<compile_context>
chip_gen: v6e
topology: v6e:2x2x1
jax: 0.10.0
libtpu: 0.0.40
codegen_flags: <defaults>
</compile_context>

<pallas_src>
import numpy as np
import jax
import jax.numpy as jnp
from jax import lax
from jax.experimental import pallas as pl
from jax.experimental.pallas import tpu as pltpu

# ---- hyperparameters (small, but shape-consistent with the module) ---------
INPUT_SIZE = 36      # LSTM feature dim == CNN output length
HIDDEN_SIZE = 32     # scaled down from 512 -> 4*H = 128 lanes (see TODO above)
NUM_CLASSES = 10
NUM_LAYERS = 2
BATCH = 2
SEQ_IN = 304         # raw 1-D signal length -> CNN produces (B, 128, 36)
BN_EPS = 1e-5
KSIZE = 9
KPAD = 16            # conv1 taps zero-padded to a full sublane multiple


# ============================ fused Pallas kernel ===========================
def _crnn_kernel(xc_ref, w1_ref, sh1_ref, w2_ref, sh2_ref, w3_ref, sh3_ref,
                 wih0_ref, b0_ref, wcomb_ref, b1_ref, wfc_ref, bfc_ref,
                 out_ref, s1, s2, s3, s4, *xgs):
    """Whole batch in one grid step: conv stack + skewed 2-layer LSTM + FC.

    xc_ref : (B, KPAD, L1)   lane-dense im2col of the padded raw signal
    w1     : (KPAD, C1)      BN-scaled conv1 weights (zero rows for pad taps)
    w2/w3  : (K*Cin, Cout)   BN-scaled conv2/3 weights, bf16
    sh*    : (1, Cout)       BN shift (includes conv bias)
    wih0   : (L3, 4H)        layer-0 input projection    b0: (1, 4H)
    wcomb  : (2H, 8H)        [[Whh0^T, Wih1^T], [0, Whh1^T]]   b1: (1, 4H)
    wfc    : (H, NC)   bfc: (1, NC)      out_ref: (B, NC)
    scratch: s1 conv1-out, s2 pooled+padded conv2-in, s3 conv2-out,
             s4 pooled+padded conv3-in, xgs[b] (T, 4H) layer-0 gate inputs.
    """
    f32 = jnp.float32
    bf16 = jnp.bfloat16
    K = KSIZE
    B = xc_ref.shape[0]
    L1, C1 = s1.shape
    P1 = L1 // 2
    pad2 = (s2.shape[0] - P1) // 2
    L2, C2 = s3.shape
    P2 = L2 // 2
    pad3 = (s4.shape[0] - P2) // 2
    T, G = xgs[0].shape
    H = G // 4
    L3 = wih0_ref.shape[0]

    # ---- zero-padding rows of the pooled buffers (written once, reused) -----
    s2[pl.ds(0, pad2), :] = jnp.zeros((pad2, C1), f32)
    s2[pl.ds(pad2 + P1, pad2), :] = jnp.zeros((pad2, C1), f32)
    s4[pl.ds(0, pad3), :] = jnp.zeros((pad3, C2), f32)
    s4[pl.ds(pad3 + P2, pad3), :] = jnp.zeros((pad3, C2), f32)

    # ===================== CNN stack (tiny next to the LSTM) =================
    for b in range(B):
        # conv1 + BN + ReLU : lane-dense (KPAD, L1) contracted over the taps.
        s1[...] = jnp.maximum(
            lax.dot_general(xc_ref[b], w1_ref[...], (((0,), (0,)), ((), ())),
                            preferred_element_type=f32) + sh1_ref[...], 0.0)

        # maxpool(2) via strided VMEM reads -> middle rows of padded conv2 in.
        s2[pl.ds(pad2, P1), :] = jnp.maximum(s1[pl.ds(0, P1, stride=2), :],
                                             s1[pl.ds(1, P1, stride=2), :])

        # conv2 + BN + ReLU : 9-tap accumulating matmuls (bf16 MXU, f32 acc).
        acc2 = None
        for k in range(K):
            term = jnp.dot(s2[pl.ds(k, L2), :].astype(bf16),
                           w2_ref[pl.ds(k * C1, C1), :],
                           preferred_element_type=f32)
            acc2 = term if acc2 is None else acc2 + term
        s3[...] = jnp.maximum(acc2 + sh2_ref[...], 0.0)

        # maxpool(2) -> padded conv3 input.
        s4[pl.ds(pad3, P2), :] = jnp.maximum(s3[pl.ds(0, P2, stride=2), :],
                                             s3[pl.ds(1, P2, stride=2), :])

        # conv3 (stride 2) + BN + ReLU : strided 9-tap accumulation.
        acc3 = None
        for k in range(K):
            term = jnp.dot(s4[pl.ds(k, L3, stride=2), :].astype(bf16),
                           w3_ref[pl.ds(k * C2, C2), :],
                           preferred_element_type=f32)
            acc3 = term if acc3 is None else acc3 + term
        a3 = jnp.maximum(acc3 + sh3_ref[...], 0.0)        # (L3=36, T=128)

        # LSTM layer-0 input projection for all T timesteps, one matmul.
        xgs[b][...] = lax.dot_general(a3, wih0_ref[...], (((0,), (0,)), ((), ())),
                                      preferred_element_type=f32) + b0_ref[...]

    # ============================ 2-layer LSTM ================================
    wc = wcomb_ref[...]                                   # (2H, 8H), lives in vregs
    b1b = jnp.broadcast_to(b1_ref[...], (B, 4 * H))       # hoisted broadcast

    def read_xt(t):
        return jnp.concatenate([xg[pl.ds(t, 1), :] for xg in xgs], axis=0)  # (B,4H)

    def fused_step(t, h0, c0, h1, c1):
        # Skewed step: layer-0(t) and layer-1(t-1).  Both read only the incoming
        # carry, so one matmul feeds both layers and their chains overlap.
        xt = read_xt(t)
        z = jnp.concatenate([h0, h1], axis=1)             # (B, 2H)
        res = jnp.dot(z, wc, preferred_element_type=jnp.float32)   # (B, 8H)
        g1 = res[:, :4 * H] + xt
        g2 = res[:, 4 * H:] + b1b
        sg1 = jax.nn.sigmoid(g1)
        tg1 = jnp.tanh(g1)
        c0n = sg1[:, H:2 * H] * c0 + sg1[:, 0:H] * tg1[:, 2 * H:3 * H]
        h0n = sg1[:, 3 * H:] * jnp.tanh(c0n)
        sg2 = jax.nn.sigmoid(g2)
        tg2 = jnp.tanh(g2)
        c1n = sg2[:, H:2 * H] * c1 + sg2[:, 0:H] * tg2[:, 2 * H:3 * H]
        h1n = sg2[:, 3 * H:] * jnp.tanh(c1n)
        return h0n, c0n, h1n, c1n

    # t = 0 : layer-0 only (zero initial state -> gates are just the projection)
    x0 = read_xt(0)
    sg0 = jax.nn.sigmoid(x0)
    tg0 = jnp.tanh(x0)
    c0 = sg0[:, 0:H] * tg0[:, 2 * H:3 * H]
    h0 = sg0[:, 3 * H:] * jnp.tanh(c0)
    zH = jnp.zeros((B, H), f32)
    carry = (h0, c0, zH, zH)

    # t = 1 .. T-2 : two skewed steps per iteration (manual 2x unroll)
    def body(i, carry):
        t = 1 + 2 * i
        carry = fused_step(t, *carry)
        return fused_step(t + 1, *carry)

    carry = lax.fori_loop(0, (T - 2) // 2, body, carry)

    # t = T-1 : layer-0(T-1) + layer-1(T-2); then layer-1(T-1) (layer-0 half of
    # the last fused step is spurious and discarded).
    carry = fused_step(T - 1, *carry)
    _, _, h1_last, _ = fused_step(T - 1, *carry)

    # ---- Linear head on the final layer-1 hidden state ----------------------
    out_ref[...] = (jnp.dot(h1_last, wfc_ref[...], preferred_element_type=f32)
                    + bfc_ref[...])


# ================================ wrappers ==================================
def _fold_bn_conv(w, b, gamma, beta, mean, var):
    """Fold eval-mode BN into conv: return (K*C_in, C_out) weights + (1,C_out) shift."""
    c_out = w.shape[0]
    scale = gamma / jnp.sqrt(var + BN_EPS)                    # (C_out,)
    w_s = w * scale[:, None, None]                            # (C_out, C_in, K)
    w_mat = jnp.transpose(w_s, (2, 1, 0)).reshape(-1, c_out)  # row = k*C_in + ci
    shift = ((b - mean) * scale + beta).reshape(1, c_out)
    return w_mat, shift


def crnn_forward(x, p):
    B, L = x.shape
    K = KSIZE
    C1, C2, C3 = 64, 128, 128
    H = HIDDEN_SIZE
    L1 = L + 2 * 4 - K + 1            # conv1 (stride 1, pad 4)
    P1 = L1 // 2                      # maxpool 2
    L2 = P1 + 2 * 4 - K + 1           # conv2 (stride 1, pad 4)
    P2 = L2 // 2                      # maxpool 2
    L3 = (P2 + 2 * 2 - K) // 2 + 1    # conv3 (stride 2, pad 2) == INPUT_SIZE
    T = C3                            # LSTM sequence length = conv3 channels
    assert L3 == INPUT_SIZE and T % 2 == 0

    # lane-dense conv1 im2col: taps on sublanes (zero-padded 9->16), length on lanes
    x_pad = jnp.pad(x, ((0, 0), (4, 4)))
    x_cols = jnp.stack([x_pad[:, k:k + L1] for k in range(K)], axis=1)   # (B,9,L1)
    x_cols = jnp.pad(x_cols, ((0, 0), (0, KPAD - K), (0, 0)))            # (B,16,L1)

    w1m, sh1 = _fold_bn_conv(p["w1"], p["b1"], p["g1"], p["bt1"], p["m1"], p["v1"])
    w1m = jnp.pad(w1m, ((0, KPAD - K), (0, 0)))                          # (16, C1)
    w2m, sh2 = _fold_bn_conv(p["w2"], p["b2"], p["g2"], p["bt2"], p["m2"], p["v2"])
    w3m, sh3 = _fold_bn_conv(p["w3"], p["b3"], p["g3"], p["bt3"], p["m3"], p["v3"])
    w2m = w2m.astype(jnp.bfloat16)          # MXU operands bf16, accumulation f32
    w3m = w3m.astype(jnp.bfloat16)

    wih0t = p["wih0"].T                                    # (36, 4H), cols i|f|g|o
    b0v = (p["bih0"] + p["bhh0"]).reshape(1, 4 * H)
    # fused recurrent weight: z=[h0|h1] -> [layer0 gates | layer1 gates]
    wcomb = jnp.concatenate(
        [jnp.concatenate([p["whh0"].T, jnp.zeros((H, 4 * H), jnp.float32)], axis=0),
         jnp.concatenate([p["wih1"].T, p["whh1"].T], axis=0)],
        axis=1)                                            # (2H, 8H)
    b1v = (p["bih1"] + p["bhh1"]).reshape(1, 4 * H)
    wfct = p["wfc"].T                                      # (H, NUM_CLASSES)
    bfcv = p["bfc"].reshape(1, NUM_CLASSES)

    return pl.pallas_call(
        _crnn_kernel,
        out_shape=jax.ShapeDtypeStruct((B, NUM_CLASSES), jnp.float32),
        grid=(1,),
        in_specs=[
            pl.BlockSpec((B, KPAD, L1), lambda i: (0, 0, 0)),    # x im2col
            pl.BlockSpec((KPAD, C1), lambda i: (0, 0)),          # conv1 W
            pl.BlockSpec((1, C1), lambda i: (0, 0)),             # conv1 shift
            pl.BlockSpec((K * C1, C2), lambda i: (0, 0)),        # conv2 W (bf16)
            pl.BlockSpec((1, C2), lambda i: (0, 0)),             # conv2 shift
            pl.BlockSpec((K * C2, C3), lambda i: (0, 0)),        # conv3 W (bf16)
            pl.BlockSpec((1, C3), lambda i: (0, 0)),             # conv3 shift
            pl.BlockSpec((L3, 4 * H), lambda i: (0, 0)),         # Wih0^T
            pl.BlockSpec((1, 4 * H), lambda i: (0, 0)),          # b0
            pl.BlockSpec((2 * H, 8 * H), lambda i: (0, 0)),      # fused LSTM weight
            pl.BlockSpec((1, 4 * H), lambda i: (0, 0)),          # b1
            pl.BlockSpec((H, NUM_CLASSES), lambda i: (0, 0)),    # Wfc^T
            pl.BlockSpec((1, NUM_CLASSES), lambda i: (0, 0)),    # bfc
        ],
        out_specs=pl.BlockSpec((B, NUM_CLASSES), lambda i: (0, 0)),
        scratch_shapes=[
            pltpu.VMEM((L1, C1), jnp.float32),            # conv1 output
            pltpu.VMEM((P1 + 2 * 4, C1), jnp.float32),    # pooled + pad-4 conv2 input
            pltpu.VMEM((L2, C2), jnp.float32),            # conv2 output
            pltpu.VMEM((P2 + 2 * 2, C2), jnp.float32),    # pooled + pad-2 conv3 input
        ] + [pltpu.VMEM((T, 4 * H), jnp.float32) for _ in range(B)],  # gate inputs
        compiler_params=pltpu.CompilerParams(
            dimension_semantics=("arbitrary",)),
    )(x_cols, w1m, sh1, w2m, sh2, w3m, sh3,
      wih0t, b0v, wcomb, b1v, wfct, bfcv)


def maxpool2(x):
    b, c, l = x.shape
    return jnp.max(x.reshape(b, c, l // 2, 2), axis=-1)


def init_params(key):
    ks = jax.random.split(key, 28)
    n = lambda k, shape, s=0.1: jax.random.normal(k, shape, jnp.float32) * s
    u = lambda k, shape: jax.random.uniform(k, shape, jnp.float32, 0.5, 1.5)
    H = HIDDEN_SIZE
    return {
        "w1": n(ks[0], (64, 1, 9)),    "b1": n(ks[1], (64,)),
        "g1": 1.0 + n(ks[2], (64,)),   "bt1": n(ks[3], (64,)),
        "m1": n(ks[4], (64,)),         "v1": u(ks[5], (64,)),
        "w2": n(ks[6], (128, 64, 9)),  "b2": n(ks[7], (128,)),
        "g2": 1.0 + n(ks[8], (128,)),  "bt2": n(ks[9], (128,)),
        "m2": n(ks[10], (128,)),       "v2": u(ks[11], (128,)),
        "w3": n(ks[12], (128, 128, 9)), "b3": n(ks[13], (128,)),
        "g3": 1.0 + n(ks[14], (128,)),  "bt3": n(ks[15], (128,)),
        "m3": n(ks[16], (128,)),        "v3": u(ks[17], (128,)),
        "wih0": n(ks[18], (4 * H, INPUT_SIZE)), "whh0": n(ks[19], (4 * H, H)),
        "bih0": n(ks[20], (4 * H,)),            "bhh0": n(ks[21], (4 * H,)),
        "wih1": n(ks[22], (4 * H, H)),          "whh1": n(ks[23], (4 * H, H)),
        "bih1": n(ks[24], (4 * H,)),            "bhh1": n(ks[25], (4 * H,)),
        "wfc": n(ks[26], (NUM_CLASSES, H)),     "bfc": n(ks[27], (NUM_CLASSES,)),
    }


# ----------------------- pure-JAX reference (for checking) ------------------
def crnn_reference(x, p):
    def conv1d(h, w, b, stride, pad):
        y = jax.lax.conv_general_dilated(
            h, w, window_strides=(stride,), padding=[(pad, pad)],
            dimension_numbers=("NCH", "OIH", "NCH"))
        return y + b[None, :, None]

    def bn(h, g, beta, m, v):
        return (g[None, :, None] * (h - m[None, :, None])
                / jnp.sqrt(v[None, :, None] + BN_EPS) + beta[None, :, None])

    h = x[:, None, :]
    h = jnp.maximum(bn(conv1d(h, p["w1"], p["b1"], 1, 4),
                       p["g1"], p["bt1"], p["m1"], p["v1"]), 0.0)
    h = maxpool2(h)
    h = jnp.maximum(bn(conv1d(h, p["w2"], p["b2"], 1, 4),
                       p["g2"], p["bt2"], p["m2"], p["v2"]), 0.0)
    h = maxpool2(h)
    h = jnp.maximum(bn(conv1d(h, p["w3"], p["b3"], 2, 2),
                       p["g3"], p["bt3"], p["m3"], p["v3"]), 0.0)

    def cell(inp, hp, cp, wih, whh, bih, bhh):
        g = inp @ wih.T + bih + hp @ whh.T + bhh
        i_g, f_g, g_g, o_g = jnp.split(g, 4, axis=-1)
        c = jax.nn.sigmoid(f_g) * cp + jax.nn.sigmoid(i_g) * jnp.tanh(g_g)
        return jax.nn.sigmoid(o_g) * jnp.tanh(c), c

    def step(carry, x_t):
        h0, c0, h1, c1 = carry
        h0, c0 = cell(x_t, h0, c0, p["wih0"], p["whh0"], p["bih0"], p["bhh0"])
        h1, c1 = cell(h0, h1, c1, p["wih1"], p["whh1"], p["bih1"], p["bhh1"])
        return (h0, c0, h1, c1), None

    init = tuple(jnp.zeros((x.shape[0], HIDDEN_SIZE), jnp.float32) for _ in range(4))
    (h0, c0, h1, c1), _ = jax.lax.scan(step, init, jnp.transpose(h, (1, 0, 2)))
    return h1 @ p["wfc"].T + p["bfc"]


if __name__ == "__main__":
    key = jax.random.PRNGKey(0)
    pkey, xkey = jax.random.split(key)
    params = init_params(pkey)
    x = jax.random.normal(xkey, (BATCH, SEQ_IN), jnp.float32)

    out = jax.block_until_ready(crnn_forward(x, params))
    assert out.shape == (BATCH, NUM_CLASSES)

    ref = jax.block_until_ready(crnn_reference(x, params))
    err = float(np.max(np.abs(np.asarray(out) - np.asarray(ref))))
    assert np.allclose(np.asarray(out), np.asarray(ref), atol=1e-2, rtol=1e-2), err

    print("KERNEL_OK")
</pallas_src>

<mosaic_0001>
module attributes {stable_mosaic.version = 11 : i64} {
  func.func @_crnn_kernel(%arg0: i32, %arg1: memref<2x16x304xf32, #tpu.memory_space<vmem>>, %arg2: memref<16x64xf32, #tpu.memory_space<vmem>>, %arg3: memref<1x64xf32, #tpu.memory_space<vmem>>, %arg4: memref<576x128xbf16, #tpu.memory_space<vmem>>, %arg5: memref<1x128xf32, #tpu.memory_space<vmem>>, %arg6: memref<1152x128xbf16, #tpu.memory_space<vmem>>, %arg7: memref<1x128xf32, #tpu.memory_space<vmem>>, %arg8: memref<36x128xf32, #tpu.memory_space<vmem>>, %arg9: memref<1x128xf32, #tpu.memory_space<vmem>>, %arg10: memref<64x256xf32, #tpu.memory_space<vmem>>, %arg11: memref<1x128xf32, #tpu.memory_space<vmem>>, %arg12: memref<32x10xf32, #tpu.memory_space<vmem>>, %arg13: memref<1x10xf32, #tpu.memory_space<vmem>>, %arg14: memref<2x10xf32, #tpu.memory_space<vmem>>, %arg15: memref<304x64xf32, #tpu.memory_space<vmem>>, %arg16: memref<160x64xf32, #tpu.memory_space<vmem>>, %arg17: memref<152x128xf32, #tpu.memory_space<vmem>>, %arg18: memref<80x128xf32, #tpu.memory_space<vmem>>, %arg19: memref<128x128xf32, #tpu.memory_space<vmem>>, %arg20: memref<128x128xf32, #tpu.memory_space<vmem>>) attributes {dimension_semantics = [#tpu.dimension_semantics<arbitrary>], iteration_bounds = array<i64: 1>, scalar_prefetch = 0 : i64, scratch_operands = 6 : i64, tpu.core_type = #tpu.core_type<tc>, window_params = [{pipeline_mode = #tpu.pipeline_mode<synchronous>, transform_indices = @transform_0, window_bounds = array<i64: 2, 16, 304>}, {pipeline_mode = #tpu.pipeline_mode<synchronous>, transform_indices = @transform_1, window_bounds = array<i64: 16, 64>}, {pipeline_mode = #tpu.pipeline_mode<synchronous>, transform_indices = @transform_2, window_bounds = array<i64: 1, 64>}, {pipeline_mode = #tpu.pipeline_mode<synchronous>, transform_indices = @transform_3, window_bounds = array<i64: 576, 128>}, {pipeline_mode = #tpu.pipeline_mode<synchronous>, transform_indices = @transform_4, window_bounds = array<i64: 1, 128>}, {pipeline_mode = #tpu.pipeline_mode<synchronous>, transform_indices = @transform_5, window_bounds = array<i64: 1152, 128>}, {pipeline_mode = #tpu.pipeline_mode<synchronous>, transform_indices = @transform_6, window_bounds = array<i64: 1, 128>}, {pipeline_mode = #tpu.pipeline_mode<synchronous>, transform_indices = @transform_7, window_bounds = array<i64: 36, 128>}, {pipeline_mode = #tpu.pipeline_mode<synchronous>, transform_indices = @transform_8, window_bounds = array<i64: 1, 128>}, {pipeline_mode = #tpu.pipeline_mode<synchronous>, transform_indices = @transform_9, window_bounds = array<i64: 64, 256>}, {pipeline_mode = #tpu.pipeline_mode<synchronous>, transform_indices = @transform_10, window_bounds = array<i64: 1, 128>}, {pipeline_mode = #tpu.pipeline_mode<synchronous>, transform_indices = @transform_11, window_bounds = array<i64: 32, 10>}, {pipeline_mode = #tpu.pipeline_mode<synchronous>, transform_indices = @transform_12, window_bounds = array<i64: 1, 10>}, {pipeline_mode = #tpu.pipeline_mode<synchronous>, transform_indices = @transform_13, window_bounds = array<i64: 2, 10>}]} {
    %cst = arith.constant 0.000000e+00 : f32
    %0 = vector.broadcast %cst : f32 to vector<4x64xf32>
    %c0 = arith.constant 0 : index
    %c0_0 = arith.constant 0 : index
    %1 = vector.load %arg16[%c0, %c0_0] : memref<160x64xf32, #tpu.memory_space<vmem>>, vector<4x64xf32>
    tpu.vector_store %arg16[%c0, %c0_0], %0 {strides = array<i32>} : memref<160x64xf32, #tpu.memory_space<vmem>>, vector<4x64xf32>,
    %cst_1 = arith.constant 0.000000e+00 : f32
    %2 = vector.broadcast %cst_1 : f32 to vector<4x64xf32>
    %c156 = arith.constant 156 : index
    %c0_2 = arith.constant 0 : index
    %3 = vector.load %arg16[%c156, %c0_2] : memref<160x64xf32, #tpu.memory_space<vmem>>, vector<4x64xf32>
    tpu.vector_store %arg16[%c156, %c0_2], %2 {strides = array<i32>} : memref<160x64xf32, #tpu.memory_space<vmem>>, vector<4x64xf32>,
    %cst_3 = arith.constant 0.000000e+00 : f32
    %4 = vector.broadcast %cst_3 : f32 to vector<2x128xf32>
    %c0_4 = arith.constant 0 : index
    %c0_5 = arith.constant 0 : index
    %5 = vector.load %arg18[%c0_4, %c0_5] : memref<80x128xf32, #tpu.memory_space<vmem>>, vector<2x128xf32>
    tpu.vector_store %arg18[%c0_4, %c0_5], %4 {strides = array<i32>} : memref<80x128xf32, #tpu.memory_space<vmem>>, vector<2x128xf32>,
    %cst_6 = arith.constant 0.000000e+00 : f32
    %6 = vector.broadcast %cst_6 : f32 to vector<2x128xf32>
    %c78 = arith.constant 78 : index
    %c0_7 = arith.constant 0 : index
    %7 = vector.load %arg18[%c78, %c0_7] : memref<80x128xf32, #tpu.memory_space<vmem>>, vector<2x128xf32>
    tpu.vector_store %arg18[%c78, %c0_7], %6 {strides = array<i32>} : memref<80x128xf32, #tpu.memory_space<vmem>>, vector<2x128xf32>,
    %c0_8 = arith.constant 0 : index
    %c0_9 = arith.constant 0 : index
    %c0_10 = arith.constant 0 : index
    %8 = vector.load %arg1[%c0_8, %c0_9, %c0_10] : memref<2x16x304xf32, #tpu.memory_space<vmem>>, vector<1x16x304xf32>
    %9 = vector.shape_cast %8 : vector<1x16x304xf32> to vector<16x304xf32>
    %c0_11 = arith.constant 0 : index
    %c0_12 = arith.constant 0 : index
    %10 = vector.load %arg2[%c0_11, %c0_12] : memref<16x64xf32, #tpu.memory_space<vmem>>, vector<16x64xf32>
    %cst_13 = arith.constant dense<0.000000e+00> : vector<304x64xf32>
    %11 = tpu.matmul %9, %10, %cst_13 {dimension_numbers = #tpu.dot_dimension_numbers<[0], [0], [1], [1], [0, 1, 1, 1], [], []>} : vector<16x304xf32>, vector<16x64xf32>, vector<304x64xf32> -> vector<304x64xf32>
    %c0_14 = arith.constant 0 : index
    %c0_15 = arith.constant 0 : index
    %12 = vector.load %arg3[%c0_14, %c0_15] : memref<1x64xf32, #tpu.memory_space<vmem>>, vector<1x64xf32>
    %13 = vector.broadcast %12 : vector<1x64xf32> to vector<304x64xf32>
    %14 = arith.addf %11, %13 : vector<304x64xf32>
    %cst_16 = arith.constant 0.000000e+00 : f32
    %15 = vector.broadcast %cst_16 : f32 to vector<304x64xf32>
    %16 = arith.maximumf %14, %15 : vector<304x64xf32>
    %c0_17 = arith.constant 0 : index
    %c0_18 = arith.constant 0 : index
    %17 = vector.load %arg15[%c0_17, %c0_18] : memref<304x64xf32, #tpu.memory_space<vmem>>, vector<304x64xf32>
    tpu.vector_store %arg15[%c0_17, %c0_18], %16 {strides = array<i32>} : memref<304x64xf32, #tpu.memory_space<vmem>>, vector<304x64xf32>,
    %c0_19 = arith.constant 0 : index
    %c0_20 = arith.constant 0 : index
    %18 = tpu.strided_load %arg15[%c0_19, %c0_20] {strides = array<i32: 2, 1>} : memref<304x64xf32, #tpu.memory_space<vmem>>, vector<152x64xf32>
    %c1 = arith.constant 1 : index
    %c0_21 = arith.constant 0 : index
    %19 = tpu.strided_load %arg15[%c1, %c0_21] {strides = array<i32: 2, 1>} : memref<304x64xf32, #tpu.memory_space<vmem>>, vector<152x64xf32>
    %20 = arith.maximumf %18, %19 : vector<152x64xf32>
    %c4 = arith.constant 4 : index
    %c0_22 = arith.constant 0 : index
    %21 = vector.load %arg16[%c4, %c0_22] : memref<160x64xf32, #tpu.memory_space<vmem>>, vector<152x64xf32>
    tpu.vector_store %arg16[%c4, %c0_22], %20 {strides = array<i32>} : memref<160x64xf32, #tpu.memory_space<vmem>>, vector<152x64xf32>,
    %c0_23 = arith.constant 0 : index
    %c0_24 = arith.constant 0 : index
    %22 = vector.load %arg16[%c0_23, %c0_24] : memref<160x64xf32, #tpu.memory_space<vmem>>, vector<152x64xf32>
    %23 = arith.truncf %22 : vector<152x64xf32> to vector<152x64xbf16>
    %c0_25 = arith.constant 0 : index
    %c0_26 = arith.constant 0 : index
    %24 = vector.load %arg4[%c0_25, %c0_26] : memref<576x128xbf16, #tpu.memory_space<vmem>>, vector<64x128xbf16>
    %cst_27 = arith.constant dense<0.000000e+00> : vector<152x128xf32>
    %25 = tpu.matmul %23, %24, %cst_27 {dimension_numbers = #tpu.dot_dimension_numbers<[1], [0], [0], [1], [0, 0, 1, 1], [], []>} : vector<152x64xbf16>, vector<64x128xbf16>, vector<152x128xf32> -> vector<152x128xf32>
    %c1_28 = arith.constant 1 : index
    %c0_29 = arith.constant 0 : index
    %26 = vector.load %arg16[%c1_28, %c0_29] : memref<160x64xf32, #tpu.memory_space<vmem>>, vector<152x64xf32>
    %27 = arith.truncf %26 : vector<152x64xf32> to vector<152x64xbf16>
    %c64 = arith.constant 64 : index
    %c0_30 = arith.constant 0 : index
    %28 = vector.load %arg4[%c64, %c0_30] : memref<576x128xbf16, #tpu.memory_space<vmem>>, vector<64x128xbf16>
    %cst_31 = arith.constant dense<0.000000e+00> : vector<152x128xf32>
    %29 = tpu.matmul %27, %28, %cst_31 {dimension_numbers = #tpu.dot_dimension_numbers<[1], [0], [0], [1], [0, 0, 1, 1], [], []>} : vector<152x64xbf16>, vector<64x128xbf16>, vector<152x128xf32> -> vector<152x128xf32>
    %30 = arith.addf %25, %29 : vector<152x128xf32>
    %c2 = arith.constant 2 : index
    %c0_32 = arith.constant 0 : index
    %31 = vector.load %arg16[%c2, %c0_32] : memref<160x64xf32, #tpu.memory_space<vmem>>, vector<152x64xf32>
    %32 = arith.truncf %31 : vector<152x64xf32> to vector<152x64xbf16>
    %c128 = arith.constant 128 : index
    %c0_33 = arith.constant 0 : index
    %33 = vector.load %arg4[%c128, %c0_33] : memref<576x128xbf16, #tpu.memory_space<vmem>>, vector<64x128xbf16>
    %cst_34 = arith.constant dense<0.000000e+00> : vector<152x128xf32>
    %34 = tpu.matmul %32, %33, %cst_34 {dimension_numbers = #tpu.dot_dimension_numbers<[1], [0], [0], [1], [0, 0, 1, 1], [], []>} : vector<152x64xbf16>, vector<64x128xbf16>, vector<152x128xf32> -> vector<152x128xf32>
    %35 = arith.addf %30, %34 : vector<152x128xf32>
    %c3 = arith.constant 3 : index
    %c0_35 = arith.constant 0 : index
    %36 = vector.load %arg16[%c3, %c0_35] : memref<160x64xf32, #tpu.memory_space<vmem>>, vector<152x64xf32>
    %37 = arith.truncf %36 : vector<152x64xf32> to vector<152x64xbf16>
    %c192 = arith.constant 192 : index
    %c0_36 = arith.constant 0 : index
    %38 = vector.load %arg4[%c192, %c0_36] : memref<576x128xbf16, #tpu.memory_space<vmem>>, vector<64x128xbf16>
    %cst_37 = arith.constant dense<0.000000e+00> : vector<152x128xf32>
    %39 = tpu.matmul %37, %38, %cst_37 {dimension_numbers = #tpu.dot_dimension_numbers<[1], [0], [0], [1], [0, 0, 1, 1], [], []>} : vector<152x64xbf16>, vector<64x128xbf16>, vector<152x128xf32> -> vector<152x128xf32>
    %40 = arith.addf %35, %39 : vector<152x128xf32>
    %c4_38 = arith.constant 4 : index
    %c0_39 = arith.constant 0 : index
    %41 = vector.load %arg16[%c4_38, %c0_39] : memref<160x64xf32, #tpu.memory_space<vmem>>, vector<152x64xf32>
    %42 = arith.truncf %41 : vector<152x64xf32> to vector<152x64xbf16>
    %c256 = arith.constant 256 : index
    %c0_40 = arith.constant 0 : index
    %43 = vector.load %arg4[%c256, %c0_40] : memref<576x128xbf16, #tpu.memory_space<vmem>>, vector<64x128xbf16>
    %cst_41 = arith.constant dense<0.000000e+00> : vector<152x128xf32>
    %44 = tpu.matmul %42, %43, %cst_41 {dimension_numbers = #tpu.dot_dimension_numbers<[1], [0], [0], [1], [0, 0, 1, 1], [], []>} : vector<152x64xbf16>, vector<64x128xbf16>, vector<152x128xf32> -> vector<152x128xf32>
    %45 = arith.addf %40, %44 : vector<152x128xf32>
    %c5 = arith.constant 5 : index
    %c0_42 = arith.constant 0 : index
    %46 = vector.load %arg16[%c5, %c0_42] : memref<160x64xf32, #tpu.memory_space<vmem>>, vector<152x64xf32>
    %47 = arith.truncf %46 : vector<152x64xf32> to vector<152x64xbf16>
    %c320 = arith.constant 320 : index
    %c0_43 = arith.constant 0 : index
    %48 = vector.load %arg4[%c320, %c0_43] : memref<576x128xbf16, #tpu.memory_space<vmem>>, vector<64x128xbf16>
    %cst_44 = arith.constant dense<0.000000e+00> : vector<152x128xf32>
    %49 = tpu.matmul %47, %48, %cst_44 {dimension_numbers = #tpu.dot_dimension_numbers<[1], [0], [0], [1], [0, 0, 1, 1], [], []>} : vector<152x64xbf16>, vector<64x128xbf16>, vector<152x128xf32> -> vector<152x128xf32>
    %50 = arith.addf %45, %49 : vector<152x128xf32>
    %c6 = arith.constant 6 : index
    %c0_45 = arith.constant 0 : index
    %51 = vector.load %arg16[%c6, %c0_45] : memref<160x64xf32, #tpu.memory_space<vmem>>, vector<152x64xf32>
    %52 = arith.truncf %51 : vector<152x64xf32> to vector<152x64xbf16>
    %c384 = arith.constant 384 : index
    %c0_46 = arith.constant 0 : index
    %53 = vector.load %arg4[%c384, %c0_46] : memref<576x128xbf16, #tpu.memory_space<vmem>>, vector<64x128xbf16>
    %cst_47 = arith.constant dense<0.000000e+00> : vector<152x128xf32>
    %54 = tpu.matmul %52, %53, %cst_47 {dimension_numbers = #tpu.dot_dimension_numbers<[1], [0], [0], [1], [0, 0, 1, 1], [], []>} : vector<152x64xbf16>, vector<64x128xbf16>, vector<152x128xf32> -> vector<152x128xf32>
    %55 = arith.addf %50, %54 : vector<152x128xf32>
    %c7 = arith.constant 7 : index
    %c0_48 = arith.constant 0 : index
    %56 = vector.load %arg16[%c7, %c0_48] : memref<160x64xf32, #tpu.memory_space<vmem>>, vector<152x64xf32>
    %57 = arith.truncf %56 : vector<152x64xf32> to vector<152x64xbf16>
    %c448 = arith.constant 448 : index
    %c0_49 = arith.constant 0 : index
    %58 = vector.load %arg4[%c448, %c0_49] : memref<576x128xbf16, #tpu.memory_space<vmem>>, vector<64x128xbf16>
    %cst_50 = arith.constant dense<0.000000e+00> : vector<152x128xf32>
    %59 = tpu.matmul %57, %58, %cst_50 {dimension_numbers = #tpu.dot_dimension_numbers<[1], [0], [0], [1], [0, 0, 1, 1], [], []>} : vector<152x64xbf16>, vector<64x128xbf16>, vector<152x128xf32> -> vector<152x128xf32>
    %60 = arith.addf %55, %59 : vector<152x128xf32>
    %c8 = arith.constant 8 : index
    %c0_51 = arith.constant 0 : index
    %61 = vector.load %arg16[%c8, %c0_51] : memref<160x64xf32, #tpu.memory_space<vmem>>, vector<152x64xf32>
    %62 = arith.truncf %61 : vector<152x64xf32> to vector<152x64xbf16>
    %c512 = arith.constant 512 : index
    %c0_52 = arith.constant 0 : index
    %63 = vector.load %arg4[%c512, %c0_52] : memref<576x128xbf16, #tpu.memory_space<vmem>>, vector<64x128xbf16>
    %cst_53 = arith.constant dense<0.000000e+00> : vector<152x128xf32>
    %64 = tpu.matmul %62, %63, %cst_53 {dimension_numbers = #tpu.dot_dimension_numbers<[1], [0], [0], [1], [0, 0, 1, 1], [], []>} : vector<152x64xbf16>, vector<64x128xbf16>, vector<152x128xf32> -> vector<152x128xf32>
    %65 = arith.addf %60, %64 : vector<152x128xf32>
    %c0_54 = arith.constant 0 : index
    %c0_55 = arith.constant 0 : index
    %66 = vector.load %arg5[%c0_54, %c0_55] : memref<1x128xf32, #tpu.memory_space<vmem>>, vector<1x128xf32>
    %67 = vector.broadcast %66 : vector<1x128xf32> to vector<152x128xf32>
    %68 = arith.addf %65, %67 : vector<152x128xf32>
    %cst_56 = arith.constant 0.000000e+00 : f32
    %69 = vector.broadcast %cst_56 : f32 to vector<152x128xf32>
    %70 = arith.maximumf %68, %69 : vector<152x128xf32>
    %c0_57 = arith.constant 0 : index
    %c0_58 = arith.constant 0 : index
    %71 = vector.load %arg17[%c0_57, %c0_58] : memref<152x128xf32, #tpu.memory_space<vmem>>, vector<152x128xf32>
    tpu.vector_store %arg17[%c0_57, %c0_58], %70 {strides = array<i32>} : memref<152x128xf32, #tpu.memory_space<vmem>>, vector<152x128xf32>,
    %c0_59 = arith.constant 0 : index
    %c0_60 = arith.constant 0 : index
    %72 = tpu.strided_load %arg17[%c0_59, %c0_60] {strides = array<i32: 2, 1>} : memref<152x128xf32, #tpu.memory_space<vmem>>, vector<76x128xf32>
    %c1_61 = arith.constant 1 : index
    %c0_62 = arith.constant 0 : index
    %73 = tpu.strided_load %arg17[%c1_61, %c0_62] {strides = array<i32: 2, 1>} : memref<152x128xf32, #tpu.memory_space<vmem>>, vector<76x128xf32>
    %74 = arith.maximumf %72, %73 : vector<76x128xf32>
    %c2_63 = arith.constant 2 : index
    %c0_64 = arith.constant 0 : index
    %75 = vector.load %arg18[%c2_63, %c0_64] : memref<80x128xf32, #tpu.memory_space<vmem>>, vector<76x128xf32>
    tpu.vector_store %arg18[%c2_63, %c0_64], %74 {strides = array<i32>} : memref<80x128xf32, #tpu.memory_space<vmem>>, vector<76x128xf32>,
    %c0_65 = arith.constant 0 : index
    %c0_66 = arith.constant 0 : index
    %76 = tpu.strided_load %arg18[%c0_65, %c0_66] {strides = array<i32: 2, 1>} : memref<80x128xf32, #tpu.memory_space<vmem>>, vector<36x128xf32>
    %77 = arith.truncf %76 : vector<36x128xf32> to vector<36x128xbf16>
    %c0_67 = arith.constant 0 : index
    %c0_68 = arith.constant 0 : index
    %78 = vector.load %arg6[%c0_67, %c0_68] : memref<1152x128xbf16, #tpu.memory_space<vmem>>, vector<128x128xbf16>
    %cst_69 = arith.constant dense<0.000000e+00> : vector<36x128xf32>
    %79 = tpu.matmul %77, %78, %cst_69 {dimension_numbers = #tpu.dot_dimension_numbers<[1], [0], [0], [1], [0, 0, 1, 1], [], []>} : vector<36x128xbf16>, vector<128x128xbf16>, vector<36x128xf32> -> vector<36x128xf32>
    %c1_70 = arith.constant 1 : index
    %c0_71 = arith.constant 0 : index
    %80 = tpu.strided_load %arg18[%c1_70, %c0_71] {strides = array<i32: 2, 1>} : memref<80x128xf32, #tpu.memory_space<vmem>>, vector<36x128xf32>
    %81 = arith.truncf %80 : vector<36x128xf32> to vector<36x128xbf16>
    %c128_72 = arith.constant 128 : index
    %c0_73 = arith.constant 0 : index
    %82 = vector.load %arg6[%c128_72, %c0_73] : memref<1152x128xbf16, #tpu.memory_space<vmem>>, vector<128x128xbf16>
    %cst_74 = arith.constant dense<0.000000e+00> : vector<36x128xf32>
    %83 = tpu.matmul %81, %82, %cst_74 {dimension_numbers = #tpu.dot_dimension_numbers<[1], [0], [0], [1], [0, 0, 1, 1], [], []>} : vector<36x128xbf16>, vector<128x128xbf16>, vector<36x128xf32> -> vector<36x128xf32>
    %84 = arith.addf %79, %83 : vector<36x128xf32>
    %c2_75 = arith.constant 2 : index
    %c0_76 = arith.constant 0 : index
    %85 = tpu.strided_load %arg18[%c2_75, %c0_76] {strides = array<i32: 2, 1>} : memref<80x128xf32, #tpu.memory_space<vmem>>, vector<36x128xf32>
    %86 = arith.truncf %85 : vector<36x128xf32> to vector<36x128xbf16>
    %c256_77 = arith.constant 256 : index
    %c0_78 = arith.constant 0 : index
    %87 = vector.load %arg6[%c256_77, %c0_78] : memref<1152x128xbf16, #tpu.memory_space<vmem>>, vector<128x128xbf16>
    %cst_79 = arith.constant dense<0.000000e+00> : vector<36x128xf32>
    %88 = tpu.matmul %86, %87, %cst_79 {dimension_numbers = #tpu.dot_dimension_numbers<[1], [0], [0], [1], [0, 0, 1, 1], [], []>} : vector<36x128xbf16>, vector<128x128xbf16>, vector<36x128xf32> -> vector<36x128xf32>
    %89 = arith.addf %84, %88 : vector<36x128xf32>
    %c3_80 = arith.constant 3 : index
    %c0_81 = arith.constant 0 : index
    %90 = tpu.strided_load %arg18[%c3_80, %c0_81] {strides = array<i32: 2, 1>} : memref<80x128xf32, #tpu.memory_space<vmem>>, vector<36x128xf32>
    %91 = arith.truncf %90 : vector<36x128xf32> to vector<36x128xbf16>
    %c384_82 = arith.constant 384 : index
    %c0_83 = arith.constant 0 : index
    %92 = vector.load %arg6[%c384_82, %c0_83] : memref<1152x128xbf16, #tpu.memory_space<vmem>>, vector<128x128xbf16>
    %cst_84 = arith.constant dense<0.000000e+00> : vector<36x128xf32>
    %93 = tpu.matmul %91, %92, %cst_84 {dimension_numbers = #tpu.dot_dimension_numbers<[1], [0], [0], [1], [0, 0, 1, 1], [], []>} : vector<36x128xbf16>, vector<128x128xbf16>, vector<36x128xf32> -> vector<36x128xf32>
    %94 = arith.addf %89, %93 : vector<36x128xf32>
    %c4_85 = arith.constant 4 : index
    %c0_86 = arith.constant 0 : index
    %95 = tpu.strided_load %arg18[%c4_85, %c0_86] {strides = array<i32: 2, 1>} : memref<80x128xf32, #tpu.memory_space<vmem>>, vector<36x128xf32>
    %96 = arith.truncf %95 : vector<36x128xf32> to vector<36x128xbf16>
    %c512_87 = arith.constant 512 : index
    %c0_88 = arith.constant 0 : index
    %97 = vector.load %arg6[%c512_87, %c0_88] : memref<1152x128xbf16, #tpu.memory_space<vmem>>, vector<128x128xbf16>
    %cst_89 = arith.constant dense<0.000000e+00> : vector<36x128xf32>
    %98 = tpu.matmul %96, %97, %cst_89 {dimension_numbers = #tpu.dot_dimension_numbers<[1], [0], [0], [1], [0, 0, 1, 1], [], []>} : vector<36x128xbf16>, vector<128x128xbf16>, vector<36x128xf32> -> vector<36x128xf32>
    %99 = arith.addf %94, %98 : vector<36x128xf32>
    %c5_90 = arith.constant 5 : index
    %c0_91 = arith.constant 0 : index
    %100 = tpu.strided_load %arg18[%c5_90, %c0_91] {strides = array<i32: 2, 1>} : memref<80x128xf32, #tpu.memory_space<vmem>>, vector<36x128xf32>
    %101 = arith.truncf %100 : vector<36x128xf32> to vector<36x128xbf16>
    %c640 = arith.constant 640 : index
    %c0_92 = arith.constant 0 : index
    %102 = vector.load %arg6[%c640, %c0_92] : memref<1152x128xbf16, #tpu.memory_space<vmem>>, vector<128x128xbf16>
    %cst_93 = arith.constant dense<0.000000e+00> : vector<36x128xf32>
    %103 = tpu.matmul %101, %102, %cst_93 {dimension_numbers = #tpu.dot_dimension_numbers<[1], [0], [0], [1], [0, 0, 1, 1], [], []>} : vector<36x128xbf16>, vector<128x128xbf16>, vector<36x128xf32> -> vector<36x128xf32>
    %104 = arith.addf %99, %103 : vector<36x128xf32>
    %c6_94 = arith.constant 6 : index
    %c0_95 = arith.constant 0 : index
    %105 = tpu.strided_load %arg18[%c6_94, %c0_95] {strides = array<i32: 2, 1>} : memref<80x128xf32, #tpu.memory_space<vmem>>, vector<36x128xf32>
    %106 = arith.truncf %105 : vector<36x128xf32> to vector<36x128xbf16>
    %c768 = arith.constant 768 : index
    %c0_96 = arith.constant 0 : index
    %107 = vector.load %arg6[%c768, %c0_96] : memref<1152x128xbf16, #tpu.memory_space<vmem>>, vector<128x128xbf16>
    %cst_97 = arith.constant dense<0.000000e+00> : vector<36x128xf32>
    %108 = tpu.matmul %106, %107, %cst_97 {dimension_numbers = #tpu.dot_dimension_numbers<[1], [0], [0], [1], [0, 0, 1, 1], [], []>} : vector<36x128xbf16>, vector<128x128xbf16>, vector<36x128xf32> -> vector<36x128xf32>
    %109 = arith.addf %104, %108 : vector<36x128xf32>
    %c7_98 = arith.constant 7 : index
    %c0_99 = arith.constant 0 : index
    %110 = tpu.strided_load %arg18[%c7_98, %c0_99] {strides = array<i32: 2, 1>} : memref<80x128xf32, #tpu.memory_space<vmem>>, vector<36x128xf32>
    %111 = arith.truncf %110 : vector<36x128xf32> to vector<36x128xbf16>
    %c896 = arith.constant 896 : index
    %c0_100 = arith.constant 0 : index
    %112 = vector.load %arg6[%c896, %c0_100] : memref<1152x128xbf16, #tpu.memory_space<vmem>>, vector<128x128xbf16>
    %cst_101 = arith.constant dense<0.000000e+00> : vector<36x128xf32>
    %113 = tpu.matmul %111, %112, %cst_101 {dimension_numbers = #tpu.dot_dimension_numbers<[1], [0], [0], [1], [0, 0, 1, 1], [], []>} : vector<36x128xbf16>, vector<128x128xbf16>, vector<36x128xf32> -> vector<36x128xf32>
    %114 = arith.addf %109, %113 : vector<36x128xf32>
    %c8_102 = arith.constant 8 : index
    %c0_103 = arith.constant 0 : index
    %115 = tpu.strided_load %arg18[%c8_102, %c0_103] {strides = array<i32: 2, 1>} : memref<80x128xf32, #tpu.memory_space<vmem>>, vector<36x128xf32>
    %116 = arith.truncf %115 : vector<36x128xf32> to vector<36x128xbf16>
    %c1024 = arith.constant 1024 : index
    %c0_104 = arith.constant 0 : index
    %117 = vector.load %arg6[%c1024, %c0_104] : memref<1152x128xbf16, #tpu.memory_space<vmem>>, vector<128x128xbf16>
    %cst_105 = arith.constant dense<0.000000e+00> : vector<36x128xf32>
    %118 = tpu.matmul %116, %117, %cst_105 {dimension_numbers = #tpu.dot_dimension_numbers<[1], [0], [0], [1], [0, 0, 1, 1], [], []>} : vector<36x128xbf16>, vector<128x128xbf16>, vector<36x128xf32> -> vector<36x128xf32>
    %119 = arith.addf %114, %118 : vector<36x128xf32>
    %c0_106 = arith.constant 0 : index
    %c0_107 = arith.constant 0 : index
    %120 = vector.load %arg7[%c0_106, %c0_107] : memref<1x128xf32, #tpu.memory_space<vmem>>, vector<1x128xf32>
    %121 = vector.broadcast %120 : vector<1x128xf32> to vector<36x128xf32>
    %122 = arith.addf %119, %121 : vector<36x128xf32>
    %cst_108 = arith.constant 0.000000e+00 : f32
    %123 = vector.broadcast %cst_108 : f32 to vector<36x128xf32>
    %124 = arith.maximumf %122, %123 : vector<36x128xf32>
    %c0_109 = arith.constant 0 : index
    %c0_110 = arith.constant 0 : index
    %125 = vector.load %arg8[%c0_109, %c0_110] : memref<36x128xf32, #tpu.memory_space<vmem>>, vector<36x128xf32>
    %cst_111 = arith.constant dense<0.000000e+00> : vector<128x128xf32>
    %126 = tpu.matmul %124, %125, %cst_111 {dimension_numbers = #tpu.dot_dimension_numbers<[0], [0], [1], [1], [0, 1, 1, 1], [], []>} : vector<36x128xf32>, vector<36x128xf32>, vector<128x128xf32> -> vector<128x128xf32>
    %c0_112 = arith.constant 0 : index
    %c0_113 = arith.constant 0 : index
    %127 = vector.load %arg9[%c0_112, %c0_113] : memref<1x128xf32, #tpu.memory_space<vmem>>, vector<1x128xf32>
    %128 = vector.broadcast %127 : vector<1x128xf32> to vector<128x128xf32>
    %129 = arith.addf %126, %128 : vector<128x128xf32>
    %c0_114 = arith.constant 0 : index
    %c0_115 = arith.constant 0 : index
    %130 = vector.load %arg19[%c0_114, %c0_115] : memref<128x128xf32, #tpu.memory_space<vmem>>, vector<128x128xf32>
    tpu.vector_store %arg19[%c0_114, %c0_115], %129 {strides = array<i32>} : memref<128x128xf32, #tpu.memory_space<vmem>>, vector<128x128xf32>,
    %c1_116 = arith.constant 1 : index
    %c0_117 = arith.constant 0 : index
    %c0_118 = arith.constant 0 : index
    %131 = vector.load %arg1[%c1_116, %c0_117, %c0_118] : memref<2x16x304xf32, #tpu.memory_space<vmem>>, vector<1x16x304xf32>
    %132 = vector.shape_cast %131 : vector<1x16x304xf32> to vector<16x304xf32>
    %c0_119 = arith.constant 0 : index
    %c0_120 = arith.constant 0 : index
    %133 = vector.load %arg2[%c0_119, %c0_120] : memref<16x64xf32, #tpu.memory_space<vmem>>, vector<16x64xf32>
    %cst_121 = arith.constant dense<0.000000e+00> : vector<304x64xf32>
    %134 = tpu.matmul %132, %133, %cst_121 {dimension_numbers = #tpu.dot_dimension_numbers<[0], [0], [1], [1], [0, 1, 1, 1], [], []>} : vector<16x304xf32>, vector<16x64xf32>, vector<304x64xf32> -> vector<304x64xf32>
    %c0_122 = arith.constant 0 : index
    %c0_123 = arith.constant 0 : index
    %135 = vector.load %arg3[%c0_122, %c0_123] : memref<1x64xf32, #tpu.memory_space<vmem>>, vector<1x64xf32>
    %136 = vector.broadcast %135 : vector<1x64xf32> to vector<304x64xf32>
    %137 = arith.addf %134, %136 : vector<304x64xf32>
    %cst_124 = arith.constant 0.000000e+00 : f32
    %138 = vector.broadcast %cst_124 : f32 to vector<304x64xf32>
    %139 = arith.maximumf %137, %138 : vector<304x64xf32>
    %c0_125 = arith.constant 0 : index
    %c0_126 = arith.constant 0 : index
    %140 = vector.load %arg15[%c0_125, %c0_126] : memref<304x64xf32, #tpu.memory_space<vmem>>, vector<304x64xf32>
    tpu.vector_store %arg15[%c0_125, %c0_126], %139 {strides = array<i32>} : memref<304x64xf32, #tpu.memory_space<vmem>>, vector<304x64xf32>,
    %c0_127 = arith.constant 0 : index
    %c0_128 = arith.constant 0 : index
    %141 = tpu.strided_load %arg15[%c0_127, %c0_128] {strides = array<i32: 2, 1>} : memref<304x64xf32, #tpu.memory_space<vmem>>, vector<152x64xf32>
    %c1_129 = arith.constant 1 : index
    %c0_130 = arith.constant 0 : index
    %142 = tpu.strided_load %arg15[%c1_129, %c0_130] {strides = array<i32: 2, 1>} : memref<304x64xf32, #tpu.memory_space<vmem>>, vector<152x64xf32>
    %143 = arith.maximumf %141, %142 : vector<152x64xf32>
    %c4_131 = arith.constant 4 : index
    %c0_132 = arith.constant 0 : index
    %144 = vector.load %arg16[%c4_131, %c0_132] : memref<160x64xf32, #tpu.memory_space<vmem>>, vector<152x64xf32>
    tpu.vector_store %arg16[%c4_131, %c0_132], %143 {strides = array<i32>} : memref<160x64xf32, #tpu.memory_space<vmem>>, vector<152x64xf32>,
    %c0_133 = arith.constant 0 : index
    %c0_134 = arith.constant 0 : index
    %145 = vector.load %arg16[%c0_133, %c0_134] : memref<160x64xf32, #tpu.memory_space<vmem>>, vector<152x64xf32>
    %146 = arith.truncf %145 : vector<152x64xf32> to vector<152x64xbf16>
    %c0_135 = arith.constant 0 : index
    %c0_136 = arith.constant 0 : index
    %147 = vector.load %arg4[%c0_135, %c0_136] : memref<576x128xbf16, #tpu.memory_space<vmem>>, vector<64x128xbf16>
    %cst_137 = arith.constant dense<0.000000e+00> : vector<152x128xf32>
    %148 = tpu.matmul %146, %147, %cst_137 {dimension_numbers = #tpu.dot_dimension_numbers<[1], [0], [0], [1], [0, 0, 1, 1], [], []>} : vector<152x64xbf16>, vector<64x128xbf16>, vector<152x128xf32> -> vector<152x128xf32>
    %c1_138 = arith.constant 1 : index
    %c0_139 = arith.constant 0 : index
    %149 = vector.load %arg16[%c1_138, %c0_139] : memref<160x64xf32, #tpu.memory_space<vmem>>, vector<152x64xf32>
    %150 = arith.truncf %149 : vector<152x64xf32> to vector<152x64xbf16>
    %c64_140 = arith.constant 64 : index
    %c0_141 = arith.constant 0 : index
    %151 = vector.load %arg4[%c64_140, %c0_141] : memref<576x128xbf16, #tpu.memory_space<vmem>>, vector<64x128xbf16>
    %cst_142 = arith.constant dense<0.000000e+00> : vector<152x128xf32>
    %152 = tpu.matmul %150, %151, %cst_142 {dimension_numbers = #tpu.dot_dimension_numbers<[1], [0], [0], [1], [0, 0, 1, 1], [], []>} : vector<152x64xbf16>, vector<64x128xbf16>, vector<152x128xf32> -> vector<152x128xf32>
    %153 = arith.addf %148, %152 : vector<152x128xf32>
    %c2_143 = arith.constant 2 : index
    %c0_144 = arith.constant 0 : index
    %154 = vector.load %arg16[%c2_143, %c0_144] : memref<160x64xf32, #tpu.memory_space<vmem>>, vector<152x64xf32>
    %155 = arith.truncf %154 : vector<152x64xf32> to vector<152x64xbf16>
    %c128_145 = arith.constant 128 : index
    %c0_146 = arith.constant 0 : index
    %156 = vector.load %arg4[%c128_145, %c0_146] : memref<576x128xbf16, #tpu.memory_space<vmem>>, vector<64x128xbf16>
    %cst_147 = arith.constant dense<0.000000e+00> : vector<152x128xf32>
    %157 = tpu.matmul %155, %156, %cst_147 {dimension_numbers = #tpu.dot_dimension_numbers<[1], [0], [0], [1], [0, 0, 1, 1], [], []>} : vector<152x64xbf16>, vector<64x128xbf16>, vector<152x128xf32> -> vector<152x128xf32>
    %158 = arith.addf %153, %157 : vector<152x128xf32>
    %c3_148 = arith.constant 3 : index
    %c0_149 = arith.constant 0 : index
    %159 = vector.load %arg16[%c3_148, %c0_149] : memref<160x64xf32, #tpu.memory_space<vmem>>, vector<152x64xf32>
    %160 = arith.truncf %159 : vector<152x64xf32> to vector<152x64xbf16>
    %c192_150 = arith.constant 192 : index
    %c0_151 = arith.constant 0 : index
    %161 = vector.load %arg4[%c192_150, %c0_151] : memref<576x128xbf16, #tpu.memory_space<vmem>>, vector<64x128xbf16>
    %cst_152 = arith.constant dense<0.000000e+00> : vector<152x128xf32>
    %162 = tpu.matmul %160, %161, %cst_152 {dimension_numbers = #tpu.dot_dimension_numbers<[1], [0], [0], [1], [0, 0, 1, 1], [], []>} : vector<152x64xbf16>, vector<64x128xbf16>, vector<152x128xf32> -> vector<152x128xf32>
    %163 = arith.addf %158, %162 : vector<152x128xf32>
    %c4_153 = arith.constant 4 : index
    %c0_154 = arith.constant 0 : index
    %164 = vector.load %arg16[%c4_153, %c0_154] : memref<160x64xf32, #tpu.memory_space<vmem>>, vector<152x64xf32>
    %165 = arith.truncf %164 : vector<152x64xf32> to vector<152x64xbf16>
    %c256_155 = arith.constant 256 : index
    %c0_156 = arith.constant 0 : index
    %166 = vector.load %arg4[%c256_155, %c0_156] : memref<576x128xbf16, #tpu.memory_space<vmem>>, vector<64x128xbf16>
    %cst_157 = arith.constant dense<0.000000e+00> : vector<152x128xf32>
    %167 = tpu.matmul %165, %166, %cst_157 {dimension_numbers = #tpu.dot_dimension_numbers<[1], [0], [0], [1], [0, 0, 1, 1], [], []>} : vector<152x64xbf16>, vector<64x128xbf16>, vector<152x128xf32> -> vector<152x128xf32>
    %168 = arith.addf %163, %167 : vector<152x128xf32>
    %c5_158 = arith.constant 5 : index
    %c0_159 = arith.constant 0 : index
    %169 = vector.load %arg16[%c5_158, %c0_159] : memref<160x64xf32, #tpu.memory_space<vmem>>, vector<152x64xf32>
    %170 = arith.truncf %169 : vector<152x64xf32> to vector<152x64xbf16>
    %c320_160 = arith.constant 320 : index
    %c0_161 = arith.constant 0 : index
    %171 = vector.load %arg4[%c320_160, %c0_161] : memref<576x128xbf16, #tpu.memory_space<vmem>>, vector<64x128xbf16>
    %cst_162 = arith.constant dense<0.000000e+00> : vector<152x128xf32>
    %172 = tpu.matmul %170, %171, %cst_162 {dimension_numbers = #tpu.dot_dimension_numbers<[1], [0], [0], [1], [0, 0, 1, 1], [], []>} : vector<152x64xbf16>, vector<64x128xbf16>, vector<152x128xf32> -> vector<152x128xf32>
    %173 = arith.addf %168, %172 : vector<152x128xf32>
    %c6_163 = arith.constant 6 : index
    %c0_164 = arith.constant 0 : index
    %174 = vector.load %arg16[%c6_163, %c0_164] : memref<160x64xf32, #tpu.memory_space<vmem>>, vector<152x64xf32>
    %175 = arith.truncf %174 : vector<152x64xf32> to vector<152x64xbf16>
    %c384_165 = arith.constant 384 : index
    %c0_166 = arith.constant 0 : index
    %176 = vector.load %arg4[%c384_165, %c0_166] : memref<576x128xbf16, #tpu.memory_space<vmem>>, vector<64x128xbf16>
    %cst_167 = arith.constant dense<0.000000e+00> : vector<152x128xf32>
    %177 = tpu.matmul %175, %176, %cst_167 {dimension_numbers = #tpu.dot_dimension_numbers<[1], [0], [0], [1], [0, 0, 1, 1], [], []>} : vector<152x64xbf16>, vector<64x128xbf16>, vector<152x128xf32> -> vector<152x128xf32>
    %178 = arith.addf %173, %177 : vector<152x128xf32>
    %c7_168 = arith.constant 7 : index
    %c0_169 = arith.constant 0 : index
    %179 = vector.load %arg16[%c7_168, %c0_169] : memref<160x64xf32, #tpu.memory_space<vmem>>, vector<152x64xf32>
    %180 = arith.truncf %179 : vector<152x64xf32> to vector<152x64xbf16>
    %c448_170 = arith.constant 448 : index
    %c0_171 = arith.constant 0 : index
    %181 = vector.load %arg4[%c448_170, %c0_171] : memref<576x128xbf16, #tpu.memory_space<vmem>>, vector<64x128xbf16>
    %cst_172 = arith.constant dense<0.000000e+00> : vector<152x128xf32>
    %182 = tpu.matmul %180, %181, %cst_172 {dimension_numbers = #tpu.dot_dimension_numbers<[1], [0], [0], [1], [0, 0, 1, 1], [], []>} : vector<152x64xbf16>, vector<64x128xbf16>, vector<152x128xf32> -> vector<152x128xf32>
    %183 = arith.addf %178, %182 : vector<152x128xf32>
    %c8_173 = arith.constant 8 : index
    %c0_174 = arith.constant 0 : index
    %184 = vector.load %arg16[%c8_173, %c0_174] : memref<160x64xf32, #tpu.memory_space<vmem>>, vector<152x64xf32>
    %185 = arith.truncf %184 : vector<152x64xf32> to vector<152x64xbf16>
    %c512_175 = arith.constant 512 : index
    %c0_176 = arith.constant 0 : index
    %186 = vector.load %arg4[%c512_175, %c0_176] : memref<576x128xbf16, #tpu.memory_space<vmem>>, vector<64x128xbf16>
    %cst_177 = arith.constant dense<0.000000e+00> : vector<152x128xf32>
    %187 = tpu.matmul %185, %186, %cst_177 {dimension_numbers = #tpu.dot_dimension_numbers<[1], [0], [0], [1], [0, 0, 1, 1], [], []>} : vector<152x64xbf16>, vector<64x128xbf16>, vector<152x128xf32> -> vector<152x128xf32>
    %188 = arith.addf %183, %187 : vector<152x128xf32>
    %c0_178 = arith.constant 0 : index
    %c0_179 = arith.constant 0 : index
    %189 = vector.load %arg5[%c0_178, %c0_179] : memref<1x128xf32, #tpu.memory_space<vmem>>, vector<1x128xf32>
    %190 = vector.broadcast %189 : vector<1x128xf32> to vector<152x128xf32>
    %191 = arith.addf %188, %190 : vector<152x128xf32>
    %cst_180 = arith.constant 0.000000e+00 : f32
    %192 = vector.broadcast %cst_180 : f32 to vector<152x128xf32>
    %193 = arith.maximumf %191, %192 : vector<152x128xf32>
    %c0_181 = arith.constant 0 : index
    %c0_182 = arith.constant 0 : index
    %194 = vector.load %arg17[%c0_181, %c0_182] : memref<152x128xf32, #tpu.memory_space<vmem>>, vector<152x128xf32>
    tpu.vector_store %arg17[%c0_181, %c0_182], %193 {strides = array<i32>} : memref<152x128xf32, #tpu.memory_space<vmem>>, vector<152x128xf32>,
    %c0_183 = arith.constant 0 : index
    %c0_184 = arith.constant 0 : index
    %195 = tpu.strided_load %arg17[%c0_183, %c0_184] {strides = array<i32: 2, 1>} : memref<152x128xf32, #tpu.memory_space<vmem>>, vector<76x128xf32>
    %c1_185 = arith.constant 1 : index
    %c0_186 = arith.constant 0 : index
    %196 = tpu.strided_load %arg17[%c1_185, %c0_186] {strides = array<i32: 2, 1>} : memref<152x128xf32, #tpu.memory_space<vmem>>, vector<76x128xf32>
    %197 = arith.maximumf %195, %196 : vector<76x128xf32>
    %c2_187 = arith.constant 2 : index
    %c0_188 = arith.constant 0 : index
    %198 = vector.load %arg18[%c2_187, %c0_188] : memref<80x128xf32, #tpu.memory_space<vmem>>, vector<76x128xf32>
    tpu.vector_store %arg18[%c2_187, %c0_188], %197 {strides = array<i32>} : memref<80x128xf32, #tpu.memory_space<vmem>>, vector<76x128xf32>,
    %c0_189 = arith.constant 0 : index
    %c0_190 = arith.constant 0 : index
    %199 = tpu.strided_load %arg18[%c0_189, %c0_190] {strides = array<i32: 2, 1>} : memref<80x128xf32, #tpu.memory_space<vmem>>, vector<36x128xf32>
    %200 = arith.truncf %199 : vector<36x128xf32> to vector<36x128xbf16>
    %c0_191 = arith.constant 0 : index
    %c0_192 = arith.constant 0 : index
    %201 = vector.load %arg6[%c0_191, %c0_192] : memref<1152x128xbf16, #tpu.memory_space<vmem>>, vector<128x128xbf16>
    %cst_193 = arith.constant dense<0.000000e+00> : vector<36x128xf32>
    %202 = tpu.matmul %200, %201, %cst_193 {dimension_numbers = #tpu.dot_dimension_numbers<[1], [0], [0], [1], [0, 0, 1, 1], [], []>} : vector<36x128xbf16>, vector<128x128xbf16>, vector<36x128xf32> -> vector<36x128xf32>
    %c1_194 = arith.constant 1 : index
    %c0_195 = arith.constant 0 : index
    %203 = tpu.strided_load %arg18[%c1_194, %c0_195] {strides = array<i32: 2, 1>} : memref<80x128xf32, #tpu.memory_space<vmem>>, vector<36x128xf32>
    %204 = arith.truncf %203 : vector<36x128xf32> to vector<36x128xbf16>
    %c128_196 = arith.constant 128 : index
    %c0_197 = arith.constant 0 : index
    %205 = vector.load %arg6[%c128_196, %c0_197] : memref<1152x128xbf16, #tpu.memory_space<vmem>>, vector<128x128xbf16>
    %cst_198 = arith.constant dense<0.000000e+00> : vector<36x128xf32>
    %206 = tpu.matmul %204, %205, %cst_198 {dimension_numbers = #tpu.dot_dimension_numbers<[1], [0], [0], [1], [0, 0, 1, 1], [], []>} : vector<36x128xbf16>, vector<128x128xbf16>, vector<36x128xf32> -> vector<36x128xf32>
    %207 = arith.addf %202, %206 : vector<36x128xf32>
    %c2_199 = arith.constant 2 : index
    %c0_200 = arith.constant 0 : index
    %208 = tpu.strided_load %arg18[%c2_199, %c0_200] {strides = array<i32: 2, 1>} : memref<80x128xf32, #tpu.memory_space<vmem>>, vector<36x128xf32>
    %209 = arith.truncf %208 : vector<36x128xf32> to vector<36x128xbf16>
    %c256_201 = arith.constant 256 : index
    %c0_202 = arith.constant 0 : index
    %210 = vector.load %arg6[%c256_201, %c0_202] : memref<1152x128xbf16, #tpu.memory_space<vmem>>, vector<128x128xbf16>
    %cst_203 = arith.constant dense<0.000000e+00> : vector<36x128xf32>
    %211 = tpu.matmul %209, %210, %cst_203 {dimension_numbers = #tpu.dot_dimension_numbers<[1], [0], [0], [1], [0, 0, 1, 1], [], []>} : vector<36x128xbf16>, vector<128x128xbf16>, vector<36x128xf32> -> vector<36x128xf32>
    %212 = arith.addf %207, %211 : vector<36x128xf32>
    %c3_204 = arith.constant 3 : index
    %c0_205 = arith.constant 0 : index
    %213 = tpu.strided_load %arg18[%c3_204, %c0_205] {strides = array<i32: 2, 1>} : memref<80x128xf32, #tpu.memory_space<vmem>>, vector<36x128xf32>
    %214 = arith.truncf %213 : vector<36x128xf32> to vector<36x128xbf16>
    %c384_206 = arith.constant 384 : index
    %c0_207 = arith.constant 0 : index
    %215 = vector.load %arg6[%c384_206, %c0_207] : memref<1152x128xbf16, #tpu.memory_space<vmem>>, vector<128x128xbf16>
    %cst_208 = arith.constant dense<0.000000e+00> : vector<36x128xf32>
    %216 = tpu.matmul %214, %215, %cst_208 {dimension_numbers = #tpu.dot_dimension_numbers<[1], [0], [0], [1], [0, 0, 1, 1], [], []>} : vector<36x128xbf16>, vector<128x128xbf16>, vector<36x128xf32> -> vector<36x128xf32>
    %217 = arith.addf %212, %216 : vector<36x128xf32>
    %c4_209 = arith.constant 4 : index
    %c0_210 = arith.constant 0 : index
    %218 = tpu.strided_load %arg18[%c4_209, %c0_210] {strides = array<i32: 2, 1>} : memref<80x128xf32, #tpu.memory_space<vmem>>, vector<36x128xf32>
    %219 = arith.truncf %218 : vector<36x128xf32> to vector<36x128xbf16>
    %c512_211 = arith.constant 512 : index
    %c0_212 = arith.constant 0 : index
    %220 = vector.load %arg6[%c512_211, %c0_212] : memref<1152x128xbf16, #tpu.memory_space<vmem>>, vector<128x128xbf16>
    %cst_213 = arith.constant dense<0.000000e+00> : vector<36x128xf32>
    %221 = tpu.matmul %219, %220, %cst_213 {dimension_numbers = #tpu.dot_dimension_numbers<[1], [0], [0], [1], [0, 0, 1, 1], [], []>} : vector<36x128xbf16>, vector<128x128xbf16>, vector<36x128xf32> -> vector<36x128xf32>
    %222 = arith.addf %217, %221 : vector<36x128xf32>
    %c5_214 = arith.constant 5 : index
    %c0_215 = arith.constant 0 : index
    %223 = tpu.strided_load %arg18[%c5_214, %c0_215] {strides = array<i32: 2, 1>} : memref<80x128xf32, #tpu.memory_space<vmem>>, vector<36x128xf32>
    %224 = arith.truncf %223 : vector<36x128xf32> to vector<36x128xbf16>
    %c640_216 = arith.constant 640 : index
    %c0_217 = arith.constant 0 : index
    %225 = vector.load %arg6[%c640_216, %c0_217] : memref<1152x128xbf16, #tpu.memory_space<vmem>>, vector<128x128xbf16>
    %cst_218 = arith.constant dense<0.000000e+00> : vector<36x128xf32>
    %226 = tpu.matmul %224, %225, %cst_218 {dimension_numbers = #tpu.dot_dimension_numbers<[1], [0], [0], [1], [0, 0, 1, 1], [], []>} : vector<36x128xbf16>, vector<128x128xbf16>, vector<36x128xf32> -> vector<36x128xf32>
    %227 = arith.addf %222, %226 : vector<36x128xf32>
    %c6_219 = arith.constant 6 : index
    %c0_220 = arith.constant 0 : index
    %228 = tpu.strided_load %arg18[%c6_219, %c0_220] {strides = array<i32: 2, 1>} : memref<80x128xf32, #tpu.memory_space<vmem>>, vector<36x128xf32>
    %229 = arith.truncf %228 : vector<36x128xf32> to vector<36x128xbf16>
    %c768_221 = arith.constant 768 : index
    %c0_222 = arith.constant 0 : index
    %230 = vector.load %arg6[%c768_221, %c0_222] : memref<1152x128xbf16, #tpu.memory_space<vmem>>, vector<128x128xbf16>
    %cst_223 = arith.constant dense<0.000000e+00> : vector<36x128xf32>
    %231 = tpu.matmul %229, %230, %cst_223 {dimension_numbers = #tpu.dot_dimension_numbers<[1], [0], [0], [1], [0, 0, 1, 1], [], []>} : vector<36x128xbf16>, vector<128x128xbf16>, vector<36x128xf32> -> vector<36x128xf32>
    %232 = arith.addf %227, %231 : vector<36x128xf32>
    %c7_224 = arith.constant 7 : index
    %c0_225 = arith.constant 0 : index
    %233 = tpu.strided_load %arg18[%c7_224, %c0_225] {strides = array<i32: 2, 1>} : memref<80x128xf32, #tpu.memory_space<vmem>>, vector<36x128xf32>
    %234 = arith.truncf %233 : vector<36x128xf32> to vector<36x128xbf16>
    %c896_226 = arith.constant 896 : index
    %c0_227 = arith.constant 0 : index
    %235 = vector.load %arg6[%c896_226, %c0_227] : memref<1152x128xbf16, #tpu.memory_space<vmem>>, vector<128x128xbf16>
    %cst_228 = arith.constant dense<0.000000e+00> : vector<36x128xf32>
    %236 = tpu.matmul %234, %235, %cst_228 {dimension_numbers = #tpu.dot_dimension_numbers<[1], [0], [0], [1], [0, 0, 1, 1], [], []>} : vector<36x128xbf16>, vector<128x128xbf16>, vector<36x128xf32> -> vector<36x128xf32>
    %237 = arith.addf %232, %236 : vector<36x128xf32>
    %c8_229 = arith.constant 8 : index
    %c0_230 = arith.constant 0 : index
    %238 = tpu.strided_load %arg18[%c8_229, %c0_230] {strides = array<i32: 2, 1>} : memref<80x128xf32, #tpu.memory_space<vmem>>, vector<36x128xf32>
    %239 = arith.truncf %238 : vector<36x128xf32> to vector<36x128xbf16>
    %c1024_231 = arith.constant 1024 : index
    %c0_232 = arith.constant 0 : index
    %240 = vector.load %arg6[%c1024_231, %c0_232] : memref<1152x128xbf16, #tpu.memory_space<vmem>>, vector<128x128xbf16>
    %cst_233 = arith.constant dense<0.000000e+00> : vector<36x128xf32>
    %241 = tpu.matmul %239, %240, %cst_233 {dimension_numbers = #tpu.dot_dimension_numbers<[1], [0], [0], [1], [0, 0, 1, 1], [], []>} : vector<36x128xbf16>, vector<128x128xbf16>, vector<36x128xf32> -> vector<36x128xf32>
    %242 = arith.addf %237, %241 : vector<36x128xf32>
    %c0_234 = arith.constant 0 : index
    %c0_235 = arith.constant 0 : index
    %243 = vector.load %arg7[%c0_234, %c0_235] : memref<1x128xf32, #tpu.memory_space<vmem>>, vector<1x128xf32>
    %244 = vector.broadcast %243 : vector<1x128xf32> to vector<36x128xf32>
    %245 = arith.addf %242, %244 : vector<36x128xf32>
    %cst_236 = arith.constant 0.000000e+00 : f32
    %246 = vector.broadcast %cst_236 : f32 to vector<36x128xf32>
    %247 = arith.maximumf %245, %246 : vector<36x128xf32>
    %c0_237 = arith.constant 0 : index
    %c0_238 = arith.constant 0 : index
    %248 = vector.load %arg8[%c0_237, %c0_238] : memref<36x128xf32, #tpu.memory_space<vmem>>, vector<36x128xf32>
    %cst_239 = arith.constant dense<0.000000e+00> : vector<128x128xf32>
    %249 = tpu.matmul %247, %248, %cst_239 {dimension_numbers = #tpu.dot_dimension_numbers<[0], [0], [1], [1], [0, 1, 1, 1], [], []>} : vector<36x128xf32>, vector<36x128xf32>, vector<128x128xf32> -> vector<128x128xf32>
    %c0_240 = arith.constant 0 : index
    %c0_241 = arith.constant 0 : index
    %250 = vector.load %arg9[%c0_240, %c0_241] : memref<1x128xf32, #tpu.memory_space<vmem>>, vector<1x128xf32>
    %251 = vector.broadcast %250 : vector<1x128xf32> to vector<128x128xf32>
    %252 = arith.addf %249, %251 : vector<128x128xf32>
    %c0_242 = arith.constant 0 : index
    %c0_243 = arith.constant 0 : index
    %253 = vector.load %arg20[%c0_242, %c0_243] : memref<128x128xf32, #tpu.memory_space<vmem>>, vector<128x128xf32>
    tpu.vector_store %arg20[%c0_242, %c0_243], %252 {strides = array<i32>} : memref<128x128xf32, #tpu.memory_space<vmem>>, vector<128x128xf32>,
    %c0_244 = arith.constant 0 : index
    %c0_245 = arith.constant 0 : index
    %254 = vector.load %arg10[%c0_244, %c0_245] : memref<64x256xf32, #tpu.memory_space<vmem>>, vector<64x256xf32>
    %c0_246 = arith.constant 0 : index
    %c0_247 = arith.constant 0 : index
    %255 = vector.load %arg11[%c0_246, %c0_247] : memref<1x128xf32, #tpu.memory_space<vmem>>, vector<1x128xf32>
    %256 = vector.shape_cast %255 : vector<1x128xf32> to vector<1x128xf32>
    %257 = vector.broadcast %256 : vector<1x128xf32> to vector<2x128xf32>
    %c0_248 = arith.constant 0 : index
    %c0_249 = arith.constant 0 : index
    %258 = vector.load %arg19[%c0_248, %c0_249] : memref<128x128xf32, #tpu.memory_space<vmem>>, vector<1x128xf32>
    %c0_250 = arith.constant 0 : index
    %c0_251 = arith.constant 0 : index
    %259 = vector.load %arg20[%c0_250, %c0_251] : memref<128x128xf32, #tpu.memory_space<vmem>>, vector<1x128xf32>
    %260 = tpu.concatenate %258, %259 in 0 : vector<1x128xf32>, vector<1x128xf32> -> vector<2x128xf32>
    %261 = arith.negf %260 : vector<2x128xf32>
    %262 = math.exp %261 : vector<2x128xf32>
    %cst_252 = arith.constant 1.000000e+00 : f32
    %263 = vector.broadcast %cst_252 : f32 to vector<2x128xf32>
    %264 = arith.addf %263, %262 : vector<2x128xf32>
    %265 = arith.divf %263, %264 : vector<2x128xf32>
    %266 = math.tanh %260 : vector<2x128xf32>
    %267 = vector.extract_strided_slice %265 {offsets = [0, 0], sizes = [2, 32], strides = [1, 1]} : vector<2x128xf32> to vector<2x32xf32>
    %268 = vector.extract_strided_slice %266 {offsets = [0, 64], sizes = [2, 32], strides = [1, 1]} : vector<2x128xf32> to vector<2x32xf32>
    %269 = arith.mulf %267, %268 : vector<2x32xf32>
    %270 = vector.extract_strided_slice %265 {offsets = [0, 96], sizes = [2, 32], strides = [1, 1]} : vector<2x128xf32> to vector<2x32xf32>
    %271 = math.tanh %269 : vector<2x32xf32>
    %272 = arith.mulf %270, %271 : vector<2x32xf32>
    %cst_253 = arith.constant 0.000000e+00 : f32
    %273 = vector.broadcast %cst_253 : f32 to vector<2x32xf32>
    %c0_i32 = arith.constant 0 : i32
    %c63_i32 = arith.constant 63 : i32
    %274 = arith.addi %c0_i32, %c63_i32 : i32
    %c1_i32 = arith.constant 1 : i32
    %275:4 = scf.for %arg21 = %c0_i32 to %274 step %c1_i32 iter_args(%arg22 = %272, %arg23 = %269, %arg24 = %273, %arg25 = %273) -> (vector<2x32xf32>, vector<2x32xf32>, vector<2x32xf32>, vector<2x32xf32>)  : i32 {
      %c2_i32 = arith.constant 2 : i32
      %340 = arith.muli %c2_i32, %arg21 : i32
      %c1_i32_270 = arith.constant 1 : i32
      %341 = arith.addi %c1_i32_270, %340 : i32
      %342 = arith.index_cast %341 : i32 to index
      %c0_271 = arith.constant 0 : index
      %343 = vector.load %arg19[%342, %c0_271] : memref<128x128xf32, #tpu.memory_space<vmem>>, vector<1x128xf32>
      %344 = arith.index_cast %341 : i32 to index
      %c0_272 = arith.constant 0 : index
      %345 = vector.load %arg20[%344, %c0_272] : memref<128x128xf32, #tpu.memory_space<vmem>>, vector<1x128xf32>
      %346 = tpu.concatenate %343, %345 in 0 : vector<1x128xf32>, vector<1x128xf32> -> vector<2x128xf32>
      %347 = tpu.concatenate %arg22, %arg24 in 1 : vector<2x32xf32>, vector<2x32xf32> -> vector<2x64xf32>
      %cst_273 = arith.constant dense<0.000000e+00> : vector<2x256xf32>
      %348 = tpu.matmul %347, %254, %cst_273 {dimension_numbers = #tpu.dot_dimension_numbers<[1], [0], [0], [1], [0, 0, 1, 1], [], []>} : vector<2x64xf32>, vector<64x256xf32>, vector<2x256xf32> -> vector<2x256xf32>
      %349 = vector.extract_strided_slice %348 {offsets = [0, 0], sizes = [2, 128], strides = [1, 1]} : vector<2x256xf32> to vector<2x128xf32>
      %350 = arith.addf %349, %346 : vector<2x128xf32>
      %351 = vector.extract_strided_slice %348 {offsets = [0, 128], sizes = [2, 128], strides = [1, 1]} : vector<2x256xf32> to vector<2x128xf32>
      %352 = arith.addf %351, %257 : vector<2x128xf32>
      %353 = arith.negf %350 : vector<2x128xf32>
      %354 = math.exp %353 : vector<2x128xf32>
      %cst_274 = arith.constant 1.000000e+00 : f32
      %355 = vector.broadcast %cst_274 : f32 to vector<2x128xf32>
      %356 = arith.addf %355, %354 : vector<2x128xf32>
      %357 = arith.divf %355, %356 : vector<2x128xf32>
      %358 = math.tanh %350 : vector<2x128xf32>
      %359 = vector.extract_strided_slice %357 {offsets = [0, 32], sizes = [2, 32], strides = [1, 1]} : vector<2x128xf32> to vector<2x32xf32>
      %360 = arith.mulf %359, %arg23 : vector<2x32xf32>
      %361 = vector.extract_strided_slice %357 {offsets = [0, 0], sizes = [2, 32], strides = [1, 1]} : vector<2x128xf32> to vector<2x32xf32>
      %362 = vector.extract_strided_slice %358 {offsets = [0, 64], sizes = [2, 32], strides = [1, 1]} : vector<2x128xf32> to vector<2x32xf32>
      %363 = arith.mulf %361, %362 : vector<2x32xf32>
      %364 = arith.addf %360, %363 : vector<2x32xf32>
      %365 = vector.extract_strided_slice %357 {offsets = [0, 96], sizes = [2, 32], strides = [1, 1]} : vector<2x128xf32> to vector<2x32xf32>
      %366 = math.tanh %364 : vector<2x32xf32>
      %367 = arith.mulf %365, %366 : vector<2x32xf32>
      %368 = arith.negf %352 : vector<2x128xf32>
      %369 = math.exp %368 : vector<2x128xf32>
      %cst_275 = arith.constant 1.000000e+00 : f32
      %370 = vector.broadcast %cst_275 : f32 to vector<2x128xf32>
      %371 = arith.addf %370, %369 : vector<2x128xf32>
      %372 = arith.divf %370, %371 : vector<2x128xf32>
      %373 = math.tanh %352 : vector<2x128xf32>
      %374 = vector.extract_strided_slice %372 {offsets = [0, 32], sizes = [2, 32], strides = [1, 1]} : vector<2x128xf32> to vector<2x32xf32>
      %375 = arith.mulf %374, %arg25 : vector<2x32xf32>
      %376 = vector.extract_strided_slice %372 {offsets = [0, 0], sizes = [2, 32], strides = [1, 1]} : vector<2x128xf32> to vector<2x32xf32>
      %377 = vector.extract_strided_slice %373 {offsets = [0, 64], sizes = [2, 32], strides = [1, 1]} : vector<2x128xf32> to vector<2x32xf32>
      %378 = arith.mulf %376, %377 : vector<2x32xf32>
      %379 = arith.addf %375, %378 : vector<2x32xf32>
      %380 = vector.extract_strided_slice %372 {offsets = [0, 96], sizes = [2, 32], strides = [1, 1]} : vector<2x128xf32> to vector<2x32xf32>
      %381 = math.tanh %379 : vector<2x32xf32>
      %382 = arith.mulf %380, %381 : vector<2x32xf32>
      %c1_i32_276 = arith.constant 1 : i32
      %383 = arith.addi %341, %c1_i32_276 : i32
      %384 = arith.index_cast %383 : i32 to index
      %c0_277 = arith.constant 0 : index
      %385 = vector.load %arg19[%384, %c0_277] : memref<128x128xf32, #tpu.memory_space<vmem>>, vector<1x128xf32>
      %386 = arith.index_cast %383 : i32 to index
      %c0_278 = arith.constant 0 : index
      %387 = vector.load %arg20[%386, %c0_278] : memref<128x128xf32, #tpu.memory_space<vmem>>, vector<1x128xf32>
      %388 = tpu.concatenate %385, %387 in 0 : vector<1x128xf32>, vector<1x128xf32> -> vector<2x128xf32>
      %389 = tpu.concatenate %367, %382 in 1 : vector<2x32xf32>, vector<2x32xf32> -> vector<2x64xf32>
      %cst_279 = arith.constant dense<0.000000e+00> : vector<2x256xf32>
      %390 = tpu.matmul %389, %254, %cst_279 {dimension_numbers = #tpu.dot_dimension_numbers<[1], [0], [0], [1], [0, 0, 1, 1], [], []>} : vector<2x64xf32>, vector<64x256xf32>, vector<2x256xf32> -> vector<2x256xf32>
      %391 = vector.extract_strided_slice %390 {offsets = [0, 0], sizes = [2, 128], strides = [1, 1]} : vector<2x256xf32> to vector<2x128xf32>
      %392 = arith.addf %391, %388 : vector<2x128xf32>
      %393 = vector.extract_strided_slice %390 {offsets = [0, 128], sizes = [2, 128], strides = [1, 1]} : vector<2x256xf32> to vector<2x128xf32>
      %394 = arith.addf %393, %257 : vector<2x128xf32>
      %395 = arith.negf %392 : vector<2x128xf32>
      %396 = math.exp %395 : vector<2x128xf32>
      %cst_280 = arith.constant 1.000000e+00 : f32
      %397 = vector.broadcast %cst_280 : f32 to vector<2x128xf32>
      %398 = arith.addf %397, %396 : vector<2x128xf32>
      %399 = arith.divf %397, %398 : vector<2x128xf32>
      %400 = math.tanh %392 : vector<2x128xf32>
      %401 = vector.extract_strided_slice %399 {offsets = [0, 32], sizes = [2, 32], strides = [1, 1]} : vector<2x128xf32> to vector<2x32xf32>
      %402 = arith.mulf %401, %364 : vector<2x32xf32>
      %403 = vector.extract_strided_slice %399 {offsets = [0, 0], sizes = [2, 32], strides = [1, 1]} : vector<2x128xf32> to vector<2x32xf32>
      %404 = vector.extract_strided_slice %400 {offsets = [0, 64], sizes = [2, 32], strides = [1, 1]} : vector<2x128xf32> to vector<2x32xf32>
      %405 = arith.mulf %403, %404 : vector<2x32xf32>
      %406 = arith.addf %402, %405 : vector<2x32xf32>
      %407 = vector.extract_strided_slice %399 {offsets = [0, 96], sizes = [2, 32], strides = [1, 1]} : vector<2x128xf32> to vector<2x32xf32>
      %408 = math.tanh %406 : vector<2x32xf32>
      %409 = arith.mulf %407, %408 : vector<2x32xf32>
      %410 = arith.negf %394 : vector<2x128xf32>
      %411 = math.exp %410 : vector<2x128xf32>
      %cst_281 = arith.constant 1.000000e+00 : f32
      %412 = vector.broadcast %cst_281 : f32 to vector<2x128xf32>
      %413 = arith.addf %412, %411 : vector<2x128xf32>
      %414 = arith.divf %412, %413 : vector<2x128xf32>
      %415 = math.tanh %394 : vector<2x128xf32>
      %416 = vector.extract_strided_slice %414 {offsets = [0, 32], sizes = [2, 32], strides = [1, 1]} : vector<2x128xf32> to vector<2x32xf32>
      %417 = arith.mulf %416, %379 : vector<2x32xf32>
      %418 = vector.extract_strided_slice %414 {offsets = [0, 0], sizes = [2, 32], strides = [1, 1]} : vector<2x128xf32> to vector<2x32xf32>
      %419 = vector.extract_strided_slice %415 {offsets = [0, 64], sizes = [2, 32], strides = [1, 1]} : vector<2x128xf32> to vector<2x32xf32>
      %420 = arith.mulf %418, %419 : vector<2x32xf32>
      %421 = arith.addf %417, %420 : vector<2x32xf32>
      %422 = vector.extract_strided_slice %414 {offsets = [0, 96], sizes = [2, 32], strides = [1, 1]} : vector<2x128xf32> to vector<2x32xf32>
      %423 = math.tanh %421 : vector<2x32xf32>
      %424 = arith.mulf %422, %423 : vector<2x32xf32>
      scf.yield %409, %406, %424, %421 : vector<2x32xf32>, vector<2x32xf32>, vector<2x32xf32>, vector<2x32xf32>
    }
    %c63_i32_254 = arith.constant 63 : i32
    %c127 = arith.constant 127 : index
    %c0_255 = arith.constant 0 : index
    %276 = vector.load %arg19[%c127, %c0_255] : memref<128x128xf32, #tpu.memory_space<vmem>>, vector<1x128xf32>
    %c127_256 = arith.constant 127 : index
    %c0_257 = arith.constant 0 : index
    %277 = vector.load %arg20[%c127_256, %c0_257] : memref<128x128xf32, #tpu.memory_space<vmem>>, vector<1x128xf32>
    %278 = tpu.concatenate %276, %277 in 0 : vector<1x128xf32>, vector<1x128xf32> -> vector<2x128xf32>
    %279 = tpu.concatenate %275#0, %275#2 in 1 : vector<2x32xf32>, vector<2x32xf32> -> vector<2x64xf32>
    %cst_258 = arith.constant dense<0.000000e+00> : vector<2x256xf32>
    %280 = tpu.matmul %279, %254, %cst_258 {dimension_numbers = #tpu.dot_dimension_numbers<[1], [0], [0], [1], [0, 0, 1, 1], [], []>} : vector<2x64xf32>, vector<64x256xf32>, vector<2x256xf32> -> vector<2x256xf32>
    %281 = vector.extract_strided_slice %280 {offsets = [0, 0], sizes = [2, 128], strides = [1, 1]} : vector<2x256xf32> to vector<2x128xf32>
    %282 = arith.addf %281, %278 : vector<2x128xf32>
    %283 = vector.extract_strided_slice %280 {offsets = [0, 128], sizes = [2, 128], strides = [1, 1]} : vector<2x256xf32> to vector<2x128xf32>
    %284 = arith.addf %283, %257 : vector<2x128xf32>
    %285 = arith.negf %282 : vector<2x128xf32>
    %286 = math.exp %285 : vector<2x128xf32>
    %cst_259 = arith.constant 1.000000e+00 : f32
    %287 = vector.broadcast %cst_259 : f32 to vector<2x128xf32>
    %288 = arith.addf %287, %286 : vector<2x128xf32>
    %289 = arith.divf %287, %288 : vector<2x128xf32>
    %290 = math.tanh %282 : vector<2x128xf32>
    %291 = vector.extract_strided_slice %289 {offsets = [0, 32], sizes = [2, 32], strides = [1, 1]} : vector<2x128xf32> to vector<2x32xf32>
    %292 = arith.mulf %291, %275#1 : vector<2x32xf32>
    %293 = vector.extract_strided_slice %289 {offsets = [0, 0], sizes = [2, 32], strides = [1, 1]} : vector<2x128xf32> to vector<2x32xf32>
    %294 = vector.extract_strided_slice %290 {offsets = [0, 64], sizes = [2, 32], strides = [1, 1]} : vector<2x128xf32> to vector<2x32xf32>
    %295 = arith.mulf %293, %294 : vector<2x32xf32>
    %296 = arith.addf %292, %295 : vector<2x32xf32>
    %297 = vector.extract_strided_slice %289 {offsets = [0, 96], sizes = [2, 32], strides = [1, 1]} : vector<2x128xf32> to vector<2x32xf32>
    %298 = math.tanh %296 : vector<2x32xf32>
    %299 = arith.mulf %297, %298 : vector<2x32xf32>
    %300 = arith.negf %284 : vector<2x128xf32>
    %301 = math.exp %300 : vector<2x128xf32>
    %cst_260 = arith.constant 1.000000e+00 : f32
    %302 = vector.broadcast %cst_260 : f32 to vector<2x128xf32>
    %303 = arith.addf %302, %301 : vector<2x128xf32>
    %304 = arith.divf %302, %303 : vector<2x128xf32>
    %305 = math.tanh %284 : vector<2x128xf32>
    %306 = vector.extract_strided_slice %304 {offsets = [0, 32], sizes = [2, 32], strides = [1, 1]} : vector<2x128xf32> to vector<2x32xf32>
    %307 = arith.mulf %306, %275#3 : vector<2x32xf32>
    %308 = vector.extract_strided_slice %304 {offsets = [0, 0], sizes = [2, 32], strides = [1, 1]} : vector<2x128xf32> to vector<2x32xf32>
    %309 = vector.extract_strided_slice %305 {offsets = [0, 64], sizes = [2, 32], strides = [1, 1]} : vector<2x128xf32> to vector<2x32xf32>
    %310 = arith.mulf %308, %309 : vector<2x32xf32>
    %311 = arith.addf %307, %310 : vector<2x32xf32>
    %312 = vector.extract_strided_slice %304 {offsets = [0, 96], sizes = [2, 32], strides = [1, 1]} : vector<2x128xf32> to vector<2x32xf32>
    %313 = math.tanh %311 : vector<2x32xf32>
    %314 = arith.mulf %312, %313 : vector<2x32xf32>
    %315 = tpu.concatenate %299, %314 in 1 : vector<2x32xf32>, vector<2x32xf32> -> vector<2x64xf32>
    %cst_261 = arith.constant dense<0.000000e+00> : vector<2x256xf32>
    %316 = tpu.matmul %315, %254, %cst_261 {dimension_numbers = #tpu.dot_dimension_numbers<[1], [0], [0], [1], [0, 0, 1, 1], [], []>} : vector<2x64xf32>, vector<64x256xf32>, vector<2x256xf32> -> vector<2x256xf32>
    %317 = vector.extract_strided_slice %316 {offsets = [0, 128], sizes = [2, 128], strides = [1, 1]} : vector<2x256xf32> to vector<2x128xf32>
    %318 = arith.addf %317, %257 : vector<2x128xf32>
    %319 = arith.negf %318 : vector<2x128xf32>
    %320 = math.exp %319 : vector<2x128xf32>
    %cst_262 = arith.constant 1.000000e+00 : f32
    %321 = vector.broadcast %cst_262 : f32 to vector<2x128xf32>
    %322 = arith.addf %321, %320 : vector<2x128xf32>
    %323 = arith.divf %321, %322 : vector<2x128xf32>
    %324 = math.tanh %318 : vector<2x128xf32>
    %325 = vector.extract_strided_slice %323 {offsets = [0, 32], sizes = [2, 32], strides = [1, 1]} : vector<2x128xf32> to vector<2x32xf32>
    %326 = arith.mulf %325, %311 : vector<2x32xf32>
    %327 = vector.extract_strided_slice %323 {offsets = [0, 0], sizes = [2, 32], strides = [1, 1]} : vector<2x128xf32> to vector<2x32xf32>
    %328 = vector.extract_strided_slice %324 {offsets = [0, 64], sizes = [2, 32], strides = [1, 1]} : vector<2x128xf32> to vector<2x32xf32>
    %329 = arith.mulf %327, %328 : vector<2x32xf32>
    %330 = arith.addf %326, %329 : vector<2x32xf32>
    %331 = vector.extract_strided_slice %323 {offsets = [0, 96], sizes = [2, 32], strides = [1, 1]} : vector<2x128xf32> to vector<2x32xf32>
    %332 = math.tanh %330 : vector<2x32xf32>
    %333 = arith.mulf %331, %332 : vector<2x32xf32>
    %c0_263 = arith.constant 0 : index
    %c0_264 = arith.constant 0 : index
    %334 = vector.load %arg12[%c0_263, %c0_264] : memref<32x10xf32, #tpu.memory_space<vmem>>, vector<32x10xf32>
    %cst_265 = arith.constant dense<0.000000e+00> : vector<2x10xf32>
    %335 = tpu.matmul %333, %334, %cst_265 {dimension_numbers = #tpu.dot_dimension_numbers<[1], [0], [0], [1], [0, 0, 1, 1], [], []>} : vector<2x32xf32>, vector<32x10xf32>, vector<2x10xf32> -> vector<2x10xf32>
    %c0_266 = arith.constant 0 : index
    %c0_267 = arith.constant 0 : index
    %336 = vector.load %arg13[%c0_266, %c0_267] : memref<1x10xf32, #tpu.memory_space<vmem>>, vector<1x10xf32>
    %337 = vector.broadcast %336 : vector<1x10xf32> to vector<2x10xf32>
    %338 = arith.addf %335, %337 : vector<2x10xf32>
    %c0_268 = arith.constant 0 : index
    %c0_269 = arith.constant 0 : index
    %339 = vector.load %arg14[%c0_268, %c0_269] : memref<2x10xf32, #tpu.memory_space<vmem>>, vector<2x10xf32>
    tpu.vector_store %arg14[%c0_268, %c0_269], %338 {strides = array<i32>} : memref<2x10xf32, #tpu.memory_space<vmem>>, vector<2x10xf32>,
    return
  }
  func.func @transform_0(%arg0: i32) -> (i32, i32, i32) {
    %c0_i32 = arith.constant 0 : i32
    %c0_i32_0 = arith.constant 0 : i32
    %c0_i32_1 = arith.constant 0 : i32
    %c0_i32_2 = arith.constant 0 : i32
    return %c0_i32, %c0_i32_0, %c0_i32_1 : i32, i32, i32
  }
  func.func @transform_1(%arg0: i32) -> (i32, i32) {
    %c0_i32 = arith.constant 0 : i32
    %c0_i32_0 = arith.constant 0 : i32
    %c0_i32_1 = arith.constant 0 : i32
    return %c0_i32, %c0_i32_0 : i32, i32
  }
  func.func @transform_2(%arg0: i32) -> (i32, i32) {
    %c0_i32 = arith.constant 0 : i32
    %c0_i32_0 = arith.constant 0 : i32
    %c0_i32_1 = arith.constant 0 : i32
    return %c0_i32, %c0_i32_0 : i32, i32
  }
  func.func @transform_3(%arg0: i32) -> (i32, i32) {
    %c0_i32 = arith.constant 0 : i32
    %c0_i32_0 = arith.constant 0 : i32
    %c0_i32_1 = arith.constant 0 : i32
    return %c0_i32, %c0_i32_0 : i32, i32
  }
  func.func @transform_4(%arg0: i32) -> (i32, i32) {
    %c0_i32 = arith.constant 0 : i32
    %c0_i32_0 = arith.constant 0 : i32
    %c0_i32_1 = arith.constant 0 : i32
    return %c0_i32, %c0_i32_0 : i32, i32
  }
  func.func @transform_5(%arg0: i32) -> (i32, i32) {
    %c0_i32 = arith.constant 0 : i32
    %c0_i32_0 = arith.constant 0 : i32
    %c0_i32_1 = arith.constant 0 : i32
    return %c0_i32, %c0_i32_0 : i32, i32
  }
  func.func @transform_6(%arg0: i32) -> (i32, i32) {
    %c0_i32 = arith.constant 0 : i32
    %c0_i32_0 = arith.constant 0 : i32
    %c0_i32_1 = arith.constant 0 : i32
    return %c0_i32, %c0_i32_0 : i32, i32
  }
  func.func @transform_7(%arg0: i32) -> (i32, i32) {
    %c0_i32 = arith.constant 0 : i32
    %c0_i32_0 = arith.constant 0 : i32
    %c0_i32_1 = arith.constant 0 : i32
    return %c0_i32, %c0_i32_0 : i32, i32
  }
  func.func @transform_8(%arg0: i32) -> (i32, i32) {
    %c0_i32 = arith.constant 0 : i32
    %c0_i32_0 = arith.constant 0 : i32
    %c0_i32_1 = arith.constant 0 : i32
    return %c0_i32, %c0_i32_0 : i32, i32
  }
  func.func @transform_9(%arg0: i32) -> (i32, i32) {
    %c0_i32 = arith.constant 0 : i32
    %c0_i32_0 = arith.constant 0 : i32
    %c0_i32_1 = arith.constant 0 : i32
    return %c0_i32, %c0_i32_0 : i32, i32
  }
  func.func @transform_10(%arg0: i32) -> (i32, i32) {
    %c0_i32 = arith.constant 0 : i32
    %c0_i32_0 = arith.constant 0 : i32
    %c0_i32_1 = arith.constant 0 : i32
    return %c0_i32, %c0_i32_0 : i32, i32
  }
  func.func @transform_11(%arg0: i32) -> (i32, i32) {
    %c0_i32 = arith.constant 0 : i32
    %c0_i32_0 = arith.constant 0 : i32
    %c0_i32_1 = arith.constant 0 : i32
    return %c0_i32, %c0_i32_0 : i32, i32
  }
  func.func @transform_12(%arg0: i32) -> (i32, i32) {
    %c0_i32 = arith.constant 0 : i32
    %c0_i32_0 = arith.constant 0 : i32
    %c0_i32_1 = arith.constant 0 : i32
    return %c0_i32, %c0_i32_0 : i32, i32
  }
  func.func @transform_13(%arg0: i32) -> (i32, i32) {
    %c0_i32 = arith.constant 0 : i32
    %c0_i32_0 = arith.constant 0 : i32
    %c0_i32_1 = arith.constant 0 : i32
    return %c0_i32, %c0_i32_0 : i32, i32
  }
}

</mosaic_0001>

<llo_original>
// kernel: tpu_custom_call.1
$region0: #{tpu_custom_call.1}
  #allocation0 [shape = 'u32[]', space=smem, size = 0x4, offset = 0x4, fixed_abs, tag = 'smem constant byte address 0x4 - core index']
  #allocation1 [shape = 'u32[144,128]{1,0:T(1,128)}', space=vmem, size = 0x12000, scoped, tag = 'internal scratch']
  #allocation2 [shape = 'f32[304,64]{1,0:T(8,128)}', space=vmem, size = 0x26000, scoped, tag = 'scratch operand']
  #allocation3 [shape = 'f32[160,64]{1,0:T(8,128)}', space=vmem, size = 0x14000, scoped, tag = 'scratch operand']
  #allocation4 [shape = 'f32[152,128]{1,0:T(8,128)}', space=vmem, size = 0x13000, scoped, tag = 'scratch operand']
  #allocation5 [shape = 'f32[80,128]{1,0:T(8,128)}', space=vmem, size = 0xa000, scoped, tag = 'scratch operand']
  #allocation6 [shape = 'f32[128,128]{1,0:T(8,128)}', space=vmem, size = 0x10000, scoped, tag = 'scratch operand']
  #allocation7 [shape = 'f32[128,128]{1,0:T(8,128)}', space=vmem, size = 0x10000, scoped, tag = 'scratch operand']
  %s0 = inlined_call_operand.hbm [shape: f32[2,16,304], index: 0, kind: input, shape index: {}]
  %s1 = inlined_call_operand.hbm [shape: f32[16,64], index: 1, kind: input, shape index: {}]
  %s2 = inlined_call_operand.vmem [shape: f32[1,64], index: 2, kind: input, shape index: {}]
  %s3 = inlined_call_operand.hbm [shape: bf16[576,128], index: 3, kind: input, shape index: {}]
  %s4 = inlined_call_operand.vmem [shape: f32[1,128], index: 4, kind: input, shape index: {}]
  %s5 = inlined_call_operand.hbm [shape: bf16[1152,128], index: 5, kind: input, shape index: {}]
  %s6 = inlined_call_operand.vmem [shape: f32[1,128], index: 6, kind: input, shape index: {}]
  %s7 = inlined_call_operand.vmem [shape: f32[36,128], index: 7, kind: input, shape index: {}]
  %s8 = inlined_call_operand.vmem [shape: f32[1,128], index: 8, kind: input, shape index: {}]
  %s9 = inlined_call_operand.hbm [shape: f32[64,256], index: 9, kind: input, shape index: {}]
  %s10 = inlined_call_operand.vmem [shape: f32[1,128], index: 10, kind: input, shape index: {}]
  %s11 = inlined_call_operand.vmem [shape: f32[32,10], index: 11, kind: input, shape index: {}]
  %s12 = inlined_call_operand.vmem [shape: f32[1,10], index: 12, kind: input, shape index: {}]
  %s13 = inlined_call_operand.hbm [shape: f32[2,10], index: 13, kind: output, shape index: {}]
  %s14 = sld [smem:[#allocation0]]
  $region89: #{tpu_custom_call.1} parent=0
    _
  %s16 = ssub.s32 1, %s14
  %s17 = scalar_select 0, %s16, %s14
  $region1: #{tpu_custom_call.1} parent=0
    #allocation8 [shape = 'u8[49152]{0}', space=vmem, size = 0xc000, scoped, tag = 'input window, operand 0, single buffered']
    #allocation9 [shape = 's32[1]{0}', space=sflag, size = 0x4, scoped, tag = 'scoped memory for tpu_custom_call.1']
    #allocation10 [shape = 's32[1]{0}', space=sflag, size = 0x4, scoped, tag = 'scoped memory for tpu_custom_call.1']
    #allocation11 [shape = 'u8[8192]{0}', space=vmem, size = 0x2000, scoped, tag = 'input window, operand 1, single buffered']
    #allocation12 [shape = 's32[1]{0}', space=sflag, size = 0x4, scoped, tag = 'scoped memory for tpu_custom_call.1']
    #allocation13 [shape = 'u8[147456]{0}', space=vmem, size = 0x24000, scoped, tag = 'input window, operand 3, single buffered']
    #allocation14 [shape = 'u8[294912]{0}', space=vmem, size = 0x48000, scoped, tag = 'input window, operand 5, single buffered']
    #allocation15 [shape = 's32[1]{0}', space=sflag, size = 0x4, scoped, tag = 'scoped memory for tpu_custom_call.1']
    #allocation16 [shape = 'u8[65536]{0}', space=vmem, size = 0x10000, scoped, tag = 'input window, operand 9, single buffered']
    #allocation17 [shape = 'u8[1024]{0}', space=vmem, size = 0x400, scoped, tag = 'output window, operand 0, single buffered']
    %18 = vsyncpa [#allocation9], 0
    %19 = vsyncpa [#allocation12], 0
    %20 = vsyncpa [#allocation15], 0
    %21 = vsyncpa [#allocation10], 0
    // Predicated region
    $region2: #{tpu_custom_call.1} parent=1 // pred_check
      _
    $region3: #{tpu_custom_call.1} parent=1 // pred_check_branch
      %23 = sbr.rel (0) target = $region5
    $region4: #{tpu_custom_call.1} parent=1 // pred_region
      %s25 = ssub.s32 1536, 1536
      %26 = vsyncadd [#allocation9], %s25
      %s27 = sshll.u32 [#allocation8], 4
      %s28 = int_to_ptr.vmem [resolvable:$true] %s27
      %33 = dma.hbm_to_vmem [thread:$0]  %s0, 1536, %s28, [#allocation9], 384, 384, 24
    $region5: #{tpu_custom_call.1} parent=1 // pred_fallthru
      _
    // Predicated region
    $region6: #{tpu_custom_call.1} parent=1 // pred_check
      _
    $region7: #{tpu_custom_call.1} parent=1 // pred_check_branch
      %35 = sbr.rel (0) target = $region9
    $region8: #{tpu_custom_call.1} parent=1 // pred_region
      %s37 = ssub.s32 256, 256
      %38 = vsyncadd [#allocation12], %s37
      %s39 = sshll.u32 [#allocation11], 4
      %s40 = int_to_ptr.vmem [resolvable:$true] %s39
      %45 = dma.hbm_to_vmem [thread:$0]  %s1, 256, %s40, [#allocation12], 128, 128, 8
    $region9: #{tpu_custom_call.1} parent=1 // pred_fallthru
      _
    // Predicated region
    $region10: #{tpu_custom_call.1} parent=1 // pred_check
      _
    $region11: #{tpu_custom_call.1} parent=1 // pred_check_branch
      %47 = sbr.rel (0) target = $region13
    $region12: #{tpu_custom_call.1} parent=1 // pred_region
      _
    $region13: #{tpu_custom_call.1} parent=1 // pred_fallthru
      _
    // Predicated region
    $region14: #{tpu_custom_call.1} parent=1 // pred_check
      _
    $region15: #{tpu_custom_call.1} parent=1 // pred_check_branch
      %49 = sbr.rel (0) target = $region17
    $region16: #{tpu_custom_call.1} parent=1 // pred_region
      %s51 = ssub.s32 4608, 4608
      %52 = vsyncadd [#allocation12], %s51
      %s53 = sshll.u32 [#allocation13], 4
      %s54 = int_to_ptr.vmem [resolvable:$true] %s53
      %59 = dma.hbm_to_vmem [thread:$0]  %s3, 4608, %s54, [#allocation12], 64, 64, 4
    $region17: #{tpu_custom_call.1} parent=1 // pred_fallthru
      _
    // Predicated region
    $region18: #{tpu_custom_call.1} parent=1 // pred_check
      _
    $region19: #{tpu_custom_call.1} parent=1 // pred_check_branch
      %61 = sbr.rel (0) target = $region21
    $region20: #{tpu_custom_call.1} parent=1 // pred_region
      _
    $region21: #{tpu_custom_call.1} parent=1 // pred_fallthru
      _
    // Predicated region
    $region22: #{tpu_custom_call.1} parent=1 // pred_check
      _
    $region23: #{tpu_custom_call.1} parent=1 // pred_check_branch
      %63 = sbr.rel (0) target = $region25
    $region24: #{tpu_custom_call.1} parent=1 // pred_region
      %s65 = ssub.s32 9216, 9216
      %66 = vsyncadd [#allocation15], %s65
      %s67 = sshll.u32 [#allocation14], 4
      %s68 = int_to_ptr.vmem [resolvable:$true] %s67
      %73 = dma.hbm_to_vmem [thread:$0]  %s5, 9216, %s68, [#allocation15], 64, 64, 4
    $region25: #{tpu_custom_call.1} parent=1 // pred_fallthru
      _
    // Predicated region
    $region26: #{tpu_custom_call.1} parent=1 // pred_check
      _
    $region27: #{tpu_custom_call.1} parent=1 // pred_check_branch
      %75 = sbr.rel (0) target = $region29
    $region28: #{tpu_custom_call.1} parent=1 // pred_region
      _
    $region29: #{tpu_custom_call.1} parent=1 // pred_fallthru
      _
    // Predicated region
    $region30: #{tpu_custom_call.1} parent=1 // pred_check
      _
    $region31: #{tpu_custom_call.1} parent=1 // pred_check_branch
      %77 = sbr.rel (0) target = $region33
    $region32: #{tpu_custom_call.1} parent=1 // pred_region
      _
    $region33: #{tpu_custom_call.1} parent=1 // pred_fallthru
      _
    // Predicated region
    $region34: #{tpu_custom_call.1} parent=1 // pred_check
      _
    $region35: #{tpu_custom_call.1} parent=1 // pred_check_branch
      %79 = sbr.rel (0) target = $region37
    $region36: #{tpu_custom_call.1} parent=1 // pred_region
      _
    $region37: #{tpu_custom_call.1} parent=1 // pred_fallthru
      _
    // Predicated region
    $region38: #{tpu_custom_call.1} parent=1 // pred_check
      _
    $region39: #{tpu_custom_call.1} parent=1 // pred_check_branch
      %81 = sbr.rel (0) target = $region41
    $region40: #{tpu_custom_call.1} parent=1 // pred_region
      %s83 = ssub.s32 2048, 2048
      %84 = vsyncadd [#allocation15], %s83
      %s85 = sshll.u32 [#allocation16], 4
      %s86 = int_to_ptr.vmem [resolvable:$true] %s85
      %91 = dma.hbm_to_vmem [thread:$0]  %s9, 2048, %s86, [#allocation15], 256, 256, 16
    $region41: #{tpu_custom_call.1} parent=1 // pred_fallthru
      _
    // Predicated region
    $region42: #{tpu_custom_call.1} parent=1 // pred_check
      _
    $region43: #{tpu_custom_call.1} parent=1 // pred_check_branch
      %93 = sbr.rel (0) target = $region45
    $region44: #{tpu_custom_call.1} parent=1 // pred_region
      _
    $region45: #{tpu_custom_call.1} parent=1 // pred_fallthru
      _
    // Predicated region
    $region46: #{tpu_custom_call.1} parent=1 // pred_check
      _
    $region47: #{tpu_custom_call.1} parent=1 // pred_check_branch
      %95 = sbr.rel (0) target = $region49
    $region48: #{tpu_custom_call.1} parent=1 // pred_region
      _
    $region49: #{tpu_custom_call.1} parent=1 // pred_fallthru
      _
    // Predicated region
    $region50: #{tpu_custom_call.1} parent=1 // pred_check
      _
    $region51: #{tpu_custom_call.1} parent=1 // pred_check_branch
      %97 = sbr.rel (0) target = $region53
    $region52: #{tpu_custom_call.1} parent=1 // pred_region
      _
    $region53: #{tpu_custom_call.1} parent=1 // pred_fallthru
      _
    // Predicated region
    $region54: #{tpu_custom_call.1} parent=1 // pred_check
      _
    $region55: #{tpu_custom_call.1} parent=1 // pred_check_branch
      %99 = sbr.rel (0) target = $region57
    $region56: #{tpu_custom_call.1} parent=1 // pred_region
      %100 = dma.done [#allocation9], 1536
    $region57: #{tpu_custom_call.1} parent=1 // pred_fallthru
      _
    // Predicated region
    $region58: #{tpu_custom_call.1} parent=1 // pred_check
      _
    $region59: #{tpu_custom_call.1} parent=1 // pred_check_branch
      %102 = sbr.rel (0) target = $region61
    $region60: #{tpu_custom_call.1} parent=1 // pred_region
      %103 = dma.done [#allocation12], 256
    $region61: #{tpu_custom_call.1} parent=1 // pred_fallthru
      _
    // Predicated region
    $region62: #{tpu_custom_call.1} parent=1 // pred_check
      _
    $region63: #{tpu_custom_call.1} parent=1 // pred_check_branch
      %105 = sbr.rel (0) target = $region65
    $region64: #{tpu_custom_call.1} parent=1 // pred_region
      %106 = dma.done [#allocation12], 4608
    $region65: #{tpu_custom_call.1} parent=1 // pred_fallthru
      _
    // Predicated region
    $region66: #{tpu_custom_call.1} parent=1 // pred_check
      _
    $region67: #{tpu_custom_call.1} parent=1 // pred_check_branch
      %108 = sbr.rel (0) target = $region69
    $region68: #{tpu_custom_call.1} parent=1 // pred_region
      %109 = dma.done [#allocation15], 9216
    $region69: #{tpu_custom_call.1} parent=1 // pred_fallthru
      _
    // Predicated region
    $region70: #{tpu_custom_call.1} parent=1 // pred_check
      _
    $region71: #{tpu_custom_call.1} parent=1 // pred_check_branch
      %111 = sbr.rel (0) target = $region73
    $region72: #{tpu_custom_call.1} parent=1 // pred_region
      %112 = dma.done [#allocation15], 2048
    $region73: #{tpu_custom_call.1} parent=1 // pred_fallthru
      _
    %vm114 = vcmask 519168
    %115 = vst.msk [vmem:[#allocation3] sm:$0xf] %vm114, 0.0
    %116 = vst.msk [vmem:[#allocation3 + $0x9c] sm:$0xf] %vm114, 0.0
    %117 = vst [vmem:[#allocation5] sm:$0x3] 0.0
    %118 = vst [vmem:[#allocation5 + $0x4e] sm:$0x3] 0.0
    %v119 = vld [vmem:[#allocation8] sm:$0xff]
    %v120 = vld [vmem:[#allocation8 + $0x8] sm:$0xff]
    %v121 = vld [vmem:[#allocation8 + $0x10] sm:$0xff]
    %v122 = vld [vmem:[#allocation8 + $0x18] sm:$0xff]
    %v123 = vld [vmem:[#allocation8 + $0x20] sm:$0xff]
    %v124 = vld [vmem:[#allocation8 + $0x28] sm:$0xff]
    %v125 = vld [vmem:[#allocation11] sm:$0xff]
    %v126 = vld [vmem:[#allocation11 + $0x8] sm:$0xff]
    %v127 = vld [vmem:[%s2] sm:$0x1]
    %v129 = vlaneseq
    %v130 = vshrl.u32 %v129, 7
    %v131 = vsub.s32 0, %v130
    %v132 = vrot.slane %v127, %v131
    %134 = vxpose.xlu0.b32.start [1/16] %v119, 128
    %135 = vxpose.xlu0.b32.cont [2/16] %v122, 128
    %136 = vxpose.xlu0.b32.cont [3/16] 0.0, 128
    %137 = vxpose.xlu0.b32.cont [4/16] 0.0, 128
    %138 = vxpose.xlu0.b32.cont [5/16] 0.0, 128
    %139 = vxpose.xlu0.b32.cont [6/16] 0.0, 128
    %140 = vxpose.xlu0.b32.cont [7/16] 0.0, 128
    %141 = vxpose.xlu0.b32.cont [8/16] 0.0, 128
    %142 = vxpose.xlu0.b32.cont [9/16] 0.0, 128
    %143 = vxpose.xlu0.b32.cont [10/16] 0.0, 128
    %144 = vxpose.xlu0.b32.cont [11/16] 0.0, 128
    %145 = vxpose.xlu0.b32.cont [12/16] 0.0, 128
    %146 = vxpose.xlu0.b32.cont [13/16] 0.0, 128
    %147 = vxpose.xlu0.b32.cont [14/16] 0.0, 128
    %148 = vxpose.xlu0.b32.cont [15/16] 0.0, 128
    %149 = vxpose.xlu0.b32.end [16/16] 0.0, 128
    %v150 = vpop.trf.xlu0
    %v151 = vpop.trf.xlu0
    %v152 = vpop.trf.xlu0
    %v153 = vpop.trf.xlu0
    %v154 = vpop.trf.xlu0
    %v155 = vpop.trf.xlu0
    %v156 = vpop.trf.xlu0
    %v157 = vpop.trf.xlu0
    %v158 = vpop.trf.xlu0
    %v159 = vpop.trf.xlu0
    %v160 = vpop.trf.xlu0
    %v161 = vpop.trf.xlu0
    %v162 = vpop.trf.xlu0
    %v163 = vpop.trf.xlu0
    %v164 = vpop.trf.xlu0
    %v165 = vpop.trf.xlu0
    %166 = vxpose.xlu0.b32.start [1/16] %v120, 128
    %167 = vxpose.xlu0.b32.cont [2/16] %v123, 128
    %168 = vxpose.xlu0.b32.cont [3/16] 0.0, 128
    %169 = vxpose.xlu0.b32.cont [4/16] 0.0, 128
    %170 = vxpose.xlu0.b32.cont [5/16] 0.0, 128
    %171 = vxpose.xlu0.b32.cont [6/16] 0.0, 128
    %172 = vxpose.xlu0.b32.cont [7/16] 0.0, 128
    %173 = vxpose.xlu0.b32.cont [8/16] 0.0, 128
    %174 = vxpose.xlu0.b32.cont [9/16] 0.0, 128
    %175 = vxpose.xlu0.b32.cont [10/16] 0.0, 128
    %176 = vxpose.xlu0.b32.cont [11/16] 0.0, 128
    %177 = vxpose.xlu0.b32.cont [12/16] 0.0, 128
    %178 = vxpose.xlu0.b32.cont [13/16] 0.0, 128
    %179 = vxpose.xlu0.b32.cont [14/16] 0.0, 128
    %180 = vxpose.xlu0.b32.cont [15/16] 0.0, 128
    %181 = vxpose.xlu0.b32.end [16/16] 0.0, 128
    %v182 = vpop.trf.xlu0
    %v183 = vpop.trf.xlu0
    %v184 = vpop.trf.xlu0
    %v185 = vpop.trf.xlu0
    %v186 = vpop.trf.xlu0
    %v187 = vpop.trf.xlu0
    %v188 = vpop.trf.xlu0
    %v189 = vpop.trf.xlu0
    %v190 = vpop.trf.xlu0
    %v191 = vpop.trf.xlu0
    %v192 = vpop.trf.xlu0
    %v193 = vpop.trf.xlu0
    %v194 = vpop.trf.xlu0
    %v195 = vpop.trf.xlu0
    %v196 = vpop.trf.xlu0
    %v197 = vpop.trf.xlu0
    %198 = vxpose.xlu0.b32.start [1/16] %v121, 128
    %199 = vxpose.xlu0.b32.cont [2/16] %v124, 128
    %200 = vxpose.xlu0.b32.cont [3/16] 0.0, 128
    %201 = vxpose.xlu0.b32.cont [4/16] 0.0, 128
    %202 = vxpose.xlu0.b32.cont [5/16] 0.0, 128
    %203 = vxpose.xlu0.b32.cont [6/16] 0.0, 128
    %204 = vxpose.xlu0.b32.cont [7/16] 0.0, 128
    %205 = vxpose.xlu0.b32.cont [8/16] 0.0, 128
    %206 = vxpose.xlu0.b32.cont [9/16] 0.0, 128
    %207 = vxpose.xlu0.b32.cont [10/16] 0.0, 128
    %208 = vxpose.xlu0.b32.cont [11/16] 0.0, 128
    %209 = vxpose.xlu0.b32.cont [12/16] 0.0, 128
    %210 = vxpose.xlu0.b32.cont [13/16] 0.0, 128
    %211 = vxpose.xlu0.b32.cont [14/16] 0.0, 128
    %212 = vxpose.xlu0.b32.cont [15/16] 0.0, 128
    %213 = vxpose.xlu0.b32.end [16/16] 0.0, 128
    %v214 = vpop.trf.xlu0
    %v215 = vpop.trf.xlu0
    %v216 = vpop.trf.xlu0
    %v217 = vpop.trf.xlu0
    %v218 = vpop.trf.xlu0
    %v219 = vpop.trf.xlu0
    %v220 = vpop.trf.xlu0
    %v221 = vpop.trf.xlu0
    %v222 = vpop.trf.xlu0
    %v223 = vpop.trf.xlu0
    %v224 = vpop.trf.xlu0
    %v225 = vpop.trf.xlu0
    %v226 = vpop.trf.xlu0
    %v227 = vpop.trf.xlu0
    %v228 = vpop.trf.xlu0
    %v229 = vpop.trf.xlu0
    %vm230 = vcmask 130048
    %v232 = vsel %vm230, %v150, 0
    %v235 = vsel %vm230, %v151, 0
    %v238 = vsel %vm230, %v152, 0
    %v241 = vsel %vm230, %v153, 0
    %v244 = vsel %vm230, %v154, 0
    %v247 = vsel %vm230, %v155, 0
    %v250 = vsel %vm230, %v156, 0
    %v253 = vsel %vm230, %v157, 0
    %v256 = vsel %vm230, %v158, 0
    %v259 = vsel %vm230, %v159, 0
    %v262 = vsel %vm230, %v160, 0
    %v265 = vsel %vm230, %v161, 0
    %v268 = vsel %vm230, %v162, 0
    %v271 = vsel %vm230, %v163, 0
    %v274 = vsel %vm230, %v164, 0
    %v277 = vsel %vm230, %v165, 0
    %v280 = vsel %vm230, %v182, 0
    %v283 = vsel %vm230, %v183, 0
    %v286 = vsel %vm230, %v184, 0
    %v289 = vsel %vm230, %v185, 0
    %v292 = vsel %vm230, %v186, 0
    %v295 = vsel %vm230, %v187, 0
    %v298 = vsel %vm230, %v188, 0
    %v301 = vsel %vm230, %v189, 0
    %v304 = vsel %vm230, %v190, 0
    %v307 = vsel %vm230, %v191, 0
    %v310 = vsel %vm230, %v192, 0
    %v313 = vsel %vm230, %v193, 0
    %v316 = vsel %vm230, %v194, 0
    %v319 = vsel %vm230, %v195, 0
    %v322 = vsel %vm230, %v196, 0
    %v325 = vsel %vm230, %v197, 0
    %v328 = vsel %vm230, %v214, 0
    %v331 = vsel %vm230, %v215, 0
    %v334 = vsel %vm230, %v216, 0
    %v337 = vsel %vm230, %v217, 0
    %v340 = vsel %vm230, %v218, 0
    %v343 = vsel %vm230, %v219, 0
    %345 = vmatprep.subr.mxu0 0.0
    %346 = vmatpush1.msra.mxu0 0.0
    %347 = vmatprep.subr.mxu0 0.0
    %348 = vmatpush1.msra.mxu0 0.0
    %349 = vmatprep.subr.mxu0 0.0
    %350 = vmatpush1.msra.mxu0 0.0
    %351 = vmatprep.subr.mxu0 0.0
    %352 = vmatpush1.msra.mxu0 0.0
    %353 = vmatprep.subr.mxu0 0.0
    %354 = vmatpush1.msra.mxu0 0.0
    %355 = vmatprep.subr.mxu0 0.0
    %356 = vmatpush1.msra.mxu0 0.0
    %357 = vmatprep.subr.mxu0 0.0
    %358 = vmatpush1.msra.mxu0 0.0
    %359 = vmatprep.subr.mxu0 0.0
    %360 = vmatpush1.msra.mxu0 0.0
    %361 = vmatprep.subr.mxu0 0.0
    %362 = vmatpush1.msra.mxu0 0.0
    %363 = vmatprep.subr.mxu0 0.0
    %364 = vmatpush1.msra.mxu0 0.0
    %365 = vmatprep.subr.mxu0 0.0
    %366 = vmatpush1.msra.mxu0 0.0
    %367 = vmatprep.subr.mxu0 0.0
    %368 = vmatpush1.msra.mxu0 0.0
    %369 = vmatprep.subr.mxu0 0.0
    %370 = vmatpush1.msra.mxu0 0.0
    %371 = vmatprep.subr.mxu0 0.0
    %372 = vmatpush1.msra.mxu0 0.0
    %373 = vmatprep.subr.mxu0 0.0
    %374 = vmatpush1.msra.mxu0 %v126
    %375 = vmatprep.subr.mxu0 0.0
    %376 = vmatpush1.msra.mxu0 %v125
    %377 = vmatprep.subr.mxu0 0.0
    %378 = vmatpush2.msra.mxu0 0.0
    %379 = vmatprep.subr.mxu0 0.0
    %380 = vmatpush2.msra.mxu0 0.0
    %381 = vmatprep.subr.mxu0 0.0
    %382 = vmatpush2.msra.mxu0 0.0
    %383 = vmatprep.subr.mxu0 0.0
    %384 = vmatpush2.msra.mxu0 0.0
    %385 = vmatprep.subr.mxu0 0.0
    %386 = vmatpush2.msra.mxu0 0.0
    %387 = vmatprep.subr.mxu0 0.0
    %388 = vmatpush2.msra.mxu0 0.0
    %389 = vmatprep.subr.mxu0 0.0
    %390 = vmatpush2.msra.mxu0 0.0
    %391 = vmatprep.subr.mxu0 0.0
    %392 = vmatpush2.msra.mxu0 0.0
    %393 = vmatprep.subr.mxu0 0.0
    %394 = vmatpush2.msra.mxu0 0.0
    %395 = vmatprep.subr.mxu0 0.0
    %396 = vmatpush2.msra.mxu0 0.0
    %397 = vmatprep.subr.mxu0 0.0
    %398 = vmatpush2.msra.mxu0 0.0
    %399 = vmatprep.subr.mxu0 0.0
    %400 = vmatpush2.msra.mxu0 0.0
    %401 = vmatprep.subr.mxu0 0.0
    %402 = vmatpush2.msra.mxu0 0.0
    %403 = vmatprep.subr.mxu0 0.0
    %404 = vmatpush2.msra.mxu0 0.0
    %405 = vmatprep.subr.mxu0 0.0
    %406 = vmatpush2.msra.mxu0 0.0
    %407 = vmatprep.subr.mxu0 0.0
    %408 = vmatpush2.msra.mxu0 0.0
    %409 = vmatprep.mubr.f32.mxu0 0.0
    %410 = vmatmul.mubr.f32.gmra.mxu0 %v232
    %v411 = vpop.f32.mrf.mxu0
    %v412 = vadd.f32 %v132, %v411
    %v413 = vpop.f32.mrf.mxu0
    %414 = vmatprep.mubr.f32.mxu0 0.0
    %415 = vmatmul.mubr.f32.gmra.mxu0 %v235
    %v416 = vpop.f32.mrf.mxu0
    %v417 = vadd.f32 %v132, %v416
    %v418 = vpop.f32.mrf.mxu0
    %419 = vmatprep.mubr.f32.mxu0 0.0
    %420 = vmatmul.mubr.f32.gmra.mxu0 %v238
    %v421 = vpop.f32.mrf.mxu0
    %v422 = vadd.f32 %v132, %v421
    %v423 = vpop.f32.mrf.mxu0
    %424 = vmatprep.mubr.f32.mxu0 0.0
    %425 = vmatmul.mubr.f32.gmra.mxu0 %v241
    %v426 = vpop.f32.mrf.mxu0
    %v427 = vadd.f32 %v132, %v426
    %v428 = vpop.f32.mrf.mxu0
    %429 = vmatprep.mubr.f32.mxu0 0.0
    %430 = vmatmul.mubr.f32.gmra.mxu0 %v244
    %v431 = vpop.f32.mrf.mxu0
    %v432 = vadd.f32 %v132, %v431
    %v433 = vpop.f32.mrf.mxu0
    %434 = vmatprep.mubr.f32.mxu0 0.0
    %435 = vmatmul.mubr.f32.gmra.mxu0 %v247
    %v436 = vpop.f32.mrf.mxu0
    %v437 = vadd.f32 %v132, %v436
    %v438 = vpop.f32.mrf.mxu0
    %439 = vmatprep.mubr.f32.mxu0 0.0
    %440 = vmatmul.mubr.f32.gmra.mxu0 %v250
    %v441 = vpop.f32.mrf.mxu0
    %v442 = vadd.f32 %v132, %v441
    %v443 = vpop.f32.mrf.mxu0
    %444 = vmatprep.mubr.f32.mxu0 0.0
    %445 = vmatmul.mubr.f32.gmra.mxu0 %v253
    %v446 = vpop.f32.mrf.mxu0
    %v447 = vadd.f32 %v132, %v446
    %v448 = vpop.f32.mrf.mxu0
    %449 = vmatprep.mubr.f32.mxu0 0.0
    %450 = vmatmul.mubr.f32.gmra.mxu0 %v256
    %v451 = vpop.f32.mrf.mxu0
    %v452 = vadd.f32 %v132, %v451
    %v453 = vpop.f32.mrf.mxu0
    %454 = vmatprep.mubr.f32.mxu0 0.0
    %455 = vmatmul.mubr.f32.gmra.mxu0 %v259
    %v456 = vpop.f32.mrf.mxu0
    %v457 = vadd.f32 %v132, %v456
    %v458 = vpop.f32.mrf.mxu0
    %459 = vmatprep.mubr.f32.mxu0 0.0
    %460 = vmatmul.mubr.f32.gmra.mxu0 %v262
    %v461 = vpop.f32.mrf.mxu0
    %v462 = vadd.f32 %v132, %v461
    %v463 = vpop.f32.mrf.mxu0
    %464 = vmatprep.mubr.f32.mxu0 0.0
    %465 = vmatmul.mubr.f32.gmra.mxu0 %v265
    %v466 = vpop.f32.mrf.mxu0
    %v467 = vadd.f32 %v132, %v466
    %v468 = vpop.f32.mrf.mxu0
    %469 = vmatprep.mubr.f32.mxu0 0.0
    %470 = vmatmul.mubr.f32.gmra.mxu0 %v268
    %v471 = vpop.f32.mrf.mxu0
    %v472 = vadd.f32 %v132, %v471
    %v473 = vpop.f32.mrf.mxu0
    %474 = vmatprep.mubr.f32.mxu0 0.0
    %475 = vmatmul.mubr.f32.gmra.mxu0 %v271
    %v476 = vpop.f32.mrf.mxu0
    %v477 = vadd.f32 %v132, %v476
    %v478 = vpop.f32.mrf.mxu0
    %479 = vmatprep.mubr.f32.mxu0 0.0
    %480 = vmatmul.mubr.f32.gmra.mxu0 %v274
    %v481 = vpop.f32.mrf.mxu0
    %v482 = vadd.f32 %v132, %v481
    %v483 = vpop.f32.mrf.mxu0
    %484 = vmatprep.mubr.f32.mxu0 0.0
    %485 = vmatmul.mubr.f32.gmra.mxu0 %v277
    %v486 = vpop.f32.mrf.mxu0
    %v487 = vadd.f32 %v132, %v486
    %v488 = vpop.f32.mrf.mxu0
    %489 = vmatprep.mubr.f32.mxu0 0.0
    %490 = vmatmul.mubr.f32.gmra.mxu0 %v280
    %v491 = vpop.f32.mrf.mxu0
    %v492 = vadd.f32 %v132, %v491
    %v493 = vpop.f32.mrf.mxu0
    %494 = vmatprep.mubr.f32.mxu0 0.0
    %495 = vmatmul.mubr.f32.gmra.mxu0 %v283
    %v496 = vpop.f32.mrf.mxu0
    %v497 = vadd.f32 %v132, %v496
    %v498 = vpop.f32.mrf.mxu0
    %499 = vmatprep.mubr.f32.mxu0 0.0
    %500 = vmatmul.mubr.f32.gmra.mxu0 %v286
    %v501 = vpop.f32.mrf.mxu0
    %v502 = vadd.f32 %v132, %v501
    %v503 = vpop.f32.mrf.mxu0
    %504 = vmatprep.mubr.f32.mxu0 0.0
    %505 = vmatmul.mubr.f32.gmra.mxu0 %v289
    %v506 = vpop.f32.mrf.mxu0
    %v507 = vadd.f32 %v132, %v506
    %v508 = vpop.f32.mrf.mxu0
    %509 = vmatprep.mubr.f32.mxu0 0.0
    %510 = vmatmul.mubr.f32.gmra.mxu0 %v292
    %v511 = vpop.f32.mrf.mxu0
    %v512 = vadd.f32 %v132, %v511
    %v513 = vpop.f32.mrf.mxu0
    %514 = vmatprep.mubr.f32.mxu0 0.0
    %515 = vmatmul.mubr.f32.gmra.mxu0 %v295
    %v516 = vpop.f32.mrf.mxu0
    %v517 = vadd.f32 %v132, %v516
    %v518 = vpop.f32.mrf.mxu0
    %519 = vmatprep.mubr.f32.mxu0 0.0
    %520 = vmatmul.mubr.f32.gmra.mxu0 %v298
    %v521 = vpop.f32.mrf.mxu0
    %v522 = vadd.f32 %v132, %v521
    %v523 = vpop.f32.mrf.mxu0
    %524 = vmatprep.mubr.f32.mxu0 0.0
    %525 = vmatmul.mubr.f32.gmra.mxu0 %v301
    %v526 = vpop.f32.mrf.mxu0
    %v527 = vadd.f32 %v132, %v526
    %v528 = vpop.f32.mrf.mxu0
    %529 = vmatprep.mubr.f32.mxu0 0.0
    %530 = vmatmul.mubr.f32.gmra.mxu0 %v304
    %v531 = vpop.f32.mrf.mxu0
    %v532 = vadd.f32 %v132, %v531
    %v533 = vpop.f32.mrf.mxu0
    %534 = vmatprep.mubr.f32.mxu0 0.0
    %535 = vmatmul.mubr.f32.gmra.mxu0 %v307
    %v536 = vpop.f32.mrf.mxu0
    %v537 = vadd.f32 %v132, %v536
    %v538 = vpop.f32.mrf.mxu0
    %539 = vmatprep.mubr.f32.mxu0 0.0
    %540 = vmatmul.mubr.f32.gmra.mxu0 %v310
    %v541 = vpop.f32.mrf.mxu0
    %v542 = vadd.f32 %v132, %v541
    %v543 = vpop.f32.mrf.mxu0
    %544 = vmatprep.mubr.f32.mxu0 0.0
    %545 = vmatmul.mubr.f32.gmra.mxu0 %v313
    %v546 = vpop.f32.mrf.mxu0
    %v547 = vadd.f32 %v132, %v546
    %v548 = vpop.f32.mrf.mxu0
    %549 = vmatprep.mubr.f32.mxu0 0.0
    %550 = vmatmul.mubr.f32.gmra.mxu0 %v316
    %v551 = vpop.f32.mrf.mxu0
    %v552 = vadd.f32 %v132, %v551
    %v553 = vpop.f32.mrf.mxu0
    %554 = vmatprep.mubr.f32.mxu0 0.0
    %555 = vmatmul.mubr.f32.gmra.mxu0 %v319
    %v556 = vpop.f32.mrf.mxu0
    %v557 = vadd.f32 %v132, %v556
    %v558 = vpop.f32.mrf.mxu0
    %559 = vmatprep.mubr.f32.mxu0 0.0
    %560 = vmatmul.mubr.f32.gmra.mxu0 %v322
    %v561 = vpop.f32.mrf.mxu0
    %v562 = vadd.f32 %v132, %v561
    %v563 = vpop.f32.mrf.mxu0
    %564 = vmatprep.mubr.f32.mxu0 0.0
    %565 = vmatmul.mubr.f32.gmra.mxu0 %v325
    %v566 = vpop.f32.mrf.mxu0
    %v567 = vadd.f32 %v132, %v566
    %v568 = vpop.f32.mrf.mxu0
    %569 = vmatprep.mubr.f32.mxu0 0.0
    %570 = vmatmul.mubr.f32.gmra.mxu0 %v328
    %v571 = vpop.f32.mrf.mxu0
    %v572 = vadd.f32 %v132, %v571
    %v573 = vpop.f32.mrf.mxu0
    %574 = vmatprep.mubr.f32.mxu0 0.0
    %575 = vmatmul.mubr.f32.gmra.mxu0 %v331
    %v576 = vpop.f32.mrf.mxu0
    %v577 = vadd.f32 %v132, %v576
    %v578 = vpop.f32.mrf.mxu0
    %579 = vmatprep.mubr.f32.mxu0 0.0
    %580 = vmatmul.mubr.f32.gmra.mxu0 %v334
    %v581 = vpop.f32.mrf.mxu0
    %v582 = vadd.f32 %v132, %v581
    %v583 = vpop.f32.mrf.mxu0
    %584 = vmatprep.mubr.f32.mxu0 0.0
    %585 = vmatmul.mubr.f32.gmra.mxu0 %v337
    %v586 = vpop.f32.mrf.mxu0
    %v587 = vadd.f32 %v132, %v586
    %v588 = vpop.f32.mrf.mxu0
    %589 = vmatprep.mubr.f32.mxu0 0.0
    %590 = vmatmul.mubr.f32.gmra.mxu0 %v340
    %v591 = vpop.f32.mrf.mxu0
    %v592 = vadd.f32 %v132, %v591
    %v593 = vpop.f32.mrf.mxu0
    %594 = vmatprep.mubr.f32.mxu0 0.0
    %595 = vmatmul.mubr.f32.gmra.mxu0 %v343
    %v596 = vpop.f32.mrf.mxu0
    %v597 = vadd.f32 %v132, %v596
    %v598 = vpop.f32.mrf.mxu0
    %599 = vdwg.mxu0
    %v600 = vmax.f32 %v412, 0.0
    %v601 = vmax.f32 %v417, 0.0
    %v602 = vmax.f32 %v422, 0.0
    %v603 = vmax.f32 %v427, 0.0
    %v604 = vmax.f32 %v432, 0.0
    %v605 = vmax.f32 %v437, 0.0
    %v606 = vmax.f32 %v442, 0.0
    %v607 = vmax.f32 %v447, 0.0
    %v608 = vmax.f32 %v452, 0.0
    %v609 = vmax.f32 %v457, 0.0
    %v610 = vmax.f32 %v462, 0.0
    %v611 = vmax.f32 %v467, 0.0
    %v612 = vmax.f32 %v472, 0.0
    %v613 = vmax.f32 %v477, 0.0
    %v614 = vmax.f32 %v482, 0.0
    %v615 = vmax.f32 %v487, 0.0
    %v616 = vmax.f32 %v492, 0.0
    %v617 = vmax.f32 %v497, 0.0
    %v618 = vmax.f32 %v502, 0.0
    %v619 = vmax.f32 %v507, 0.0
    %v620 = vmax.f32 %v512, 0.0
    %v621 = vmax.f32 %v517, 0.0
    %v622 = vmax.f32 %v522, 0.0
    %v623 = vmax.f32 %v527, 0.0
    %v624 = vmax.f32 %v532, 0.0
    %v625 = vmax.f32 %v537, 0.0
    %v626 = vmax.f32 %v542, 0.0
    %v627 = vmax.f32 %v547, 0.0
    %v628 = vmax.f32 %v552, 0.0
    %v629 = vmax.f32 %v557, 0.0
    %v630 = vmax.f32 %v562, 0.0
    %v631 = vmax.f32 %v567, 0.0
    %v632 = vmax.f32 %v572, 0.0
    %v633 = vmax.f32 %v577, 0.0
    %v634 = vmax.f32 %v582, 0.0
    %v635 = vmax.f32 %v587, 0.0
    %v636 = vmax.f32 %v592, 0.0
    %v637 = vmax.f32 %v597, 0.0
    %vm638 = vcmask 523264
    %639 = vst.msk [vmem:[#allocation2] sm:$0xff] %vm638, %v600
    %640 = vst.msk [vmem:[#allocation2 + $0x8] sm:$0xff] %vm638, %v601
    %641 = vst.msk [vmem:[#allocation2 + $0x10] sm:$0xff] %vm638, %v602
    %642 = vst.msk [vmem:[#allocation2 + $0x18] sm:$0xff] %vm638, %v603
    %643 = vst.msk [vmem:[#allocation2 + $0x20] sm:$0xff] %vm638, %v604
    %644 = vst.msk [vmem:[#allocation2 + $0x28] sm:$0xff] %vm638, %v605
    %645 = vst.msk [vmem:[#allocation2 + $0x30] sm:$0xff] %vm638, %v606
    %646 = vst.msk [vmem:[#allocation2 + $0x38] sm:$0xff] %vm638, %v607
    %647 = vst.msk [vmem:[#allocation2 + $0x40] sm:$0xff] %vm638, %v608
    %648 = vst.msk [vmem:[#allocation2 + $0x48] sm:$0xff] %vm638, %v609
    %649 = vst.msk [vmem:[#allocation2 + $0x50] sm:$0xff] %vm638, %v610
    %650 = vst.msk [vmem:[#allocation2 + $0x58] sm:$0xff] %vm638, %v611
    %651 = vst.msk [vmem:[#allocation2 + $0x60] sm:$0xff] %vm638, %v612
    %652 = vst.msk [vmem:[#allocation2 + $0x68] sm:$0xff] %vm638, %v613
    %653 = vst.msk [vmem:[#allocation2 + $0x70] sm:$0xff] %vm638, %v614
    %654 = vst.msk [vmem:[#allocation2 + $0x78] sm:$0xff] %vm638, %v615
    %655 = vst.msk [vmem:[#allocation2 + $0x80] sm:$0xff] %vm638, %v616
    %656 = vst.msk [vmem:[#allocation2 + $0x88] sm:$0xff] %vm638, %v617
    %657 = vst.msk [vmem:[#allocation2 + $0x90] sm:$0xff] %vm638, %v618
    %658 = vst.msk [vmem:[#allocation2 + $0x98] sm:$0xff] %vm638, %v619
    %659 = vst.msk [vmem:[#allocation2 + $0xa0] sm:$0xff] %vm638, %v620
    %660 = vst.msk [vmem:[#allocation2 + $0xa8] sm:$0xff] %vm638, %v621
    %661 = vst.msk [vmem:[#allocation2 + $0xb0] sm:$0xff] %vm638, %v622
    %662 = vst.msk [vmem:[#allocation2 + $0xb8] sm:$0xff] %vm638, %v623
    %663 = vst.msk [vmem:[#allocation2 + $0xc0] sm:$0xff] %vm638, %v624
    %664 = vst.msk [vmem:[#allocation2 + $0xc8] sm:$0xff] %vm638, %v625
    %665 = vst.msk [vmem:[#allocation2 + $0xd0] sm:$0xff] %vm638, %v626
    %666 = vst.msk [vmem:[#allocation2 + $0xd8] sm:$0xff] %vm638, %v627
    %667 = vst.msk [vmem:[#allocation2 + $0xe0] sm:$0xff] %vm638, %v628
    %668 = vst.msk [vmem:[#allocation2 + $0xe8] sm:$0xff] %vm638, %v629
    %669 = vst.msk [vmem:[#allocation2 + $0xf0] sm:$0xff] %vm638, %v630
    %670 = vst.msk [vmem:[#allocation2 + $0xf8] sm:$0xff] %vm638, %v631
    %671 = vst.msk [vmem:[#allocation2 + $0x100] sm:$0xff] %vm638, %v632
    %672 = vst.msk [vmem:[#allocation2 + $0x108] sm:$0xff] %vm638, %v633
    %673 = vst.msk [vmem:[#allocation2 + $0x110] sm:$0xff] %vm638, %v634
    %674 = vst.msk [vmem:[#allocation2 + $0x118] sm:$0xff] %vm638, %v635
    %675 = vst.msk [vmem:[#allocation2 + $0x120] sm:$0xff] %vm638, %v636
    %676 = vst.msk [vmem:[#allocation2 + $0x128] sm:$0xff] %vm638, %v637
    %v677 = vld [vmem:[#allocation2] ss:$2 sm:$0xff]
    %s678 = scalar_lea.vmem [#allocation2], 16
    %v679 = vld [vmem:[%s678] ss:$2 sm:$0xff]
    %s680 = scalar_lea.vmem [#allocation2], 32
    %v681 = vld [vmem:[%s680] ss:$2 sm:$0xff]
    %s682 = scalar_lea.vmem [#allocation2], 48
    %v683 = vld [vmem:[%s682] ss:$2 sm:$0xff]
    %s684 = scalar_lea.vmem [#allocation2], 64
    %v685 = vld [vmem:[%s684] ss:$2 sm:$0xff]
    %s686 = scalar_lea.vmem [#allocation2], 80
    %v687 = vld [vmem:[%s686] ss:$2 sm:$0xff]
    %s688 = scalar_lea.vmem [#allocation2], 96
    %v689 = vld [vmem:[%s688] ss:$2 sm:$0xff]
    %s690 = scalar_lea.vmem [#allocation2], 112
    %v691 = vld [vmem:[%s690] ss:$2 sm:$0xff]
    %s692 = scalar_lea.vmem [#allocation2], 128
    %v693 = vld [vmem:[%s692] ss:$2 sm:$0xff]
    %s694 = scalar_lea.vmem [#allocation2], 144
    %v695 = vld [vmem:[%s694] ss:$2 sm:$0xff]
    %s696 = scalar_lea.vmem [#allocation2], 160
    %v697 = vld [vmem:[%s696] ss:$2 sm:$0xff]
    %s698 = scalar_lea.vmem [#allocation2], 176
    %v699 = vld [vmem:[%s698] ss:$2 sm:$0xff]
    %s700 = scalar_lea.vmem [#allocation2], 192
    %v701 = vld [vmem:[%s700] ss:$2 sm:$0xff]
    %s702 = scalar_lea.vmem [#allocation2], 208
    %v703 = vld [vmem:[%s702] ss:$2 sm:$0xff]
    %s704 = scalar_lea.vmem [#allocation2], 224
    %v705 = vld [vmem:[%s704] ss:$2 sm:$0xff]
    %s706 = scalar_lea.vmem [#allocation2], 240
    %v707 = vld [vmem:[%s706] ss:$2 sm:$0xff]
    %s708 = scalar_lea.vmem [#allocation2], 256
    %v709 = vld [vmem:[%s708] ss:$2 sm:$0xff]
    %s710 = scalar_lea.vmem [#allocation2], 272
    %v711 = vld [vmem:[%s710] ss:$2 sm:$0xff]
    %s712 = scalar_lea.vmem [#allocation2], 288
    %v713 = vld [vmem:[%s712] ss:$2 sm:$0xff]
    %s714 = scalar_lea.vmem [#allocation2], 1
    %v715 = vld [vmem:[%s714] ss:$2 sm:$0xff]
    %s716 = scalar_lea.vmem [#allocation2], 17
    %v717 = vld [vmem:[%s716] ss:$2 sm:$0xff]
    %s718 = scalar_lea.vmem [#allocation2], 33
    %v719 = vld [vmem:[%s718] ss:$2 sm:$0xff]
    %s720 = scalar_lea.vmem [#allocation2], 49
    %v721 = vld [vmem:[%s720] ss:$2 sm:$0xff]
    %s722 = scalar_lea.vmem [#allocation2], 65
    %v723 = vld [vmem:[%s722] ss:$2 sm:$0xff]
    %s724 = scalar_lea.vmem [#allocation2], 81
    %v725 = vld [vmem:[%s724] ss:$2 sm:$0xff]
    %s726 = scalar_lea.vmem [#allocation2], 97
    %v727 = vld [vmem:[%s726] ss:$2 sm:$0xff]
    %s728 = scalar_lea.vmem [#allocation2], 113
    %v729 = vld [vmem:[%s728] ss:$2 sm:$0xff]
    %s730 = scalar_lea.vmem [#allocation2], 129
    %v731 = vld [vmem:[%s730] ss:$2 sm:$0xff]
    %s732 = scalar_lea.vmem [#allocation2], 145
    %v733 = vld [vmem:[%s732] ss:$2 sm:$0xff]
    %s734 = scalar_lea.vmem [#allocation2], 161
    %v735 = vld [vmem:[%s734] ss:$2 sm:$0xff]
    %s736 = scalar_lea.vmem [#allocation2], 177
    %v737 = vld [vmem:[%s736] ss:$2 sm:$0xff]
    %s738 = scalar_lea.vmem [#allocation2], 193
    %v739 = vld [vmem:[%s738] ss:$2 sm:$0xff]
    %s740 = scalar_lea.vmem [#allocation2], 209
    %v741 = vld [vmem:[%s740] ss:$2 sm:$0xff]
    %s742 = scalar_lea.vmem [#allocation2], 225
    %v743 = vld [vmem:[%s742] ss:$2 sm:$0xff]
    %s744 = scalar_lea.vmem [#allocation2], 241
    %v745 = vld [vmem:[%s744] ss:$2 sm:$0xff]
    %s746 = scalar_lea.vmem [#allocation2], 257
    %v747 = vld [vmem:[%s746] ss:$2 sm:$0xff]
    %s748 = scalar_lea.vmem [#allocation2], 273
    %v749 = vld [vmem:[%s748] ss:$2 sm:$0xff]
    %s750 = scalar_lea.vmem [#allocation2], 289
    %v751 = vld [vmem:[%s750] ss:$2 sm:$0xff]
    %v752 = vmax.f32 %v677, %v715
    %v753 = vmax.f32 %v679, %v717
    %v754 = vmax.f32 %v681, %v719
    %v755 = vmax.f32 %v683, %v721
    %v756 = vmax.f32 %v685, %v723
    %v757 = vmax.f32 %v687, %v725
    %v758 = vmax.f32 %v689, %v727
    %v759 = vmax.f32 %v691, %v729
    %v760 = vmax.f32 %v693, %v731
    %v761 = vmax.f32 %v695, %v733
    %v762 = vmax.f32 %v697, %v735
    %v763 = vmax.f32 %v699, %v737
    %v764 = vmax.f32 %v701, %v739
    %v765 = vmax.f32 %v703, %v741
    %v766 = vmax.f32 %v705, %v743
    %v767 = vmax.f32 %v707, %v745
    %v768 = vmax.f32 %v709, %v747
    %v769 = vmax.f32 %v711, %v749
    %v770 = vmax.f32 %v713, %v751
    %771 = vst.msk [vmem:[#allocation3 + $0x4] sm:$0xff] %vm638, %v752
    %772 = vst.msk [vmem:[#allocation3 + $0xc] sm:$0xff] %vm638, %v753
    %773 = vst.msk [vmem:[#allocation3 + $0x14] sm:$0xff] %vm638, %v754
    %774 = vst.msk [vmem:[#allocation3 + $0x1c] sm:$0xff] %vm638, %v755
    %775 = vst.msk [vmem:[#allocation3 + $0x24] sm:$0xff] %vm638, %v756
    %776 = vst.msk [vmem:[#allocation3 + $0x2c] sm:$0xff] %vm638, %v757
    %777 = vst.msk [vmem:[#allocation3 + $0x34] sm:$0xff] %vm638, %v758
    %778 = vst.msk [vmem:[#allocation3 + $0x3c] sm:$0xff] %vm638, %v759
    %779 = vst.msk [vmem:[#allocation3 + $0x44] sm:$0xff] %vm638, %v760
    %780 = vst.msk [vmem:[#allocation3 + $0x4c] sm:$0xff] %vm638, %v761
    %781 = vst.msk [vmem:[#allocation3 + $0x54] sm:$0xff] %vm638, %v762
    %782 = vst.msk [vmem:[#allocation3 + $0x5c] sm:$0xff] %vm638, %v763
    %783 = vst.msk [vmem:[#allocation3 + $0x64] sm:$0xff] %vm638, %v764
    %784 = vst.msk [vmem:[#allocation3 + $0x6c] sm:$0xff] %vm638, %v765
    %785 = vst.msk [vmem:[#allocation3 + $0x74] sm:$0xff] %vm638, %v766
    %786 = vst.msk [vmem:[#allocation3 + $0x7c] sm:$0xff] %vm638, %v767
    %787 = vst.msk [vmem:[#allocation3 + $0x84] sm:$0xff] %vm638, %v768
    %788 = vst.msk [vmem:[#allocation3 + $0x8c] sm:$0xff] %vm638, %v769
    %789 = vst.msk [vmem:[#allocation3 + $0x94] sm:$0xff] %vm638, %v770
    %v790 = vld [vmem:[#allocation3] sm:$0xff]
    %v791 = vld [vmem:[#allocation3 + $0x8] sm:$0xff]
    %v792 = vld [vmem:[#allocation3 + $0x10] sm:$0xff]
    %v793 = vld [vmem:[#allocation3 + $0x18] sm:$0xff]
    %v794 = vld [vmem:[#allocation3 + $0x20] sm:$0xff]
    %v795 = vld [vmem:[#allocation3 + $0x28] sm:$0xff]
    %v796 = vld [vmem:[#allocation3 + $0x30] sm:$0xff]
    %v797 = vld [vmem:[#allocation3 + $0x38] sm:$0xff]
    %v798 = vld [vmem:[#allocation3 + $0x40] sm:$0xff]
    %v799 = vld [vmem:[#allocation3 + $0x48] sm:$0xff]
    %v800 = vld [vmem:[#allocation3 + $0x50] sm:$0xff]
    %v801 = vld [vmem:[#allocation3 + $0x58] sm:$0xff]
    %v802 = vld [vmem:[#allocation3 + $0x60] sm:$0xff]
    %v803 = vld [vmem:[#allocation3 + $0x68] sm:$0xff]
    %v804 = vld [vmem:[#allocation3 + $0x70] sm:$0xff]
    %v805 = vld [vmem:[#allocation3 + $0x78] sm:$0xff]
    %v806 = vld [vmem:[#allocation3 + $0x80] sm:$0xff]
    %v807 = vld [vmem:[#allocation3 + $0x88] sm:$0xff]
    %v808 = vld [vmem:[#allocation3 + $0x90] sm:$0xff]
    %v809 = vpack.c.bf16 %v791, %v790
    %v810 = vpack.c.bf16 %v793, %v792
    %v811 = vpack.c.bf16 %v795, %v794
    %v812 = vpack.c.bf16 %v797, %v796
    %v813 = vpack.c.bf16 %v799, %v798
    %v814 = vpack.c.bf16 %v801, %v800
    %v815 = vpack.c.bf16 %v803, %v802
    %v816 = vpack.c.bf16 %v805, %v804
    %v817 = vpack.c.bf16 %v807, %v806
    %v818 = vpack.c.bf16 %v808, %v808
    %v819 = vld [vmem:[#allocation13] sm:$0xf]
    %v820 = vld [vmem:[#allocation13 + $0x4] sm:$0xf]
    %v821 = vld [vmem:[#allocation13 + $0x8] sm:$0xf]
    %v822 = vld [vmem:[#allocation13 + $0xc] sm:$0xf]
    %v823 = vld [vmem:[#allocation13 + $0x10] sm:$0xf]
    %v824 = vld [vmem:[#allocation13 + $0x14] sm:$0xf]
    %v825 = vld [vmem:[#allocation13 + $0x18] sm:$0xf]
    %v826 = vld [vmem:[#allocation13 + $0x1c] sm:$0xf]
    %v827 = vld [vmem:[#allocation3 + $0x1] sm:$0xff]
    %v828 = vld [vmem:[#allocation3 + $0x9] sm:$0xff]
    %v829 = vld [vmem:[#allocation3 + $0x11] sm:$0xff]
    %v830 = vld [vmem:[#allocation3 + $0x19] sm:$0xff]
    %v831 = vld [vmem:[#allocation3 + $0x21] sm:$0xff]
    %v832 = vld [vmem:[#allocation3 + $0x29] sm:$0xff]
    %v833 = vld [vmem:[#allocation3 + $0x31] sm:$0xff]
    %v834 = vld [vmem:[#allocation3 + $0x39] sm:$0xff]
    %v835 = vld [vmem:[#allocation3 + $0x41] sm:$0xff]
    %v836 = vld [vmem:[#allocation3 + $0x49] sm:$0xff]
    %v837 = vld [vmem:[#allocation3 + $0x51] sm:$0xff]
    %v838 = vld [vmem:[#allocation3 + $0x59] sm:$0xff]
    %v839 = vld [vmem:[#allocation3 + $0x61] sm:$0xff]
    %v840 = vld [vmem:[#allocation3 + $0x69] sm:$0xff]
    %v841 = vld [vmem:[#allocation3 + $0x71] sm:$0xff]
    %v842 = vld [vmem:[#allocation3 + $0x79] sm:$0xff]
    %v843 = vld [vmem:[#allocation3 + $0x81] sm:$0xff]
    %v844 = vld [vmem:[#allocation3 + $0x89] sm:$0xff]
    %v845 = vld [vmem:[#allocation3 + $0x91] sm:$0xff]
    %v846 = vpack.c.bf16 %v828, %v827
    %v847 = vpack.c.bf16 %v830, %v829
    %v848 = vpack.c.bf16 %v832, %v831
    %v849 = vpack.c.bf16 %v834, %v833
    %v850 = vpack.c.bf16 %v836, %v835
    %v851 = vpack.c.bf16 %v838, %v837
    %v852 = vpack.c.bf16 %v840, %v839
    %v853 = vpack.c.bf16 %v842, %v841
    %v854 = vpack.c.bf16 %v844, %v843
    %v855 = vpack.c.bf16 %v845, %v845
    %v856 = vld [vmem:[#allocation13 + $0x20] sm:$0xf]
    %v857 = vld [vmem:[#allocation13 + $0x24] sm:$0xf]
    %v858 = vld [vmem:[#allocation13 + $0x28] sm:$0xf]
    %v859 = vld [vmem:[#allocation13 + $0x2c] sm:$0xf]
    %v860 = vld [vmem:[#allocation13 + $0x30] sm:$0xf]
    %v861 = vld [vmem:[#allocation13 + $0x34] sm:$0xf]
    %v862 = vld [vmem:[#allocation13 + $0x38] sm:$0xf]
    %v863 = vld [vmem:[#allocation13 + $0x3c] sm:$0xf]
    %v872 = vunpack.c.l.b16 %v856
    %v873 = vunpack.c.l.b16 %v857
    %v874 = vunpack.c.l.b16 %v858
    %v875 = vunpack.c.l.b16 %v859
    %v876 = vunpack.c.l.b16 %v860
    %v877 = vunpack.c.l.b16 %v861
    %v878 = vunpack.c.l.b16 %v862
    %v879 = vunpack.c.l.b16 %v863
    %v880 = vpack.c.b16 %v873, %v872
    %v881 = vpack.c.b16 %v875, %v874
    %v882 = vpack.c.b16 %v877, %v876
    %v883 = vpack.c.b16 %v879, %v878
    %v889 = vsel %vm638, %v846, 0
    %v892 = vsel %vm638, %v847, 0
    %v895 = vsel %vm638, %v848, 0
    %v898 = vsel %vm638, %v849, 0
    %v901 = vsel %vm638, %v850, 0
    %v904 = vsel %vm638, %v851, 0
    %v907 = vsel %vm638, %v852, 0
    %v910 = vsel %vm638, %v853, 0
    %v913 = vsel %vm638, %v854, 0
    %v916 = vsel %vm638, %v855, 0
    %918 = vmatprep.subr.bf16.mxu0 0
    %919 = vmatpush1.bf16.msra.mxu0 0
    %920 = vmatprep.subr.bf16.mxu0 0
    %921 = vmatpush1.bf16.msra.mxu0 0
    %922 = vmatprep.subr.bf16.mxu0 0
    %923 = vmatpush1.bf16.msra.mxu0 0
    %924 = vmatprep.subr.bf16.mxu0 0
    %925 = vmatpush1.bf16.msra.mxu0 0
    %926 = vmatprep.subr.bf16.mxu0 0
    %927 = vmatpush1.bf16.msra.mxu0 %v883
    %928 = vmatprep.subr.bf16.mxu0 0
    %929 = vmatpush1.bf16.msra.mxu0 %v882
    %930 = vmatprep.subr.bf16.mxu0 0
    %931 = vmatpush1.bf16.msra.mxu0 %v881
    %932 = vmatprep.subr.bf16.mxu0 0
    %933 = vmatpush1.bf16.msra.mxu0 %v880
    %934 = vmatprep.subr.bf16.mxu0 0
    %935 = vmatpush2.bf16.msra.mxu0 0
    %936 = vmatprep.subr.bf16.mxu0 0
    %937 = vmatpush2.bf16.msra.mxu0 0
    %938 = vmatprep.subr.bf16.mxu0 0
    %939 = vmatpush2.bf16.msra.mxu0 0
    %940 = vmatprep.subr.bf16.mxu0 0
    %941 = vmatpush2.bf16.msra.mxu0 0
    %942 = vmatprep.subr.bf16.mxu0 0
    %943 = vmatpush2.bf16.msra.mxu0 0
    %944 = vmatprep.subr.bf16.mxu0 0
    %945 = vmatpush2.bf16.msra.mxu0 0
    %946 = vmatprep.subr.bf16.mxu0 0
    %947 = vmatpush2.bf16.msra.mxu0 0
    %948 = vmatprep.subr.bf16.mxu0 0
    %949 = vmatpush2.bf16.msra.mxu0 0
    %950 = vmatprep.mubr.bf16.mxu0 0
    %951 = vmatmul.mubr.bf16.gmra.mxu0 %v889
    %v952 = vpop.f32.mrf.mxu0
    %v953 = vadd.f32 0.0, %v952
    %v954 = vpop.f32.mrf.mxu0
    %v955 = vpop.f32.mrf.mxu0
    %v956 = vadd.f32 0.0, %v955
    %v957 = vpop.f32.mrf.mxu0
    %958 = vmatprep.mubr.bf16.mxu0 0
    %959 = vmatmul.mubr.bf16.gmra.mxu0 %v892
    %v960 = vpop.f32.mrf.mxu0
    %v961 = vadd.f32 0.0, %v960
    %v962 = vpop.f32.mrf.mxu0
    %v963 = vpop.f32.mrf.mxu0
    %v964 = vadd.f32 0.0, %v963
    %v965 = vpop.f32.mrf.mxu0
    %966 = vmatprep.mubr.bf16.mxu0 0
    %967 = vmatmul.mubr.bf16.gmra.mxu0 %v895
    %v968 = vpop.f32.mrf.mxu0
    %v969 = vadd.f32 0.0, %v968
    %v970 = vpop.f32.mrf.mxu0
    %v971 = vpop.f32.mrf.mxu0
    %v972 = vadd.f32 0.0, %v971
    %v973 = vpop.f32.mrf.mxu0
    %974 = vmatprep.mubr.bf16.mxu0 0
    %975 = vmatmul.mubr.bf16.gmra.mxu0 %v898
    %v976 = vpop.f32.mrf.mxu0
    %v977 = vadd.f32 0.0, %v976
    %v978 = vpop.f32.mrf.mxu0
    %v979 = vpop.f32.mrf.mxu0
    %v980 = vadd.f32 0.0, %v979
    %v981 = vpop.f32.mrf.mxu0
    %982 = vmatprep.mubr.bf16.mxu0 0
    %983 = vmatmul.mubr.bf16.gmra.mxu0 %v901
    %v984 = vpop.f32.mrf.mxu0
    %v985 = vadd.f32 0.0, %v984
    %v986 = vpop.f32.mrf.mxu0
    %v987 = vpop.f32.mrf.mxu0
    %v988 = vadd.f32 0.0, %v987
    %v989 = vpop.f32.mrf.mxu0
    %990 = vmatprep.mubr.bf16.mxu0 0
    %991 = vmatmul.mubr.bf16.gmra.mxu0 %v904
    %v992 = vpop.f32.mrf.mxu0
    %v993 = vadd.f32 0.0, %v992
    %v994 = vpop.f32.mrf.mxu0
    %v995 = vpop.f32.mrf.mxu0
    %v996 = vadd.f32 0.0, %v995
    %v997 = vpop.f32.mrf.mxu0
    %998 = vmatprep.mubr.bf16.mxu0 0
    %999 = vmatmul.mubr.bf16.gmra.mxu0 %v907
    %v1000 = vpop.f32.mrf.mxu0
    %v1001 = vadd.f32 0.0, %v1000
    %v1002 = vpop.f32.mrf.mxu0
    %v1003 = vpop.f32.mrf.mxu0
    %v1004 = vadd.f32 0.0, %v1003
    %v1005 = vpop.f32.mrf.mxu0
    %1006 = vmatprep.mubr.bf16.mxu0 0
    %1007 = vmatmul.mubr.bf16.gmra.mxu0 %v910
    %v1008 = vpop.f32.mrf.mxu0
    %v1009 = vadd.f32 0.0, %v1008
    %v1010 = vpop.f32.mrf.mxu0
    %v1011 = vpop.f32.mrf.mxu0
    %v1012 = vadd.f32 0.0, %v1011
    %v1013 = vpop.f32.mrf.mxu0
    %1014 = vmatprep.mubr.bf16.mxu0 0
    %1015 = vmatmul.mubr.bf16.gmra.mxu0 %v913
    %v1016 = vpop.f32.mrf.mxu0
    %v1017 = vadd.f32 0.0, %v1016
    %v1018 = vpop.f32.mrf.mxu0
    %v1019 = vpop.f32.mrf.mxu0
    %v1020 = vadd.f32 0.0, %v1019
    %v1021 = vpop.f32.mrf.mxu0
    %1022 = vmatprep.mubr.bf16.mxu0 0
    %1023 = vmatmul.mubr.bf16.gmra.mxu0 %v916
    %v1024 = vpop.f32.mrf.mxu0
    %v1025 = vadd.f32 0.0, %v1024
    %v1026 = vpop.f32.mrf.mxu0
    %v1027 = vpop.f32.mrf.mxu0
    %v1028 = vpop.f32.mrf.mxu0
    %1029 = vdwg.mxu0
    %v1038 = vunpack.c.l.b16 %v819
    %v1039 = vunpack.c.l.b16 %v820
    %v1040 = vunpack.c.l.b16 %v821
    %v1041 = vunpack.c.l.b16 %v822
    %v1042 = vunpack.c.l.b16 %v823
    %v1043 = vunpack.c.l.b16 %v824
    %v1044 = vunpack.c.l.b16 %v825
    %v1045 = vunpack.c.l.b16 %v826
    %v1046 = vpack.c.b16 %v1039, %v1038
    %v1047 = vpack.c.b16 %v1041, %v1040
    %v1048 = vpack.c.b16 %v1043, %v1042
    %v1049 = vpack.c.b16 %v1045, %v1044
    %v1055 = vsel %vm638, %v809, 0
    %v1058 = vsel %vm638, %v810, 0
    %v1061 = vsel %vm638, %v811, 0
    %v1064 = vsel %vm638, %v812, 0
    %v1067 = vsel %vm638, %v813, 0
    %v1070 = vsel %vm638, %v814, 0
    %v1073 = vsel %vm638, %v815, 0
    %v1076 = vsel %vm638, %v816, 0
    %v1079 = vsel %vm638, %v817, 0
    %v1082 = vsel %vm638, %v818, 0
    %1084 = vmatprep.subr.bf16.mxu0 0
    %1085 = vmatpush1.bf16.msra.mxu0 0
    %1086 = vmatprep.subr.bf16.mxu0 0
    %1087 = vmatpush1.bf16.msra.mxu0 0
    %1088 = vmatprep.subr.bf16.mxu0 0
    %1089 = vmatpush1.bf16.msra.mxu0 0
    %1090 = vmatprep.subr.bf16.mxu0 0
    %1091 = vmatpush1.bf16.msra.mxu0 0
    %1092 = vmatprep.subr.bf16.mxu0 0
    %1093 = vmatpush1.bf16.msra.mxu0 %v1049
    %1094 = vmatprep.subr.bf16.mxu0 0
    %1095 = vmatpush1.bf16.msra.mxu0 %v1048
    %1096 = vmatprep.subr.bf16.mxu0 0
    %1097 = vmatpush1.bf16.msra.mxu0 %v1047
    %1098 = vmatprep.subr.bf16.mxu0 0
    %1099 = vmatpush1.bf16.msra.mxu0 %v1046
    %1100 = vmatprep.subr.bf16.mxu0 0
    %1101 = vmatpush2.bf16.msra.mxu0 0
    %1102 = vmatprep.subr.bf16.mxu0 0
    %1103 = vmatpush2.bf16.msra.mxu0 0
    %1104 = vmatprep.subr.bf16.mxu0 0
    %1105 = vmatpush2.bf16.msra.mxu0 0
    %1106 = vmatprep.subr.bf16.mxu0 0
    %1107 = vmatpush2.bf16.msra.mxu0 0
    %1108 = vmatprep.subr.bf16.mxu0 0
    %1109 = vmatpush2.bf16.msra.mxu0 0
    %1110 = vmatprep.subr.bf16.mxu0 0
    %1111 = vmatpush2.bf16.msra.mxu0 0
    %1112 = vmatprep.subr.bf16.mxu0 0
    %1113 = vmatpush2.bf16.msra.mxu0 0
    %1114 = vmatprep.subr.bf16.mxu0 0
    %1115 = vmatpush2.bf16.msra.mxu0 0
    %1116 = vmatprep.mubr.bf16.mxu0 0
    %1117 = vmatmul.mubr.bf16.gmra.mxu0 %v1055
    %v1118 = vpop.f32.mrf.mxu0
    %v1119 = vadd.f32 %v953, %v1118
    %v1120 = vpop.f32.mrf.mxu0
    %v1121 = vpop.f32.mrf.mxu0
    %v1122 = vadd.f32 %v956, %v1121
    %v1123 = vpop.f32.mrf.mxu0
    %1124 = vmatprep.mubr.bf16.mxu0 0
    %1125 = vmatmul.mubr.bf16.gmra.mxu0 %v1058
    %v1126 = vpop.f32.mrf.mxu0
    %v1127 = vadd.f32 %v961, %v1126
    %v1128 = vpop.f32.mrf.mxu0
    %v1129 = vpop.f32.mrf.mxu0
    %v1130 = vadd.f32 %v964, %v1129
    %v1131 = vpop.f32.mrf.mxu0
    %1132 = vmatprep.mubr.bf16.mxu0 0
    %1133 = vmatmul.mubr.bf16.gmra.mxu0 %v1061
    %v1134 = vpop.f32.mrf.mxu0
    %v1135 = vadd.f32 %v969, %v1134
    %v1136 = vpop.f32.mrf.mxu0
    %v1137 = vpop.f32.mrf.mxu0
    %v1138 = vadd.f32 %v972, %v1137
    %v1139 = vpop.f32.mrf.mxu0
    %1140 = vmatprep.mubr.bf16.mxu0 0
    %1141 = vmatmul.mubr.bf16.gmra.mxu0 %v1064
    %v1142 = vpop.f32.mrf.mxu0
    %v1143 = vadd.f32 %v977, %v1142
    %v1144 = vpop.f32.mrf.mxu0
    %v1145 = vpop.f32.mrf.mxu0
    %v1146 = vadd.f32 %v980, %v1145
    %v1147 = vpop.f32.mrf.mxu0
    %1148 = vmatprep.mubr.bf16.mxu0 0
    %1149 = vmatmul.mubr.bf16.gmra.mxu0 %v1067
    %v1150 = vpop.f32.mrf.mxu0
    %v1151 = vadd.f32 %v985, %v1150
    %v1152 = vpop.f32.mrf.mxu0
    %v1153 = vpop.f32.mrf.mxu0
    %v1154 = vadd.f32 %v988, %v1153
    %v1155 = vpop.f32.mrf.mxu0
    %1156 = vmatprep.mubr.bf16.mxu0 0
    %1157 = vmatmul.mubr.bf16.gmra.mxu0 %v1070
    %v1158 = vpop.f32.mrf.mxu0
    %v1159 = vadd.f32 %v993, %v1158
    %v1160 = vpop.f32.mrf.mxu0
    %v1161 = vpop.f32.mrf.mxu0
    %v1162 = vadd.f32 %v996, %v1161
    %v1163 = vpop.f32.mrf.mxu0
    %1164 = vmatprep.mubr.bf16.mxu0 0
    %1165 = vmatmul.mubr.bf16.gmra.mxu0 %v1073
    %v1166 = vpop.f32.mrf.mxu0
    %v1167 = vadd.f32 %v1001, %v1166
    %v1168 = vpop.f32.mrf.mxu0
    %v1169 = vpop.f32.mrf.mxu0
    %v1170 = vadd.f32 %v1004, %v1169
    %v1171 = vpop.f32.mrf.mxu0
    %1172 = vmatprep.mubr.bf16.mxu0 0
    %1173 = vmatmul.mubr.bf16.gmra.mxu0 %v1076
    %v1174 = vpop.f32.mrf.mxu0
    %v1175 = vadd.f32 %v1009, %v1174
    %v1176 = vpop.f32.mrf.mxu0
    %v1177 = vpop.f32.mrf.mxu0
    %v1178 = vadd.f32 %v1012, %v1177
    %v1179 = vpop.f32.mrf.mxu0
    %1180 = vmatprep.mubr.bf16.mxu0 0
    %1181 = vmatmul.mubr.bf16.gmra.mxu0 %v1079
    %v1182 = vpop.f32.mrf.mxu0
    %v1183 = vadd.f32 %v1017, %v1182
    %v1184 = vpop.f32.mrf.mxu0
    %v1185 = vpop.f32.mrf.mxu0
    %v1186 = vadd.f32 %v1020, %v1185
    %v1187 = vpop.f32.mrf.mxu0
    %1188 = vmatprep.mubr.bf16.mxu0 0
    %1189 = vmatmul.mubr.bf16.gmra.mxu0 %v1082
    %v1190 = vpop.f32.mrf.mxu0
    %v1191 = vadd.f32 %v1025, %v1190
    %v1192 = vpop.f32.mrf.mxu0
    %v1193 = vpop.f32.mrf.mxu0
    %v1194 = vpop.f32.mrf.mxu0
    %1195 = vdwg.mxu0
    %v1196 = vld [vmem:[#allocation3 + $0x2] sm:$0xff]
    %v1197 = vld [vmem:[#allocation3 + $0xa] sm:$0xff]
    %v1198 = vld [vmem:[#allocation3 + $0x12] sm:$0xff]
    %v1199 = vld [vmem:[#allocation3 + $0x1a] sm:$0xff]
    %v1200 = vld [vmem:[#allocation3 + $0x22] sm:$0xff]
    %v1201 = vld [vmem:[#allocation3 + $0x2a] sm:$0xff]
    %v1202 = vld [vmem:[#allocation3 + $0x32] sm:$0xff]
    %v1203 = vld [vmem:[#allocation3 + $0x3a] sm:$0xff]
    %v1204 = vld [vmem:[#allocation3 + $0x42] sm:$0xff]
    %v1205 = vld [vmem:[#allocation3 + $0x4a] sm:$0xff]
    %v1206 = vld [vmem:[#allocation3 + $0x52] sm:$0xff]
    %v1207 = vld [vmem:[#allocation3 + $0x5a] sm:$0xff]
    %v1208 = vld [vmem:[#allocation3 + $0x62] sm:$0xff]
    %v1209 = vld [vmem:[#allocation3 + $0x6a] sm:$0xff]
    %v1210 = vld [vmem:[#allocation3 + $0x72] sm:$0xff]
    %v1211 = vld [vmem:[#allocation3 + $0x7a] sm:$0xff]
    %v1212 = vld [vmem:[#allocation3 + $0x82] sm:$0xff]
    %v1213 = vld [vmem:[#allocation3 + $0x8a] sm:$0xff]
    %v1214 = vld [vmem:[#allocation3 + $0x92] sm:$0xff]
    %v1215 = vpack.c.bf16 %v1197, %v1196
    %v1216 = vpack.c.bf16 %v1199, %v1198
    %v1217 = vpack.c.bf16 %v1201, %v1200
    %v1218 = vpack.c.bf16 %v1203, %v1202
    %v1219 = vpack.c.bf16 %v1205, %v1204
    %v1220 = vpack.c.bf16 %v1207, %v1206
    %v1221 = vpack.c.bf16 %v1209, %v1208
    %v1222 = vpack.c.bf16 %v1211, %v1210
    %v1223 = vpack.c.bf16 %v1213, %v1212
    %v1224 = vpack.c.bf16 %v1214, %v1214
    %v1225 = vld [vmem:[#allocation13 + $0x40] sm:$0xf]
    %v1226 = vld [vmem:[#allocation13 + $0x44] sm:$0xf]
    %v1227 = vld [vmem:[#allocation13 + $0x48] sm:$0xf]
    %v1228 = vld [vmem:[#allocation13 + $0x4c] sm:$0xf]
    %v1229 = vld [vmem:[#allocation13 + $0x50] sm:$0xf]
    %v1230 = vld [vmem:[#allocation13 + $0x54] sm:$0xf]
    %v1231 = vld [vmem:[#allocation13 + $0x58] sm:$0xf]
    %v1232 = vld [vmem:[#allocation13 + $0x5c] sm:$0xf]
    %v1241 = vunpack.c.l.b16 %v1225
    %v1242 = vunpack.c.l.b16 %v1226
    %v1243 = vunpack.c.l.b16 %v1227
    %v1244 = vunpack.c.l.b16 %v1228
    %v1245 = vunpack.c.l.b16 %v1229
    %v1246 = vunpack.c.l.b16 %v1230
    %v1247 = vunpack.c.l.b16 %v1231
    %v1248 = vunpack.c.l.b16 %v1232
    %v1249 = vpack.c.b16 %v1242, %v1241
    %v1250 = vpack.c.b16 %v1244, %v1243
    %v1251 = vpack.c.b16 %v1246, %v1245
    %v1252 = vpack.c.b16 %v1248, %v1247
    %v1258 = vsel %vm638, %v1215, 0
    %v1261 = vsel %vm638, %v1216, 0
    %v1264 = vsel %vm638, %v1217, 0
    %v1267 = vsel %vm638, %v1218, 0
    %v1270 = vsel %vm638, %v1219, 0
    %v1273 = vsel %vm638, %v1220, 0
    %v1276 = vsel %vm638, %v1221, 0
    %v1279 = vsel %vm638, %v1222, 0
    %v1282 = vsel %vm638, %v1223, 0
    %v1285 = vsel %vm638, %v1224, 0
    %1287 = vmatprep.subr.bf16.mxu0 0
    %1288 = vmatpush1.bf16.msra.mxu0 0
    %1289 = vmatprep.subr.bf16.mxu0 0
    %1290 = vmatpush1.bf16.msra.mxu0 0
    %1291 = vmatprep.subr.bf16.mxu0 0
    %1292 = vmatpush1.bf16.msra.mxu0 0
    %1293 = vmatprep.subr.bf16.mxu0 0
    %1294 = vmatpush1.bf16.msra.mxu0 0
    %1295 = vmatprep.subr.bf16.mxu0 0
    %1296 = vmatpush1.bf16.msra.mxu0 %v1252
    %1297 = vmatprep.subr.bf16.mxu0 0
    %1298 = vmatpush1.bf16.msra.mxu0 %v1251
    %1299 = vmatprep.subr.bf16.mxu0 0
    %1300 = vmatpush1.bf16.msra.mxu0 %v1250
    %1301 = vmatprep.subr.bf16.mxu0 0
    %1302 = vmatpush1.bf16.msra.mxu0 %v1249
    %1303 = vmatprep.subr.bf16.mxu0 0
    %1304 = vmatpush2.bf16.msra.mxu0 0
    %1305 = vmatprep.subr.bf16.mxu0 0
    %1306 = vmatpush2.bf16.msra.mxu0 0
    %1307 = vmatprep.subr.bf16.mxu0 0
    %1308 = vmatpush2.bf16.msra.mxu0 0
    %1309 = vmatprep.subr.bf16.mxu0 0
    %1310 = vmatpush2.bf16.msra.mxu0 0
    %1311 = vmatprep.subr.bf16.mxu0 0
    %1312 = vmatpush2.bf16.msra.mxu0 0
    %1313 = vmatprep.subr.bf16.mxu0 0
    %1314 = vmatpush2.bf16.msra.mxu0 0
    %1315 = vmatprep.subr.bf16.mxu0 0
    %1316 = vmatpush2.bf16.msra.mxu0 0
    %1317 = vmatprep.subr.bf16.mxu0 0
    %1318 = vmatpush2.bf16.msra.mxu0 0
    %1319 = vmatprep.mubr.bf16.mxu0 0
    %1320 = vmatmul.mubr.bf16.gmra.mxu0 %v1258
    %v1321 = vpop.f32.mrf.mxu0
    %v1322 = vadd.f32 0.0, %v1321
    %v1323 = vpop.f32.mrf.mxu0
    %v1324 = vpop.f32.mrf.mxu0
    %v1325 = vadd.f32 0.0, %v1324
    %v1326 = vpop.f32.mrf.mxu0
    %1327 = vmatprep.mubr.bf16.mxu0 0
    %1328 = vmatmul.mubr.bf16.gmra.mxu0 %v1261
    %v1329 = vpop.f32.mrf.mxu0
    %v1330 = vadd.f32 0.0, %v1329
    %v1331 = vpop.f32.mrf.mxu0
    %v1332 = vpop.f32.mrf.mxu0
    %v1333 = vadd.f32 0.0, %v1332
    %v1334 = vpop.f32.mrf.mxu0
    %1335 = vmatprep.mubr.bf16.mxu0 0
    %1336 = vmatmul.mubr.bf16.gmra.mxu0 %v1264
    %v1337 = vpop.f32.mrf.mxu0
    %v1338 = vadd.f32 0.0, %v1337
    %v1339 = vpop.f32.mrf.mxu0
    %v1340 = vpop.f32.mrf.mxu0
    %v1341 = vadd.f32 0.0, %v1340
    %v1342 = vpop.f32.mrf.mxu0
    %1343 = vmatprep.mubr.bf16.mxu0 0
    %1344 = vmatmul.mubr.bf16.gmra.mxu0 %v1267
    %v1345 = vpop.f32.mrf.mxu0
    %v1346 = vadd.f32 0.0, %v1345
    %v1347 = vpop.f32.mrf.mxu0
    %v1348 = vpop.f32.mrf.mxu0
    %v1349 = vadd.f32 0.0, %v1348
    %v1350 = vpop.f32.mrf.mxu0
    %1351 = vmatprep.mubr.bf16.mxu0 0
    %1352 = vmatmul.mubr.bf16.gmra.mxu0 %v1270
    %v1353 = vpop.f32.mrf.mxu0
    %v1354 = vadd.f32 0.0, %v1353
    %v1355 = vpop.f32.mrf.mxu0
    %v1356 = vpop.f32.mrf.mxu0
    %v1357 = vadd.f32 0.0, %v1356
    %v1358 = vpop.f32.mrf.mxu0
    %1359 = vmatprep.mubr.bf16.mxu0 0
    %1360 = vmatmul.mubr.bf16.gmra.mxu0 %v1273
    %v1361 = vpop.f32.mrf.mxu0
    %v1362 = vadd.f32 0.0, %v1361
    %v1363 = vpop.f32.mrf.mxu0
    %v1364 = vpop.f32.mrf.mxu0
    %v1365 = vadd.f32 0.0, %v1364
    %v1366 = vpop.f32.mrf.mxu0
    %1367 = vmatprep.mubr.bf16.mxu0 0
    %1368 = vmatmul.mubr.bf16.gmra.mxu0 %v1276
    %v1369 = vpop.f32.mrf.mxu0
    %v1370 = vadd.f32 0.0, %v1369
    %v1371 = vpop.f32.mrf.mxu0
    %v1372 = vpop.f32.mrf.mxu0
    %v1373 = vadd.f32 0.0, %v1372
    %v1374 = vpop.f32.mrf.mxu0
    %1375 = vmatprep.mubr.bf16.mxu0 0
    %1376 = vmatmul.mubr.bf16.gmra.mxu0 %v1279
    %v1377 = vpop.f32.mrf.mxu0
    %v1378 = vadd.f32 0.0, %v1377
    %v1379 = vpop.f32.mrf.mxu0
    %v1380 = vpop.f32.mrf.mxu0
    %v1381 = vadd.f32 0.0, %v1380
    %v1382 = vpop.f32.mrf.mxu0
    %1383 = vmatprep.mubr.bf16.mxu0 0
    %1384 = vmatmul.mubr.bf16.gmra.mxu0 %v1282
    %v1385 = vpop.f32.mrf.mxu0
    %v1386 = vadd.f32 0.0, %v1385
    %v1387 = vpop.f32.mrf.mxu0
    %v1388 = vpop.f32.mrf.mxu0
    %v1389 = vadd.f32 0.0, %v1388
    %v1390 = vpop.f32.mrf.mxu0
    %1391 = vmatprep.mubr.bf16.mxu0 0
    %1392 = vmatmul.mubr.bf16.gmra.mxu0 %v1285
    %v1393 = vpop.f32.mrf.mxu0
    %v1394 = vadd.f32 0.0, %v1393
    %v1395 = vpop.f32.mrf.mxu0
    %v1396 = vpop.f32.mrf.mxu0
    %v1397 = vpop.f32.mrf.mxu0
    %1398 = vdwg.mxu0
    %v1399 = vadd.f32 %v1119, %v1322
    %v1400 = vadd.f32 %v1122, %v1325
    %v1401 = vadd.f32 %v1127, %v1330
    %v1402 = vadd.f32 %v1130, %v1333
    %v1403 = vadd.f32 %v1135, %v1338
    %v1404 = vadd.f32 %v1138, %v1341
    %v1405 = vadd.f32 %v1143, %v1346
    %v1406 = vadd.f32 %v1146, %v1349
    %v1407 = vadd.f32 %v1151, %v1354
    %v1408 = vadd.f32 %v1154, %v1357
    %v1409 = vadd.f32 %v1159, %v1362
    %v1410 = vadd.f32 %v1162, %v1365
    %v1411 = vadd.f32 %v1167, %v1370
    %v1412 = vadd.f32 %v1170, %v1373
    %v1413 = vadd.f32 %v1175, %v1378
    %v1414 = vadd.f32 %v1178, %v1381
    %v1415 = vadd.f32 %v1183, %v1386
    %v1416 = vadd.f32 %v1186, %v1389
    %v1417 = vadd.f32 %v1191, %v1394
    %v1418 = vld [vmem:[#allocation3 + $0x3] sm:$0xff]
    %v1419 = vld [vmem:[#allocation3 + $0xb] sm:$0xff]
    %v1420 = vld [vmem:[#allocation3 + $0x13] sm:$0xff]
    %v1421 = vld [vmem:[#allocation3 + $0x1b] sm:$0xff]
    %v1422 = vld [vmem:[#allocation3 + $0x23] sm:$0xff]
    %v1423 = vld [vmem:[#allocation3 + $0x2b] sm:$0xff]
    %v1424 = vld [vmem:[#allocation3 + $0x33] sm:$0xff]
    %v1425 = vld [vmem:[#allocation3 + $0x3b] sm:$0xff]
    %v1426 = vld [vmem:[#allocation3 + $0x43] sm:$0xff]
    %v1427 = vld [vmem:[#allocation3 + $0x4b] sm:$0xff]
    %v1428 = vld [vmem:[#allocation3 + $0x53] sm:$0xff]
    %v1429 = vld [vmem:[#allocation3 + $0x5b] sm:$0xff]
    %v1430 = vld [vmem:[#allocation3 + $0x63] sm:$0xff]
    %v1431 = vld [vmem:[#allocation3 + $0x6b] sm:$0xff]
    %v1432 = vld [vmem:[#allocation3 + $0x73] sm:$0xff]
    %v1433 = vld [vmem:[#allocation3 + $0x7b] sm:$0xff]
    %v1434 = vld [vmem:[#allocation3 + $0x83] sm:$0xff]
    %v1435 = vld [vmem:[#allocation3 + $0x8b] sm:$0xff]
    %v1436 = vld [vmem:[#allocation3 + $0x93] sm:$0xff]
    %v1437 = vpack.c.bf16 %v1419, %v1418
    %v1438 = vpack.c.bf16 %v1421, %v1420
    %v1439 = vpack.c.bf16 %v1423, %v1422
    %v1440 = vpack.c.bf16 %v1425, %v1424
    %v1441 = vpack.c.bf16 %v1427, %v1426
    %v1442 = vpack.c.bf16 %v1429, %v1428
    %v1443 = vpack.c.bf16 %v1431, %v1430
    %v1444 = vpack.c.bf16 %v1433, %v1432
    %v1445 = vpack.c.bf16 %v1435, %v1434
    %v1446 = vpack.c.bf16 %v1436, %v1436
    %v1447 = vld [vmem:[#allocation13 + $0x60] sm:$0xf]
    %v1448 = vld [vmem:[#allocation13 + $0x64] sm:$0xf]
    %v1449 = vld [vmem:[#allocation13 + $0x68] sm:$0xf]
    %v1450 = vld [vmem:[#allocation13 + $0x6c] sm:$0xf]
    %v1451 = vld [vmem:[#allocation13 + $0x70] sm:$0xf]
    %v1452 = vld [vmem:[#allocation13 + $0x74] sm:$0xf]
    %v1453 = vld [vmem:[#allocation13 + $0x78] sm:$0xf]
    %v1454 = vld [vmem:[#allocation13 + $0x7c] sm:$0xf]
    %v1463 = vunpack.c.l.b16 %v1447
    %v1464 = vunpack.c.l.b16 %v1448
    %v1465 = vunpack.c.l.b16 %v1449
    %v1466 = vunpack.c.l.b16 %v1450
    %v1467 = vunpack.c.l.b16 %v1451
    %v1468 = vunpack.c.l.b16 %v1452
    %v1469 = vunpack.c.l.b16 %v1453
    %v1470 = vunpack.c.l.b16 %v1454
    %v1471 = vpack.c.b16 %v1464, %v1463
    %v1472 = vpack.c.b16 %v1466, %v1465
    %v1473 = vpack.c.b16 %v1468, %v1467
    %v1474 = vpack.c.b16 %v1470, %v1469
    %v1480 = vsel %vm638, %v1437, 0
    %v1483 = vsel %vm638, %v1438, 0
    %v1486 = vsel %vm638, %v1439, 0
    %v1489 = vsel %vm638, %v1440, 0
    %v1492 = vsel %vm638, %v1441, 0
    %v1495 = vsel %vm638, %v1442, 0
    %v1498 = vsel %vm638, %v1443, 0
    %v1501 = vsel %vm638, %v1444, 0
    %v1504 = vsel %vm638, %v1445, 0
    %v1507 = vsel %vm638, %v1446, 0
    %1509 = vmatprep.subr.bf16.mxu0 0
    %1510 = vmatpush1.bf16.msra.mxu0 0
    %1511 = vmatprep.subr.bf16.mxu0 0
    %1512 = vmatpush1.bf16.msra.mxu0 0
    %1513 = vmatprep.subr.bf16.mxu0 0
    %1514 = vmatpush1.bf16.msra.mxu0 0
    %1515 = vmatprep.subr.bf16.mxu0 0
    %1516 = vmatpush1.bf16.msra.mxu0 0
    %1517 = vmatprep.subr.bf16.mxu0 0
    %1518 = vmatpush1.bf16.msra.mxu0 %v1474
    %1519 = vmatprep.subr.bf16.mxu0 0
    %1520 = vmatpush1.bf16.msra.mxu0 %v1473
    %1521 = vmatprep.subr.bf16.mxu0 0
    %1522 = vmatpush1.bf16.msra.mxu0 %v1472
    %1523 = vmatprep.subr.bf16.mxu0 0
    %1524 = vmatpush1.bf16.msra.mxu0 %v1471
    %1525 = vmatprep.subr.bf16.mxu0 0
    %1526 = vmatpush2.bf16.msra.mxu0 0
    %1527 = vmatprep.subr.bf16.mxu0 0
    %1528 = vmatpush2.bf16.msra.mxu0 0
    %1529 = vmatprep.subr.bf16.mxu0 0
    %1530 = vmatpush2.bf16.msra.mxu0 0
    %1531 = vmatprep.subr.bf16.mxu0 0
    %1532 = vmatpush2.bf16.msra.mxu0 0
    %1533 = vmatprep.subr.bf16.mxu0 0
    %1534 = vmatpush2.bf16.msra.mxu0 0
    %1535 = vmatprep.subr.bf16.mxu0 0
    %1536 = vmatpush2.bf16.msra.mxu0 0
    %1537 = vmatprep.subr.bf16.mxu0 0
    %1538 = vmatpush2.bf16.msra.mxu0 0
    %1539 = vmatprep.subr.bf16.mxu0 0
    %1540 = vmatpush2.bf16.msra.mxu0 0
    %1541 = vmatprep.mubr.bf16.mxu0 0
    %1542 = vmatmul.mubr.bf16.gmra.mxu0 %v1480
    %v1543 = vpop.f32.mrf.mxu0
    %v1544 = vadd.f32 0.0, %v1543
    %v1545 = vpop.f32.mrf.mxu0
    %v1546 = vpop.f32.mrf.mxu0
    %v1547 = vadd.f32 0.0, %v1546
    %v1548 = vpop.f32.mrf.mxu0
    %1549 = vmatprep.mubr.bf16.mxu0 0
    %1550 = vmatmul.mubr.bf16.gmra.mxu0 %v1483
    %v1551 = vpop.f32.mrf.mxu0
    %v1552 = vadd.f32 0.0, %v1551
    %v1553 = vpop.f32.mrf.mxu0
    %v1554 = vpop.f32.mrf.mxu0
    %v1555 = vadd.f32 0.0, %v1554
    %v1556 = vpop.f32.mrf.mxu0
    %1557 = vmatprep.mubr.bf16.mxu0 0
    %1558 = vmatmul.mubr.bf16.gmra.mxu0 %v1486
    %v1559 = vpop.f32.mrf.mxu0
    %v1560 = vadd.f32 0.0, %v1559
    %v1561 = vpop.f32.mrf.mxu0
    %v1562 = vpop.f32.mrf.mxu0
    %v1563 = vadd.f32 0.0, %v1562
    %v1564 = vpop.f32.mrf.mxu0
    %1565 = vmatprep.mubr.bf16.mxu0 0
    %1566 = vmatmul.mubr.bf16.gmra.mxu0 %v1489
    %v1567 = vpop.f32.mrf.mxu0
    %v1568 = vadd.f32 0.0, %v1567
    %v1569 = vpop.f32.mrf.mxu0
    %v1570 = vpop.f32.mrf.mxu0
    %v1571 = vadd.f32 0.0, %v1570
    %v1572 = vpop.f32.mrf.mxu0
    %1573 = vmatprep.mubr.bf16.mxu0 0
    %1574 = vmatmul.mubr.bf16.gmra.mxu0 %v1492
    %v1575 = vpop.f32.mrf.mxu0
    %v1576 = vadd.f32 0.0, %v1575
    %v1577 = vpop.f32.mrf.mxu0
    %v1578 = vpop.f32.mrf.mxu0
    %v1579 = vadd.f32 0.0, %v1578
    %v1580 = vpop.f32.mrf.mxu0
    %1581 = vmatprep.mubr.bf16.mxu0 0
    %1582 = vmatmul.mubr.bf16.gmra.mxu0 %v1495
    %v1583 = vpop.f32.mrf.mxu0
    %v1584 = vadd.f32 0.0, %v1583
    %v1585 = vpop.f32.mrf.mxu0
    %v1586 = vpop.f32.mrf.mxu0
    %v1587 = vadd.f32 0.0, %v1586
    %v1588 = vpop.f32.mrf.mxu0
    %1589 = vmatprep.mubr.bf16.mxu0 0
    %1590 = vmatmul.mubr.bf16.gmra.mxu0 %v1498
    %v1591 = vpop.f32.mrf.mxu0
    %v1592 = vadd.f32 0.0, %v1591
    %v1593 = vpop.f32.mrf.mxu0
    %v1594 = vpop.f32.mrf.mxu0
    %v1595 = vadd.f32 0.0, %v1594
    %v1596 = vpop.f32.mrf.mxu0
    %1597 = vmatprep.mubr.bf16.mxu0 0
    %1598 = vmatmul.mubr.bf16.gmra.mxu0 %v1501
    %v1599 = vpop.f32.mrf.mxu0
    %v1600 = vadd.f32 0.0, %v1599
    %v1601 = vpop.f32.mrf.mxu0
    %v1602 = vpop.f32.mrf.mxu0
    %v1603 = vadd.f32 0.0, %v1602
    %v1604 = vpop.f32.mrf.mxu0
    %1605 = vmatprep.mubr.bf16.mxu0 0
    %1606 = vmatmul.mubr.bf16.gmra.mxu0 %v1504
    %v1607 = vpop.f32.mrf.mxu0
    %v1608 = vadd.f32 0.0, %v1607
    %v1609 = vpop.f32.mrf.mxu0
    %v1610 = vpop.f32.mrf.mxu0
    %v1611 = vadd.f32 0.0, %v1610
    %v1612 = vpop.f32.mrf.mxu0
    %1613 = vmatprep.mubr.bf16.mxu0 0
    %1614 = vmatmul.mubr.bf16.gmra.mxu0 %v1507
    %v1615 = vpop.f32.mrf.mxu0
    %v1616 = vadd.f32 0.0, %v1615
    %v1617 = vpop.f32.mrf.mxu0
    %v1618 = vpop.f32.mrf.mxu0
    %v1619 = vpop.f32.mrf.mxu0
    %1620 = vdwg.mxu0
    %v1621 = vadd.f32 %v1399, %v1544
    %v1622 = vadd.f32 %v1400, %v1547
    %v1623 = vadd.f32 %v1401, %v1552
    %v1624 = vadd.f32 %v1402, %v1555
    %v1625 = vadd.f32 %v1403, %v1560
    %v1626 = vadd.f32 %v1404, %v1563
    %v1627 = vadd.f32 %v1405, %v1568
    %v1628 = vadd.f32 %v1406, %v1571
    %v1629 = vadd.f32 %v1407, %v1576
    %v1630 = vadd.f32 %v1408, %v1579
    %v1631 = vadd.f32 %v1409, %v1584
    %v1632 = vadd.f32 %v1410, %v1587
    %v1633 = vadd.f32 %v1411, %v1592
    %v1634 = vadd.f32 %v1412, %v1595
    %v1635 = vadd.f32 %v1413, %v1600
    %v1636 = vadd.f32 %v1414, %v1603
    %v1637 = vadd.f32 %v1415, %v1608
    %v1638 = vadd.f32 %v1416, %v1611
    %v1639 = vadd.f32 %v1417, %v1616
    %v1640 = vld [vmem:[#allocation3 + $0x4] sm:$0xff]
    %v1641 = vld [vmem:[#allocation3 + $0xc] sm:$0xff]
    %v1642 = vld [vmem:[#allocation3 + $0x14] sm:$0xff]
    %v1643 = vld [vmem:[#allocation3 + $0x1c] sm:$0xff]
    %v1644 = vld [vmem:[#allocation3 + $0x24] sm:$0xff]
    %v1645 = vld [vmem:[#allocation3 + $0x2c] sm:$0xff]
    %v1646 = vld [vmem:[#allocation3 + $0x34] sm:$0xff]
    %v1647 = vld [vmem:[#allocation3 + $0x3c] sm:$0xff]
    %v1648 = vld [vmem:[#allocation3 + $0x44] sm:$0xff]
    %v1649 = vld [vmem:[#allocation3 + $0x4c] sm:$0xff]
    %v1650 = vld [vmem:[#allocation3 + $0x54] sm:$0xff]
    %v1651 = vld [vmem:[#allocation3 + $0x5c] sm:$0xff]
    %v1652 = vld [vmem:[#allocation3 + $0x64] sm:$0xff]
    %v1653 = vld [vmem:[#allocation3 + $0x6c] sm:$0xff]
    %v1654 = vld [vmem:[#allocation3 + $0x74] sm:$0xff]
    %v1655 = vld [vmem:[#allocation3 + $0x7c] sm:$0xff]
    %v1656 = vld [vmem:[#allocation3 + $0x84] sm:$0xff]
    %v1657 = vld [vmem:[#allocation3 + $0x8c] sm:$0xff]
    %v1658 = vld [vmem:[#allocation3 + $0x94] sm:$0xff]
    %v1659 = vpack.c.bf16 %v1641, %v1640
    %v1660 = vpack.c.bf16 %v1643, %v1642
    %v1661 = vpack.c.bf16 %v1645, %v1644
    %v1662 = vpack.c.bf16 %v1647, %v1646
    %v1663 = vpack.c.bf16 %v1649, %v1648
    %v1664 = vpack.c.bf16 %v1651, %v1650
    %v1665 = vpack.c.bf16 %v1653, %v1652
    %v1666 = vpack.c.bf16 %v1655, %v1654
    %v1667 = vpack.c.bf16 %v1657, %v1656
    %v1668 = vpack.c.bf16 %v1658, %v1658
    %v1669 = vld [vmem:[#allocation13 + $0x80] sm:$0xf]
    %v1670 = vld [vmem:[#allocation13 + $0x84] sm:$0xf]
    %v1671 = vld [vmem:[#allocation13 + $0x88] sm:$0xf]
    %v1672 = vld [vmem:[#allocation13 + $0x8c] sm:$0xf]
    %v1673 = vld [vmem:[#allocation13 + $0x90] sm:$0xf]
    %v1674 = vld [vmem:[#allocation13 + $0x94] sm:$0xf]
    %v1675 = vld [vmem:[#allocation13 + $0x98] sm:$0xf]
    %v1676 = vld [vmem:[#allocation13 + $0x9c] sm:$0xf]
    %v1685 = vunpack.c.l.b16 %v1669
    %v1686 = vunpack.c.l.b16 %v1670
    %v1687 = vunpack.c.l.b16 %v1671
    %v1688 = vunpack.c.l.b16 %v1672
    %v1689 = vunpack.c.l.b16 %v1673
    %v1690 = vunpack.c.l.b16 %v1674
    %v1691 = vunpack.c.l.b16 %v1675
    %v1692 = vunpack.c.l.b16 %v1676
    %v1693 = vpack.c.b16 %v1686, %v1685
    %v1694 = vpack.c.b16 %v1688, %v1687
    %v1695 = vpack.c.b16 %v1690, %v1689
    %v1696 = vpack.c.b16 %v1692, %v1691
    %v1702 = vsel %vm638, %v1659, 0
    %v1705 = vsel %vm638, %v1660, 0
    %v1708 = vsel %vm638, %v1661, 0
    %v1711 = vsel %vm638, %v1662, 0
    %v1714 = vsel %vm638, %v1663, 0
    %v1717 = vsel %vm638, %v1664, 0
    %v1720 = vsel %vm638, %v1665, 0
    %v1723 = vsel %vm638, %v1666, 0
    %v1726 = vsel %vm638, %v1667, 0
    %v1729 = vsel %vm638, %v1668, 0
    %1731 = vmatprep.subr.bf16.mxu0 0
    %1732 = vmatpush1.bf16.msra.mxu0 0
    %1733 = vmatprep.subr.bf16.mxu0 0
    %1734 = vmatpush1.bf16.msra.mxu0 0
    %1735 = vmatprep.subr.bf16.mxu0 0
    %1736 = vmatpush1.bf16.msra.mxu0 0
    %1737 = vmatprep.subr.bf16.mxu0 0
    %1738 = vmatpush1.bf16.msra.mxu0 0
    %1739 = vmatprep.subr.bf16.mxu0 0
    %1740 = vmatpush1.bf16.msra.mxu0 %v1696
    %1741 = vmatprep.subr.bf16.mxu0 0
    %1742 = vmatpush1.bf16.msra.mxu0 %v1695
    %1743 = vmatprep.subr.bf16.mxu0 0
    %1744 = vmatpush1.bf16.msra.mxu0 %v1694
    %1745 = vmatprep.subr.bf16.mxu0 0
    %1746 = vmatpush1.bf16.msra.mxu0 %v1693
    %1747 = vmatprep.subr.bf16.mxu0 0
    %1748 = vmatpush2.bf16.msra.mxu0 0
    %1749 = vmatprep.subr.bf16.mxu0 0
    %1750 = vmatpush2.bf16.msra.mxu0 0
    %1751 = vmatprep.subr.bf16.mxu0 0
    %1752 = vmatpush2.bf16.msra.mxu0 0
    %1753 = vmatprep.subr.bf16.mxu0 0
    %1754 = vmatpush2.bf16.msra.mxu0 0
    %1755 = vmatprep.subr.bf16.mxu0 0
    %1756 = vmatpush2.bf16.msra.mxu0 0
    %1757 = vmatprep.subr.bf16.mxu0 0
    %1758 = vmatpush2.bf16.msra.mxu0 0
    %1759 = vmatprep.subr.bf16.mxu0 0
    %1760 = vmatpush2.bf16.msra.mxu0 0
    %1761 = vmatprep.subr.bf16.mxu0 0
    %1762 = vmatpush2.bf16.msra.mxu0 0
    %1763 = vmatprep.mubr.bf16.mxu0 0
    %1764 = vmatmul.mubr.bf16.gmra.mxu0 %v1702
    %v1765 = vpop.f32.mrf.mxu0
    %v1766 = vadd.f32 0.0, %v1765
    %v1767 = vpop.f32.mrf.mxu0
    %v1768 = vpop.f32.mrf.mxu0
    %v1769 = vadd.f32 0.0, %v1768
    %v1770 = vpop.f32.mrf.mxu0
    %1771 = vmatprep.mubr.bf16.mxu0 0
    %1772 = vmatmul.mubr.bf16.gmra.mxu0 %v1705
    %v1773 = vpop.f32.mrf.mxu0
    %v1774 = vadd.f32 0.0, %v1773
    %v1775 = vpop.f32.mrf.mxu0
    %v1776 = vpop.f32.mrf.mxu0
    %v1777 = vadd.f32 0.0, %v1776
    %v1778 = vpop.f32.mrf.mxu0
    %1779 = vmatprep.mubr.bf16.mxu0 0
    %1780 = vmatmul.mubr.bf16.gmra.mxu0 %v1708
    %v1781 = vpop.f32.mrf.mxu0
    %v1782 = vadd.f32 0.0, %v1781
    %v1783 = vpop.f32.mrf.mxu0
    %v1784 = vpop.f32.mrf.mxu0
    %v1785 = vadd.f32 0.0, %v1784
    %v1786 = vpop.f32.mrf.mxu0
    %1787 = vmatprep.mubr.bf16.mxu0 0
    %1788 = vmatmul.mubr.bf16.gmra.mxu0 %v1711
    %v1789 = vpop.f32.mrf.mxu0
    %v1790 = vadd.f32 0.0, %v1789
    %v1791 = vpop.f32.mrf.mxu0
    %v1792 = vpop.f32.mrf.mxu0
    %v1793 = vadd.f32 0.0, %v1792
    %v1794 = vpop.f32.mrf.mxu0
    %1795 = vmatprep.mubr.bf16.mxu0 0
    %1796 = vmatmul.mubr.bf16.gmra.mxu0 %v1714
    %v1797 = vpop.f32.mrf.mxu0
    %v1798 = vadd.f32 0.0, %v1797
    %v1799 = vpop.f32.mrf.mxu0
    %v1800 = vpop.f32.mrf.mxu0
    %v1801 = vadd.f32 0.0, %v1800
    %v1802 = vpop.f32.mrf.mxu0
    %1803 = vmatprep.mubr.bf16.mxu0 0
    %1804 = vmatmul.mubr.bf16.gmra.mxu0 %v1717
    %v1805 = vpop.f32.mrf.mxu0
    %v1806 = vadd.f32 0.0, %v1805
    %v1807 = vpop.f32.mrf.mxu0
    %v1808 = vpop.f32.mrf.mxu0
    %v1809 = vadd.f32 0.0, %v1808
    %v1810 = vpop.f32.mrf.mxu0
    %1811 = vmatprep.mubr.bf16.mxu0 0
    %1812 = vmatmul.mubr.bf16.gmra.mxu0 %v1720
    %v1813 = vpop.f32.mrf.mxu0
    %v1814 = vadd.f32 0.0, %v1813
    %v1815 = vpop.f32.mrf.mxu0
    %v1816 = vpop.f32.mrf.mxu0
    %v1817 = vadd.f32 0.0, %v1816
    %v1818 = vpop.f32.mrf.mxu0
    %1819 = vmatprep.mubr.bf16.mxu0 0
    %1820 = vmatmul.mubr.bf16.gmra.mxu0 %v1723
    %v1821 = vpop.f32.mrf.mxu0
    %v1822 = vadd.f32 0.0, %v1821
    %v1823 = vpop.f32.mrf.mxu0
    %v1824 = vpop.f32.mrf.mxu0
    %v1825 = vadd.f32 0.0, %v1824
    %v1826 = vpop.f32.mrf.mxu0
    %1827 = vmatprep.mubr.bf16.mxu0 0
    %1828 = vmatmul.mubr.bf16.gmra.mxu0 %v1726
    %v1829 = vpop.f32.mrf.mxu0
    %v1830 = vadd.f32 0.0, %v1829
    %v1831 = vpop.f32.mrf.mxu0
    %v1832 = vpop.f32.mrf.mxu0
    %v1833 = vadd.f32 0.0, %v1832
    %v1834 = vpop.f32.mrf.mxu0
    %1835 = vmatprep.mubr.bf16.mxu0 0
    %1836 = vmatmul.mubr.bf16.gmra.mxu0 %v1729
    %v1837 = vpop.f32.mrf.mxu0
    %v1838 = vadd.f32 0.0, %v1837
    %v1839 = vpop.f32.mrf.mxu0
    %v1840 = vpop.f32.mrf.mxu0
    %v1841 = vpop.f32.mrf.mxu0
    %1842 = vdwg.mxu0
    %v1843 = vadd.f32 %v1621, %v1766
    %v1844 = vadd.f32 %v1622, %v1769
    %v1845 = vadd.f32 %v1623, %v1774
    %v1846 = vadd.f32 %v1624, %v1777
    %v1847 = vadd.f32 %v1625, %v1782
    %v1848 = vadd.f32 %v1626, %v1785
    %v1849 = vadd.f32 %v1627, %v1790
    %v1850 = vadd.f32 %v1628, %v1793
    %v1851 = vadd.f32 %v1629, %v1798
    %v1852 = vadd.f32 %v1630, %v1801
    %v1853 = vadd.f32 %v1631, %v1806
    %v1854 = vadd.f32 %v1632, %v1809
    %v1855 = vadd.f32 %v1633, %v1814
    %v1856 = vadd.f32 %v1634, %v1817
    %v1857 = vadd.f32 %v1635, %v1822
    %v1858 = vadd.f32 %v1636, %v1825
    %v1859 = vadd.f32 %v1637, %v1830
    %v1860 = vadd.f32 %v1638, %v1833
    %v1861 = vadd.f32 %v1639, %v1838
    %v1862 = vld [vmem:[#allocation3 + $0x5] sm:$0xff]
    %v1863 = vld [vmem:[#allocation3 + $0xd] sm:$0xff]
    %v1864 = vld [vmem:[#allocation3 + $0x15] sm:$0xff]
    %v1865 = vld [vmem:[#allocation3 + $0x1d] sm:$0xff]
    %v1866 = vld [vmem:[#allocation3 + $0x25] sm:$0xff]
    %v1867 = vld [vmem:[#allocation3 + $0x2d] sm:$0xff]
    %v1868 = vld [vmem:[#allocation3 + $0x35] sm:$0xff]
    %v1869 = vld [vmem:[#allocation3 + $0x3d] sm:$0xff]
    %v1870 = vld [vmem:[#allocation3 + $0x45] sm:$0xff]
    %v1871 = vld [vmem:[#allocation3 + $0x4d] sm:$0xff]
    %v1872 = vld [vmem:[#allocation3 + $0x55] sm:$0xff]
    %v1873 = vld [vmem:[#allocation3 + $0x5d] sm:$0xff]
    %v1874 = vld [vmem:[#allocation3 + $0x65] sm:$0xff]
    %v1875 = vld [vmem:[#allocation3 + $0x6d] sm:$0xff]
    %v1876 = vld [vmem:[#allocation3 + $0x75] sm:$0xff]
    %v1877 = vld [vmem:[#allocation3 + $0x7d] sm:$0xff]
    %v1878 = vld [vmem:[#allocation3 + $0x85] sm:$0xff]
    %v1879 = vld [vmem:[#allocation3 + $0x8d] sm:$0xff]
    %v1880 = vld [vmem:[#allocation3 + $0x95] sm:$0xff]
    %v1881 = vpack.c.bf16 %v1863, %v1862
    %v1882 = vpack.c.bf16 %v1865, %v1864
    %v1883 = vpack.c.bf16 %v1867, %v1866
    %v1884 = vpack.c.bf16 %v1869, %v1868
    %v1885 = vpack.c.bf16 %v1871, %v1870
    %v1886 = vpack.c.bf16 %v1873, %v1872
    %v1887 = vpack.c.bf16 %v1875, %v1874
    %v1888 = vpack.c.bf16 %v1877, %v1876
    %v1889 = vpack.c.bf16 %v1879, %v1878
    %v1890 = vpack.c.bf16 %v1880, %v1880
    %v1891 = vld [vmem:[#allocation13 + $0xa0] sm:$0xf]
    %v1892 = vld [vmem:[#allocation13 + $0xa4] sm:$0xf]
    %v1893 = vld [vmem:[#allocation13 + $0xa8] sm:$0xf]
    %v1894 = vld [vmem:[#allocation13 + $0xac] sm:$0xf]
    %v1895 = vld [vmem:[#allocation13 + $0xb0] sm:$0xf]
    %v1896 = vld [vmem:[#allocation13 + $0xb4] sm:$0xf]
    %v1897 = vld [vmem:[#allocation13 + $0xb8] sm:$0xf]
    %v1898 = vld [vmem:[#allocation13 + $0xbc] sm:$0xf]
    %v1907 = vunpack.c.l.b16 %v1891
    %v1908 = vunpack.c.l.b16 %v1892
    %v1909 = vunpack.c.l.b16 %v1893
    %v1910 = vunpack.c.l.b16 %v1894
    %v1911 = vunpack.c.l.b16 %v1895
    %v1912 = vunpack.c.l.b16 %v1896
    %v1913 = vunpack.c.l.b16 %v1897
    %v1914 = vunpack.c.l.b16 %v1898
    %v1915 = vpack.c.b16 %v1908, %v1907
    %v1916 = vpack.c.b16 %v1910, %v1909
    %v1917 = vpack.c.b16 %v1912, %v1911
    %v1918 = vpack.c.b16 %v1914, %v1913
    %v1924 = vsel %vm638, %v1881, 0
    %v1927 = vsel %vm638, %v1882, 0
    %v1930 = vsel %vm638, %v1883, 0
    %v1933 = vsel %vm638, %v1884, 0
    %v1936 = vsel %vm638, %v1885, 0
    %v1939 = vsel %vm638, %v1886, 0
    %v1942 = vsel %vm638, %v1887, 0
    %v1945 = vsel %vm638, %v1888, 0
    %v1948 = vsel %vm638, %v1889, 0
    %v1951 = vsel %vm638, %v1890, 0
    %1953 = vmatprep.subr.bf16.mxu0 0
    %1954 = vmatpush1.bf16.msra.mxu0 0
    %1955 = vmatprep.subr.bf16.mxu0 0
    %1956 = vmatpush1.bf16.msra.mxu0 0
    %1957 = vmatprep.subr.bf16.mxu0 0
    %1958 = vmatpush1.bf16.msra.mxu0 0
    %1959 = vmatprep.subr.bf16.mxu0 0
    %1960 = vmatpush1.bf16.msra.mxu0 0
    %1961 = vmatprep.subr.bf16.mxu0 0
    %1962 = vmatpush1.bf16.msra.mxu0 %v1918
    %1963 = vmatprep.subr.bf16.mxu0 0
    %1964 = vmatpush1.bf16.msra.mxu0 %v1917
    %1965 = vmatprep.subr.bf16.mxu0 0
    %1966 = vmatpush1.bf16.msra.mxu0 %v1916
    %1967 = vmatprep.subr.bf16.mxu0 0
    %1968 = vmatpush1.bf16.msra.mxu0 %v1915
    %1969 = vmatprep.subr.bf16.mxu0 0
    %1970 = vmatpush2.bf16.msra.mxu0 0
    %1971 = vmatprep.subr.bf16.mxu0 0
    %1972 = vmatpush2.bf16.msra.mxu0 0
    %1973 = vmatprep.subr.bf16.mxu0 0
    %1974 = vmatpush2.bf16.msra.mxu0 0
    %1975 = vmatprep.subr.bf16.mxu0 0
    %1976 = vmatpush2.bf16.msra.mxu0 0
    %1977 = vmatprep.subr.bf16.mxu0 0
    %1978 = vmatpush2.bf16.msra.mxu0 0
    %1979 = vmatprep.subr.bf16.mxu0 0
    %1980 = vmatpush2.bf16.msra.mxu0 0
    %1981 = vmatprep.subr.bf16.mxu0 0
    %1982 = vmatpush2.bf16.msra.mxu0 0
    %1983 = vmatprep.subr.bf16.mxu0 0
    %1984 = vmatpush2.bf16.msra.mxu0 0
    %1985 = vmatprep.mubr.bf16.mxu0 0
    %1986 = vmatmul.mubr.bf16.gmra.mxu0 %v1924
    %v1987 = vpop.f32.mrf.mxu0
    %v1988 = vadd.f32 0.0, %v1987
    %v1989 = vpop.f32.mrf.mxu0
    %v1990 = vpop.f32.mrf.mxu0
    %v1991 = vadd.f32 0.0, %v1990
    %v1992 = vpop.f32.mrf.mxu0
    %1993 = vmatprep.mubr.bf16.mxu0 0
    %1994 = vmatmul.mubr.bf16.gmra.mxu0 %v1927
    %v1995 = vpop.f32.mrf.mxu0
    %v1996 = vadd.f32 0.0, %v1995
    %v1997 = vpop.f32.mrf.mxu0
    %v1998 = vpop.f32.mrf.mxu0
    %v1999 = vadd.f32 0.0, %v1998
    %v2000 = vpop.f32.mrf.mxu0
    %2001 = vmatprep.mubr.bf16.mxu0 0
    %2002 = vmatmul.mubr.bf16.gmra.mxu0 %v1930
    %v2003 = vpop.f32.mrf.mxu0
    %v2004 = vadd.f32 0.0, %v2003
    %v2005 = vpop.f32.mrf.mxu0
    %v2006 = vpop.f32.mrf.mxu0
    %v2007 = vadd.f32 0.0, %v2006
    %v2008 = vpop.f32.mrf.mxu0
    %2009 = vmatprep.mubr.bf16.mxu0 0
    %2010 = vmatmul.mubr.bf16.gmra.mxu0 %v1933
    %v2011 = vpop.f32.mrf.mxu0
    %v2012 = vadd.f32 0.0, %v2011
    %v2013 = vpop.f32.mrf.mxu0
    %v2014 = vpop.f32.mrf.mxu0
    %v2015 = vadd.f32 0.0, %v2014
    %v2016 = vpop.f32.mrf.mxu0
    %2017 = vmatprep.mubr.bf16.mxu0 0
    %2018 = vmatmul.mubr.bf16.gmra.mxu0 %v1936
    %v2019 = vpop.f32.mrf.mxu0
    %v2020 = vadd.f32 0.0, %v2019
    %v2021 = vpop.f32.mrf.mxu0
    %v2022 = vpop.f32.mrf.mxu0
    %v2023 = vadd.f32 0.0, %v2022
    %v2024 = vpop.f32.mrf.mxu0
    %2025 = vmatprep.mubr.bf16.mxu0 0
    %2026 = vmatmul.mubr.bf16.gmra.mxu0 %v1939
    %v2027 = vpop.f32.mrf.mxu0
    %v2028 = vadd.f32 0.0, %v2027
    %v2029 = vpop.f32.mrf.mxu0
    %v2030 = vpop.f32.mrf.mxu0
    %v2031 = vadd.f32 0.0, %v2030
    %v2032 = vpop.f32.mrf.mxu0
    %2033 = vmatprep.mubr.bf16.mxu0 0
    %2034 = vmatmul.mubr.bf16.gmra.mxu0 %v1942
    %v2035 = vpop.f32.mrf.mxu0
    %v2036 = vadd.f32 0.0, %v2035
    %v2037 = vpop.f32.mrf.mxu0
    %v2038 = vpop.f32.mrf.mxu0
    %v2039 = vadd.f32 0.0, %v2038
    %v2040 = vpop.f32.mrf.mxu0
    %2041 = vmatprep.mubr.bf16.mxu0 0
    %2042 = vmatmul.mubr.bf16.gmra.mxu0 %v1945
    %v2043 = vpop.f32.mrf.mxu0
    %v2044 = vadd.f32 0.0, %v2043
    %v2045 = vpop.f32.mrf.mxu0
    %v2046 = vpop.f32.mrf.mxu0
    %v2047 = vadd.f32 0.0, %v2046
    %v2048 = vpop.f32.mrf.mxu0
    %2049 = vmatprep.mubr.bf16.mxu0 0
    %2050 = vmatmul.mubr.bf16.gmra.mxu0 %v1948
    %v2051 = vpop.f32.mrf.mxu0
    %v2052 = vadd.f32 0.0, %v2051
    %v2053 = vpop.f32.mrf.mxu0
    %v2054 = vpop.f32.mrf.mxu0
    %v2055 = vadd.f32 0.0, %v2054
    %v2056 = vpop.f32.mrf.mxu0
    %2057 = vmatprep.mubr.bf16.mxu0 0
    %2058 = vmatmul.mubr.bf16.gmra.mxu0 %v1951
    %v2059 = vpop.f32.mrf.mxu0
    %v2060 = vadd.f32 0.0, %v2059
    %v2061 = vpop.f32.mrf.mxu0
    %v2062 = vpop.f32.mrf.mxu0
    %v2063 = vpop.f32.mrf.mxu0
    %2064 = vdwg.mxu0
    %v2065 = vadd.f32 %v1843, %v1988
    %v2066 = vadd.f32 %v1844, %v1991
    %v2067 = vadd.f32 %v1845, %v1996
    %v2068 = vadd.f32 %v1846, %v1999
    %v2069 = vadd.f32 %v1847, %v2004
    %v2070 = vadd.f32 %v1848, %v2007
    %v2071 = vadd.f32 %v1849, %v2012
    %v2072 = vadd.f32 %v1850, %v2015
    %v2073 = vadd.f32 %v1851, %v2020
    %v2074 = vadd.f32 %v1852, %v2023
    %v2075 = vadd.f32 %v1853, %v2028
    %v2076 = vadd.f32 %v1854, %v2031
    %v2077 = vadd.f32 %v1855, %v2036
    %v2078 = vadd.f32 %v1856, %v2039
    %v2079 = vadd.f32 %v1857, %v2044
    %v2080 = vadd.f32 %v1858, %v2047
    %v2081 = vadd.f32 %v1859, %v2052
    %v2082 = vadd.f32 %v1860, %v2055
    %v2083 = vadd.f32 %v1861, %v2060
    %v2084 = vld [vmem:[#allocation3 + $0x6] sm:$0xff]
    %v2085 = vld [vmem:[#allocation3 + $0xe] sm:$0xff]
    %v2086 = vld [vmem:[#allocation3 + $0x16] sm:$0xff]
    %v2087 = vld [vmem:[#allocation3 + $0x1e] sm:$0xff]
    %v2088 = vld [vmem:[#allocation3 + $0x26] sm:$0xff]
    %v2089 = vld [vmem:[#allocation3 + $0x2e] sm:$0xff]
    %v2090 = vld [vmem:[#allocation3 + $0x36] sm:$0xff]
    %v2091 = vld [vmem:[#allocation3 + $0x3e] sm:$0xff]
    %v2092 = vld [vmem:[#allocation3 + $0x46] sm:$0xff]
    %v2093 = vld [vmem:[#allocation3 + $0x4e] sm:$0xff]
    %v2094 = vld [vmem:[#allocation3 + $0x56] sm:$0xff]
    %v2095 = vld [vmem:[#allocation3 + $0x5e] sm:$0xff]
    %v2096 = vld [vmem:[#allocation3 + $0x66] sm:$0xff]
    %v2097 = vld [vmem:[#allocation3 + $0x6e] sm:$0xff]
    %v2098 = vld [vmem:[#allocation3 + $0x76] sm:$0xff]
    %v2099 = vld [vmem:[#allocation3 + $0x7e] sm:$0xff]
    %v2100 = vld [vmem:[#allocation3 + $0x86] sm:$0xff]
    %v2101 = vld [vmem:[#allocation3 + $0x8e] sm:$0xff]
    %v2102 = vld [vmem:[#allocation3 + $0x96] sm:$0xff]
    %v2103 = vpack.c.bf16 %v2085, %v2084
    %v2104 = vpack.c.bf16 %v2087, %v2086
    %v2105 = vpack.c.bf16 %v2089, %v2088
    %v2106 = vpack.c.bf16 %v2091, %v2090
    %v2107 = vpack.c.bf16 %v2093, %v2092
    %v2108 = vpack.c.bf16 %v2095, %v2094
    %v2109 = vpack.c.bf16 %v2097, %v2096
    %v2110 = vpack.c.bf16 %v2099, %v2098
    %v2111 = vpack.c.bf16 %v2101, %v2100
    %v2112 = vpack.c.bf16 %v2102, %v2102
    %v2113 = vld [vmem:[#allocation13 + $0xc0] sm:$0xf]
    %v2114 = vld [vmem:[#allocation13 + $0xc4] sm:$0xf]
    %v2115 = vld [vmem:[#allocation13 + $0xc8] sm:$0xf]
    %v2116 = vld [vmem:[#allocation13 + $0xcc] sm:$0xf]
    %v2117 = vld [vmem:[#allocation13 + $0xd0] sm:$0xf]
    %v2118 = vld [vmem:[#allocation13 + $0xd4] sm:$0xf]
    %v2119 = vld [vmem:[#allocation13 + $0xd8] sm:$0xf]
    %v2120 = vld [vmem:[#allocation13 + $0xdc] sm:$0xf]
    %v2129 = vunpack.c.l.b16 %v2113
    %v2130 = vunpack.c.l.b16 %v2114
    %v2131 = vunpack.c.l.b16 %v2115
    %v2132 = vunpack.c.l.b16 %v2116
    %v2133 = vunpack.c.l.b16 %v2117
    %v2134 = vunpack.c.l.b16 %v2118
    %v2135 = vunpack.c.l.b16 %v2119
    %v2136 = vunpack.c.l.b16 %v2120
    %v2137 = vpack.c.b16 %v2130, %v2129
    %v2138 = vpack.c.b16 %v2132, %v2131
    %v2139 = vpack.c.b16 %v2134, %v2133
    %v2140 = vpack.c.b16 %v2136, %v2135
    %v2146 = vsel %vm638, %v2103, 0
    %v2149 = vsel %vm638, %v2104, 0
    %v2152 = vsel %vm638, %v2105, 0
    %v2155 = vsel %vm638, %v2106, 0
    %v2158 = vsel %vm638, %v2107, 0
    %v2161 = vsel %vm638, %v2108, 0
    %v2164 = vsel %vm638, %v2109, 0
    %v2167 = vsel %vm638, %v2110, 0
    %v2170 = vsel %vm638, %v2111, 0
    %v2173 = vsel %vm638, %v2112, 0
    %2175 = vmatprep.subr.bf16.mxu0 0
    %2176 = vmatpush1.bf16.msra.mxu0 0
    %2177 = vmatprep.subr.bf16.mxu0 0
    %2178 = vmatpush1.bf16.msra.mxu0 0
    %2179 = vmatprep.subr.bf16.mxu0 0
    %2180 = vmatpush1.bf16.msra.mxu0 0
    %2181 = vmatprep.subr.bf16.mxu0 0
    %2182 = vmatpush1.bf16.msra.mxu0 0
    %2183 = vmatprep.subr.bf16.mxu0 0
    %2184 = vmatpush1.bf16.msra.mxu0 %v2140
    %2185 = vmatprep.subr.bf16.mxu0 0
    %2186 = vmatpush1.bf16.msra.mxu0 %v2139
    %2187 = vmatprep.subr.bf16.mxu0 0
    %2188 = vmatpush1.bf16.msra.mxu0 %v2138
    %2189 = vmatprep.subr.bf16.mxu0 0
    %2190 = vmatpush1.bf16.msra.mxu0 %v2137
    %2191 = vmatprep.subr.bf16.mxu0 0
    %2192 = vmatpush2.bf16.msra.mxu0 0
    %2193 = vmatprep.subr.bf16.mxu0 0
    %2194 = vmatpush2.bf16.msra.mxu0 0
    %2195 = vmatprep.subr.bf16.mxu0 0
    %2196 = vmatpush2.bf16.msra.mxu0 0
    %2197 = vmatprep.subr.bf16.mxu0 0
    %2198 = vmatpush2.bf16.msra.mxu0 0
    %2199 = vmatprep.subr.bf16.mxu0 0
    %2200 = vmatpush2.bf16.msra.mxu0 0
    %2201 = vmatprep.subr.bf16.mxu0 0
    %2202 = vmatpush2.bf16.msra.mxu0 0
    %2203 = vmatprep.subr.bf16.mxu0 0
    %2204 = vmatpush2.bf16.msra.mxu0 0
    %2205 = vmatprep.subr.bf16.mxu0 0
    %2206 = vmatpush2.bf16.msra.mxu0 0
    %2207 = vmatprep.mubr.bf16.mxu0 0
    %2208 = vmatmul.mubr.bf16.gmra.mxu0 %v2146
    %v2209 = vpop.f32.mrf.mxu0
    %v2210 = vadd.f32 0.0, %v2209
    %v2211 = vpop.f32.mrf.mxu0
    %v2212 = vpop.f32.mrf.mxu0
    %v2213 = vadd.f32 0.0, %v2212
    %v2214 = vpop.f32.mrf.mxu0
    %2215 = vmatprep.mubr.bf16.mxu0 0
    %2216 = vmatmul.mubr.bf16.gmra.mxu0 %v2149
    %v2217 = vpop.f32.mrf.mxu0
    %v2218 = vadd.f32 0.0, %v2217
    %v2219 = vpop.f32.mrf.mxu0
    %v2220 = vpop.f32.mrf.mxu0
    %v2221 = vadd.f32 0.0, %v2220
    %v2222 = vpop.f32.mrf.mxu0
    %2223 = vmatprep.mubr.bf16.mxu0 0
    %2224 = vmatmul.mubr.bf16.gmra.mxu0 %v2152
    %v2225 = vpop.f32.mrf.mxu0
    %v2226 = vadd.f32 0.0, %v2225
    %v2227 = vpop.f32.mrf.mxu0
    %v2228 = vpop.f32.mrf.mxu0
    %v2229 = vadd.f32 0.0, %v2228
    %v2230 = vpop.f32.mrf.mxu0
    %2231 = vmatprep.mubr.bf16.mxu0 0
    %2232 = vmatmul.mubr.bf16.gmra.mxu0 %v2155
    %v2233 = vpop.f32.mrf.mxu0
    %v2234 = vadd.f32 0.0, %v2233
    %v2235 = vpop.f32.mrf.mxu0
    %v2236 = vpop.f32.mrf.mxu0
    %v2237 = vadd.f32 0.0, %v2236
    %v2238 = vpop.f32.mrf.mxu0
    %2239 = vmatprep.mubr.bf16.mxu0 0
    %2240 = vmatmul.mubr.bf16.gmra.mxu0 %v2158
    %v2241 = vpop.f32.mrf.mxu0
    %v2242 = vadd.f32 0.0, %v2241
    %v2243 = vpop.f32.mrf.mxu0
    %v2244 = vpop.f32.mrf.mxu0
    %v2245 = vadd.f32 0.0, %v2244
    %v2246 = vpop.f32.mrf.mxu0
    %2247 = vmatprep.mubr.bf16.mxu0 0
    %2248 = vmatmul.mubr.bf16.gmra.mxu0 %v2161
    %v2249 = vpop.f32.mrf.mxu0
    %v2250 = vadd.f32 0.0, %v2249
    %v2251 = vpop.f32.mrf.mxu0
    %v2252 = vpop.f32.mrf.mxu0
    %v2253 = vadd.f32 0.0, %v2252
    %v2254 = vpop.f32.mrf.mxu0
    %2255 = vmatprep.mubr.bf16.mxu0 0
    %2256 = vmatmul.mubr.bf16.gmra.mxu0 %v2164
    %v2257 = vpop.f32.mrf.mxu0
    %v2258 = vadd.f32 0.0, %v2257
    %v2259 = vpop.f32.mrf.mxu0
    %v2260 = vpop.f32.mrf.mxu0
    %v2261 = vadd.f32 0.0, %v2260
    %v2262 = vpop.f32.mrf.mxu0
    %2263 = vmatprep.mubr.bf16.mxu0 0
    %2264 = vmatmul.mubr.bf16.gmra.mxu0 %v2167
    %v2265 = vpop.f32.mrf.mxu0
    %v2266 = vadd.f32 0.0, %v2265
    %v2267 = vpop.f32.mrf.mxu0
    %v2268 = vpop.f32.mrf.mxu0
    %v2269 = vadd.f32 0.0, %v2268
    %v2270 = vpop.f32.mrf.mxu0
    %2271 = vmatprep.mubr.bf16.mxu0 0
    %2272 = vmatmul.mubr.bf16.gmra.mxu0 %v2170
    %v2273 = vpop.f32.mrf.mxu0
    %v2274 = vadd.f32 0.0, %v2273
    %v2275 = vpop.f32.mrf.mxu0
    %v2276 = vpop.f32.mrf.mxu0
    %v2277 = vadd.f32 0.0, %v2276
    %v2278 = vpop.f32.mrf.mxu0
    %2279 = vmatprep.mubr.bf16.mxu0 0
    %2280 = vmatmul.mubr.bf16.gmra.mxu0 %v2173
    %v2281 = vpop.f32.mrf.mxu0
    %v2282 = vadd.f32 0.0, %v2281
    %v2283 = vpop.f32.mrf.mxu0
    %v2284 = vpop.f32.mrf.mxu0
    %v2285 = vpop.f32.mrf.mxu0
    %2286 = vdwg.mxu0
    %v2287 = vadd.f32 %v2065, %v2210
    %v2288 = vadd.f32 %v2066, %v2213
    %v2289 = vadd.f32 %v2067, %v2218
    %v2290 = vadd.f32 %v2068, %v2221
    %v2291 = vadd.f32 %v2069, %v2226
    %v2292 = vadd.f32 %v2070, %v2229
    %v2293 = vadd.f32 %v2071, %v2234
    %v2294 = vadd.f32 %v2072, %v2237
    %v2295 = vadd.f32 %v2073, %v2242
    %v2296 = vadd.f32 %v2074, %v2245
    %v2297 = vadd.f32 %v2075, %v2250
    %v2298 = vadd.f32 %v2076, %v2253
    %v2299 = vadd.f32 %v2077, %v2258
    %v2300 = vadd.f32 %v2078, %v2261
    %v2301 = vadd.f32 %v2079, %v2266
    %v2302 = vadd.f32 %v2080, %v2269
    %v2303 = vadd.f32 %v2081, %v2274
    %v2304 = vadd.f32 %v2082, %v2277
    %v2305 = vadd.f32 %v2083, %v2282
    %v2306 = vld [vmem:[#allocation3 + $0x7] sm:$0xff]
    %v2307 = vld [vmem:[#allocation3 + $0xf] sm:$0xff]
    %v2308 = vld [vmem:[#allocation3 + $0x17] sm:$0xff]
    %v2309 = vld [vmem:[#allocation3 + $0x1f] sm:$0xff]
    %v2310 = vld [vmem:[#allocation3 + $0x27] sm:$0xff]
    %v2311 = vld [vmem:[#allocation3 + $0x2f] sm:$0xff]
    %v2312 = vld [vmem:[#allocation3 + $0x37] sm:$0xff]
    %v2313 = vld [vmem:[#allocation3 + $0x3f] sm:$0xff]
    %v2314 = vld [vmem:[#allocation3 + $0x47] sm:$0xff]
    %v2315 = vld [vmem:[#allocation3 + $0x4f] sm:$0xff]
    %v2316 = vld [vmem:[#allocation3 + $0x57] sm:$0xff]
    %v2317 = vld [vmem:[#allocation3 + $0x5f] sm:$0xff]
    %v2318 = vld [vmem:[#allocation3 + $0x67] sm:$0xff]
    %v2319 = vld [vmem:[#allocation3 + $0x6f] sm:$0xff]
    %v2320 = vld [vmem:[#allocation3 + $0x77] sm:$0xff]
    %v2321 = vld [vmem:[#allocation3 + $0x7f] sm:$0xff]
    %v2322 = vld [vmem:[#allocation3 + $0x87] sm:$0xff]
    %v2323 = vld [vmem:[#allocation3 + $0x8f] sm:$0xff]
    %v2324 = vld [vmem:[#allocation3 + $0x97] sm:$0xff]
    %v2325 = vpack.c.bf16 %v2307, %v2306
    %v2326 = vpack.c.bf16 %v2309, %v2308
    %v2327 = vpack.c.bf16 %v2311, %v2310
    %v2328 = vpack.c.bf16 %v2313, %v2312
    %v2329 = vpack.c.bf16 %v2315, %v2314
    %v2330 = vpack.c.bf16 %v2317, %v2316
    %v2331 = vpack.c.bf16 %v2319, %v2318
    %v2332 = vpack.c.bf16 %v2321, %v2320
    %v2333 = vpack.c.bf16 %v2323, %v2322
    %v2334 = vpack.c.bf16 %v2324, %v2324
    %v2335 = vld [vmem:[#allocation13 + $0xe0] sm:$0xf]
    %v2336 = vld [vmem:[#allocation13 + $0xe4] sm:$0xf]
    %v2337 = vld [vmem:[#allocation13 + $0xe8] sm:$0xf]
    %v2338 = vld [vmem:[#allocation13 + $0xec] sm:$0xf]
    %v2339 = vld [vmem:[#allocation13 + $0xf0] sm:$0xf]
    %v2340 = vld [vmem:[#allocation13 + $0xf4] sm:$0xf]
    %v2341 = vld [vmem:[#allocation13 + $0xf8] sm:$0xf]
    %v2342 = vld [vmem:[#allocation13 + $0xfc] sm:$0xf]
    %v2351 = vunpack.c.l.b16 %v2335
    %v2352 = vunpack.c.l.b16 %v2336
    %v2353 = vunpack.c.l.b16 %v2337
    %v2354 = vunpack.c.l.b16 %v2338
    %v2355 = vunpack.c.l.b16 %v2339
    %v2356 = vunpack.c.l.b16 %v2340
    %v2357 = vunpack.c.l.b16 %v2341
    %v2358 = vunpack.c.l.b16 %v2342
    %v2359 = vpack.c.b16 %v2352, %v2351
    %v2360 = vpack.c.b16 %v2354, %v2353
    %v2361 = vpack.c.b16 %v2356, %v2355
    %v2362 = vpack.c.b16 %v2358, %v2357
    %v2368 = vsel %vm638, %v2325, 0
    %v2371 = vsel %vm638, %v2326, 0
    %v2374 = vsel %vm638, %v2327, 0
    %v2377 = vsel %vm638, %v2328, 0
    %v2380 = vsel %vm638, %v2329, 0
    %v2383 = vsel %vm638, %v2330, 0
    %v2386 = vsel %vm638, %v2331, 0
    %v2389 = vsel %vm638, %v2332, 0
    %v2392 = vsel %vm638, %v2333, 0
    %v2395 = vsel %vm638, %v2334, 0
    %2397 = vmatprep.subr.bf16.mxu0 0
    %2398 = vmatpush1.bf16.msra.mxu0 0
    %2399 = vmatprep.subr.bf16.mxu0 0
    %2400 = vmatpush1.bf16.msra.mxu0 0
    %2401 = vmatprep.subr.bf16.mxu0 0
    %2402 = vmatpush1.bf16.msra.mxu0 0
    %2403 = vmatprep.subr.bf16.mxu0 0
    %2404 = vmatpush1.bf16.msra.mxu0 0
    %2405 = vmatprep.subr.bf16.mxu0 0
    %2406 = vmatpush1.bf16.msra.mxu0 %v2362
    %2407 = vmatprep.subr.bf16.mxu0 0
    %2408 = vmatpush1.bf16.msra.mxu0 %v2361
    %2409 = vmatprep.subr.bf16.mxu0 0
    %2410 = vmatpush1.bf16.msra.mxu0 %v2360
    %2411 = vmatprep.subr.bf16.mxu0 0
    %2412 = vmatpush1.bf16.msra.mxu0 %v2359
    %2413 = vmatprep.subr.bf16.mxu0 0
    %2414 = vmatpush2.bf16.msra.mxu0 0
    %2415 = vmatprep.subr.bf16.mxu0 0
    %2416 = vmatpush2.bf16.msra.mxu0 0
    %2417 = vmatprep.subr.bf16.mxu0 0
    %2418 = vmatpush2.bf16.msra.mxu0 0
    %2419 = vmatprep.subr.bf16.mxu0 0
    %2420 = vmatpush2.bf16.msra.mxu0 0
    %2421 = vmatprep.subr.bf16.mxu0 0
    %2422 = vmatpush2.bf16.msra.mxu0 0
    %2423 = vmatprep.subr.bf16.mxu0 0
    %2424 = vmatpush2.bf16.msra.mxu0 0
    %2425 = vmatprep.subr.bf16.mxu0 0
    %2426 = vmatpush2.bf16.msra.mxu0 0
    %2427 = vmatprep.subr.bf16.mxu0 0
    %2428 = vmatpush2.bf16.msra.mxu0 0
    %2429 = vmatprep.mubr.bf16.mxu0 0
    %2430 = vmatmul.mubr.bf16.gmra.mxu0 %v2368
    %v2431 = vpop.f32.mrf.mxu0
    %v2432 = vadd.f32 0.0, %v2431
    %v2433 = vpop.f32.mrf.mxu0
    %v2434 = vpop.f32.mrf.mxu0
    %v2435 = vadd.f32 0.0, %v2434
    %v2436 = vpop.f32.mrf.mxu0
    %2437 = vmatprep.mubr.bf16.mxu0 0
    %2438 = vmatmul.mubr.bf16.gmra.mxu0 %v2371
    %v2439 = vpop.f32.mrf.mxu0
    %v2440 = vadd.f32 0.0, %v2439
    %v2441 = vpop.f32.mrf.mxu0
    %v2442 = vpop.f32.mrf.mxu0
    %v2443 = vadd.f32 0.0, %v2442
    %v2444 = vpop.f32.mrf.mxu0
    %2445 = vmatprep.mubr.bf16.mxu0 0
    %2446 = vmatmul.mubr.bf16.gmra.mxu0 %v2374
    %v2447 = vpop.f32.mrf.mxu0
    %v2448 = vadd.f32 0.0, %v2447
    %v2449 = vpop.f32.mrf.mxu0
    %v2450 = vpop.f32.mrf.mxu0
    %v2451 = vadd.f32 0.0, %v2450
    %v2452 = vpop.f32.mrf.mxu0
    %2453 = vmatprep.mubr.bf16.mxu0 0
    %2454 = vmatmul.mubr.bf16.gmra.mxu0 %v2377
    %v2455 = vpop.f32.mrf.mxu0
    %v2456 = vadd.f32 0.0, %v2455
    %v2457 = vpop.f32.mrf.mxu0
    %v2458 = vpop.f32.mrf.mxu0
    %v2459 = vadd.f32 0.0, %v2458
    %v2460 = vpop.f32.mrf.mxu0
    %2461 = vmatprep.mubr.bf16.mxu0 0
    %2462 = vmatmul.mubr.bf16.gmra.mxu0 %v2380
    %v2463 = vpop.f32.mrf.mxu0
    %v2464 = vadd.f32 0.0, %v2463
    %v2465 = vpop.f32.mrf.mxu0
    %v2466 = vpop.f32.mrf.mxu0
    %v2467 = vadd.f32 0.0, %v2466
    %v2468 = vpop.f32.mrf.mxu0
    %2469 = vmatprep.mubr.bf16.mxu0 0
    %2470 = vmatmul.mubr.bf16.gmra.mxu0 %v2383
    %v2471 = vpop.f32.mrf.mxu0
    %v2472 = vadd.f32 0.0, %v2471
    %v2473 = vpop.f32.mrf.mxu0
    %v2474 = vpop.f32.mrf.mxu0
    %v2475 = vadd.f32 0.0, %v2474
    %v2476 = vpop.f32.mrf.mxu0
    %2477 = vmatprep.mubr.bf16.mxu0 0
    %2478 = vmatmul.mubr.bf16.gmra.mxu0 %v2386
    %v2479 = vpop.f32.mrf.mxu0
    %v2480 = vadd.f32 0.0, %v2479
    %v2481 = vpop.f32.mrf.mxu0
    %v2482 = vpop.f32.mrf.mxu0
    %v2483 = vadd.f32 0.0, %v2482
    %v2484 = vpop.f32.mrf.mxu0
    %2485 = vmatprep.mubr.bf16.mxu0 0
    %2486 = vmatmul.mubr.bf16.gmra.mxu0 %v2389
    %v2487 = vpop.f32.mrf.mxu0
    %v2488 = vadd.f32 0.0, %v2487
    %v2489 = vpop.f32.mrf.mxu0
    %v2490 = vpop.f32.mrf.mxu0
    %v2491 = vadd.f32 0.0, %v2490
    %v2492 = vpop.f32.mrf.mxu0
    %2493 = vmatprep.mubr.bf16.mxu0 0
    %2494 = vmatmul.mubr.bf16.gmra.mxu0 %v2392
    %v2495 = vpop.f32.mrf.mxu0
    %v2496 = vadd.f32 0.0, %v2495
    %v2497 = vpop.f32.mrf.mxu0
    %v2498 = vpop.f32.mrf.mxu0
    %v2499 = vadd.f32 0.0, %v2498
    %v2500 = vpop.f32.mrf.mxu0
    %2501 = vmatprep.mubr.bf16.mxu0 0
    %2502 = vmatmul.mubr.bf16.gmra.mxu0 %v2395
    %v2503 = vpop.f32.mrf.mxu0
    %v2504 = vadd.f32 0.0, %v2503
    %v2505 = vpop.f32.mrf.mxu0
    %v2506 = vpop.f32.mrf.mxu0
    %v2507 = vpop.f32.mrf.mxu0
    %2508 = vdwg.mxu0
    %v2509 = vadd.f32 %v2287, %v2432
    %v2510 = vadd.f32 %v2288, %v2435
    %v2511 = vadd.f32 %v2289, %v2440
    %v2512 = vadd.f32 %v2290, %v2443
    %v2513 = vadd.f32 %v2291, %v2448
    %v2514 = vadd.f32 %v2292, %v2451
    %v2515 = vadd.f32 %v2293, %v2456
    %v2516 = vadd.f32 %v2294, %v2459
    %v2517 = vadd.f32 %v2295, %v2464
    %v2518 = vadd.f32 %v2296, %v2467
    %v2519 = vadd.f32 %v2297, %v2472
    %v2520 = vadd.f32 %v2298, %v2475
    %v2521 = vadd.f32 %v2299, %v2480
    %v2522 = vadd.f32 %v2300, %v2483
    %v2523 = vadd.f32 %v2301, %v2488
    %v2524 = vadd.f32 %v2302, %v2491
    %v2525 = vadd.f32 %v2303, %v2496
    %v2526 = vadd.f32 %v2304, %v2499
    %v2527 = vadd.f32 %v2305, %v2504
    %v2528 = vld [vmem:[#allocation3 + $0x8] sm:$0xff]
    %v2529 = vld [vmem:[#allocation3 + $0x10] sm:$0xff]
    %v2530 = vld [vmem:[#allocation3 + $0x18] sm:$0xff]
    %v2531 = vld [vmem:[#allocation3 + $0x20] sm:$0xff]
    %v2532 = vld [vmem:[#allocation3 + $0x28] sm:$0xff]
    %v2533 = vld [vmem:[#allocation3 + $0x30] sm:$0xff]
    %v2534 = vld [vmem:[#allocation3 + $0x38] sm:$0xff]
    %v2535 = vld [vmem:[#allocation3 + $0x40] sm:$0xff]
    %v2536 = vld [vmem:[#allocation3 + $0x48] sm:$0xff]
    %v2537 = vld [vmem:[#allocation3 + $0x50] sm:$0xff]
    %v2538 = vld [vmem:[#allocation3 + $0x58] sm:$0xff]
    %v2539 = vld [vmem:[#allocation3 + $0x60] sm:$0xff]
    %v2540 = vld [vmem:[#allocation3 + $0x68] sm:$0xff]
    %v2541 = vld [vmem:[#allocation3 + $0x70] sm:$0xff]
    %v2542 = vld [vmem:[#allocation3 + $0x78] sm:$0xff]
    %v2543 = vld [vmem:[#allocation3 + $0x80] sm:$0xff]
    %v2544 = vld [vmem:[#allocation3 + $0x88] sm:$0xff]
    %v2545 = vld [vmem:[#allocation3 + $0x90] sm:$0xff]
    %v2546 = vld [vmem:[#allocation3 + $0x98] sm:$0xff]
    %v2547 = vpack.c.bf16 %v2529, %v2528
    %v2548 = vpack.c.bf16 %v2531, %v2530
    %v2549 = vpack.c.bf16 %v2533, %v2532
    %v2550 = vpack.c.bf16 %v2535, %v2534
    %v2551 = vpack.c.bf16 %v2537, %v2536
    %v2552 = vpack.c.bf16 %v2539, %v2538
    %v2553 = vpack.c.bf16 %v2541, %v2540
    %v2554 = vpack.c.bf16 %v2543, %v2542
    %v2555 = vpack.c.bf16 %v2545, %v2544
    %v2556 = vpack.c.bf16 %v2546, %v2546
    %v2557 = vld [vmem:[#allocation13 + $0x100] sm:$0xf]
    %v2558 = vld [vmem:[#allocation13 + $0x104] sm:$0xf]
    %v2559 = vld [vmem:[#allocation13 + $0x108] sm:$0xf]
    %v2560 = vld [vmem:[#allocation13 + $0x10c] sm:$0xf]
    %v2561 = vld [vmem:[#allocation13 + $0x110] sm:$0xf]
    %v2562 = vld [vmem:[#allocation13 + $0x114] sm:$0xf]
    %v2563 = vld [vmem:[#allocation13 + $0x118] sm:$0xf]
    %v2564 = vld [vmem:[#allocation13 + $0x11c] sm:$0xf]
    %v2573 = vunpack.c.l.b16 %v2557
    %v2574 = vunpack.c.l.b16 %v2558
    %v2575 = vunpack.c.l.b16 %v2559
    %v2576 = vunpack.c.l.b16 %v2560
    %v2577 = vunpack.c.l.b16 %v2561
    %v2578 = vunpack.c.l.b16 %v2562
    %v2579 = vunpack.c.l.b16 %v2563
    %v2580 = vunpack.c.l.b16 %v2564
    %v2581 = vpack.c.b16 %v2574, %v2573
    %v2582 = vpack.c.b16 %v2576, %v2575
    %v2583 = vpack.c.b16 %v2578, %v2577
    %v2584 = vpack.c.b16 %v2580, %v2579
    %v2590 = vsel %vm638, %v2547, 0
    %v2593 = vsel %vm638, %v2548, 0
    %v2596 = vsel %vm638, %v2549, 0
    %v2599 = vsel %vm638, %v2550, 0
    %v2602 = vsel %vm638, %v2551, 0
    %v2605 = vsel %vm638, %v2552, 0
    %v2608 = vsel %vm638, %v2553, 0
    %v2611 = vsel %vm638, %v2554, 0
    %v2614 = vsel %vm638, %v2555, 0
    %v2617 = vsel %vm638, %v2556, 0
    %2619 = vmatprep.subr.bf16.mxu0 0
    %2620 = vmatpush1.bf16.msra.mxu0 0
    %2621 = vmatprep.subr.bf16.mxu0 0
    %2622 = vmatpush1.bf16.msra.mxu0 0
    %2623 = vmatprep.subr.bf16.mxu0 0
    %2624 = vmatpush1.bf16.msra.mxu0 0
    %2625 = vmatprep.subr.bf16.mxu0 0
    %2626 = vmatpush1.bf16.msra.mxu0 0
    %2627 = vmatprep.subr.bf16.mxu0 0
    %2628 = vmatpush1.bf16.msra.mxu0 %v2584
    %2629 = vmatprep.subr.bf16.mxu0 0
    %2630 = vmatpush1.bf16.msra.mxu0 %v2583
    %2631 = vmatprep.subr.bf16.mxu0 0
    %2632 = vmatpush1.bf16.msra.mxu0 %v2582
    %2633 = vmatprep.subr.bf16.mxu0 0
    %2634 = vmatpush1.bf16.msra.mxu0 %v2581
    %2635 = vmatprep.subr.bf16.mxu0 0
    %2636 = vmatpush2.bf16.msra.mxu0 0
    %2637 = vmatprep.subr.bf16.mxu0 0
    %2638 = vmatpush2.bf16.msra.mxu0 0
    %2639 = vmatprep.subr.bf16.mxu0 0
    %2640 = vmatpush2.bf16.msra.mxu0 0
    %2641 = vmatprep.subr.bf16.mxu0 0
    %2642 = vmatpush2.bf16.msra.mxu0 0
    %2643 = vmatprep.subr.bf16.mxu0 0
    %2644 = vmatpush2.bf16.msra.mxu0 0
    %2645 = vmatprep.subr.bf16.mxu0 0
    %2646 = vmatpush2.bf16.msra.mxu0 0
    %2647 = vmatprep.subr.bf16.mxu0 0
    %2648 = vmatpush2.bf16.msra.mxu0 0
    %2649 = vmatprep.subr.bf16.mxu0 0
    %2650 = vmatpush2.bf16.msra.mxu0 0
    %2651 = vmatprep.mubr.bf16.mxu0 0
    %2652 = vmatmul.mubr.bf16.gmra.mxu0 %v2590
    %v2653 = vpop.f32.mrf.mxu0
    %v2654 = vadd.f32 0.0, %v2653
    %v2655 = vpop.f32.mrf.mxu0
    %v2656 = vpop.f32.mrf.mxu0
    %v2657 = vadd.f32 0.0, %v2656
    %v2658 = vpop.f32.mrf.mxu0
    %2659 = vmatprep.mubr.bf16.mxu0 0
    %2660 = vmatmul.mubr.bf16.gmra.mxu0 %v2593
    %v2661 = vpop.f32.mrf.mxu0
    %v2662 = vadd.f32 0.0, %v2661
    %v2663 = vpop.f32.mrf.mxu0
    %v2664 = vpop.f32.mrf.mxu0
    %v2665 = vadd.f32 0.0, %v2664
    %v2666 = vpop.f32.mrf.mxu0
    %2667 = vmatprep.mubr.bf16.mxu0 0
    %2668 = vmatmul.mubr.bf16.gmra.mxu0 %v2596
    %v2669 = vpop.f32.mrf.mxu0
    %v2670 = vadd.f32 0.0, %v2669
    %v2671 = vpop.f32.mrf.mxu0
    %v2672 = vpop.f32.mrf.mxu0
    %v2673 = vadd.f32 0.0, %v2672
    %v2674 = vpop.f32.mrf.mxu0
    %2675 = vmatprep.mubr.bf16.mxu0 0
    %2676 = vmatmul.mubr.bf16.gmra.mxu0 %v2599
    %v2677 = vpop.f32.mrf.mxu0
    %v2678 = vadd.f32 0.0, %v2677
    %v2679 = vpop.f32.mrf.mxu0
    %v2680 = vpop.f32.mrf.mxu0
    %v2681 = vadd.f32 0.0, %v2680
    %v2682 = vpop.f32.mrf.mxu0
    %2683 = vmatprep.mubr.bf16.mxu0 0
    %2684 = vmatmul.mubr.bf16.gmra.mxu0 %v2602
    %v2685 = vpop.f32.mrf.mxu0
    %v2686 = vadd.f32 0.0, %v2685
    %v2687 = vpop.f32.mrf.mxu0
    %v2688 = vpop.f32.mrf.mxu0
    %v2689 = vadd.f32 0.0, %v2688
    %v2690 = vpop.f32.mrf.mxu0
    %2691 = vmatprep.mubr.bf16.mxu0 0
    %2692 = vmatmul.mubr.bf16.gmra.mxu0 %v2605
    %v2693 = vpop.f32.mrf.mxu0
    %v2694 = vadd.f32 0.0, %v2693
    %v2695 = vpop.f32.mrf.mxu0
    %v2696 = vpop.f32.mrf.mxu0
    %v2697 = vadd.f32 0.0, %v2696
    %v2698 = vpop.f32.mrf.mxu0
    %2699 = vmatprep.mubr.bf16.mxu0 0
    %2700 = vmatmul.mubr.bf16.gmra.mxu0 %v2608
    %v2701 = vpop.f32.mrf.mxu0
    %v2702 = vadd.f32 0.0, %v2701
    %v2703 = vpop.f32.mrf.mxu0
    %v2704 = vpop.f32.mrf.mxu0
    %v2705 = vadd.f32 0.0, %v2704
    %v2706 = vpop.f32.mrf.mxu0
    %2707 = vmatprep.mubr.bf16.mxu0 0
    %2708 = vmatmul.mubr.bf16.gmra.mxu0 %v2611
    %v2709 = vpop.f32.mrf.mxu0
    %v2710 = vadd.f32 0.0, %v2709
    %v2711 = vpop.f32.mrf.mxu0
    %v2712 = vpop.f32.mrf.mxu0
    %v2713 = vadd.f32 0.0, %v2712
    %v2714 = vpop.f32.mrf.mxu0
    %2715 = vmatprep.mubr.bf16.mxu0 0
    %2716 = vmatmul.mubr.bf16.gmra.mxu0 %v2614
    %v2717 = vpop.f32.mrf.mxu0
    %v2718 = vadd.f32 0.0, %v2717
    %v2719 = vpop.f32.mrf.mxu0
    %v2720 = vpop.f32.mrf.mxu0
    %v2721 = vadd.f32 0.0, %v2720
    %v2722 = vpop.f32.mrf.mxu0
    %2723 = vmatprep.mubr.bf16.mxu0 0
    %2724 = vmatmul.mubr.bf16.gmra.mxu0 %v2617
    %v2725 = vpop.f32.mrf.mxu0
    %v2726 = vadd.f32 0.0, %v2725
    %v2727 = vpop.f32.mrf.mxu0
    %v2728 = vpop.f32.mrf.mxu0
    %v2729 = vpop.f32.mrf.mxu0
    %2730 = vdwg.mxu0
    %v2731 = vadd.f32 %v2509, %v2654
    %v2732 = vadd.f32 %v2510, %v2657
    %v2733 = vadd.f32 %v2511, %v2662
    %v2734 = vadd.f32 %v2512, %v2665
    %v2735 = vadd.f32 %v2513, %v2670
    %v2736 = vadd.f32 %v2514, %v2673
    %v2737 = vadd.f32 %v2515, %v2678
    %v2738 = vadd.f32 %v2516, %v2681
    %v2739 = vadd.f32 %v2517, %v2686
    %v2740 = vadd.f32 %v2518, %v2689
    %v2741 = vadd.f32 %v2519, %v2694
    %v2742 = vadd.f32 %v2520, %v2697
    %v2743 = vadd.f32 %v2521, %v2702
    %v2744 = vadd.f32 %v2522, %v2705
    %v2745 = vadd.f32 %v2523, %v2710
    %v2746 = vadd.f32 %v2524, %v2713
    %v2747 = vadd.f32 %v2525, %v2718
    %v2748 = vadd.f32 %v2526, %v2721
    %v2749 = vadd.f32 %v2527, %v2726
    %v2750 = vld [vmem:[%s4] sm:$0x1]
    %v2752 = vlaneseq
    %v2753 = vshrl.u32 %v2752, 7
    %v2754 = vsub.s32 0, %v2753
    %v2755 = vrot.slane %v2750, %v2754
    %v2757 = vadd.f32 %v2731, %v2755
    %v2758 = vadd.f32 %v2732, %v2755
    %v2759 = vadd.f32 %v2733, %v2755
    %v2760 = vadd.f32 %v2734, %v2755
    %v2761 = vadd.f32 %v2735, %v2755
    %v2762 = vadd.f32 %v2736, %v2755
    %v2763 = vadd.f32 %v2737, %v2755
    %v2764 = vadd.f32 %v2738, %v2755
    %v2765 = vadd.f32 %v2739, %v2755
    %v2766 = vadd.f32 %v2740, %v2755
    %v2767 = vadd.f32 %v2741, %v2755
    %v2768 = vadd.f32 %v2742, %v2755
    %v2769 = vadd.f32 %v2743, %v2755
    %v2770 = vadd.f32 %v2744, %v2755
    %v2771 = vadd.f32 %v2745, %v2755
    %v2772 = vadd.f32 %v2746, %v2755
    %v2773 = vadd.f32 %v2747, %v2755
    %v2774 = vadd.f32 %v2748, %v2755
    %v2775 = vadd.f32 %v2749, %v2755
    %v2776 = vmax.f32 %v2757, 0.0
    %v2777 = vmax.f32 %v2758, 0.0
    %v2778 = vmax.f32 %v2759, 0.0
    %v2779 = vmax.f32 %v2760, 0.0
    %v2780 = vmax.f32 %v2761, 0.0
    %v2781 = vmax.f32 %v2762, 0.0
    %v2782 = vmax.f32 %v2763, 0.0
    %v2783 = vmax.f32 %v2764, 0.0
    %v2784 = vmax.f32 %v2765, 0.0
    %v2785 = vmax.f32 %v2766, 0.0
    %v2786 = vmax.f32 %v2767, 0.0
    %v2787 = vmax.f32 %v2768, 0.0
    %v2788 = vmax.f32 %v2769, 0.0
    %v2789 = vmax.f32 %v2770, 0.0
    %v2790 = vmax.f32 %v2771, 0.0
    %v2791 = vmax.f32 %v2772, 0.0
    %v2792 = vmax.f32 %v2773, 0.0
    %v2793 = vmax.f32 %v2774, 0.0
    %v2794 = vmax.f32 %v2775, 0.0
    %2795 = vst [vmem:[#allocation4] sm:$0xff] %v2776
    %2796 = vst [vmem:[#allocation4 + $0x8] sm:$0xff] %v2777
    %2797 = vst [vmem:[#allocation4 + $0x10] sm:$0xff] %v2778
    %2798 = vst [vmem:[#allocation4 + $0x18] sm:$0xff] %v2779
    %2799 = vst [vmem:[#allocation4 + $0x20] sm:$0xff] %v2780
    %2800 = vst [vmem:[#allocation4 + $0x28] sm:$0xff] %v2781
    %2801 = vst [vmem:[#allocation4 + $0x30] sm:$0xff] %v2782
    %2802 = vst [vmem:[#allocation4 + $0x38] sm:$0xff] %v2783
    %2803 = vst [vmem:[#allocation4 + $0x40] sm:$0xff] %v2784
    %2804 = vst [vmem:[#allocation4 + $0x48] sm:$0xff] %v2785
    %2805 = vst [vmem:[#allocation4 + $0x50] sm:$0xff] %v2786
    %2806 = vst [vmem:[#allocation4 + $0x58] sm:$0xff] %v2787
    %2807 = vst [vmem:[#allocation4 + $0x60] sm:$0xff] %v2788
    %2808 = vst [vmem:[#allocation4 + $0x68] sm:$0xff] %v2789
    %2809 = vst [vmem:[#allocation4 + $0x70] sm:$0xff] %v2790
    %2810 = vst [vmem:[#allocation4 + $0x78] sm:$0xff] %v2791
    %2811 = vst [vmem:[#allocation4 + $0x80] sm:$0xff] %v2792
    %2812 = vst [vmem:[#allocation4 + $0x88] sm:$0xff] %v2793
    %2813 = vst [vmem:[#allocation4 + $0x90] sm:$0xff] %v2794
    %v2814 = vld [vmem:[#allocation4] ss:$2 sm:$0xff]
    %s2815 = scalar_lea.vmem [#allocation4], 16
    %v2816 = vld [vmem:[%s2815] ss:$2 sm:$0xff]
    %s2817 = scalar_lea.vmem [#allocation4], 32
    %v2818 = vld [vmem:[%s2817] ss:$2 sm:$0xff]
    %s2819 = scalar_lea.vmem [#allocation4], 48
    %v2820 = vld [vmem:[%s2819] ss:$2 sm:$0xff]
    %s2821 = scalar_lea.vmem [#allocation4], 64
    %v2822 = vld [vmem:[%s2821] ss:$2 sm:$0xff]
    %s2823 = scalar_lea.vmem [#allocation4], 80
    %v2824 = vld [vmem:[%s2823] ss:$2 sm:$0xff]
    %s2825 = scalar_lea.vmem [#allocation4], 96
    %v2826 = vld [vmem:[%s2825] ss:$2 sm:$0xff]
    %s2827 = scalar_lea.vmem [#allocation4], 112
    %v2828 = vld [vmem:[%s2827] ss:$2 sm:$0xff]
    %s2829 = scalar_lea.vmem [#allocation4], 128
    %v2830 = vld [vmem:[%s2829] ss:$2 sm:$0xff]
    %s2831 = scalar_lea.vmem [#allocation4], 144
    %v2832 = vld [vmem:[%s2831] ss:$2 sm:$0xf]
    %s2833 = scalar_lea.vmem [#allocation4], 1
    %v2834 = vld [vmem:[%s2833] ss:$2 sm:$0xff]
    %s2835 = scalar_lea.vmem [#allocation4], 17
    %v2836 = vld [vmem:[%s2835] ss:$2 sm:$0xff]
    %s2837 = scalar_lea.vmem [#allocation4], 33
    %v2838 = vld [vmem:[%s2837] ss:$2 sm:$0xff]
    %s2839 = scalar_lea.vmem [#allocation4], 49
    %v2840 = vld [vmem:[%s2839] ss:$2 sm:$0xff]
    %s2841 = scalar_lea.vmem [#allocation4], 65
    %v2842 = vld [vmem:[%s2841] ss:$2 sm:$0xff]
    %s2843 = scalar_lea.vmem [#allocation4], 81
    %v2844 = vld [vmem:[%s2843] ss:$2 sm:$0xff]
    %s2845 = scalar_lea.vmem [#allocation4], 97
    %v2846 = vld [vmem:[%s2845] ss:$2 sm:$0xff]
    %s2847 = scalar_lea.vmem [#allocation4], 113
    %v2848 = vld [vmem:[%s2847] ss:$2 sm:$0xff]
    %s2849 = scalar_lea.vmem [#allocation4], 129
    %v2850 = vld [vmem:[%s2849] ss:$2 sm:$0xff]
    %s2851 = scalar_lea.vmem [#allocation4], 145
    %v2852 = vld [vmem:[%s2851] ss:$2 sm:$0xf]
    %v2853 = vmax.f32 %v2814, %v2834
    %v2854 = vmax.f32 %v2816, %v2836
    %v2855 = vmax.f32 %v2818, %v2838
    %v2856 = vmax.f32 %v2820, %v2840
    %v2857 = vmax.f32 %v2822, %v2842
    %v2858 = vmax.f32 %v2824, %v2844
    %v2859 = vmax.f32 %v2826, %v2846
    %v2860 = vmax.f32 %v2828, %v2848
    %v2861 = vmax.f32 %v2830, %v2850
    %v2862 = vmax.f32 %v2832, %v2852
    %2863 = vst [vmem:[#allocation5 + $0x2] sm:$0xff] %v2853
    %2864 = vst [vmem:[#allocation5 + $0xa] sm:$0xff] %v2854
    %2865 = vst [vmem:[#allocation5 + $0x12] sm:$0xff] %v2855
    %2866 = vst [vmem:[#allocation5 + $0x1a] sm:$0xff] %v2856
    %2867 = vst [vmem:[#allocation5 + $0x22] sm:$0xff] %v2857
    %2868 = vst [vmem:[#allocation5 + $0x2a] sm:$0xff] %v2858
    %2869 = vst [vmem:[#allocation5 + $0x32] sm:$0xff] %v2859
    %2870 = vst [vmem:[#allocation5 + $0x3a] sm:$0xff] %v2860
    %2871 = vst [vmem:[#allocation5 + $0x42] sm:$0xff] %v2861
    %2872 = vst [vmem:[#allocation5 + $0x4a] sm:$0xf] %v2862
    %v2873 = vld [vmem:[#allocation5] ss:$2 sm:$0xff]
    %s2874 = scalar_lea.vmem [#allocation5], 16
    %v2875 = vld [vmem:[%s2874] ss:$2 sm:$0xff]
    %s2876 = scalar_lea.vmem [#allocation5], 32
    %v2877 = vld [vmem:[%s2876] ss:$2 sm:$0xff]
    %s2878 = scalar_lea.vmem [#allocation5], 48
    %v2879 = vld [vmem:[%s2878] ss:$2 sm:$0xff]
    %s2880 = scalar_lea.vmem [#allocation5], 64
    %v2881 = vld [vmem:[%s2880] ss:$2 sm:$0xf]
    %v2882 = vpack.c.bf16 %v2875, %v2873
    %v2883 = vpack.c.bf16 %v2879, %v2877
    %v2884 = vpack.c.bf16 %v2881, %v2881
    %v2885 = vld [vmem:[#allocation14] sm:$0xf]
    %v2886 = vld [vmem:[#allocation14 + $0x4] sm:$0xf]
    %v2887 = vld [vmem:[#allocation14 + $0x8] sm:$0xf]
    %v2888 = vld [vmem:[#allocation14 + $0xc] sm:$0xf]
    %v2889 = vld [vmem:[#allocation14 + $0x10] sm:$0xf]
    %v2890 = vld [vmem:[#allocation14 + $0x14] sm:$0xf]
    %v2891 = vld [vmem:[#allocation14 + $0x18] sm:$0xf]
    %v2892 = vld [vmem:[#allocation14 + $0x1c] sm:$0xf]
    %v2893 = vld [vmem:[#allocation14 + $0x20] sm:$0xf]
    %v2894 = vld [vmem:[#allocation14 + $0x24] sm:$0xf]
    %v2895 = vld [vmem:[#allocation14 + $0x28] sm:$0xf]
    %v2896 = vld [vmem:[#allocation14 + $0x2c] sm:$0xf]
    %v2897 = vld [vmem:[#allocation14 + $0x30] sm:$0xf]
    %v2898 = vld [vmem:[#allocation14 + $0x34] sm:$0xf]
    %v2899 = vld [vmem:[#allocation14 + $0x38] sm:$0xf]
    %v2900 = vld [vmem:[#allocation14 + $0x3c] sm:$0xf]
    %s2901 = scalar_lea.vmem [#allocation5], 1
    %v2902 = vld [vmem:[%s2901] ss:$2 sm:$0xff]
    %s2903 = scalar_lea.vmem [#allocation5], 17
    %v2904 = vld [vmem:[%s2903] ss:$2 sm:$0xff]
    %s2905 = scalar_lea.vmem [#allocation5], 33
    %v2906 = vld [vmem:[%s2905] ss:$2 sm:$0xff]
    %s2907 = scalar_lea.vmem [#allocation5], 49
    %v2908 = vld [vmem:[%s2907] ss:$2 sm:$0xff]
    %s2909 = scalar_lea.vmem [#allocation5], 65
    %v2910 = vld [vmem:[%s2909] ss:$2 sm:$0xf]
    %v2911 = vpack.c.bf16 %v2904, %v2902
    %v2912 = vpack.c.bf16 %v2908, %v2906
    %v2913 = vpack.c.bf16 %v2910, %v2910
    %v2914 = vld [vmem:[#allocation14 + $0x40] sm:$0xf]
    %v2915 = vld [vmem:[#allocation14 + $0x44] sm:$0xf]
    %v2916 = vld [vmem:[#allocation14 + $0x48] sm:$0xf]
    %v2917 = vld [vmem:[#allocation14 + $0x4c] sm:$0xf]
    %v2918 = vld [vmem:[#allocation14 + $0x50] sm:$0xf]
    %v2919 = vld [vmem:[#allocation14 + $0x54] sm:$0xf]
    %v2920 = vld [vmem:[#allocation14 + $0x58] sm:$0xf]
    %v2921 = vld [vmem:[#allocation14 + $0x5c] sm:$0xf]
    %v2922 = vld [vmem:[#allocation14 + $0x60] sm:$0xf]
    %v2923 = vld [vmem:[#allocation14 + $0x64] sm:$0xf]
    %v2924 = vld [vmem:[#allocation14 + $0x68] sm:$0xf]
    %v2925 = vld [vmem:[#allocation14 + $0x6c] sm:$0xf]
    %v2926 = vld [vmem:[#allocation14 + $0x70] sm:$0xf]
    %v2927 = vld [vmem:[#allocation14 + $0x74] sm:$0xf]
    %v2928 = vld [vmem:[#allocation14 + $0x78] sm:$0xf]
    %v2929 = vld [vmem:[#allocation14 + $0x7c] sm:$0xf]
    %v2946 = vunpack.c.l.b16 %v2914
    %v2947 = vunpack.c.l.b16 %v2915
    %v2948 = vunpack.c.l.b16 %v2916
    %v2949 = vunpack.c.l.b16 %v2917
    %v2950 = vunpack.c.l.b16 %v2918
    %v2951 = vunpack.c.l.b16 %v2919
    %v2952 = vunpack.c.l.b16 %v2920
    %v2953 = vunpack.c.l.b16 %v2921
    %v2954 = vunpack.c.l.b16 %v2922
    %v2955 = vunpack.c.l.b16 %v2923
    %v2956 = vunpack.c.l.b16 %v2924
    %v2957 = vunpack.c.l.b16 %v2925
    %v2958 = vunpack.c.l.b16 %v2926
    %v2959 = vunpack.c.l.b16 %v2927
    %v2960 = vunpack.c.l.b16 %v2928
    %v2961 = vunpack.c.l.b16 %v2929
    %v2962 = vpack.c.b16 %v2947, %v2946
    %v2963 = vpack.c.b16 %v2949, %v2948
    %v2964 = vpack.c.b16 %v2951, %v2950
    %v2965 = vpack.c.b16 %v2953, %v2952
    %v2966 = vpack.c.b16 %v2955, %v2954
    %v2967 = vpack.c.b16 %v2957, %v2956
    %v2968 = vpack.c.b16 %v2959, %v2958
    %v2969 = vpack.c.b16 %v2961, %v2960
    %2978 = vmatprep.subr.bf16.mxu0 0
    %2979 = vmatpush1.bf16.msra.mxu0 %v2969
    %2980 = vmatprep.subr.bf16.mxu0 0
    %2981 = vmatpush1.bf16.msra.mxu0 %v2968
    %2982 = vmatprep.subr.bf16.mxu0 0
    %2983 = vmatpush1.bf16.msra.mxu0 %v2967
    %2984 = vmatprep.subr.bf16.mxu0 0
    %2985 = vmatpush1.bf16.msra.mxu0 %v2966
    %2986 = vmatprep.subr.bf16.mxu0 0
    %2987 = vmatpush1.bf16.msra.mxu0 %v2965
    %2988 = vmatprep.subr.bf16.mxu0 0
    %2989 = vmatpush1.bf16.msra.mxu0 %v2964
    %2990 = vmatprep.subr.bf16.mxu0 0
    %2991 = vmatpush1.bf16.msra.mxu0 %v2963
    %2992 = vmatprep.subr.bf16.mxu0 0
    %2993 = vmatpush1.bf16.msra.mxu0 %v2962
    %2994 = vmatprep.subr.bf16.mxu0 0
    %2995 = vmatpush2.bf16.msra.mxu0 0
    %2996 = vmatprep.subr.bf16.mxu0 0
    %2997 = vmatpush2.bf16.msra.mxu0 0
    %2998 = vmatprep.subr.bf16.mxu0 0
    %2999 = vmatpush2.bf16.msra.mxu0 0
    %3000 = vmatprep.subr.bf16.mxu0 0
    %3001 = vmatpush2.bf16.msra.mxu0 0
    %3002 = vmatprep.subr.bf16.mxu0 0
    %3003 = vmatpush2.bf16.msra.mxu0 0
    %3004 = vmatprep.subr.bf16.mxu0 0
    %3005 = vmatpush2.bf16.msra.mxu0 0
    %3006 = vmatprep.subr.bf16.mxu0 0
    %3007 = vmatpush2.bf16.msra.mxu0 0
    %3008 = vmatprep.subr.bf16.mxu0 0
    %3009 = vmatpush2.bf16.msra.mxu0 0
    %3010 = vmatprep.mubr.bf16.mxu0 0
    %3011 = vmatmul.mubr.bf16.gmra.mxu0 %v2911
    %v3012 = vpop.f32.mrf.mxu0
    %v3013 = vadd.f32 0.0, %v3012
    %v3014 = vpop.f32.mrf.mxu0
    %v3015 = vpop.f32.mrf.mxu0
    %v3016 = vadd.f32 0.0, %v3015
    %v3017 = vpop.f32.mrf.mxu0
    %3018 = vmatprep.mubr.bf16.mxu0 0
    %3019 = vmatmul.mubr.bf16.gmra.mxu0 %v2912
    %v3020 = vpop.f32.mrf.mxu0
    %v3021 = vadd.f32 0.0, %v3020
    %v3022 = vpop.f32.mrf.mxu0
    %v3023 = vpop.f32.mrf.mxu0
    %v3024 = vadd.f32 0.0, %v3023
    %v3025 = vpop.f32.mrf.mxu0
    %3026 = vmatprep.mubr.bf16.mxu0 0
    %3027 = vmatmul.mubr.bf16.gmra.mxu0 %v2913
    %v3028 = vpop.f32.mrf.mxu0
    %v3029 = vadd.f32 0.0, %v3028
    %v3030 = vpop.f32.mrf.mxu0
    %v3031 = vpop.f32.mrf.mxu0
    %v3032 = vpop.f32.mrf.mxu0
    %3033 = vdwg.mxu0
    %v3050 = vunpack.c.l.b16 %v2885
    %v3051 = vunpack.c.l.b16 %v2886
    %v3052 = vunpack.c.l.b16 %v2887
    %v3053 = vunpack.c.l.b16 %v2888
    %v3054 = vunpack.c.l.b16 %v2889
    %v3055 = vunpack.c.l.b16 %v2890
    %v3056 = vunpack.c.l.b16 %v2891
    %v3057 = vunpack.c.l.b16 %v2892
    %v3058 = vunpack.c.l.b16 %v2893
    %v3059 = vunpack.c.l.b16 %v2894
    %v3060 = vunpack.c.l.b16 %v2895
    %v3061 = vunpack.c.l.b16 %v2896
    %v3062 = vunpack.c.l.b16 %v2897
    %v3063 = vunpack.c.l.b16 %v2898
    %v3064 = vunpack.c.l.b16 %v2899
    %v3065 = vunpack.c.l.b16 %v2900
    %v3066 = vpack.c.b16 %v3051, %v3050
    %v3067 = vpack.c.b16 %v3053, %v3052
    %v3068 = vpack.c.b16 %v3055, %v3054
    %v3069 = vpack.c.b16 %v3057, %v3056
    %v3070 = vpack.c.b16 %v3059, %v3058
    %v3071 = vpack.c.b16 %v3061, %v3060
    %v3072 = vpack.c.b16 %v3063, %v3062
    %v3073 = vpack.c.b16 %v3065, %v3064
    %3082 = vmatprep.subr.bf16.mxu0 0
    %3083 = vmatpush1.bf16.msra.mxu0 %v3073
    %3084 = vmatprep.subr.bf16.mxu0 0
    %3085 = vmatpush1.bf16.msra.mxu0 %v3072
    %3086 = vmatprep.subr.bf16.mxu0 0
    %3087 = vmatpush1.bf16.msra.mxu0 %v3071
    %3088 = vmatprep.subr.bf16.mxu0 0
    %3089 = vmatpush1.bf16.msra.mxu0 %v3070
    %3090 = vmatprep.subr.bf16.mxu0 0
    %3091 = vmatpush1.bf16.msra.mxu0 %v3069
    %3092 = vmatprep.subr.bf16.mxu0 0
    %3093 = vmatpush1.bf16.msra.mxu0 %v3068
    %3094 = vmatprep.subr.bf16.mxu0 0
    %3095 = vmatpush1.bf16.msra.mxu0 %v3067
    %3096 = vmatprep.subr.bf16.mxu0 0
    %3097 = vmatpush1.bf16.msra.mxu0 %v3066
    %3098 = vmatprep.subr.bf16.mxu0 0
    %3099 = vmatpush2.bf16.msra.mxu0 0
    %3100 = vmatprep.subr.bf16.mxu0 0
    %3101 = vmatpush2.bf16.msra.mxu0 0
    %3102 = vmatprep.subr.bf16.mxu0 0
    %3103 = vmatpush2.bf16.msra.mxu0 0
    %3104 = vmatprep.subr.bf16.mxu0 0
    %3105 = vmatpush2.bf16.msra.mxu0 0
    %3106 = vmatprep.subr.bf16.mxu0 0
    %3107 = vmatpush2.bf16.msra.mxu0 0
    %3108 = vmatprep.subr.bf16.mxu0 0
    %3109 = vmatpush2.bf16.msra.mxu0 0
    %3110 = vmatprep.subr.bf16.mxu0 0
    %3111 = vmatpush2.bf16.msra.mxu0 0
    %3112 = vmatprep.subr.bf16.mxu0 0
    %3113 = vmatpush2.bf16.msra.mxu0 0
    %3114 = vmatprep.mubr.bf16.mxu0 0
    %3115 = vmatmul.mubr.bf16.gmra.mxu0 %v2882
    %v3116 = vpop.f32.mrf.mxu0
    %v3117 = vadd.f32 %v3013, %v3116
    %v3118 = vpop.f32.mrf.mxu0
    %v3119 = vpop.f32.mrf.mxu0
    %v3120 = vadd.f32 %v3016, %v3119
    %v3121 = vpop.f32.mrf.mxu0
    %3122 = vmatprep.mubr.bf16.mxu0 0
    %3123 = vmatmul.mubr.bf16.gmra.mxu0 %v2883
    %v3124 = vpop.f32.mrf.mxu0
    %v3125 = vadd.f32 %v3021, %v3124
    %v3126 = vpop.f32.mrf.mxu0
    %v3127 = vpop.f32.mrf.mxu0
    %v3128 = vadd.f32 %v3024, %v3127
    %v3129 = vpop.f32.mrf.mxu0
    %3130 = vmatprep.mubr.bf16.mxu0 0
    %3131 = vmatmul.mubr.bf16.gmra.mxu0 %v2884
    %v3132 = vpop.f32.mrf.mxu0
    %v3133 = vadd.f32 %v3029, %v3132
    %v3134 = vpop.f32.mrf.mxu0
    %v3135 = vpop.f32.mrf.mxu0
    %v3136 = vpop.f32.mrf.mxu0
    %3137 = vdwg.mxu0
    %s3138 = scalar_lea.vmem [#allocation5], 2
    %v3139 = vld [vmem:[%s3138] ss:$2 sm:$0xff]
    %s3140 = scalar_lea.vmem [#allocation5], 18
    %v3141 = vld [vmem:[%s3140] ss:$2 sm:$0xff]
    %s3142 = scalar_lea.vmem [#allocation5], 34
    %v3143 = vld [vmem:[%s3142] ss:$2 sm:$0xff]
    %s3144 = scalar_lea.vmem [#allocation5], 50
    %v3145 = vld [vmem:[%s3144] ss:$2 sm:$0xff]
    %s3146 = scalar_lea.vmem [#allocation5], 66
    %v3147 = vld [vmem:[%s3146] ss:$2 sm:$0xf]
    %v3148 = vpack.c.bf16 %v3141, %v3139
    %v3149 = vpack.c.bf16 %v3145, %v3143
    %v3150 = vpack.c.bf16 %v3147, %v3147
    %v3151 = vld [vmem:[#allocation14 + $0x80] sm:$0xf]
    %v3152 = vld [vmem:[#allocation14 + $0x84] sm:$0xf]
    %v3153 = vld [vmem:[#allocation14 + $0x88] sm:$0xf]
    %v3154 = vld [vmem:[#allocation14 + $0x8c] sm:$0xf]
    %v3155 = vld [vmem:[#allocation14 + $0x90] sm:$0xf]
    %v3156 = vld [vmem:[#allocation14 + $0x94] sm:$0xf]
    %v3157 = vld [vmem:[#allocation14 + $0x98] sm:$0xf]
    %v3158 = vld [vmem:[#allocation14 + $0x9c] sm:$0xf]
    %v3159 = vld [vmem:[#allocation14 + $0xa0] sm:$0xf]
    %v3160 = vld [vmem:[#allocation14 + $0xa4] sm:$0xf]
    %v3161 = vld [vmem:[#allocation14 + $0xa8] sm:$0xf]
    %v3162 = vld [vmem:[#allocation14 + $0xac] sm:$0xf]
    %v3163 = vld [vmem:[#allocation14 + $0xb0] sm:$0xf]
    %v3164 = vld [vmem:[#allocation14 + $0xb4] sm:$0xf]
    %v3165 = vld [vmem:[#allocation14 + $0xb8] sm:$0xf]
    %v3166 = vld [vmem:[#allocation14 + $0xbc] sm:$0xf]
    %v3183 = vunpack.c.l.b16 %v3151
    %v3184 = vunpack.c.l.b16 %v3152
    %v3185 = vunpack.c.l.b16 %v3153
    %v3186 = vunpack.c.l.b16 %v3154
    %v3187 = vunpack.c.l.b16 %v3155
    %v3188 = vunpack.c.l.b16 %v3156
    %v3189 = vunpack.c.l.b16 %v3157
    %v3190 = vunpack.c.l.b16 %v3158
    %v3191 = vunpack.c.l.b16 %v3159
    %v3192 = vunpack.c.l.b16 %v3160
    %v3193 = vunpack.c.l.b16 %v3161
    %v3194 = vunpack.c.l.b16 %v3162
    %v3195 = vunpack.c.l.b16 %v3163
    %v3196 = vunpack.c.l.b16 %v3164
    %v3197 = vunpack.c.l.b16 %v3165
    %v3198 = vunpack.c.l.b16 %v3166
    %v3199 = vpack.c.b16 %v3184, %v3183
    %v3200 = vpack.c.b16 %v3186, %v3185
    %v3201 = vpack.c.b16 %v3188, %v3187
    %v3202 = vpack.c.b16 %v3190, %v3189
    %v3203 = vpack.c.b16 %v3192, %v3191
    %v3204 = vpack.c.b16 %v3194, %v3193
    %v3205 = vpack.c.b16 %v3196, %v3195
    %v3206 = vpack.c.b16 %v3198, %v3197
    %3215 = vmatprep.subr.bf16.mxu0 0
    %3216 = vmatpush1.bf16.msra.mxu0 %v3206
    %3217 = vmatprep.subr.bf16.mxu0 0
    %3218 = vmatpush1.bf16.msra.mxu0 %v3205
    %3219 = vmatprep.subr.bf16.mxu0 0
    %3220 = vmatpush1.bf16.msra.mxu0 %v3204
    %3221 = vmatprep.subr.bf16.mxu0 0
    %3222 = vmatpush1.bf16.msra.mxu0 %v3203
    %3223 = vmatprep.subr.bf16.mxu0 0
    %3224 = vmatpush1.bf16.msra.mxu0 %v3202
    %3225 = vmatprep.subr.bf16.mxu0 0
    %3226 = vmatpush1.bf16.msra.mxu0 %v3201
    %3227 = vmatprep.subr.bf16.mxu0 0
    %3228 = vmatpush1.bf16.msra.mxu0 %v3200
    %3229 = vmatprep.subr.bf16.mxu0 0
    %3230 = vmatpush1.bf16.msra.mxu0 %v3199
    %3231 = vmatprep.subr.bf16.mxu0 0
    %3232 = vmatpush2.bf16.msra.mxu0 0
    %3233 = vmatprep.subr.bf16.mxu0 0
    %3234 = vmatpush2.bf16.msra.mxu0 0
    %3235 = vmatprep.subr.bf16.mxu0 0
    %3236 = vmatpush2.bf16.msra.mxu0 0
    %3237 = vmatprep.subr.bf16.mxu0 0
    %3238 = vmatpush2.bf16.msra.mxu0 0
    %3239 = vmatprep.subr.bf16.mxu0 0
    %3240 = vmatpush2.bf16.msra.mxu0 0
    %3241 = vmatprep.subr.bf16.mxu0 0
    %3242 = vmatpush2.bf16.msra.mxu0 0
    %3243 = vmatprep.subr.bf16.mxu0 0
    %3244 = vmatpush2.bf16.msra.mxu0 0
    %3245 = vmatprep.subr.bf16.mxu0 0
    %3246 = vmatpush2.bf16.msra.mxu0 0
    %3247 = vmatprep.mubr.bf16.mxu0 0
    %3248 = vmatmul.mubr.bf16.gmra.mxu0 %v3148
    %v3249 = vpop.f32.mrf.mxu0
    %v3250 = vadd.f32 0.0, %v3249
    %v3251 = vpop.f32.mrf.mxu0
    %v3252 = vpop.f32.mrf.mxu0
    %v3253 = vadd.f32 0.0, %v3252
    %v3254 = vpop.f32.mrf.mxu0
    %3255 = vmatprep.mubr.bf16.mxu0 0
    %3256 = vmatmul.mubr.bf16.gmra.mxu0 %v3149
    %v3257 = vpop.f32.mrf.mxu0
    %v3258 = vadd.f32 0.0, %v3257
    %v3259 = vpop.f32.mrf.mxu0
    %v3260 = vpop.f32.mrf.mxu0
    %v3261 = vadd.f32 0.0, %v3260
    %v3262 = vpop.f32.mrf.mxu0
    %3263 = vmatprep.mubr.bf16.mxu0 0
    %3264 = vmatmul.mubr.bf16.gmra.mxu0 %v3150
    %v3265 = vpop.f32.mrf.mxu0
    %v3266 = vadd.f32 0.0, %v3265
    %v3267 = vpop.f32.mrf.mxu0
    %v3268 = vpop.f32.mrf.mxu0
    %v3269 = vpop.f32.mrf.mxu0
    %3270 = vdwg.mxu0
    %v3271 = vadd.f32 %v3117, %v3250
    %v3272 = vadd.f32 %v3120, %v3253
    %v3273 = vadd.f32 %v3125, %v3258
    %v3274 = vadd.f32 %v3128, %v3261
    %v3275 = vadd.f32 %v3133, %v3266
    %s3276 = scalar_lea.vmem [#allocation5], 3
    %v3277 = vld [vmem:[%s3276] ss:$2 sm:$0xff]
    %s3278 = scalar_lea.vmem [#allocation5], 19
    %v3279 = vld [vmem:[%s3278] ss:$2 sm:$0xff]
    %s3280 = scalar_lea.vmem [#allocation5], 35
    %v3281 = vld [vmem:[%s3280] ss:$2 sm:$0xff]
    %s3282 = scalar_lea.vmem [#allocation5], 51
    %v3283 = vld [vmem:[%s3282] ss:$2 sm:$0xff]
    %s3284 = scalar_lea.vmem [#allocation5], 67
    %v3285 = vld [vmem:[%s3284] ss:$2 sm:$0xf]
    %v3286 = vpack.c.bf16 %v3279, %v3277
    %v3287 = vpack.c.bf16 %v3283, %v3281
    %v3288 = vpack.c.bf16 %v3285, %v3285
    %v3289 = vld [vmem:[#allocation14 + $0xc0] sm:$0xf]
    %v3290 = vld [vmem:[#allocation14 + $0xc4] sm:$0xf]
    %v3291 = vld [vmem:[#allocation14 + $0xc8] sm:$0xf]
    %v3292 = vld [vmem:[#allocation14 + $0xcc] sm:$0xf]
    %v3293 = vld [vmem:[#allocation14 + $0xd0] sm:$0xf]
    %v3294 = vld [vmem:[#allocation14 + $0xd4] sm:$0xf]
    %v3295 = vld [vmem:[#allocation14 + $0xd8] sm:$0xf]
    %v3296 = vld [vmem:[#allocation14 + $0xdc] sm:$0xf]
    %v3297 = vld [vmem:[#allocation14 + $0xe0] sm:$0xf]
    %v3298 = vld [vmem:[#allocation14 + $0xe4] sm:$0xf]
    %v3299 = vld [vmem:[#allocation14 + $0xe8] sm:$0xf]
    %v3300 = vld [vmem:[#allocation14 + $0xec] sm:$0xf]
    %v3301 = vld [vmem:[#allocation14 + $0xf0] sm:$0xf]
    %v3302 = vld [vmem:[#allocation14 + $0xf4] sm:$0xf]
    %v3303 = vld [vmem:[#allocation14 + $0xf8] sm:$0xf]
    %v3304 = vld [vmem:[#allocation14 + $0xfc] sm:$0xf]
    %v3321 = vunpack.c.l.b16 %v3289
    %v3322 = vunpack.c.l.b16 %v3290
    %v3323 = vunpack.c.l.b16 %v3291
    %v3324 = vunpack.c.l.b16 %v3292
    %v3325 = vunpack.c.l.b16 %v3293
    %v3326 = vunpack.c.l.b16 %v3294
    %v3327 = vunpack.c.l.b16 %v3295
    %v3328 = vunpack.c.l.b16 %v3296
    %v3329 = vunpack.c.l.b16 %v3297
    %v3330 = vunpack.c.l.b16 %v3298
    %v3331 = vunpack.c.l.b16 %v3299
    %v3332 = vunpack.c.l.b16 %v3300
    %v3333 = vunpack.c.l.b16 %v3301
    %v3334 = vunpack.c.l.b16 %v3302
    %v3335 = vunpack.c.l.b16 %v3303
    %v3336 = vunpack.c.l.b16 %v3304
    %v3337 = vpack.c.b16 %v3322, %v3321
    %v3338 = vpack.c.b16 %v3324, %v3323
    %v3339 = vpack.c.b16 %v3326, %v3325
    %v3340 = vpack.c.b16 %v3328, %v3327
    %v3341 = vpack.c.b16 %v3330, %v3329
    %v3342 = vpack.c.b16 %v3332, %v3331
    %v3343 = vpack.c.b16 %v3334, %v3333
    %v3344 = vpack.c.b16 %v3336, %v3335
    %3353 = vmatprep.subr.bf16.mxu0 0
    %3354 = vmatpush1.bf16.msra.mxu0 %v3344
    %3355 = vmatprep.subr.bf16.mxu0 0
    %3356 = vmatpush1.bf16.msra.mxu0 %v3343
    %3357 = vmatprep.subr.bf16.mxu0 0
    %3358 = vmatpush1.bf16.msra.mxu0 %v3342
    %3359 = vmatprep.subr.bf16.mxu0 0
    %3360 = vmatpush1.bf16.msra.mxu0 %v3341
    %3361 = vmatprep.subr.bf16.mxu0 0
    %3362 = vmatpush1.bf16.msra.mxu0 %v3340
    %3363 = vmatprep.subr.bf16.mxu0 0
    %3364 = vmatpush1.bf16.msra.mxu0 %v3339
    %3365 = vmatprep.subr.bf16.mxu0 0
    %3366 = vmatpush1.bf16.msra.mxu0 %v3338
    %3367 = vmatprep.subr.bf16.mxu0 0
    %3368 = vmatpush1.bf16.msra.mxu0 %v3337
    %3369 = vmatprep.subr.bf16.mxu0 0
    %3370 = vmatpush2.bf16.msra.mxu0 0
    %3371 = vmatprep.subr.bf16.mxu0 0
    %3372 = vmatpush2.bf16.msra.mxu0 0
    %3373 = vmatprep.subr.bf16.mxu0 0
    %3374 = vmatpush2.bf16.msra.mxu0 0
    %3375 = vmatprep.subr.bf16.mxu0 0
    %3376 = vmatpush2.bf16.msra.mxu0 0
    %3377 = vmatprep.subr.bf16.mxu0 0
    %3378 = vmatpush2.bf16.msra.mxu0 0
    %3379 = vmatprep.subr.bf16.mxu0 0
    %3380 = vmatpush2.bf16.msra.mxu0 0
    %3381 = vmatprep.subr.bf16.mxu0 0
    %3382 = vmatpush2.bf16.msra.mxu0 0
    %3383 = vmatprep.subr.bf16.mxu0 0
    %3384 = vmatpush2.bf16.msra.mxu0 0
    %3385 = vmatprep.mubr.bf16.mxu0 0
    %3386 = vmatmul.mubr.bf16.gmra.mxu0 %v3286
    %v3387 = vpop.f32.mrf.mxu0
    %v3388 = vadd.f32 0.0, %v3387
    %v3389 = vpop.f32.mrf.mxu0
    %v3390 = vpop.f32.mrf.mxu0
    %v3391 = vadd.f32 0.0, %v3390
    %v3392 = vpop.f32.mrf.mxu0
    %3393 = vmatprep.mubr.bf16.mxu0 0
    %3394 = vmatmul.mubr.bf16.gmra.mxu0 %v3287
    %v3395 = vpop.f32.mrf.mxu0
    %v3396 = vadd.f32 0.0, %v3395
    %v3397 = vpop.f32.mrf.mxu0
    %v3398 = vpop.f32.mrf.mxu0
    %v3399 = vadd.f32 0.0, %v3398
    %v3400 = vpop.f32.mrf.mxu0
    %3401 = vmatprep.mubr.bf16.mxu0 0
    %3402 = vmatmul.mubr.bf16.gmra.mxu0 %v3288
    %v3403 = vpop.f32.mrf.mxu0
    %v3404 = vadd.f32 0.0, %v3403
    %v3405 = vpop.f32.mrf.mxu0
    %v3406 = vpop.f32.mrf.mxu0
    %v3407 = vpop.f32.mrf.mxu0
    %3408 = vdwg.mxu0
    %v3409 = vadd.f32 %v3271, %v3388
    %v3410 = vadd.f32 %v3272, %v3391
    %v3411 = vadd.f32 %v3273, %v3396
    %v3412 = vadd.f32 %v3274, %v3399
    %v3413 = vadd.f32 %v3275, %v3404
    %s3414 = scalar_lea.vmem [#allocation5], 4
    %v3415 = vld [vmem:[%s3414] ss:$2 sm:$0xff]
    %s3416 = scalar_lea.vmem [#allocation5], 20
    %v3417 = vld [vmem:[%s3416] ss:$2 sm:$0xff]
    %s3418 = scalar_lea.vmem [#allocation5], 36
    %v3419 = vld [vmem:[%s3418] ss:$2 sm:$0xff]
    %s3420 = scalar_lea.vmem [#allocation5], 52
    %v3421 = vld [vmem:[%s3420] ss:$2 sm:$0xff]
    %s3422 = scalar_lea.vmem [#allocation5], 68
    %v3423 = vld [vmem:[%s3422] ss:$2 sm:$0xf]
    %v3424 = vpack.c.bf16 %v3417, %v3415
    %v3425 = vpack.c.bf16 %v3421, %v3419
    %v3426 = vpack.c.bf16 %v3423, %v3423
    %v3427 = vld [vmem:[#allocation14 + $0x100] sm:$0xf]
    %v3428 = vld [vmem:[#allocation14 + $0x104] sm:$0xf]
    %v3429 = vld [vmem:[#allocation14 + $0x108] sm:$0xf]
    %v3430 = vld [vmem:[#allocation14 + $0x10c] sm:$0xf]
    %v3431 = vld [vmem:[#allocation14 + $0x110] sm:$0xf]
    %v3432 = vld [vmem:[#allocation14 + $0x114] sm:$0xf]
    %v3433 = vld [vmem:[#allocation14 + $0x118] sm:$0xf]
    %v3434 = vld [vmem:[#allocation14 + $0x11c] sm:$0xf]
    %v3435 = vld [vmem:[#allocation14 + $0x120] sm:$0xf]
    %v3436 = vld [vmem:[#allocation14 + $0x124] sm:$0xf]
    %v3437 = vld [vmem:[#allocation14 + $0x128] sm:$0xf]
    %v3438 = vld [vmem:[#allocation14 + $0x12c] sm:$0xf]
    %v3439 = vld [vmem:[#allocation14 + $0x130] sm:$0xf]
    %v3440 = vld [vmem:[#allocation14 + $0x134] sm:$0xf]
    %v3441 = vld [vmem:[#allocation14 + $0x138] sm:$0xf]
    %v3442 = vld [vmem:[#allocation14 + $0x13c] sm:$0xf]
    %v3459 = vunpack.c.l.b16 %v3427
    %v3460 = vunpack.c.l.b16 %v3428
    %v3461 = vunpack.c.l.b16 %v3429
    %v3462 = vunpack.c.l.b16 %v3430
    %v3463 = vunpack.c.l.b16 %v3431
    %v3464 = vunpack.c.l.b16 %v3432
    %v3465 = vunpack.c.l.b16 %v3433
    %v3466 = vunpack.c.l.b16 %v3434
    %v3467 = vunpack.c.l.b16 %v3435
    %v3468 = vunpack.c.l.b16 %v3436
    %v3469 = vunpack.c.l.b16 %v3437
    %v3470 = vunpack.c.l.b16 %v3438
    %v3471 = vunpack.c.l.b16 %v3439
    %v3472 = vunpack.c.l.b16 %v3440
    %v3473 = vunpack.c.l.b16 %v3441
    %v3474 = vunpack.c.l.b16 %v3442
    %v3475 = vpack.c.b16 %v3460, %v3459
    %v3476 = vpack.c.b16 %v3462, %v3461
    %v3477 = vpack.c.b16 %v3464, %v3463
    %v3478 = vpack.c.b16 %v3466, %v3465
    %v3479 = vpack.c.b16 %v3468, %v3467
    %v3480 = vpack.c.b16 %v3470, %v3469
    %v3481 = vpack.c.b16 %v3472, %v3471
    %v3482 = vpack.c.b16 %v3474, %v3473
    %3491 = vmatprep.subr.bf16.mxu0 0
    %3492 = vmatpush1.bf16.msra.mxu0 %v3482
    %3493 = vmatprep.subr.bf16.mxu0 0
    %3494 = vmatpush1.bf16.msra.mxu0 %v3481
    %3495 = vmatprep.subr.bf16.mxu0 0
    %3496 = vmatpush1.bf16.msra.mxu0 %v3480
    %3497 = vmatprep.subr.bf16.mxu0 0
    %3498 = vmatpush1.bf16.msra.mxu0 %v3479
    %3499 = vmatprep.subr.bf16.mxu0 0
    %3500 = vmatpush1.bf16.msra.mxu0 %v3478
    %3501 = vmatprep.subr.bf16.mxu0 0
    %3502 = vmatpush1.bf16.msra.mxu0 %v3477
    %3503 = vmatprep.subr.bf16.mxu0 0
    %3504 = vmatpush1.bf16.msra.mxu0 %v3476
    %3505 = vmatprep.subr.bf16.mxu0 0
    %3506 = vmatpush1.bf16.msra.mxu0 %v3475
    %3507 = vmatprep.subr.bf16.mxu0 0
    %3508 = vmatpush2.bf16.msra.mxu0 0
    %3509 = vmatprep.subr.bf16.mxu0 0
    %3510 = vmatpush2.bf16.msra.mxu0 0
    %3511 = vmatprep.subr.bf16.mxu0 0
    %3512 = vmatpush2.bf16.msra.mxu0 0
    %3513 = vmatprep.subr.bf16.mxu0 0
    %3514 = vmatpush2.bf16.msra.mxu0 0
    %3515 = vmatprep.subr.bf16.mxu0 0
    %3516 = vmatpush2.bf16.msra.mxu0 0
    %3517 = vmatprep.subr.bf16.mxu0 0
    %3518 = vmatpush2.bf16.msra.mxu0 0
    %3519 = vmatprep.subr.bf16.mxu0 0
    %3520 = vmatpush2.bf16.msra.mxu0 0
    %3521 = vmatprep.subr.bf16.mxu0 0
    %3522 = vmatpush2.bf16.msra.mxu0 0
    %3523 = vmatprep.mubr.bf16.mxu0 0
    %3524 = vmatmul.mubr.bf16.gmra.mxu0 %v3424
    %v3525 = vpop.f32.mrf.mxu0
    %v3526 = vadd.f32 0.0, %v3525
    %v3527 = vpop.f32.mrf.mxu0
    %v3528 = vpop.f32.mrf.mxu0
    %v3529 = vadd.f32 0.0, %v3528
    %v3530 = vpop.f32.mrf.mxu0
    %3531 = vmatprep.mubr.bf16.mxu0 0
    %3532 = vmatmul.mubr.bf16.gmra.mxu0 %v3425
    %v3533 = vpop.f32.mrf.mxu0
    %v3534 = vadd.f32 0.0, %v3533
    %v3535 = vpop.f32.mrf.mxu0
    %v3536 = vpop.f32.mrf.mxu0
    %v3537 = vadd.f32 0.0, %v3536
    %v3538 = vpop.f32.mrf.mxu0
    %3539 = vmatprep.mubr.bf16.mxu0 0
    %3540 = vmatmul.mubr.bf16.gmra.mxu0 %v3426
    %v3541 = vpop.f32.mrf.mxu0
    %v3542 = vadd.f32 0.0, %v3541
    %v3543 = vpop.f32.mrf.mxu0
    %v3544 = vpop.f32.mrf.mxu0
    %v3545 = vpop.f32.mrf.mxu0
    %3546 = vdwg.mxu0
    %v3547 = vadd.f32 %v3409, %v3526
    %v3548 = vadd.f32 %v3410, %v3529
    %v3549 = vadd.f32 %v3411, %v3534
    %v3550 = vadd.f32 %v3412, %v3537
    %v3551 = vadd.f32 %v3413, %v3542
    %s3552 = scalar_lea.vmem [#allocation5], 5
    %v3553 = vld [vmem:[%s3552] ss:$2 sm:$0xff]
    %s3554 = scalar_lea.vmem [#allocation5], 21
    %v3555 = vld [vmem:[%s3554] ss:$2 sm:$0xff]
    %s3556 = scalar_lea.vmem [#allocation5], 37
    %v3557 = vld [vmem:[%s3556] ss:$2 sm:$0xff]
    %s3558 = scalar_lea.vmem [#allocation5], 53
    %v3559 = vld [vmem:[%s3558] ss:$2 sm:$0xff]
    %s3560 = scalar_lea.vmem [#allocation5], 69
    %v3561 = vld [vmem:[%s3560] ss:$2 sm:$0xf]
    %v3562 = vpack.c.bf16 %v3555, %v3553
    %v3563 = vpack.c.bf16 %v3559, %v3557
    %v3564 = vpack.c.bf16 %v3561, %v3561
    %v3565 = vld [vmem:[#allocation14 + $0x140] sm:$0xf]
    %v3566 = vld [vmem:[#allocation14 + $0x144] sm:$0xf]
    %v3567 = vld [vmem:[#allocation14 + $0x148] sm:$0xf]
    %v3568 = vld [vmem:[#allocation14 + $0x14c] sm:$0xf]
    %v3569 = vld [vmem:[#allocation14 + $0x150] sm:$0xf]
    %v3570 = vld [vmem:[#allocation14 + $0x154] sm:$0xf]
    %v3571 = vld [vmem:[#allocation14 + $0x158] sm:$0xf]
    %v3572 = vld [vmem:[#allocation14 + $0x15c] sm:$0xf]
    %v3573 = vld [vmem:[#allocation14 + $0x160] sm:$0xf]
    %v3574 = vld [vmem:[#allocation14 + $0x164] sm:$0xf]
    %v3575 = vld [vmem:[#allocation14 + $0x168] sm:$0xf]
    %v3576 = vld [vmem:[#allocation14 + $0x16c] sm:$0xf]
    %v3577 = vld [vmem:[#allocation14 + $0x170] sm:$0xf]
    %v3578 = vld [vmem:[#allocation14 + $0x174] sm:$0xf]
    %v3579 = vld [vmem:[#allocation14 + $0x178] sm:$0xf]
    %v3580 = vld [vmem:[#allocation14 + $0x17c] sm:$0xf]
    %v3597 = vunpack.c.l.b16 %v3565
    %v3598 = vunpack.c.l.b16 %v3566
    %v3599 = vunpack.c.l.b16 %v3567
    %v3600 = vunpack.c.l.b16 %v3568
    %v3601 = vunpack.c.l.b16 %v3569
    %v3602 = vunpack.c.l.b16 %v3570
    %v3603 = vunpack.c.l.b16 %v3571
    %v3604 = vunpack.c.l.b16 %v3572
    %v3605 = vunpack.c.l.b16 %v3573
    %v3606 = vunpack.c.l.b16 %v3574
    %v3607 = vunpack.c.l.b16 %v3575
    %v3608 = vunpack.c.l.b16 %v3576
    %v3609 = vunpack.c.l.b16 %v3577
    %v3610 = vunpack.c.l.b16 %v3578
    %v3611 = vunpack.c.l.b16 %v3579
    %v3612 = vunpack.c.l.b16 %v3580
    %v3613 = vpack.c.b16 %v3598, %v3597
    %v3614 = vpack.c.b16 %v3600, %v3599
    %v3615 = vpack.c.b16 %v3602, %v3601
    %v3616 = vpack.c.b16 %v3604, %v3603
    %v3617 = vpack.c.b16 %v3606, %v3605
    %v3618 = vpack.c.b16 %v3608, %v3607
    %v3619 = vpack.c.b16 %v3610, %v3609
    %v3620 = vpack.c.b16 %v3612, %v3611
    %3629 = vmatprep.subr.bf16.mxu0 0
    %3630 = vmatpush1.bf16.msra.mxu0 %v3620
    %3631 = vmatprep.subr.bf16.mxu0 0
    %3632 = vmatpush1.bf16.msra.mxu0 %v3619
    %3633 = vmatprep.subr.bf16.mxu0 0
    %3634 = vmatpush1.bf16.msra.mxu0 %v3618
    %3635 = vmatprep.subr.bf16.mxu0 0
    %3636 = vmatpush1.bf16.msra.mxu0 %v3617
    %3637 = vmatprep.subr.bf16.mxu0 0
    %3638 = vmatpush1.bf16.msra.mxu0 %v3616
    %3639 = vmatprep.subr.bf16.mxu0 0
    %3640 = vmatpush1.bf16.msra.mxu0 %v3615
    %3641 = vmatprep.subr.bf16.mxu0 0
    %3642 = vmatpush1.bf16.msra.mxu0 %v3614
    %3643 = vmatprep.subr.bf16.mxu0 0
    %3644 = vmatpush1.bf16.msra.mxu0 %v3613
    %3645 = vmatprep.subr.bf16.mxu0 0
    %3646 = vmatpush2.bf16.msra.mxu0 0
    %3647 = vmatprep.subr.bf16.mxu0 0
    %3648 = vmatpush2.bf16.msra.mxu0 0
    %3649 = vmatprep.subr.bf16.mxu0 0
    %3650 = vmatpush2.bf16.msra.mxu0 0
    %3651 = vmatprep.subr.bf16.mxu0 0
    %3652 = vmatpush2.bf16.msra.mxu0 0
    %3653 = vmatprep.subr.bf16.mxu0 0
    %3654 = vmatpush2.bf16.msra.mxu0 0
    %3655 = vmatprep.subr.bf16.mxu0 0
    %3656 = vmatpush2.bf16.msra.mxu0 0
    %3657 = vmatprep.subr.bf16.mxu0 0
    %3658 = vmatpush2.bf16.msra.mxu0 0
    %3659 = vmatprep.subr.bf16.mxu0 0
    %3660 = vmatpush2.bf16.msra.mxu0 0
    %3661 = vmatprep.mubr.bf16.mxu0 0
    %3662 = vmatmul.mubr.bf16.gmra.mxu0 %v3562
    %v3663 = vpop.f32.mrf.mxu0
    %v3664 = vadd.f32 0.0, %v3663
    %v3665 = vpop.f32.mrf.mxu0
    %v3666 = vpop.f32.mrf.mxu0
    %v3667 = vadd.f32 0.0, %v3666
    %v3668 = vpop.f32.mrf.mxu0
    %3669 = vmatprep.mubr.bf16.mxu0 0
    %3670 = vmatmul.mubr.bf16.gmra.mxu0 %v3563
    %v3671 = vpop.f32.mrf.mxu0
    %v3672 = vadd.f32 0.0, %v3671
    %v3673 = vpop.f32.mrf.mxu0
    %v3674 = vpop.f32.mrf.mxu0
    %v3675 = vadd.f32 0.0, %v3674
    %v3676 = vpop.f32.mrf.mxu0
    %3677 = vmatprep.mubr.bf16.mxu0 0
    %3678 = vmatmul.mubr.bf16.gmra.mxu0 %v3564
    %v3679 = vpop.f32.mrf.mxu0
    %v3680 = vadd.f32 0.0, %v3679
    %v3681 = vpop.f32.mrf.mxu0
    %v3682 = vpop.f32.mrf.mxu0
    %v3683 = vpop.f32.mrf.mxu0
    %3684 = vdwg.mxu0
    %v3685 = vadd.f32 %v3547, %v3664
    %v3686 = vadd.f32 %v3548, %v3667
    %v3687 = vadd.f32 %v3549, %v3672
    %v3688 = vadd.f32 %v3550, %v3675
    %v3689 = vadd.f32 %v3551, %v3680
    %s3690 = scalar_lea.vmem [#allocation5], 6
    %v3691 = vld [vmem:[%s3690] ss:$2 sm:$0xff]
    %s3692 = scalar_lea.vmem [#allocation5], 22
    %v3693 = vld [vmem:[%s3692] ss:$2 sm:$0xff]
    %s3694 = scalar_lea.vmem [#allocation5], 38
    %v3695 = vld [vmem:[%s3694] ss:$2 sm:$0xff]
    %s3696 = scalar_lea.vmem [#allocation5], 54
    %v3697 = vld [vmem:[%s3696] ss:$2 sm:$0xff]
    %s3698 = scalar_lea.vmem [#allocation5], 70
    %v3699 = vld [vmem:[%s3698] ss:$2 sm:$0xf]
    %v3700 = vpack.c.bf16 %v3693, %v3691
    %v3701 = vpack.c.bf16 %v3697, %v3695
    %v3702 = vpack.c.bf16 %v3699, %v3699
    %v3703 = vld [vmem:[#allocation14 + $0x180] sm:$0xf]
    %v3704 = vld [vmem:[#allocation14 + $0x184] sm:$0xf]
    %v3705 = vld [vmem:[#allocation14 + $0x188] sm:$0xf]
    %v3706 = vld [vmem:[#allocation14 + $0x18c] sm:$0xf]
    %v3707 = vld [vmem:[#allocation14 + $0x190] sm:$0xf]
    %v3708 = vld [vmem:[#allocation14 + $0x194] sm:$0xf]
    %v3709 = vld [vmem:[#allocation14 + $0x198] sm:$0xf]
    %v3710 = vld [vmem:[#allocation14 + $0x19c] sm:$0xf]
    %v3711 = vld [vmem:[#allocation14 + $0x1a0] sm:$0xf]
    %v3712 = vld [vmem:[#allocation14 + $0x1a4] sm:$0xf]
    %v3713 = vld [vmem:[#allocation14 + $0x1a8] sm:$0xf]
    %v3714 = vld [vmem:[#allocation14 + $0x1ac] sm:$0xf]
    %v3715 = vld [vmem:[#allocation14 + $0x1b0] sm:$0xf]
    %v3716 = vld [vmem:[#allocation14 + $0x1b4] sm:$0xf]
    %v3717 = vld [vmem:[#allocation14 + $0x1b8] sm:$0xf]
    %v3718 = vld [vmem:[#allocation14 + $0x1bc] sm:$0xf]
    %v3735 = vunpack.c.l.b16 %v3703
    %v3736 = vunpack.c.l.b16 %v3704
    %v3737 = vunpack.c.l.b16 %v3705
    %v3738 = vunpack.c.l.b16 %v3706
    %v3739 = vunpack.c.l.b16 %v3707
    %v3740 = vunpack.c.l.b16 %v3708
    %v3741 = vunpack.c.l.b16 %v3709
    %v3742 = vunpack.c.l.b16 %v3710
    %v3743 = vunpack.c.l.b16 %v3711
    %v3744 = vunpack.c.l.b16 %v3712
    %v3745 = vunpack.c.l.b16 %v3713
    %v3746 = vunpack.c.l.b16 %v3714
    %v3747 = vunpack.c.l.b16 %v3715
    %v3748 = vunpack.c.l.b16 %v3716
    %v3749 = vunpack.c.l.b16 %v3717
    %v3750 = vunpack.c.l.b16 %v3718
    %v3751 = vpack.c.b16 %v3736, %v3735
    %v3752 = vpack.c.b16 %v3738, %v3737
    %v3753 = vpack.c.b16 %v3740, %v3739
    %v3754 = vpack.c.b16 %v3742, %v3741
    %v3755 = vpack.c.b16 %v3744, %v3743
    %v3756 = vpack.c.b16 %v3746, %v3745
    %v3757 = vpack.c.b16 %v3748, %v3747
    %v3758 = vpack.c.b16 %v3750, %v3749
    %3767 = vmatprep.subr.bf16.mxu0 0
    %3768 = vmatpush1.bf16.msra.mxu0 %v3758
    %3769 = vmatprep.subr.bf16.mxu0 0
    %3770 = vmatpush1.bf16.msra.mxu0 %v3757
    %3771 = vmatprep.subr.bf16.mxu0 0
    %3772 = vmatpush1.bf16.msra.mxu0 %v3756
    %3773 = vmatprep.subr.bf16.mxu0 0
    %3774 = vmatpush1.bf16.msra.mxu0 %v3755
    %3775 = vmatprep.subr.bf16.mxu0 0
    %3776 = vmatpush1.bf16.msra.mxu0 %v3754
    %3777 = vmatprep.subr.bf16.mxu0 0
    %3778 = vmatpush1.bf16.msra.mxu0 %v3753
    %3779 = vmatprep.subr.bf16.mxu0 0
    %3780 = vmatpush1.bf16.msra.mxu0 %v3752
    %3781 = vmatprep.subr.bf16.mxu0 0
    %3782 = vmatpush1.bf16.msra.mxu0 %v3751
    %3783 = vmatprep.subr.bf16.mxu0 0
    %3784 = vmatpush2.bf16.msra.mxu0 0
    %3785 = vmatprep.subr.bf16.mxu0 0
    %3786 = vmatpush2.bf16.msra.mxu0 0
    %3787 = vmatprep.subr.bf16.mxu0 0
    %3788 = vmatpush2.bf16.msra.mxu0 0
    %3789 = vmatprep.subr.bf16.mxu0 0
    %3790 = vmatpush2.bf16.msra.mxu0 0
    %3791 = vmatprep.subr.bf16.mxu0 0
    %3792 = vmatpush2.bf16.msra.mxu0 0
    %3793 = vmatprep.subr.bf16.mxu0 0
    %3794 = vmatpush2.bf16.msra.mxu0 0
    %3795 = vmatprep.subr.bf16.mxu0 0
    %3796 = vmatpush2.bf16.msra.mxu0 0
    %3797 = vmatprep.subr.bf16.mxu0 0
    %3798 = vmatpush2.bf16.msra.mxu0 0
    %3799 = vmatprep.mubr.bf16.mxu0 0
    %3800 = vmatmul.mubr.bf16.gmra.mxu0 %v3700
    %v3801 = vpop.f32.mrf.mxu0
    %v3802 = vadd.f32 0.0, %v3801
    %v3803 = vpop.f32.mrf.mxu0
    %v3804 = vpop.f32.mrf.mxu0
    %v3805 = vadd.f32 0.0, %v3804
    %v3806 = vpop.f32.mrf.mxu0
    %3807 = vmatprep.mubr.bf16.mxu0 0
    %3808 = vmatmul.mubr.bf16.gmra.mxu0 %v3701
    %v3809 = vpop.f32.mrf.mxu0
    %v3810 = vadd.f32 0.0, %v3809
    %v3811 = vpop.f32.mrf.mxu0
    %v3812 = vpop.f32.mrf.mxu0
    %v3813 = vadd.f32 0.0, %v3812
    %v3814 = vpop.f32.mrf.mxu0
    %3815 = vmatprep.mubr.bf16.mxu0 0
    %3816 = vmatmul.mubr.bf16.gmra.mxu0 %v3702
    %v3817 = vpop.f32.mrf.mxu0
    %v3818 = vadd.f32 0.0, %v3817
    %v3819 = vpop.f32.mrf.mxu0
    %v3820 = vpop.f32.mrf.mxu0
    %v3821 = vpop.f32.mrf.mxu0
    %3822 = vdwg.mxu0
    %v3823 = vadd.f32 %v3685, %v3802
    %v3824 = vadd.f32 %v3686, %v3805
    %v3825 = vadd.f32 %v3687, %v3810
    %v3826 = vadd.f32 %v3688, %v3813
    %v3827 = vadd.f32 %v3689, %v3818
    %s3828 = scalar_lea.vmem [#allocation5], 7
    %v3829 = vld [vmem:[%s3828] ss:$2 sm:$0xff]
    %s3830 = scalar_lea.vmem [#allocation5], 23
    %v3831 = vld [vmem:[%s3830] ss:$2 sm:$0xff]
    %s3832 = scalar_lea.vmem [#allocation5], 39
    %v3833 = vld [vmem:[%s3832] ss:$2 sm:$0xff]
    %s3834 = scalar_lea.vmem [#allocation5], 55
    %v3835 = vld [vmem:[%s3834] ss:$2 sm:$0xff]
    %s3836 = scalar_lea.vmem [#allocation5], 71
    %v3837 = vld [vmem:[%s3836] ss:$2 sm:$0xf]
    %v3838 = vpack.c.bf16 %v3831, %v3829
    %v3839 = vpack.c.bf16 %v3835, %v3833
    %v3840 = vpack.c.bf16 %v3837, %v3837
    %v3841 = vld [vmem:[#allocation14 + $0x1c0] sm:$0xf]
    %v3842 = vld [vmem:[#allocation14 + $0x1c4] sm:$0xf]
    %v3843 = vld [vmem:[#allocation14 + $0x1c8] sm:$0xf]
    %v3844 = vld [vmem:[#allocation14 + $0x1cc] sm:$0xf]
    %v3845 = vld [vmem:[#allocation14 + $0x1d0] sm:$0xf]
    %v3846 = vld [vmem:[#allocation14 + $0x1d4] sm:$0xf]
    %v3847 = vld [vmem:[#allocation14 + $0x1d8] sm:$0xf]
    %v3848 = vld [vmem:[#allocation14 + $0x1dc] sm:$0xf]
    %v3849 = vld [vmem:[#allocation14 + $0x1e0] sm:$0xf]
    %v3850 = vld [vmem:[#allocation14 + $0x1e4] sm:$0xf]
    %v3851 = vld [vmem:[#allocation14 + $0x1e8] sm:$0xf]
    %v3852 = vld [vmem:[#allocation14 + $0x1ec] sm:$0xf]
    %v3853 = vld [vmem:[#allocation14 + $0x1f0] sm:$0xf]
    %v3854 = vld [vmem:[#allocation14 + $0x1f4] sm:$0xf]
    %v3855 = vld [vmem:[#allocation14 + $0x1f8] sm:$0xf]
    %v3856 = vld [vmem:[#allocation14 + $0x1fc] sm:$0xf]
    %v3873 = vunpack.c.l.b16 %v3841
    %v3874 = vunpack.c.l.b16 %v3842
    %v3875 = vunpack.c.l.b16 %v3843
    %v3876 = vunpack.c.l.b16 %v3844
    %v3877 = vunpack.c.l.b16 %v3845
    %v3878 = vunpack.c.l.b16 %v3846
    %v3879 = vunpack.c.l.b16 %v3847
    %v3880 = vunpack.c.l.b16 %v3848
    %v3881 = vunpack.c.l.b16 %v3849
    %v3882 = vunpack.c.l.b16 %v3850
    %v3883 = vunpack.c.l.b16 %v3851
    %v3884 = vunpack.c.l.b16 %v3852
    %v3885 = vunpack.c.l.b16 %v3853
    %v3886 = vunpack.c.l.b16 %v3854
    %v3887 = vunpack.c.l.b16 %v3855
    %v3888 = vunpack.c.l.b16 %v3856
    %v3889 = vpack.c.b16 %v3874, %v3873
    %v3890 = vpack.c.b16 %v3876, %v3875
    %v3891 = vpack.c.b16 %v3878, %v3877
    %v3892 = vpack.c.b16 %v3880, %v3879
    %v3893 = vpack.c.b16 %v3882, %v3881
    %v3894 = vpack.c.b16 %v3884, %v3883
    %v3895 = vpack.c.b16 %v3886, %v3885
    %v3896 = vpack.c.b16 %v3888, %v3887
    %3905 = vmatprep.subr.bf16.mxu0 0
    %3906 = vmatpush1.bf16.msra.mxu0 %v3896
    %3907 = vmatprep.subr.bf16.mxu0 0
    %3908 = vmatpush1.bf16.msra.mxu0 %v3895
    %3909 = vmatprep.subr.bf16.mxu0 0
    %3910 = vmatpush1.bf16.msra.mxu0 %v3894
    %3911 = vmatprep.subr.bf16.mxu0 0
    %3912 = vmatpush1.bf16.msra.mxu0 %v3893
    %3913 = vmatprep.subr.bf16.mxu0 0
    %3914 = vmatpush1.bf16.msra.mxu0 %v3892
    %3915 = vmatprep.subr.bf16.mxu0 0
    %3916 = vmatpush1.bf16.msra.mxu0 %v3891
    %3917 = vmatprep.subr.bf16.mxu0 0
    %3918 = vmatpush1.bf16.msra.mxu0 %v3890
    %3919 = vmatprep.subr.bf16.mxu0 0
    %3920 = vmatpush1.bf16.msra.mxu0 %v3889
    %3921 = vmatprep.subr.bf16.mxu0 0
    %3922 = vmatpush2.bf16.msra.mxu0 0
    %3923 = vmatprep.subr.bf16.mxu0 0
    %3924 = vmatpush2.bf16.msra.mxu0 0
    %3925 = vmatprep.subr.bf16.mxu0 0
    %3926 = vmatpush2.bf16.msra.mxu0 0
    %3927 = vmatprep.subr.bf16.mxu0 0
    %3928 = vmatpush2.bf16.msra.mxu0 0
    %3929 = vmatprep.subr.bf16.mxu0 0
    %3930 = vmatpush2.bf16.msra.mxu0 0
    %3931 = vmatprep.subr.bf16.mxu0 0
    %3932 = vmatpush2.bf16.msra.mxu0 0
    %3933 = vmatprep.subr.bf16.mxu0 0
    %3934 = vmatpush2.bf16.msra.mxu0 0
    %3935 = vmatprep.subr.bf16.mxu0 0
    %3936 = vmatpush2.bf16.msra.mxu0 0
    %3937 = vmatprep.mubr.bf16.mxu0 0
    %3938 = vmatmul.mubr.bf16.gmra.mxu0 %v3838
    %v3939 = vpop.f32.mrf.mxu0
    %v3940 = vadd.f32 0.0, %v3939
    %v3941 = vpop.f32.mrf.mxu0
    %v3942 = vpop.f32.mrf.mxu0
    %v3943 = vadd.f32 0.0, %v3942
    %v3944 = vpop.f32.mrf.mxu0
    %3945 = vmatprep.mubr.bf16.mxu0 0
    %3946 = vmatmul.mubr.bf16.gmra.mxu0 %v3839
    %v3947 = vpop.f32.mrf.mxu0
    %v3948 = vadd.f32 0.0, %v3947
    %v3949 = vpop.f32.mrf.mxu0
    %v3950 = vpop.f32.mrf.mxu0
    %v3951 = vadd.f32 0.0, %v3950
    %v3952 = vpop.f32.mrf.mxu0
    %3953 = vmatprep.mubr.bf16.mxu0 0
    %3954 = vmatmul.mubr.bf16.gmra.mxu0 %v3840
    %v3955 = vpop.f32.mrf.mxu0
    %v3956 = vadd.f32 0.0, %v3955
    %v3957 = vpop.f32.mrf.mxu0
    %v3958 = vpop.f32.mrf.mxu0
    %v3959 = vpop.f32.mrf.mxu0
    %3960 = vdwg.mxu0
    %v3961 = vadd.f32 %v3823, %v3940
    %v3962 = vadd.f32 %v3824, %v3943
    %v3963 = vadd.f32 %v3825, %v3948
    %v3964 = vadd.f32 %v3826, %v3951
    %v3965 = vadd.f32 %v3827, %v3956
    %s3966 = scalar_lea.vmem [#allocation5], 8
    %v3967 = vld [vmem:[%s3966] ss:$2 sm:$0xff]
    %s3968 = scalar_lea.vmem [#allocation5], 24
    %v3969 = vld [vmem:[%s3968] ss:$2 sm:$0xff]
    %s3970 = scalar_lea.vmem [#allocation5], 40
    %v3971 = vld [vmem:[%s3970] ss:$2 sm:$0xff]
    %s3972 = scalar_lea.vmem [#allocation5], 56
    %v3973 = vld [vmem:[%s3972] ss:$2 sm:$0xff]
    %s3974 = scalar_lea.vmem [#allocation5], 72
    %v3975 = vld [vmem:[%s3974] ss:$2 sm:$0xf]
    %v3976 = vpack.c.bf16 %v3969, %v3967
    %v3977 = vpack.c.bf16 %v3973, %v3971
    %v3978 = vpack.c.bf16 %v3975, %v3975
    %v3979 = vld [vmem:[#allocation14 + $0x200] sm:$0xf]
    %v3980 = vld [vmem:[#allocation14 + $0x204] sm:$0xf]
    %v3981 = vld [vmem:[#allocation14 + $0x208] sm:$0xf]
    %v3982 = vld [vmem:[#allocation14 + $0x20c] sm:$0xf]
    %v3983 = vld [vmem:[#allocation14 + $0x210] sm:$0xf]
    %v3984 = vld [vmem:[#allocation14 + $0x214] sm:$0xf]
    %v3985 = vld [vmem:[#allocation14 + $0x218] sm:$0xf]
    %v3986 = vld [vmem:[#allocation14 + $0x21c] sm:$0xf]
    %v3987 = vld [vmem:[#allocation14 + $0x220] sm:$0xf]
    %v3988 = vld [vmem:[#allocation14 + $0x224] sm:$0xf]
    %v3989 = vld [vmem:[#allocation14 + $0x228] sm:$0xf]
    %v3990 = vld [vmem:[#allocation14 + $0x22c] sm:$0xf]
    %v3991 = vld [vmem:[#allocation14 + $0x230] sm:$0xf]
    %v3992 = vld [vmem:[#allocation14 + $0x234] sm:$0xf]
    %v3993 = vld [vmem:[#allocation14 + $0x238] sm:$0xf]
    %v3994 = vld [vmem:[#allocation14 + $0x23c] sm:$0xf]
    %v4011 = vunpack.c.l.b16 %v3979
    %v4012 = vunpack.c.l.b16 %v3980
    %v4013 = vunpack.c.l.b16 %v3981
    %v4014 = vunpack.c.l.b16 %v3982
    %v4015 = vunpack.c.l.b16 %v3983
    %v4016 = vunpack.c.l.b16 %v3984
    %v4017 = vunpack.c.l.b16 %v3985
    %v4018 = vunpack.c.l.b16 %v3986
    %v4019 = vunpack.c.l.b16 %v3987
    %v4020 = vunpack.c.l.b16 %v3988
    %v4021 = vunpack.c.l.b16 %v3989
    %v4022 = vunpack.c.l.b16 %v3990
    %v4023 = vunpack.c.l.b16 %v3991
    %v4024 = vunpack.c.l.b16 %v3992
    %v4025 = vunpack.c.l.b16 %v3993
    %v4026 = vunpack.c.l.b16 %v3994
    %v4027 = vpack.c.b16 %v4012, %v4011
    %v4028 = vpack.c.b16 %v4014, %v4013
    %v4029 = vpack.c.b16 %v4016, %v4015
    %v4030 = vpack.c.b16 %v4018, %v4017
    %v4031 = vpack.c.b16 %v4020, %v4019
    %v4032 = vpack.c.b16 %v4022, %v4021
    %v4033 = vpack.c.b16 %v4024, %v4023
    %v4034 = vpack.c.b16 %v4026, %v4025
    %4043 = vmatprep.subr.bf16.mxu0 0
    %4044 = vmatpush1.bf16.msra.mxu0 %v4034
    %4045 = vmatprep.subr.bf16.mxu0 0
    %4046 = vmatpush1.bf16.msra.mxu0 %v4033
    %4047 = vmatprep.subr.bf16.mxu0 0
    %4048 = vmatpush1.bf16.msra.mxu0 %v4032
    %4049 = vmatprep.subr.bf16.mxu0 0
    %4050 = vmatpush1.bf16.msra.mxu0 %v4031
    %4051 = vmatprep.subr.bf16.mxu0 0
    %4052 = vmatpush1.bf16.msra.mxu0 %v4030
    %4053 = vmatprep.subr.bf16.mxu0 0
    %4054 = vmatpush1.bf16.msra.mxu0 %v4029
    %4055 = vmatprep.subr.bf16.mxu0 0
    %4056 = vmatpush1.bf16.msra.mxu0 %v4028
    %4057 = vmatprep.subr.bf16.mxu0 0
    %4058 = vmatpush1.bf16.msra.mxu0 %v4027
    %4059 = vmatprep.subr.bf16.mxu0 0
    %4060 = vmatpush2.bf16.msra.mxu0 0
    %4061 = vmatprep.subr.bf16.mxu0 0
    %4062 = vmatpush2.bf16.msra.mxu0 0
    %4063 = vmatprep.subr.bf16.mxu0 0
    %4064 = vmatpush2.bf16.msra.mxu0 0
    %4065 = vmatprep.subr.bf16.mxu0 0
    %4066 = vmatpush2.bf16.msra.mxu0 0
    %4067 = vmatprep.subr.bf16.mxu0 0
    %4068 = vmatpush2.bf16.msra.mxu0 0
    %4069 = vmatprep.subr.bf16.mxu0 0
    %4070 = vmatpush2.bf16.msra.mxu0 0
    %4071 = vmatprep.subr.bf16.mxu0 0
    %4072 = vmatpush2.bf16.msra.mxu0 0
    %4073 = vmatprep.subr.bf16.mxu0 0
    %4074 = vmatpush2.bf16.msra.mxu0 0
    %4075 = vmatprep.mubr.bf16.mxu0 0
    %4076 = vmatmul.mubr.bf16.gmra.mxu0 %v3976
    %v4077 = vpop.f32.mrf.mxu0
    %v4078 = vadd.f32 0.0, %v4077
    %v4079 = vpop.f32.mrf.mxu0
    %v4080 = vpop.f32.mrf.mxu0
    %v4081 = vadd.f32 0.0, %v4080
    %v4082 = vpop.f32.mrf.mxu0
    %4083 = vmatprep.mubr.bf16.mxu0 0
    %4084 = vmatmul.mubr.bf16.gmra.mxu0 %v3977
    %v4085 = vpop.f32.mrf.mxu0
    %v4086 = vadd.f32 0.0, %v4085
    %v4087 = vpop.f32.mrf.mxu0
    %v4088 = vpop.f32.mrf.mxu0
    %v4089 = vadd.f32 0.0, %v4088
    %v4090 = vpop.f32.mrf.mxu0
    %4091 = vmatprep.mubr.bf16.mxu0 0
    %4092 = vmatmul.mubr.bf16.gmra.mxu0 %v3978
    %v4093 = vpop.f32.mrf.mxu0
    %v4094 = vadd.f32 0.0, %v4093
    %v4095 = vpop.f32.mrf.mxu0
    %v4096 = vpop.f32.mrf.mxu0
    %v4097 = vpop.f32.mrf.mxu0
    %4098 = vdwg.mxu0
    %v4099 = vadd.f32 %v3961, %v4078
    %v4100 = vadd.f32 %v3962, %v4081
    %v4101 = vadd.f32 %v3963, %v4086
    %v4102 = vadd.f32 %v3964, %v4089
    %v4103 = vadd.f32 %v3965, %v4094
    %v4104 = vld [vmem:[%s6] sm:$0x1]
    %v4106 = vlaneseq
    %v4107 = vshrl.u32 %v4106, 7
    %v4108 = vsub.s32 0, %v4107
    %v4109 = vrot.slane %v4104, %v4108
    %v4111 = vadd.f32 %v4099, %v4109
    %v4112 = vadd.f32 %v4100, %v4109
    %v4113 = vadd.f32 %v4101, %v4109
    %v4114 = vadd.f32 %v4102, %v4109
    %v4115 = vadd.f32 %v4103, %v4109
    %v4116 = vmax.f32 %v4111, 0.0
    %v4117 = vmax.f32 %v4112, 0.0
    %v4118 = vmax.f32 %v4113, 0.0
    %v4119 = vmax.f32 %v4114, 0.0
    %v4120 = vmax.f32 %v4115, 0.0
    %v4121 = vld [vmem:[%s7] sm:$0xff]
    %v4122 = vld [vmem:[%s7 + $0x8] sm:$0xff]
    %v4123 = vld [vmem:[%s7 + $0x10] sm:$0xff]
    %v4124 = vld [vmem:[%s7 + $0x18] sm:$0xff]
    %v4125 = vld [vmem:[%s7 + $0x20] sm:$0xf]
    %v4126 = vld [vmem:[%s8] sm:$0x1]
    %v4128 = vlaneseq
    %v4129 = vshrl.u32 %v4128, 7
    %v4130 = vsub.s32 0, %v4129
    %v4131 = vrot.slane %v4126, %v4130
    %4133 = vxpose.xlu0.b32.start [1/16] %v4116, 128
    %4134 = vxpose.xlu0.b32.cont [2/16] %v4117, 128
    %4135 = vxpose.xlu0.b32.cont [3/16] %v4118, 128
    %4136 = vxpose.xlu0.b32.cont [4/16] %v4119, 128
    %4137 = vxpose.xlu0.b32.cont [5/16] %v4120, 128
    %4138 = vxpose.xlu0.b32.cont [6/16] 0.0, 128
    %4139 = vxpose.xlu0.b32.cont [7/16] 0.0, 128
    %4140 = vxpose.xlu0.b32.cont [8/16] 0.0, 128
    %4141 = vxpose.xlu0.b32.cont [9/16] 0.0, 128
    %4142 = vxpose.xlu0.b32.cont [10/16] 0.0, 128
    %4143 = vxpose.xlu0.b32.cont [11/16] 0.0, 128
    %4144 = vxpose.xlu0.b32.cont [12/16] 0.0, 128
    %4145 = vxpose.xlu0.b32.cont [13/16] 0.0, 128
    %4146 = vxpose.xlu0.b32.cont [14/16] 0.0, 128
    %4147 = vxpose.xlu0.b32.cont [15/16] 0.0, 128
    %4148 = vxpose.xlu0.b32.end [16/16] 0.0, 128
    %v4149 = vpop.trf.xlu0
    %v4150 = vpop.trf.xlu0
    %v4151 = vpop.trf.xlu0
    %v4152 = vpop.trf.xlu0
    %v4153 = vpop.trf.xlu0
    %v4154 = vpop.trf.xlu0
    %v4155 = vpop.trf.xlu0
    %v4156 = vpop.trf.xlu0
    %v4157 = vpop.trf.xlu0
    %v4158 = vpop.trf.xlu0
    %v4159 = vpop.trf.xlu0
    %v4160 = vpop.trf.xlu0
    %v4161 = vpop.trf.xlu0
    %v4162 = vpop.trf.xlu0
    %v4163 = vpop.trf.xlu0
    %v4164 = vpop.trf.xlu0
    %vm4165 = vcmask 293888
    %v4167 = vsel %vm4165, %v4149, 0
    %v4170 = vsel %vm4165, %v4150, 0
    %v4173 = vsel %vm4165, %v4151, 0
    %v4176 = vsel %vm4165, %v4152, 0
    %v4179 = vsel %vm4165, %v4153, 0
    %v4182 = vsel %vm4165, %v4154, 0
    %v4185 = vsel %vm4165, %v4155, 0
    %v4188 = vsel %vm4165, %v4156, 0
    %v4191 = vsel %vm4165, %v4157, 0
    %v4194 = vsel %vm4165, %v4158, 0
    %v4197 = vsel %vm4165, %v4159, 0
    %v4200 = vsel %vm4165, %v4160, 0
    %v4203 = vsel %vm4165, %v4161, 0
    %v4206 = vsel %vm4165, %v4162, 0
    %v4209 = vsel %vm4165, %v4163, 0
    %v4212 = vsel %vm4165, %v4164, 0
    %vm4214 = vcmask 1043456
    %v4216 = vsel %vm4214, %v4125, 0
    %4218 = vmatprep.subr.mxu0 0.0
    %4219 = vmatpush1.msra.mxu0 0.0
    %4220 = vmatprep.subr.mxu0 0.0
    %4221 = vmatpush1.msra.mxu0 0.0
    %4222 = vmatprep.subr.mxu0 0.0
    %4223 = vmatpush1.msra.mxu0 0.0
    %4224 = vmatprep.subr.mxu0 0.0
    %4225 = vmatpush1.msra.mxu0 0.0
    %4226 = vmatprep.subr.mxu0 0.0
    %4227 = vmatpush1.msra.mxu0 0.0
    %4228 = vmatprep.subr.mxu0 0.0
    %4229 = vmatpush1.msra.mxu0 0.0
    %4230 = vmatprep.subr.mxu0 0.0
    %4231 = vmatpush1.msra.mxu0 0.0
    %4232 = vmatprep.subr.mxu0 0.0
    %4233 = vmatpush1.msra.mxu0 0.0
    %4234 = vmatprep.subr.mxu0 0.0
    %4235 = vmatpush1.msra.mxu0 0.0
    %4236 = vmatprep.subr.mxu0 0.0
    %4237 = vmatpush1.msra.mxu0 0.0
    %4238 = vmatprep.subr.mxu0 0.0
    %4239 = vmatpush1.msra.mxu0 0.0
    %4240 = vmatprep.subr.mxu0 0.0
    %4241 = vmatpush1.msra.mxu0 %v4216
    %4242 = vmatprep.subr.mxu0 0.0
    %4243 = vmatpush1.msra.mxu0 %v4124
    %4244 = vmatprep.subr.mxu0 0.0
    %4245 = vmatpush1.msra.mxu0 %v4123
    %4246 = vmatprep.subr.mxu0 0.0
    %4247 = vmatpush1.msra.mxu0 %v4122
    %4248 = vmatprep.subr.mxu0 0.0
    %4249 = vmatpush1.msra.mxu0 %v4121
    %4250 = vmatprep.subr.mxu0 0.0
    %4251 = vmatpush2.msra.mxu0 0.0
    %4252 = vmatprep.subr.mxu0 0.0
    %4253 = vmatpush2.msra.mxu0 0.0
    %4254 = vmatprep.subr.mxu0 0.0
    %4255 = vmatpush2.msra.mxu0 0.0
    %4256 = vmatprep.subr.mxu0 0.0
    %4257 = vmatpush2.msra.mxu0 0.0
    %4258 = vmatprep.subr.mxu0 0.0
    %4259 = vmatpush2.msra.mxu0 0.0
    %4260 = vmatprep.subr.mxu0 0.0
    %4261 = vmatpush2.msra.mxu0 0.0
    %4262 = vmatprep.subr.mxu0 0.0
    %4263 = vmatpush2.msra.mxu0 0.0
    %4264 = vmatprep.subr.mxu0 0.0
    %4265 = vmatpush2.msra.mxu0 0.0
    %4266 = vmatprep.subr.mxu0 0.0
    %4267 = vmatpush2.msra.mxu0 0.0
    %4268 = vmatprep.subr.mxu0 0.0
    %4269 = vmatpush2.msra.mxu0 0.0
    %4270 = vmatprep.subr.mxu0 0.0
    %4271 = vmatpush2.msra.mxu0 0.0
    %4272 = vmatprep.subr.mxu0 0.0
    %4273 = vmatpush2.msra.mxu0 0.0
    %4274 = vmatprep.subr.mxu0 0.0
    %4275 = vmatpush2.msra.mxu0 0.0
    %4276 = vmatprep.subr.mxu0 0.0
    %4277 = vmatpush2.msra.mxu0 0.0
    %4278 = vmatprep.subr.mxu0 0.0
    %4279 = vmatpush2.msra.mxu0 0.0
    %4280 = vmatprep.subr.mxu0 0.0
    %4281 = vmatpush2.msra.mxu0 0.0
    %4282 = vmatprep.mubr.f32.mxu0 0.0
    %4283 = vmatmul.mubr.f32.gmra.mxu0 %v4167
    %v4284 = vpop.f32.mrf.mxu0
    %v4285 = vadd.f32 %v4131, %v4284
    %v4286 = vpop.f32.mrf.mxu0
    %4287 = vmatprep.mubr.f32.mxu0 0.0
    %4288 = vmatmul.mubr.f32.gmra.mxu0 %v4170
    %v4289 = vpop.f32.mrf.mxu0
    %v4290 = vadd.f32 %v4131, %v4289
    %v4291 = vpop.f32.mrf.mxu0
    %4292 = vmatprep.mubr.f32.mxu0 0.0
    %4293 = vmatmul.mubr.f32.gmra.mxu0 %v4173
    %v4294 = vpop.f32.mrf.mxu0
    %v4295 = vadd.f32 %v4131, %v4294
    %v4296 = vpop.f32.mrf.mxu0
    %4297 = vmatprep.mubr.f32.mxu0 0.0
    %4298 = vmatmul.mubr.f32.gmra.mxu0 %v4176
    %v4299 = vpop.f32.mrf.mxu0
    %v4300 = vadd.f32 %v4131, %v4299
    %v4301 = vpop.f32.mrf.mxu0
    %4302 = vmatprep.mubr.f32.mxu0 0.0
    %4303 = vmatmul.mubr.f32.gmra.mxu0 %v4179
    %v4304 = vpop.f32.mrf.mxu0
    %v4305 = vadd.f32 %v4131, %v4304
    %v4306 = vpop.f32.mrf.mxu0
    %4307 = vmatprep.mubr.f32.mxu0 0.0
    %4308 = vmatmul.mubr.f32.gmra.mxu0 %v4182
    %v4309 = vpop.f32.mrf.mxu0
    %v4310 = vadd.f32 %v4131, %v4309
    %v4311 = vpop.f32.mrf.mxu0
    %4312 = vmatprep.mubr.f32.mxu0 0.0
    %4313 = vmatmul.mubr.f32.gmra.mxu0 %v4185
    %v4314 = vpop.f32.mrf.mxu0
    %v4315 = vadd.f32 %v4131, %v4314
    %v4316 = vpop.f32.mrf.mxu0
    %4317 = vmatprep.mubr.f32.mxu0 0.0
    %4318 = vmatmul.mubr.f32.gmra.mxu0 %v4188
    %v4319 = vpop.f32.mrf.mxu0
    %v4320 = vadd.f32 %v4131, %v4319
    %v4321 = vpop.f32.mrf.mxu0
    %4322 = vmatprep.mubr.f32.mxu0 0.0
    %4323 = vmatmul.mubr.f32.gmra.mxu0 %v4191
    %v4324 = vpop.f32.mrf.mxu0
    %v4325 = vadd.f32 %v4131, %v4324
    %v4326 = vpop.f32.mrf.mxu0
    %4327 = vmatprep.mubr.f32.mxu0 0.0
    %4328 = vmatmul.mubr.f32.gmra.mxu0 %v4194
    %v4329 = vpop.f32.mrf.mxu0
    %v4330 = vadd.f32 %v4131, %v4329
    %v4331 = vpop.f32.mrf.mxu0
    %4332 = vmatprep.mubr.f32.mxu0 0.0
    %4333 = vmatmul.mubr.f32.gmra.mxu0 %v4197
    %v4334 = vpop.f32.mrf.mxu0
    %v4335 = vadd.f32 %v4131, %v4334
    %v4336 = vpop.f32.mrf.mxu0
    %4337 = vmatprep.mubr.f32.mxu0 0.0
    %4338 = vmatmul.mubr.f32.gmra.mxu0 %v4200
    %v4339 = vpop.f32.mrf.mxu0
    %v4340 = vadd.f32 %v4131, %v4339
    %v4341 = vpop.f32.mrf.mxu0
    %4342 = vmatprep.mubr.f32.mxu0 0.0
    %4343 = vmatmul.mubr.f32.gmra.mxu0 %v4203
    %v4344 = vpop.f32.mrf.mxu0
    %v4345 = vadd.f32 %v4131, %v4344
    %v4346 = vpop.f32.mrf.mxu0
    %4347 = vmatprep.mubr.f32.mxu0 0.0
    %4348 = vmatmul.mubr.f32.gmra.mxu0 %v4206
    %v4349 = vpop.f32.mrf.mxu0
    %v4350 = vadd.f32 %v4131, %v4349
    %v4351 = vpop.f32.mrf.mxu0
    %4352 = vmatprep.mubr.f32.mxu0 0.0
    %4353 = vmatmul.mubr.f32.gmra.mxu0 %v4209
    %v4354 = vpop.f32.mrf.mxu0
    %v4355 = vadd.f32 %v4131, %v4354
    %v4356 = vpop.f32.mrf.mxu0
    %4357 = vmatprep.mubr.f32.mxu0 0.0
    %4358 = vmatmul.mubr.f32.gmra.mxu0 %v4212
    %v4359 = vpop.f32.mrf.mxu0
    %v4360 = vadd.f32 %v4131, %v4359
    %v4361 = vpop.f32.mrf.mxu0
    %4362 = vdwg.mxu0
    %4363 = vst [vmem:[#allocation6] sm:$0xff] %v4285
    %4364 = vst [vmem:[#allocation6 + $0x8] sm:$0xff] %v4290
    %4365 = vst [vmem:[#allocation6 + $0x10] sm:$0xff] %v4295
    %4366 = vst [vmem:[#allocation6 + $0x18] sm:$0xff] %v4300
    %4367 = vst [vmem:[#allocation6 + $0x20] sm:$0xff] %v4305
    %4368 = vst [vmem:[#allocation6 + $0x28] sm:$0xff] %v4310
    %4369 = vst [vmem:[#allocation6 + $0x30] sm:$0xff] %v4315
    %4370 = vst [vmem:[#allocation6 + $0x38] sm:$0xff] %v4320
    %4371 = vst [vmem:[#allocation6 + $0x40] sm:$0xff] %v4325
    %4372 = vst [vmem:[#allocation6 + $0x48] sm:$0xff] %v4330
    %4373 = vst [vmem:[#allocation6 + $0x50] sm:$0xff] %v4335
    %4374 = vst [vmem:[#allocation6 + $0x58] sm:$0xff] %v4340
    %4375 = vst [vmem:[#allocation6 + $0x60] sm:$0xff] %v4345
    %4376 = vst [vmem:[#allocation6 + $0x68] sm:$0xff] %v4350
    %4377 = vst [vmem:[#allocation6 + $0x70] sm:$0xff] %v4355
    %4378 = vst [vmem:[#allocation6 + $0x78] sm:$0xff] %v4360
    %s4379 = scalar_lea.vmem [#allocation8], 48
    %v4380 = vld [vmem:[%s4379] sm:$0xff]
    %v4381 = vld [vmem:[%s4379 + $0x8] sm:$0xff]
    %v4382 = vld [vmem:[%s4379 + $0x10] sm:$0xff]
    %v4383 = vld [vmem:[%s4379 + $0x18] sm:$0xff]
    %v4384 = vld [vmem:[%s4379 + $0x20] sm:$0xff]
    %v4385 = vld [vmem:[%s4379 + $0x28] sm:$0xff]
    %v4386 = vld [vmem:[#allocation11] sm:$0xff]
    %v4387 = vld [vmem:[#allocation11 + $0x8] sm:$0xff]
    %v4388 = vld [vmem:[%s2] sm:$0x1]
    %v4390 = vlaneseq
    %v4391 = vshrl.u32 %v4390, 7
    %v4392 = vsub.s32 0, %v4391
    %v4393 = vrot.slane %v4388, %v4392
    %4395 = vxpose.xlu0.b32.start [1/16] %v4380, 128
    %4396 = vxpose.xlu0.b32.cont [2/16] %v4383, 128
    %4397 = vxpose.xlu0.b32.cont [3/16] 0.0, 128
    %4398 = vxpose.xlu0.b32.cont [4/16] 0.0, 128
    %4399 = vxpose.xlu0.b32.cont [5/16] 0.0, 128
    %4400 = vxpose.xlu0.b32.cont [6/16] 0.0, 128
    %4401 = vxpose.xlu0.b32.cont [7/16] 0.0, 128
    %4402 = vxpose.xlu0.b32.cont [8/16] 0.0, 128
    %4403 = vxpose.xlu0.b32.cont [9/16] 0.0, 128
    %4404 = vxpose.xlu0.b32.cont [10/16] 0.0, 128
    %4405 = vxpose.xlu0.b32.cont [11/16] 0.0, 128
    %4406 = vxpose.xlu0.b32.cont [12/16] 0.0, 128
    %4407 = vxpose.xlu0.b32.cont [13/16] 0.0, 128
    %4408 = vxpose.xlu0.b32.cont [14/16] 0.0, 128
    %4409 = vxpose.xlu0.b32.cont [15/16] 0.0, 128
    %4410 = vxpose.xlu0.b32.end [16/16] 0.0, 128
    %v4411 = vpop.trf.xlu0
    %v4412 = vpop.trf.xlu0
    %v4413 = vpop.trf.xlu0
    %v4414 = vpop.trf.xlu0
    %v4415 = vpop.trf.xlu0
    %v4416 = vpop.trf.xlu0
    %v4417 = vpop.trf.xlu0
    %v4418 = vpop.trf.xlu0
    %v4419 = vpop.trf.xlu0
    %v4420 = vpop.trf.xlu0
    %v4421 = vpop.trf.xlu0
    %v4422 = vpop.trf.xlu0
    %v4423 = vpop.trf.xlu0
    %v4424 = vpop.trf.xlu0
    %v4425 = vpop.trf.xlu0
    %v4426 = vpop.trf.xlu0
    %4427 = vxpose.xlu0.b32.start [1/16] %v4381, 128
    %4428 = vxpose.xlu0.b32.cont [2/16] %v4384, 128
    %4429 = vxpose.xlu0.b32.cont [3/16] 0.0, 128
    %4430 = vxpose.xlu0.b32.cont [4/16] 0.0, 128
    %4431 = vxpose.xlu0.b32.cont [5/16] 0.0, 128
    %4432 = vxpose.xlu0.b32.cont [6/16] 0.0, 128
    %4433 = vxpose.xlu0.b32.cont [7/16] 0.0, 128
    %4434 = vxpose.xlu0.b32.cont [8/16] 0.0, 128
    %4435 = vxpose.xlu0.b32.cont [9/16] 0.0, 128
    %4436 = vxpose.xlu0.b32.cont [10/16] 0.0, 128
    %4437 = vxpose.xlu0.b32.cont [11/16] 0.0, 128
    %4438 = vxpose.xlu0.b32.cont [12/16] 0.0, 128
    %4439 = vxpose.xlu0.b32.cont [13/16] 0.0, 128
    %4440 = vxpose.xlu0.b32.cont [14/16] 0.0, 128
    %4441 = vxpose.xlu0.b32.cont [15/16] 0.0, 128
    %4442 = vxpose.xlu0.b32.end [16/16] 0.0, 128
    %v4443 = vpop.trf.xlu0
    %v4444 = vpop.trf.xlu0
    %v4445 = vpop.trf.xlu0
    %v4446 = vpop.trf.xlu0
    %v4447 = vpop.trf.xlu0
    %v4448 = vpop.trf.xlu0
    %v4449 = vpop.trf.xlu0
    %v4450 = vpop.trf.xlu0
    %v4451 = vpop.trf.xlu0
    %v4452 = vpop.trf.xlu0
    %v4453 = vpop.trf.xlu0
    %v4454 = vpop.trf.xlu0
    %v4455 = vpop.trf.xlu0
    %v4456 = vpop.trf.xlu0
    %v4457 = vpop.trf.xlu0
    %v4458 = vpop.trf.xlu0
    %4459 = vxpose.xlu0.b32.start [1/16] %v4382, 128
    %4460 = vxpose.xlu0.b32.cont [2/16] %v4385, 128
    %4461 = vxpose.xlu0.b32.cont [3/16] 0.0, 128
    %4462 = vxpose.xlu0.b32.cont [4/16] 0.0, 128
    %4463 = vxpose.xlu0.b32.cont [5/16] 0.0, 128
    %4464 = vxpose.xlu0.b32.cont [6/16] 0.0, 128
    %4465 = vxpose.xlu0.b32.cont [7/16] 0.0, 128
    %4466 = vxpose.xlu0.b32.cont [8/16] 0.0, 128
    %4467 = vxpose.xlu0.b32.cont [9/16] 0.0, 128
    %4468 = vxpose.xlu0.b32.cont [10/16] 0.0, 128
    %4469 = vxpose.xlu0.b32.cont [11/16] 0.0, 128
    %4470 = vxpose.xlu0.b32.cont [12/16] 0.0, 128
    %4471 = vxpose.xlu0.b32.cont [13/16] 0.0, 128
    %4472 = vxpose.xlu0.b32.cont [14/16] 0.0, 128
    %4473 = vxpose.xlu0.b32.cont [15/16] 0.0, 128
    %4474 = vxpose.xlu0.b32.end [16/16] 0.0, 128
    %v4475 = vpop.trf.xlu0
    %v4476 = vpop.trf.xlu0
    %v4477 = vpop.trf.xlu0
    %v4478 = vpop.trf.xlu0
    %v4479 = vpop.trf.xlu0
    %v4480 = vpop.trf.xlu0
    %v4481 = vpop.trf.xlu0
    %v4482 = vpop.trf.xlu0
    %v4483 = vpop.trf.xlu0
    %v4484 = vpop.trf.xlu0
    %v4485 = vpop.trf.xlu0
    %v4486 = vpop.trf.xlu0
    %v4487 = vpop.trf.xlu0
    %v4488 = vpop.trf.xlu0
    %v4489 = vpop.trf.xlu0
    %v4490 = vpop.trf.xlu0
    %v4492 = vsel %vm230, %v4411, 0
    %v4495 = vsel %vm230, %v4412, 0
    %v4498 = vsel %vm230, %v4413, 0
    %v4501 = vsel %vm230, %v4414, 0
    %v4504 = vsel %vm230, %v4415, 0
    %v4507 = vsel %vm230, %v4416, 0
    %v4510 = vsel %vm230, %v4417, 0
    %v4513 = vsel %vm230, %v4418, 0
    %v4516 = vsel %vm230, %v4419, 0
    %v4519 = vsel %vm230, %v4420, 0
    %v4522 = vsel %vm230, %v4421, 0
    %v4525 = vsel %vm230, %v4422, 0
    %v4528 = vsel %vm230, %v4423, 0
    %v4531 = vsel %vm230, %v4424, 0
    %v4534 = vsel %vm230, %v4425, 0
    %v4537 = vsel %vm230, %v4426, 0
    %v4540 = vsel %vm230, %v4443, 0
    %v4543 = vsel %vm230, %v4444, 0
    %v4546 = vsel %vm230, %v4445, 0
    %v4549 = vsel %vm230, %v4446, 0
    %v4552 = vsel %vm230, %v4447, 0
    %v4555 = vsel %vm230, %v4448, 0
    %v4558 = vsel %vm230, %v4449, 0
    %v4561 = vsel %vm230, %v4450, 0
    %v4564 = vsel %vm230, %v4451, 0
    %v4567 = vsel %vm230, %v4452, 0
    %v4570 = vsel %vm230, %v4453, 0
    %v4573 = vsel %vm230, %v4454, 0
    %v4576 = vsel %vm230, %v4455, 0
    %v4579 = vsel %vm230, %v4456, 0
    %v4582 = vsel %vm230, %v4457, 0
    %v4585 = vsel %vm230, %v4458, 0
    %v4588 = vsel %vm230, %v4475, 0
    %v4591 = vsel %vm230, %v4476, 0
    %v4594 = vsel %vm230, %v4477, 0
    %v4597 = vsel %vm230, %v4478, 0
    %v4600 = vsel %vm230, %v4479, 0
    %v4603 = vsel %vm230, %v4480, 0
    %4605 = vmatprep.subr.mxu0 0.0
    %4606 = vmatpush1.msra.mxu0 0.0
    %4607 = vmatprep.subr.mxu0 0.0
    %4608 = vmatpush1.msra.mxu0 0.0
    %4609 = vmatprep.subr.mxu0 0.0
    %4610 = vmatpush1.msra.mxu0 0.0
    %4611 = vmatprep.subr.mxu0 0.0
    %4612 = vmatpush1.msra.mxu0 0.0
    %4613 = vmatprep.subr.mxu0 0.0
    %4614 = vmatpush1.msra.mxu0 0.0
    %4615 = vmatprep.subr.mxu0 0.0
    %4616 = vmatpush1.msra.mxu0 0.0
    %4617 = vmatprep.subr.mxu0 0.0
    %4618 = vmatpush1.msra.mxu0 0.0
    %4619 = vmatprep.subr.mxu0 0.0
    %4620 = vmatpush1.msra.mxu0 0.0
    %4621 = vmatprep.subr.mxu0 0.0
    %4622 = vmatpush1.msra.mxu0 0.0
    %4623 = vmatprep.subr.mxu0 0.0
    %4624 = vmatpush1.msra.mxu0 0.0
    %4625 = vmatprep.subr.mxu0 0.0
    %4626 = vmatpush1.msra.mxu0 0.0
    %4627 = vmatprep.subr.mxu0 0.0
    %4628 = vmatpush1.msra.mxu0 0.0
    %4629 = vmatprep.subr.mxu0 0.0
    %4630 = vmatpush1.msra.mxu0 0.0
    %4631 = vmatprep.subr.mxu0 0.0
    %4632 = vmatpush1.msra.mxu0 0.0
    %4633 = vmatprep.subr.mxu0 0.0
    %4634 = vmatpush1.msra.mxu0 %v4387
    %4635 = vmatprep.subr.mxu0 0.0
    %4636 = vmatpush1.msra.mxu0 %v4386
    %4637 = vmatprep.subr.mxu0 0.0
    %4638 = vmatpush2.msra.mxu0 0.0
    %4639 = vmatprep.subr.mxu0 0.0
    %4640 = vmatpush2.msra.mxu0 0.0
    %4641 = vmatprep.subr.mxu0 0.0
    %4642 = vmatpush2.msra.mxu0 0.0
    %4643 = vmatprep.subr.mxu0 0.0
    %4644 = vmatpush2.msra.mxu0 0.0
    %4645 = vmatprep.subr.mxu0 0.0
    %4646 = vmatpush2.msra.mxu0 0.0
    %4647 = vmatprep.subr.mxu0 0.0
    %4648 = vmatpush2.msra.mxu0 0.0
    %4649 = vmatprep.subr.mxu0 0.0
    %4650 = vmatpush2.msra.mxu0 0.0
    %4651 = vmatprep.subr.mxu0 0.0
    %4652 = vmatpush2.msra.mxu0 0.0
    %4653 = vmatprep.subr.mxu0 0.0
    %4654 = vmatpush2.msra.mxu0 0.0
    %4655 = vmatprep.subr.mxu0 0.0
    %4656 = vmatpush2.msra.mxu0 0.0
    %4657 = vmatprep.subr.mxu0 0.0
    %4658 = vmatpush2.msra.mxu0 0.0
    %4659 = vmatprep.subr.mxu0 0.0
    %4660 = vmatpush2.msra.mxu0 0.0
    %4661 = vmatprep.subr.mxu0 0.0
    %4662 = vmatpush2.msra.mxu0 0.0
    %4663 = vmatprep.subr.mxu0 0.0
    %4664 = vmatpush2.msra.mxu0 0.0
    %4665 = vmatprep.subr.mxu0 0.0
    %4666 = vmatpush2.msra.mxu0 0.0
    %4667 = vmatprep.subr.mxu0 0.0
    %4668 = vmatpush2.msra.mxu0 0.0
    %4669 = vmatprep.mubr.f32.mxu0 0.0
    %4670 = vmatmul.mubr.f32.gmra.mxu0 %v4492
    %v4671 = vpop.f32.mrf.mxu0
    %v4672 = vadd.f32 %v4393, %v4671
    %v4673 = vpop.f32.mrf.mxu0
    %4674 = vmatprep.mubr.f32.mxu0 0.0
    %4675 = vmatmul.mubr.f32.gmra.mxu0 %v4495
    %v4676 = vpop.f32.mrf.mxu0
    %v4677 = vadd.f32 %v4393, %v4676
    %v4678 = vpop.f32.mrf.mxu0
    %4679 = vmatprep.mubr.f32.mxu0 0.0
    %4680 = vmatmul.mubr.f32.gmra.mxu0 %v4498
    %v4681 = vpop.f32.mrf.mxu0
    %v4682 = vadd.f32 %v4393, %v4681
    %v4683 = vpop.f32.mrf.mxu0
    %4684 = vmatprep.mubr.f32.mxu0 0.0
    %4685 = vmatmul.mubr.f32.gmra.mxu0 %v4501
    %v4686 = vpop.f32.mrf.mxu0
    %v4687 = vadd.f32 %v4393, %v4686
    %v4688 = vpop.f32.mrf.mxu0
    %4689 = vmatprep.mubr.f32.mxu0 0.0
    %4690 = vmatmul.mubr.f32.gmra.mxu0 %v4504
    %v4691 = vpop.f32.mrf.mxu0
    %v4692 = vadd.f32 %v4393, %v4691
    %v4693 = vpop.f32.mrf.mxu0
    %4694 = vmatprep.mubr.f32.mxu0 0.0
    %4695 = vmatmul.mubr.f32.gmra.mxu0 %v4507
    %v4696 = vpop.f32.mrf.mxu0
    %v4697 = vadd.f32 %v4393, %v4696
    %v4698 = vpop.f32.mrf.mxu0
    %4699 = vmatprep.mubr.f32.mxu0 0.0
    %4700 = vmatmul.mubr.f32.gmra.mxu0 %v4510
    %v4701 = vpop.f32.mrf.mxu0
    %v4702 = vadd.f32 %v4393, %v4701
    %v4703 = vpop.f32.mrf.mxu0
    %4704 = vmatprep.mubr.f32.mxu0 0.0
    %4705 = vmatmul.mubr.f32.gmra.mxu0 %v4513
    %v4706 = vpop.f32.mrf.mxu0
    %v4707 = vadd.f32 %v4393, %v4706
    %v4708 = vpop.f32.mrf.mxu0
    %4709 = vmatprep.mubr.f32.mxu0 0.0
    %4710 = vmatmul.mubr.f32.gmra.mxu0 %v4516
    %v4711 = vpop.f32.mrf.mxu0
    %v4712 = vadd.f32 %v4393, %v4711
    %v4713 = vpop.f32.mrf.mxu0
    %4714 = vmatprep.mubr.f32.mxu0 0.0
    %4715 = vmatmul.mubr.f32.gmra.mxu0 %v4519
    %v4716 = vpop.f32.mrf.mxu0
    %v4717 = vadd.f32 %v4393, %v4716
    %v4718 = vpop.f32.mrf.mxu0
    %4719 = vmatprep.mubr.f32.mxu0 0.0
    %4720 = vmatmul.mubr.f32.gmra.mxu0 %v4522
    %v4721 = vpop.f32.mrf.mxu0
    %v4722 = vadd.f32 %v4393, %v4721
    %v4723 = vpop.f32.mrf.mxu0
    %4724 = vmatprep.mubr.f32.mxu0 0.0
    %4725 = vmatmul.mubr.f32.gmra.mxu0 %v4525
    %v4726 = vpop.f32.mrf.mxu0
    %v4727 = vadd.f32 %v4393, %v4726
    %v4728 = vpop.f32.mrf.mxu0
    %4729 = vmatprep.mubr.f32.mxu0 0.0
    %4730 = vmatmul.mubr.f32.gmra.mxu0 %v4528
    %v4731 = vpop.f32.mrf.mxu0
    %v4732 = vadd.f32 %v4393, %v4731
    %v4733 = vpop.f32.mrf.mxu0
    %4734 = vmatprep.mubr.f32.mxu0 0.0
    %4735 = vmatmul.mubr.f32.gmra.mxu0 %v4531
    %v4736 = vpop.f32.mrf.mxu0
    %v4737 = vadd.f32 %v4393, %v4736
    %v4738 = vpop.f32.mrf.mxu0
    %4739 = vmatprep.mubr.f32.mxu0 0.0
    %4740 = vmatmul.mubr.f32.gmra.mxu0 %v4534
    %v4741 = vpop.f32.mrf.mxu0
    %v4742 = vadd.f32 %v4393, %v4741
    %v4743 = vpop.f32.mrf.mxu0
    %4744 = vmatprep.mubr.f32.mxu0 0.0
    %4745 = vmatmul.mubr.f32.gmra.mxu0 %v4537
    %v4746 = vpop.f32.mrf.mxu0
    %v4747 = vadd.f32 %v4393, %v4746
    %v4748 = vpop.f32.mrf.mxu0
    %4749 = vmatprep.mubr.f32.mxu0 0.0
    %4750 = vmatmul.mubr.f32.gmra.mxu0 %v4540
    %v4751 = vpop.f32.mrf.mxu0
    %v4752 = vadd.f32 %v4393, %v4751
    %v4753 = vpop.f32.mrf.mxu0
    %4754 = vmatprep.mubr.f32.mxu0 0.0
    %4755 = vmatmul.mubr.f32.gmra.mxu0 %v4543
    %v4756 = vpop.f32.mrf.mxu0
    %v4757 = vadd.f32 %v4393, %v4756
    %v4758 = vpop.f32.mrf.mxu0
    %4759 = vmatprep.mubr.f32.mxu0 0.0
    %4760 = vmatmul.mubr.f32.gmra.mxu0 %v4546
    %v4761 = vpop.f32.mrf.mxu0
    %v4762 = vadd.f32 %v4393, %v4761
    %v4763 = vpop.f32.mrf.mxu0
    %4764 = vmatprep.mubr.f32.mxu0 0.0
    %4765 = vmatmul.mubr.f32.gmra.mxu0 %v4549
    %v4766 = vpop.f32.mrf.mxu0
    %v4767 = vadd.f32 %v4393, %v4766
    %v4768 = vpop.f32.mrf.mxu0
    %4769 = vmatprep.mubr.f32.mxu0 0.0
    %4770 = vmatmul.mubr.f32.gmra.mxu0 %v4552
    %v4771 = vpop.f32.mrf.mxu0
    %v4772 = vadd.f32 %v4393, %v4771
    %v4773 = vpop.f32.mrf.mxu0
    %4774 = vmatprep.mubr.f32.mxu0 0.0
    %4775 = vmatmul.mubr.f32.gmra.mxu0 %v4555
    %v4776 = vpop.f32.mrf.mxu0
    %v4777 = vadd.f32 %v4393, %v4776
    %v4778 = vpop.f32.mrf.mxu0
    %4779 = vmatprep.mubr.f32.mxu0 0.0
    %4780 = vmatmul.mubr.f32.gmra.mxu0 %v4558
    %v4781 = vpop.f32.mrf.mxu0
    %v4782 = vadd.f32 %v4393, %v4781
    %v4783 = vpop.f32.mrf.mxu0
    %4784 = vmatprep.mubr.f32.mxu0 0.0
    %4785 = vmatmul.mubr.f32.gmra.mxu0 %v4561
    %v4786 = vpop.f32.mrf.mxu0
    %v4787 = vadd.f32 %v4393, %v4786
    %v4788 = vpop.f32.mrf.mxu0
    %4789 = vmatprep.mubr.f32.mxu0 0.0
    %4790 = vmatmul.mubr.f32.gmra.mxu0 %v4564
    %v4791 = vpop.f32.mrf.mxu0
    %v4792 = vadd.f32 %v4393, %v4791
    %v4793 = vpop.f32.mrf.mxu0
    %4794 = vmatprep.mubr.f32.mxu0 0.0
    %4795 = vmatmul.mubr.f32.gmra.mxu0 %v4567
    %v4796 = vpop.f32.mrf.mxu0
    %v4797 = vadd.f32 %v4393, %v4796
    %v4798 = vpop.f32.mrf.mxu0
    %4799 = vmatprep.mubr.f32.mxu0 0.0
    %4800 = vmatmul.mubr.f32.gmra.mxu0 %v4570
    %v4801 = vpop.f32.mrf.mxu0
    %v4802 = vadd.f32 %v4393, %v4801
    %v4803 = vpop.f32.mrf.mxu0
    %4804 = vmatprep.mubr.f32.mxu0 0.0
    %4805 = vmatmul.mubr.f32.gmra.mxu0 %v4573
    %v4806 = vpop.f32.mrf.mxu0
    %v4807 = vadd.f32 %v4393, %v4806
    %v4808 = vpop.f32.mrf.mxu0
    %4809 = vmatprep.mubr.f32.mxu0 0.0
    %4810 = vmatmul.mubr.f32.gmra.mxu0 %v4576
    %v4811 = vpop.f32.mrf.mxu0
    %v4812 = vadd.f32 %v4393, %v4811
    %v4813 = vpop.f32.mrf.mxu0
    %4814 = vmatprep.mubr.f32.mxu0 0.0
    %4815 = vmatmul.mubr.f32.gmra.mxu0 %v4579
    %v4816 = vpop.f32.mrf.mxu0
    %v4817 = vadd.f32 %v4393, %v4816
    %v4818 = vpop.f32.mrf.mxu0
    %4819 = vmatprep.mubr.f32.mxu0 0.0
    %4820 = vmatmul.mubr.f32.gmra.mxu0 %v4582
    %v4821 = vpop.f32.mrf.mxu0
    %v4822 = vadd.f32 %v4393, %v4821
    %v4823 = vpop.f32.mrf.mxu0
    %4824 = vmatprep.mubr.f32.mxu0 0.0
    %4825 = vmatmul.mubr.f32.gmra.mxu0 %v4585
    %v4826 = vpop.f32.mrf.mxu0
    %v4827 = vadd.f32 %v4393, %v4826
    %v4828 = vpop.f32.mrf.mxu0
    %4829 = vmatprep.mubr.f32.mxu0 0.0
    %4830 = vmatmul.mubr.f32.gmra.mxu0 %v4588
    %v4831 = vpop.f32.mrf.mxu0
    %v4832 = vadd.f32 %v4393, %v4831
    %v4833 = vpop.f32.mrf.mxu0
    %4834 = vmatprep.mubr.f32.mxu0 0.0
    %4835 = vmatmul.mubr.f32.gmra.mxu0 %v4591
    %v4836 = vpop.f32.mrf.mxu0
    %v4837 = vadd.f32 %v4393, %v4836
    %v4838 = vpop.f32.mrf.mxu0
    %4839 = vmatprep.mubr.f32.mxu0 0.0
    %4840 = vmatmul.mubr.f32.gmra.mxu0 %v4594
    %v4841 = vpop.f32.mrf.mxu0
    %v4842 = vadd.f32 %v4393, %v4841
    %v4843 = vpop.f32.mrf.mxu0
    %4844 = vmatprep.mubr.f32.mxu0 0.0
    %4845 = vmatmul.mubr.f32.gmra.mxu0 %v4597
    %v4846 = vpop.f32.mrf.mxu0
    %v4847 = vadd.f32 %v4393, %v4846
    %v4848 = vpop.f32.mrf.mxu0
    %4849 = vmatprep.mubr.f32.mxu0 0.0
    %4850 = vmatmul.mubr.f32.gmra.mxu0 %v4600
    %v4851 = vpop.f32.mrf.mxu0
    %v4852 = vadd.f32 %v4393, %v4851
    %v4853 = vpop.f32.mrf.mxu0
    %4854 = vmatprep.mubr.f32.mxu0 0.0
    %4855 = vmatmul.mubr.f32.gmra.mxu0 %v4603
    %v4856 = vpop.f32.mrf.mxu0
    %v4857 = vadd.f32 %v4393, %v4856
    %v4858 = vpop.f32.mrf.mxu0
    %4859 = vdwg.mxu0
    %v4860 = vmax.f32 %v4672, 0.0
    %v4861 = vmax.f32 %v4677, 0.0
    %v4862 = vmax.f32 %v4682, 0.0
    %v4863 = vmax.f32 %v4687, 0.0
    %v4864 = vmax.f32 %v4692, 0.0
    %v4865 = vmax.f32 %v4697, 0.0
    %v4866 = vmax.f32 %v4702, 0.0
    %v4867 = vmax.f32 %v4707, 0.0
    %v4868 = vmax.f32 %v4712, 0.0
    %v4869 = vmax.f32 %v4717, 0.0
    %v4870 = vmax.f32 %v4722, 0.0
    %v4871 = vmax.f32 %v4727, 0.0
    %v4872 = vmax.f32 %v4732, 0.0
    %v4873 = vmax.f32 %v4737, 0.0
    %v4874 = vmax.f32 %v4742, 0.0
    %v4875 = vmax.f32 %v4747, 0.0
    %v4876 = vmax.f32 %v4752, 0.0
    %v4877 = vmax.f32 %v4757, 0.0
    %v4878 = vmax.f32 %v4762, 0.0
    %v4879 = vmax.f32 %v4767, 0.0
    %v4880 = vmax.f32 %v4772, 0.0
    %v4881 = vmax.f32 %v4777, 0.0
    %v4882 = vmax.f32 %v4782, 0.0
    %v4883 = vmax.f32 %v4787, 0.0
    %v4884 = vmax.f32 %v4792, 0.0
    %v4885 = vmax.f32 %v4797, 0.0
    %v4886 = vmax.f32 %v4802, 0.0
    %v4887 = vmax.f32 %v4807, 0.0
    %v4888 = vmax.f32 %v4812, 0.0
    %v4889 = vmax.f32 %v4817, 0.0
    %v4890 = vmax.f32 %v4822, 0.0
    %v4891 = vmax.f32 %v4827, 0.0
    %v4892 = vmax.f32 %v4832, 0.0
    %v4893 = vmax.f32 %v4837, 0.0
    %v4894 = vmax.f32 %v4842, 0.0
    %v4895 = vmax.f32 %v4847, 0.0
    %v4896 = vmax.f32 %v4852, 0.0
    %v4897 = vmax.f32 %v4857, 0.0
    %4898 = vst.msk [vmem:[#allocation2] sm:$0xff] %vm638, %v4860
    %4899 = vst.msk [vmem:[#allocation2 + $0x8] sm:$0xff] %vm638, %v4861
    %4900 = vst.msk [vmem:[#allocation2 + $0x10] sm:$0xff] %vm638, %v4862
    %4901 = vst.msk [vmem:[#allocation2 + $0x18] sm:$0xff] %vm638, %v4863
    %4902 = vst.msk [vmem:[#allocation2 + $0x20] sm:$0xff] %vm638, %v4864
    %4903 = vst.msk [vmem:[#allocation2 + $0x28] sm:$0xff] %vm638, %v4865
    %4904 = vst.msk [vmem:[#allocation2 + $0x30] sm:$0xff] %vm638, %v4866
    %4905 = vst.msk [vmem:[#allocation2 + $0x38] sm:$0xff] %vm638, %v4867
    %4906 = vst.msk [vmem:[#allocation2 + $0x40] sm:$0xff] %vm638, %v4868
    %4907 = vst.msk [vmem:[#allocation2 + $0x48] sm:$0xff] %vm638, %v4869
    %4908 = vst.msk [vmem:[#allocation2 + $0x50] sm:$0xff] %vm638, %v4870
    %4909 = vst.msk [vmem:[#allocation2 + $0x58] sm:$0xff] %vm638, %v4871
    %4910 = vst.msk [vmem:[#allocation2 + $0x60] sm:$0xff] %vm638, %v4872
    %4911 = vst.msk [vmem:[#allocation2 + $0x68] sm:$0xff] %vm638, %v4873
    %4912 = vst.msk [vmem:[#allocation2 + $0x70] sm:$0xff] %vm638, %v4874
    %4913 = vst.msk [vmem:[#allocation2 + $0x78] sm:$0xff] %vm638, %v4875
    %4914 = vst.msk [vmem:[#allocation2 + $0x80] sm:$0xff] %vm638, %v4876
    %4915 = vst.msk [vmem:[#allocation2 + $0x88] sm:$0xff] %vm638, %v4877
    %4916 = vst.msk [vmem:[#allocation2 + $0x90] sm:$0xff] %vm638, %v4878
    %4917 = vst.msk [vmem:[#allocation2 + $0x98] sm:$0xff] %vm638, %v4879
    %4918 = vst.msk [vmem:[#allocation2 + $0xa0] sm:$0xff] %vm638, %v4880
    %4919 = vst.msk [vmem:[#allocation2 + $0xa8] sm:$0xff] %vm638, %v4881
    %4920 = vst.msk [vmem:[#allocation2 + $0xb0] sm:$0xff] %vm638, %v4882
    %4921 = vst.msk [vmem:[#allocation2 + $0xb8] sm:$0xff] %vm638, %v4883
    %4922 = vst.msk [vmem:[#allocation2 + $0xc0] sm:$0xff] %vm638, %v4884
    %4923 = vst.msk [vmem:[#allocation2 + $0xc8] sm:$0xff] %vm638, %v4885
    %4924 = vst.msk [vmem:[#allocation2 + $0xd0] sm:$0xff] %vm638, %v4886
    %4925 = vst.msk [vmem:[#allocation2 + $0xd8] sm:$0xff] %vm638, %v4887
    %4926 = vst.msk [vmem:[#allocation2 + $0xe0] sm:$0xff] %vm638, %v4888
    %4927 = vst.msk [vmem:[#allocation2 + $0xe8] sm:$0xff] %vm638, %v4889
    %4928 = vst.msk [vmem:[#allocation2 + $0xf0] sm:$0xff] %vm638, %v4890
    %4929 = vst.msk [vmem:[#allocation2 + $0xf8] sm:$0xff] %vm638, %v4891
    %4930 = vst.msk [vmem:[#allocation2 + $0x100] sm:$0xff] %vm638, %v4892
    %4931 = vst.msk [vmem:[#allocation2 + $0x108] sm:$0xff] %vm638, %v4893
    %4932 = vst.msk [vmem:[#allocation2 + $0x110] sm:$0xff] %vm638, %v4894
    %4933 = vst.msk [vmem:[#allocation2 + $0x118] sm:$0xff] %vm638, %v4895
    %4934 = vst.msk [vmem:[#allocation2 + $0x120] sm:$0xff] %vm638, %v4896
    %4935 = vst.msk [vmem:[#allocation2 + $0x128] sm:$0xff] %vm638, %v4897
    %v4936 = vld [vmem:[#allocation2] ss:$2 sm:$0xff]
    %v4937 = vld [vmem:[%s678] ss:$2 sm:$0xff]
    %v4938 = vld [vmem:[%s680] ss:$2 sm:$0xff]
    %v4939 = vld [vmem:[%s682] ss:$2 sm:$0xff]
    %v4940 = vld [vmem:[%s684] ss:$2 sm:$0xff]
    %v4941 = vld [vmem:[%s686] ss:$2 sm:$0xff]
    %v4942 = vld [vmem:[%s688] ss:$2 sm:$0xff]
    %v4943 = vld [vmem:[%s690] ss:$2 sm:$0xff]
    %v4944 = vld [vmem:[%s692] ss:$2 sm:$0xff]
    %v4945 = vld [vmem:[%s694] ss:$2 sm:$0xff]
    %v4946 = vld [vmem:[%s696] ss:$2 sm:$0xff]
    %v4947 = vld [vmem:[%s698] ss:$2 sm:$0xff]
    %v4948 = vld [vmem:[%s700] ss:$2 sm:$0xff]
    %v4949 = vld [vmem:[%s702] ss:$2 sm:$0xff]
    %v4950 = vld [vmem:[%s704] ss:$2 sm:$0xff]
    %v4951 = vld [vmem:[%s706] ss:$2 sm:$0xff]
    %v4952 = vld [vmem:[%s708] ss:$2 sm:$0xff]
    %v4953 = vld [vmem:[%s710] ss:$2 sm:$0xff]
    %v4954 = vld [vmem:[%s712] ss:$2 sm:$0xff]
    %v4955 = vld [vmem:[%s714] ss:$2 sm:$0xff]
    %v4956 = vld [vmem:[%s716] ss:$2 sm:$0xff]
    %v4957 = vld [vmem:[%s718] ss:$2 sm:$0xff]
    %v4958 = vld [vmem:[%s720] ss:$2 sm:$0xff]
    %v4959 = vld [vmem:[%s722] ss:$2 sm:$0xff]
    %v4960 = vld [vmem:[%s724] ss:$2 sm:$0xff]
    %v4961 = vld [vmem:[%s726] ss:$2 sm:$0xff]
    %v4962 = vld [vmem:[%s728] ss:$2 sm:$0xff]
    %v4963 = vld [vmem:[%s730] ss:$2 sm:$0xff]
    %v4964 = vld [vmem:[%s732] ss:$2 sm:$0xff]
    %v4965 = vld [vmem:[%s734] ss:$2 sm:$0xff]
    %v4966 = vld [vmem:[%s736] ss:$2 sm:$0xff]
    %v4967 = vld [vmem:[%s738] ss:$2 sm:$0xff]
    %v4968 = vld [vmem:[%s740] ss:$2 sm:$0xff]
    %v4969 = vld [vmem:[%s742] ss:$2 sm:$0xff]
    %v4970 = vld [vmem:[%s744] ss:$2 sm:$0xff]
    %v4971 = vld [vmem:[%s746] ss:$2 sm:$0xff]
    %v4972 = vld [vmem:[%s748] ss:$2 sm:$0xff]
    %v4973 = vld [vmem:[%s750] ss:$2 sm:$0xff]
    %v4974 = vmax.f32 %v4936, %v4955
    %v4975 = vmax.f32 %v4937, %v4956
    %v4976 = vmax.f32 %v4938, %v4957
    %v4977 = vmax.f32 %v4939, %v4958
    %v4978 = vmax.f32 %v4940, %v4959
    %v4979 = vmax.f32 %v4941, %v4960
    %v4980 = vmax.f32 %v4942, %v4961
    %v4981 = vmax.f32 %v4943, %v4962
    %v4982 = vmax.f32 %v4944, %v4963
    %v4983 = vmax.f32 %v4945, %v4964
    %v4984 = vmax.f32 %v4946, %v4965
    %v4985 = vmax.f32 %v4947, %v4966
    %v4986 = vmax.f32 %v4948, %v4967
    %v4987 = vmax.f32 %v4949, %v4968
    %v4988 = vmax.f32 %v4950, %v4969
    %v4989 = vmax.f32 %v4951, %v4970
    %v4990 = vmax.f32 %v4952, %v4971
    %v4991 = vmax.f32 %v4953, %v4972
    %v4992 = vmax.f32 %v4954, %v4973
    %4993 = vst.msk [vmem:[#allocation3 + $0x4] sm:$0xff] %vm638, %v4974
    %4994 = vst.msk [vmem:[#allocation3 + $0xc] sm:$0xff] %vm638, %v4975
    %4995 = vst.msk [vmem:[#allocation3 + $0x14] sm:$0xff] %vm638, %v4976
    %4996 = vst.msk [vmem:[#allocation3 + $0x1c] sm:$0xff] %vm638, %v4977
    %4997 = vst.msk [vmem:[#allocation3 + $0x24] sm:$0xff] %vm638, %v4978
    %4998 = vst.msk [vmem:[#allocation3 + $0x2c] sm:$0xff] %vm638, %v4979
    %4999 = vst.msk [vmem:[#allocation3 + $0x34] sm:$0xff] %vm638, %v4980
    %5000 = vst.msk [vmem:[#allocation3 + $0x3c] sm:$0xff] %vm638, %v4981
    %5001 = vst.msk [vmem:[#allocation3 + $0x44] sm:$0xff] %vm638, %v4982
    %5002 = vst.msk [vmem:[#allocation3 + $0x4c] sm:$0xff] %vm638, %v4983
    %5003 = vst.msk [vmem:[#allocation3 + $0x54] sm:$0xff] %vm638, %v4984
    %5004 = vst.msk [vmem:[#allocation3 + $0x5c] sm:$0xff] %vm638, %v4985
    %5005 = vst.msk [vmem:[#allocation3 + $0x64] sm:$0xff] %vm638, %v4986
    %5006 = vst.msk [vmem:[#allocation3 + $0x6c] sm:$0xff] %vm638, %v4987
    %5007 = vst.msk [vmem:[#allocation3 + $0x74] sm:$0xff] %vm638, %v4988
    %5008 = vst.msk [vmem:[#allocation3 + $0x7c] sm:$0xff] %vm638, %v4989
    %5009 = vst.msk [vmem:[#allocation3 + $0x84] sm:$0xff] %vm638, %v4990
    %5010 = vst.msk [vmem:[#allocation3 + $0x8c] sm:$0xff] %vm638, %v4991
    %5011 = vst.msk [vmem:[#allocation3 + $0x94] sm:$0xff] %vm638, %v4992
    %v5012 = vld [vmem:[#allocation3] sm:$0xff]
    %v5013 = vld [vmem:[#allocation3 + $0x8] sm:$0xff]
    %v5014 = vld [vmem:[#allocation3 + $0x10] sm:$0xff]
    %v5015 = vld [vmem:[#allocation3 + $0x18] sm:$0xff]
    %v5016 = vld [vmem:[#allocation3 + $0x20] sm:$0xff]
    %v5017 = vld [vmem:[#allocation3 + $0x28] sm:$0xff]
    %v5018 = vld [vmem:[#allocation3 + $0x30] sm:$0xff]
    %v5019 = vld [vmem:[#allocation3 + $0x38] sm:$0xff]
    %v5020 = vld [vmem:[#allocation3 + $0x40] sm:$0xff]
    %v5021 = vld [vmem:[#allocation3 + $0x48] sm:$0xff]
    %v5022 = vld [vmem:[#allocation3 + $0x50] sm:$0xff]
    %v5023 = vld [vmem:[#allocation3 + $0x58] sm:$0xff]
    %v5024 = vld [vmem:[#allocation3 + $0x60] sm:$0xff]
    %v5025 = vld [vmem:[#allocation3 + $0x68] sm:$0xff]
    %v5026 = vld [vmem:[#allocation3 + $0x70] sm:$0xff]
    %v5027 = vld [vmem:[#allocation3 + $0x78] sm:$0xff]
    %v5028 = vld [vmem:[#allocation3 + $0x80] sm:$0xff]
    %v5029 = vld [vmem:[#allocation3 + $0x88] sm:$0xff]
    %v5030 = vld [vmem:[#allocation3 + $0x90] sm:$0xff]
    %v5031 = vpack.c.bf16 %v5013, %v5012
    %v5032 = vpack.c.bf16 %v5015, %v5014
    %v5033 = vpack.c.bf16 %v5017, %v5016
    %v5034 = vpack.c.bf16 %v5019, %v5018
    %v5035 = vpack.c.bf16 %v5021, %v5020
    %v5036 = vpack.c.bf16 %v5023, %v5022
    %v5037 = vpack.c.bf16 %v5025, %v5024
    %v5038 = vpack.c.bf16 %v5027, %v5026
    %v5039 = vpack.c.bf16 %v5029, %v5028
    %v5040 = vpack.c.bf16 %v5030, %v5030
    %v5041 = vld [vmem:[#allocation13] sm:$0xf]
    %v5042 = vld [vmem:[#allocation13 + $0x4] sm:$0xf]
    %v5043 = vld [vmem:[#allocation13 + $0x8] sm:$0xf]
    %v5044 = vld [vmem:[#allocation13 + $0xc] sm:$0xf]
    %v5045 = vld [vmem:[#allocation13 + $0x10] sm:$0xf]
    %v5046 = vld [vmem:[#allocation13 + $0x14] sm:$0xf]
    %v5047 = vld [vmem:[#allocation13 + $0x18] sm:$0xf]
    %v5048 = vld [vmem:[#allocation13 + $0x1c] sm:$0xf]
    %v5049 = vld [vmem:[#allocation3 + $0x1] sm:$0xff]
    %v5050 = vld [vmem:[#allocation3 + $0x9] sm:$0xff]
    %v5051 = vld [vmem:[#allocation3 + $0x11] sm:$0xff]
    %v5052 = vld [vmem:[#allocation3 + $0x19] sm:$0xff]
    %v5053 = vld [vmem:[#allocation3 + $0x21] sm:$0xff]
    %v5054 = vld [vmem:[#allocation3 + $0x29] sm:$0xff]
    %v5055 = vld [vmem:[#allocation3 + $0x31] sm:$0xff]
    %v5056 = vld [vmem:[#allocation3 + $0x39] sm:$0xff]
    %v5057 = vld [vmem:[#allocation3 + $0x41] sm:$0xff]
    %v5058 = vld [vmem:[#allocation3 + $0x49] sm:$0xff]
    %v5059 = vld [vmem:[#allocation3 + $0x51] sm:$0xff]
    %v5060 = vld [vmem:[#allocation3 + $0x59] sm:$0xff]
    %v5061 = vld [vmem:[#allocation3 + $0x61] sm:$0xff]
    %v5062 = vld [vmem:[#allocation3 + $0x69] sm:$0xff]
    %v5063 = vld [vmem:[#allocation3 + $0x71] sm:$0xff]
    %v5064 = vld [vmem:[#allocation3 + $0x79] sm:$0xff]
    %v5065 = vld [vmem:[#allocation3 + $0x81] sm:$0xff]
    %v5066 = vld [vmem:[#allocation3 + $0x89] sm:$0xff]
    %v5067 = vld [vmem:[#allocation3 + $0x91] sm:$0xff]
    %v5068 = vpack.c.bf16 %v5050, %v5049
    %v5069 = vpack.c.bf16 %v5052, %v5051
    %v5070 = vpack.c.bf16 %v5054, %v5053
    %v5071 = vpack.c.bf16 %v5056, %v5055
    %v5072 = vpack.c.bf16 %v5058, %v5057
    %v5073 = vpack.c.bf16 %v5060, %v5059
    %v5074 = vpack.c.bf16 %v5062, %v5061
    %v5075 = vpack.c.bf16 %v5064, %v5063
    %v5076 = vpack.c.bf16 %v5066, %v5065
    %v5077 = vpack.c.bf16 %v5067, %v5067
    %v5078 = vld [vmem:[#allocation13 + $0x20] sm:$0xf]
    %v5079 = vld [vmem:[#allocation13 + $0x24] sm:$0xf]
    %v5080 = vld [vmem:[#allocation13 + $0x28] sm:$0xf]
    %v5081 = vld [vmem:[#allocation13 + $0x2c] sm:$0xf]
    %v5082 = vld [vmem:[#allocation13 + $0x30] sm:$0xf]
    %v5083 = vld [vmem:[#allocation13 + $0x34] sm:$0xf]
    %v5084 = vld [vmem:[#allocation13 + $0x38] sm:$0xf]
    %v5085 = vld [vmem:[#allocation13 + $0x3c] sm:$0xf]
    %v5094 = vunpack.c.l.b16 %v5078
    %v5095 = vunpack.c.l.b16 %v5079
    %v5096 = vunpack.c.l.b16 %v5080
    %v5097 = vunpack.c.l.b16 %v5081
    %v5098 = vunpack.c.l.b16 %v5082
    %v5099 = vunpack.c.l.b16 %v5083
    %v5100 = vunpack.c.l.b16 %v5084
    %v5101 = vunpack.c.l.b16 %v5085
    %v5102 = vpack.c.b16 %v5095, %v5094
    %v5103 = vpack.c.b16 %v5097, %v5096
    %v5104 = vpack.c.b16 %v5099, %v5098
    %v5105 = vpack.c.b16 %v5101, %v5100
    %v5111 = vsel %vm638, %v5068, 0
    %v5114 = vsel %vm638, %v5069, 0
    %v5117 = vsel %vm638, %v5070, 0
    %v5120 = vsel %vm638, %v5071, 0
    %v5123 = vsel %vm638, %v5072, 0
    %v5126 = vsel %vm638, %v5073, 0
    %v5129 = vsel %vm638, %v5074, 0
    %v5132 = vsel %vm638, %v5075, 0
    %v5135 = vsel %vm638, %v5076, 0
    %v5138 = vsel %vm638, %v5077, 0
    %5140 = vmatprep.subr.bf16.mxu0 0
    %5141 = vmatpush1.bf16.msra.mxu0 0
    %5142 = vmatprep.subr.bf16.mxu0 0
    %5143 = vmatpush1.bf16.msra.mxu0 0
    %5144 = vmatprep.subr.bf16.mxu0 0
    %5145 = vmatpush1.bf16.msra.mxu0 0
    %5146 = vmatprep.subr.bf16.mxu0 0
    %5147 = vmatpush1.bf16.msra.mxu0 0
    %5148 = vmatprep.subr.bf16.mxu0 0
    %5149 = vmatpush1.bf16.msra.mxu0 %v5105
    %5150 = vmatprep.subr.bf16.mxu0 0
    %5151 = vmatpush1.bf16.msra.mxu0 %v5104
    %5152 = vmatprep.subr.bf16.mxu0 0
    %5153 = vmatpush1.bf16.msra.mxu0 %v5103
    %5154 = vmatprep.subr.bf16.mxu0 0
    %5155 = vmatpush1.bf16.msra.mxu0 %v5102
    %5156 = vmatprep.subr.bf16.mxu0 0
    %5157 = vmatpush2.bf16.msra.mxu0 0
    %5158 = vmatprep.subr.bf16.mxu0 0
    %5159 = vmatpush2.bf16.msra.mxu0 0
    %5160 = vmatprep.subr.bf16.mxu0 0
    %5161 = vmatpush2.bf16.msra.mxu0 0
    %5162 = vmatprep.subr.bf16.mxu0 0
    %5163 = vmatpush2.bf16.msra.mxu0 0
    %5164 = vmatprep.subr.bf16.mxu0 0
    %5165 = vmatpush2.bf16.msra.mxu0 0
    %5166 = vmatprep.subr.bf16.mxu0 0
    %5167 = vmatpush2.bf16.msra.mxu0 0
    %5168 = vmatprep.subr.bf16.mxu0 0
    %5169 = vmatpush2.bf16.msra.mxu0 0
    %5170 = vmatprep.subr.bf16.mxu0 0
    %5171 = vmatpush2.bf16.msra.mxu0 0
    %5172 = vmatprep.mubr.bf16.mxu0 0
    %5173 = vmatmul.mubr.bf16.gmra.mxu0 %v5111
    %v5174 = vpop.f32.mrf.mxu0
    %v5175 = vadd.f32 0.0, %v5174
    %v5176 = vpop.f32.mrf.mxu0
    %v5177 = vpop.f32.mrf.mxu0
    %v5178 = vadd.f32 0.0, %v5177
    %v5179 = vpop.f32.mrf.mxu0
    %5180 = vmatprep.mubr.bf16.mxu0 0
    %5181 = vmatmul.mubr.bf16.gmra.mxu0 %v5114
    %v5182 = vpop.f32.mrf.mxu0
    %v5183 = vadd.f32 0.0, %v5182
    %v5184 = vpop.f32.mrf.mxu0
    %v5185 = vpop.f32.mrf.mxu0
    %v5186 = vadd.f32 0.0, %v5185
    %v5187 = vpop.f32.mrf.mxu0
    %5188 = vmatprep.mubr.bf16.mxu0 0
    %5189 = vmatmul.mubr.bf16.gmra.mxu0 %v5117
    %v5190 = vpop.f32.mrf.mxu0
    %v5191 = vadd.f32 0.0, %v5190
    %v5192 = vpop.f32.mrf.mxu0
    %v5193 = vpop.f32.mrf.mxu0
    %v5194 = vadd.f32 0.0, %v5193
    %v5195 = vpop.f32.mrf.mxu0
    %5196 = vmatprep.mubr.bf16.mxu0 0
    %5197 = vmatmul.mubr.bf16.gmra.mxu0 %v5120
    %v5198 = vpop.f32.mrf.mxu0
    %v5199 = vadd.f32 0.0, %v5198
    %v5200 = vpop.f32.mrf.mxu0
    %v5201 = vpop.f32.mrf.mxu0
    %v5202 = vadd.f32 0.0, %v5201
    %v5203 = vpop.f32.mrf.mxu0
    %5204 = vmatprep.mubr.bf16.mxu0 0
    %5205 = vmatmul.mubr.bf16.gmra.mxu0 %v5123
    %v5206 = vpop.f32.mrf.mxu0
    %v5207 = vadd.f32 0.0, %v5206
    %v5208 = vpop.f32.mrf.mxu0
    %v5209 = vpop.f32.mrf.mxu0
    %v5210 = vadd.f32 0.0, %v5209
    %v5211 = vpop.f32.mrf.mxu0
    %5212 = vmatprep.mubr.bf16.mxu0 0
    %5213 = vmatmul.mubr.bf16.gmra.mxu0 %v5126
    %v5214 = vpop.f32.mrf.mxu0
    %v5215 = vadd.f32 0.0, %v5214
    %v5216 = vpop.f32.mrf.mxu0
    %v5217 = vpop.f32.mrf.mxu0
    %v5218 = vadd.f32 0.0, %v5217
    %v5219 = vpop.f32.mrf.mxu0
    %5220 = vmatprep.mubr.bf16.mxu0 0
    %5221 = vmatmul.mubr.bf16.gmra.mxu0 %v5129
    %v5222 = vpop.f32.mrf.mxu0
    %v5223 = vadd.f32 0.0, %v5222
    %v5224 = vpop.f32.mrf.mxu0
    %v5225 = vpop.f32.mrf.mxu0
    %v5226 = vadd.f32 0.0, %v5225
    %v5227 = vpop.f32.mrf.mxu0
    %5228 = vmatprep.mubr.bf16.mxu0 0
    %5229 = vmatmul.mubr.bf16.gmra.mxu0 %v5132
    %v5230 = vpop.f32.mrf.mxu0
    %v5231 = vadd.f32 0.0, %v5230
    %v5232 = vpop.f32.mrf.mxu0
    %v5233 = vpop.f32.mrf.mxu0
    %v5234 = vadd.f32 0.0, %v5233
    %v5235 = vpop.f32.mrf.mxu0
    %5236 = vmatprep.mubr.bf16.mxu0 0
    %5237 = vmatmul.mubr.bf16.gmra.mxu0 %v5135
    %v5238 = vpop.f32.mrf.mxu0
    %v5239 = vadd.f32 0.0, %v5238
    %v5240 = vpop.f32.mrf.mxu0
    %v5241 = vpop.f32.mrf.mxu0
    %v5242 = vadd.f32 0.0, %v5241
    %v5243 = vpop.f32.mrf.mxu0
    %5244 = vmatprep.mubr.bf16.mxu0 0
    %5245 = vmatmul.mubr.bf16.gmra.mxu0 %v5138
    %v5246 = vpop.f32.mrf.mxu0
    %v5247 = vadd.f32 0.0, %v5246
    %v5248 = vpop.f32.mrf.mxu0
    %v5249 = vpop.f32.mrf.mxu0
    %v5250 = vpop.f32.mrf.mxu0
    %5251 = vdwg.mxu0
    %v5260 = vunpack.c.l.b16 %v5041
    %v5261 = vunpack.c.l.b16 %v5042
    %v5262 = vunpack.c.l.b16 %v5043
    %v5263 = vunpack.c.l.b16 %v5044
    %v5264 = vunpack.c.l.b16 %v5045
    %v5265 = vunpack.c.l.b16 %v5046
    %v5266 = vunpack.c.l.b16 %v5047
    %v5267 = vunpack.c.l.b16 %v5048
    %v5268 = vpack.c.b16 %v5261, %v5260
    %v5269 = vpack.c.b16 %v5263, %v5262
    %v5270 = vpack.c.b16 %v5265, %v5264
    %v5271 = vpack.c.b16 %v5267, %v5266
    %v5277 = vsel %vm638, %v5031, 0
    %v5280 = vsel %vm638, %v5032, 0
    %v5283 = vsel %vm638, %v5033, 0
    %v5286 = vsel %vm638, %v5034, 0
    %v5289 = vsel %vm638, %v5035, 0
    %v5292 = vsel %vm638, %v5036, 0
    %v5295 = vsel %vm638, %v5037, 0
    %v5298 = vsel %vm638, %v5038, 0
    %v5301 = vsel %vm638, %v5039, 0
    %v5304 = vsel %vm638, %v5040, 0
    %5306 = vmatprep.subr.bf16.mxu0 0
    %5307 = vmatpush1.bf16.msra.mxu0 0
    %5308 = vmatprep.subr.bf16.mxu0 0
    %5309 = vmatpush1.bf16.msra.mxu0 0
    %5310 = vmatprep.subr.bf16.mxu0 0
    %5311 = vmatpush1.bf16.msra.mxu0 0
    %5312 = vmatprep.subr.bf16.mxu0 0
    %5313 = vmatpush1.bf16.msra.mxu0 0
    %5314 = vmatprep.subr.bf16.mxu0 0
    %5315 = vmatpush1.bf16.msra.mxu0 %v5271
    %5316 = vmatprep.subr.bf16.mxu0 0
    %5317 = vmatpush1.bf16.msra.mxu0 %v5270
    %5318 = vmatprep.subr.bf16.mxu0 0
    %5319 = vmatpush1.bf16.msra.mxu0 %v5269
    %5320 = vmatprep.subr.bf16.mxu0 0
    %5321 = vmatpush1.bf16.msra.mxu0 %v5268
    %5322 = vmatprep.subr.bf16.mxu0 0
    %5323 = vmatpush2.bf16.msra.mxu0 0
    %5324 = vmatprep.subr.bf16.mxu0 0
    %5325 = vmatpush2.bf16.msra.mxu0 0
    %5326 = vmatprep.subr.bf16.mxu0 0
    %5327 = vmatpush2.bf16.msra.mxu0 0
    %5328 = vmatprep.subr.bf16.mxu0 0
    %5329 = vmatpush2.bf16.msra.mxu0 0
    %5330 = vmatprep.subr.bf16.mxu0 0
    %5331 = vmatpush2.bf16.msra.mxu0 0
    %5332 = vmatprep.subr.bf16.mxu0 0
    %5333 = vmatpush2.bf16.msra.mxu0 0
    %5334 = vmatprep.subr.bf16.mxu0 0
    %5335 = vmatpush2.bf16.msra.mxu0 0
    %5336 = vmatprep.subr.bf16.mxu0 0
    %5337 = vmatpush2.bf16.msra.mxu0 0
    %5338 = vmatprep.mubr.bf16.mxu0 0
    %5339 = vmatmul.mubr.bf16.gmra.mxu0 %v5277
    %v5340 = vpop.f32.mrf.mxu0
    %v5341 = vadd.f32 %v5175, %v5340
    %v5342 = vpop.f32.mrf.mxu0
    %v5343 = vpop.f32.mrf.mxu0
    %v5344 = vadd.f32 %v5178, %v5343
    %v5345 = vpop.f32.mrf.mxu0
    %5346 = vmatprep.mubr.bf16.mxu0 0
    %5347 = vmatmul.mubr.bf16.gmra.mxu0 %v5280
    %v5348 = vpop.f32.mrf.mxu0
    %v5349 = vadd.f32 %v5183, %v5348
    %v5350 = vpop.f32.mrf.mxu0
    %v5351 = vpop.f32.mrf.mxu0
    %v5352 = vadd.f32 %v5186, %v5351
    %v5353 = vpop.f32.mrf.mxu0
    %5354 = vmatprep.mubr.bf16.mxu0 0
    %5355 = vmatmul.mubr.bf16.gmra.mxu0 %v5283
    %v5356 = vpop.f32.mrf.mxu0
    %v5357 = vadd.f32 %v5191, %v5356
    %v5358 = vpop.f32.mrf.mxu0
    %v5359 = vpop.f32.mrf.mxu0
    %v5360 = vadd.f32 %v5194, %v5359
    %v5361 = vpop.f32.mrf.mxu0
    %5362 = vmatprep.mubr.bf16.mxu0 0
    %5363 = vmatmul.mubr.bf16.gmra.mxu0 %v5286
    %v5364 = vpop.f32.mrf.mxu0
    %v5365 = vadd.f32 %v5199, %v5364
    %v5366 = vpop.f32.mrf.mxu0
    %v5367 = vpop.f32.mrf.mxu0
    %v5368 = vadd.f32 %v5202, %v5367
    %v5369 = vpop.f32.mrf.mxu0
    %5370 = vmatprep.mubr.bf16.mxu0 0
    %5371 = vmatmul.mubr.bf16.gmra.mxu0 %v5289
    %v5372 = vpop.f32.mrf.mxu0
    %v5373 = vadd.f32 %v5207, %v5372
    %v5374 = vpop.f32.mrf.mxu0
    %v5375 = vpop.f32.mrf.mxu0
    %v5376 = vadd.f32 %v5210, %v5375
    %v5377 = vpop.f32.mrf.mxu0
    %5378 = vmatprep.mubr.bf16.mxu0 0
    %5379 = vmatmul.mubr.bf16.gmra.mxu0 %v5292
    %v5380 = vpop.f32.mrf.mxu0
    %v5381 = vadd.f32 %v5215, %v5380
    %v5382 = vpop.f32.mrf.mxu0
    %v5383 = vpop.f32.mrf.mxu0
    %v5384 = vadd.f32 %v5218, %v5383
    %v5385 = vpop.f32.mrf.mxu0
    %5386 = vmatprep.mubr.bf16.mxu0 0
    %5387 = vmatmul.mubr.bf16.gmra.mxu0 %v5295
    %v5388 = vpop.f32.mrf.mxu0
    %v5389 = vadd.f32 %v5223, %v5388
    %v5390 = vpop.f32.mrf.mxu0
    %v5391 = vpop.f32.mrf.mxu0
    %v5392 = vadd.f32 %v5226, %v5391
    %v5393 = vpop.f32.mrf.mxu0
    %5394 = vmatprep.mubr.bf16.mxu0 0
    %5395 = vmatmul.mubr.bf16.gmra.mxu0 %v5298
    %v5396 = vpop.f32.mrf.mxu0
    %v5397 = vadd.f32 %v5231, %v5396
    %v5398 = vpop.f32.mrf.mxu0
    %v5399 = vpop.f32.mrf.mxu0
    %v5400 = vadd.f32 %v5234, %v5399
    %v5401 = vpop.f32.mrf.mxu0
    %5402 = vmatprep.mubr.bf16.mxu0 0
    %5403 = vmatmul.mubr.bf16.gmra.mxu0 %v5301
    %v5404 = vpop.f32.mrf.mxu0
    %v5405 = vadd.f32 %v5239, %v5404
    %v5406 = vpop.f32.mrf.mxu0
    %v5407 = vpop.f32.mrf.mxu0
    %v5408 = vadd.f32 %v5242, %v5407
    %v5409 = vpop.f32.mrf.mxu0
    %5410 = vmatprep.mubr.bf16.mxu0 0
    %5411 = vmatmul.mubr.bf16.gmra.mxu0 %v5304
    %v5412 = vpop.f32.mrf.mxu0
    %v5413 = vadd.f32 %v5247, %v5412
    %v5414 = vpop.f32.mrf.mxu0
    %v5415 = vpop.f32.mrf.mxu0
    %v5416 = vpop.f32.mrf.mxu0
    %5417 = vdwg.mxu0
    %v5418 = vld [vmem:[#allocation3 + $0x2] sm:$0xff]
    %v5419 = vld [vmem:[#allocation3 + $0xa] sm:$0xff]
    %v5420 = vld [vmem:[#allocation3 + $0x12] sm:$0xff]
    %v5421 = vld [vmem:[#allocation3 + $0x1a] sm:$0xff]
    %v5422 = vld [vmem:[#allocation3 + $0x22] sm:$0xff]
    %v5423 = vld [vmem:[#allocation3 + $0x2a] sm:$0xff]
    %v5424 = vld [vmem:[#allocation3 + $0x32] sm:$0xff]
    %v5425 = vld [vmem:[#allocation3 + $0x3a] sm:$0xff]
    %v5426 = vld [vmem:[#allocation3 + $0x42] sm:$0xff]
    %v5427 = vld [vmem:[#allocation3 + $0x4a] sm:$0xff]
    %v5428 = vld [vmem:[#allocation3 + $0x52] sm:$0xff]
    %v5429 = vld [vmem:[#allocation3 + $0x5a] sm:$0xff]
    %v5430 = vld [vmem:[#allocation3 + $0x62] sm:$0xff]
    %v5431 = vld [vmem:[#allocation3 + $0x6a] sm:$0xff]
    %v5432 = vld [vmem:[#allocation3 + $0x72] sm:$0xff]
    %v5433 = vld [vmem:[#allocation3 + $0x7a] sm:$0xff]
    %v5434 = vld [vmem:[#allocation3 + $0x82] sm:$0xff]
    %v5435 = vld [vmem:[#allocation3 + $0x8a] sm:$0xff]
    %v5436 = vld [vmem:[#allocation3 + $0x92] sm:$0xff]
    %v5437 = vpack.c.bf16 %v5419, %v5418
    %v5438 = vpack.c.bf16 %v5421, %v5420
    %v5439 = vpack.c.bf16 %v5423, %v5422
    %v5440 = vpack.c.bf16 %v5425, %v5424
    %v5441 = vpack.c.bf16 %v5427, %v5426
    %v5442 = vpack.c.bf16 %v5429, %v5428
    %v5443 = vpack.c.bf16 %v5431, %v5430
    %v5444 = vpack.c.bf16 %v5433, %v5432
    %v5445 = vpack.c.bf16 %v5435, %v5434
    %v5446 = vpack.c.bf16 %v5436, %v5436
    %v5447 = vld [vmem:[#allocation13 + $0x40] sm:$0xf]
    %v5448 = vld [vmem:[#allocation13 + $0x44] sm:$0xf]
    %v5449 = vld [vmem:[#allocation13 + $0x48] sm:$0xf]
    %v5450 = vld [vmem:[#allocation13 + $0x4c] sm:$0xf]
    %v5451 = vld [vmem:[#allocation13 + $0x50] sm:$0xf]
    %v5452 = vld [vmem:[#allocation13 + $0x54] sm:$0xf]
    %v5453 = vld [vmem:[#allocation13 + $0x58] sm:$0xf]
    %v5454 = vld [vmem:[#allocation13 + $0x5c] sm:$0xf]
    %v5463 = vunpack.c.l.b16 %v5447
    %v5464 = vunpack.c.l.b16 %v5448
    %v5465 = vunpack.c.l.b16 %v5449
    %v5466 = vunpack.c.l.b16 %v5450
    %v5467 = vunpack.c.l.b16 %v5451
    %v5468 = vunpack.c.l.b16 %v5452
    %v5469 = vunpack.c.l.b16 %v5453
    %v5470 = vunpack.c.l.b16 %v5454
    %v5471 = vpack.c.b16 %v5464, %v5463
    %v5472 = vpack.c.b16 %v5466, %v5465
    %v5473 = vpack.c.b16 %v5468, %v5467
    %v5474 = vpack.c.b16 %v5470, %v5469
    %v5480 = vsel %vm638, %v5437, 0
    %v5483 = vsel %vm638, %v5438, 0
    %v5486 = vsel %vm638, %v5439, 0
    %v5489 = vsel %vm638, %v5440, 0
    %v5492 = vsel %vm638, %v5441, 0
    %v5495 = vsel %vm638, %v5442, 0
    %v5498 = vsel %vm638, %v5443, 0
    %v5501 = vsel %vm638, %v5444, 0
    %v5504 = vsel %vm638, %v5445, 0
    %v5507 = vsel %vm638, %v5446, 0
    %5509 = vmatprep.subr.bf16.mxu0 0
    %5510 = vmatpush1.bf16.msra.mxu0 0
    %5511 = vmatprep.subr.bf16.mxu0 0
    %5512 = vmatpush1.bf16.msra.mxu0 0
    %5513 = vmatprep.subr.bf16.mxu0 0
    %5514 = vmatpush1.bf16.msra.mxu0 0
    %5515 = vmatprep.subr.bf16.mxu0 0
    %5516 = vmatpush1.bf16.msra.mxu0 0
    %5517 = vmatprep.subr.bf16.mxu0 0
    %5518 = vmatpush1.bf16.msra.mxu0 %v5474
    %5519 = vmatprep.subr.bf16.mxu0 0
    %5520 = vmatpush1.bf16.msra.mxu0 %v5473
    %5521 = vmatprep.subr.bf16.mxu0 0
    %5522 = vmatpush1.bf16.msra.mxu0 %v5472
    %5523 = vmatprep.subr.bf16.mxu0 0
    %5524 = vmatpush1.bf16.msra.mxu0 %v5471
    %5525 = vmatprep.subr.bf16.mxu0 0
    %5526 = vmatpush2.bf16.msra.mxu0 0
    %5527 = vmatprep.subr.bf16.mxu0 0
    %5528 = vmatpush2.bf16.msra.mxu0 0
    %5529 = vmatprep.subr.bf16.mxu0 0
    %5530 = vmatpush2.bf16.msra.mxu0 0
    %5531 = vmatprep.subr.bf16.mxu0 0
    %5532 = vmatpush2.bf16.msra.mxu0 0
    %5533 = vmatprep.subr.bf16.mxu0 0
    %5534 = vmatpush2.bf16.msra.mxu0 0
    %5535 = vmatprep.subr.bf16.mxu0 0
    %5536 = vmatpush2.bf16.msra.mxu0 0
    %5537 = vmatprep.subr.bf16.mxu0 0
    %5538 = vmatpush2.bf16.msra.mxu0 0
    %5539 = vmatprep.subr.bf16.mxu0 0
    %5540 = vmatpush2.bf16.msra.mxu0 0
    %5541 = vmatprep.mubr.bf16.mxu0 0
    %5542 = vmatmul.mubr.bf16.gmra.mxu0 %v5480
    %v5543 = vpop.f32.mrf.mxu0
    %v5544 = vadd.f32 0.0, %v5543
    %v5545 = vpop.f32.mrf.mxu0
    %v5546 = vpop.f32.mrf.mxu0
    %v5547 = vadd.f32 0.0, %v5546
    %v5548 = vpop.f32.mrf.mxu0
    %5549 = vmatprep.mubr.bf16.mxu0 0
    %5550 = vmatmul.mubr.bf16.gmra.mxu0 %v5483
    %v5551 = vpop.f32.mrf.mxu0
    %v5552 = vadd.f32 0.0, %v5551
    %v5553 = vpop.f32.mrf.mxu0
    %v5554 = vpop.f32.mrf.mxu0
    %v5555 = vadd.f32 0.0, %v5554
    %v5556 = vpop.f32.mrf.mxu0
    %5557 = vmatprep.mubr.bf16.mxu0 0
    %5558 = vmatmul.mubr.bf16.gmra.mxu0 %v5486
    %v5559 = vpop.f32.mrf.mxu0
    %v5560 = vadd.f32 0.0, %v5559
    %v5561 = vpop.f32.mrf.mxu0
    %v5562 = vpop.f32.mrf.mxu0
    %v5563 = vadd.f32 0.0, %v5562
    %v5564 = vpop.f32.mrf.mxu0
    %5565 = vmatprep.mubr.bf16.mxu0 0
    %5566 = vmatmul.mubr.bf16.gmra.mxu0 %v5489
    %v5567 = vpop.f32.mrf.mxu0
    %v5568 = vadd.f32 0.0, %v5567
    %v5569 = vpop.f32.mrf.mxu0
    %v5570 = vpop.f32.mrf.mxu0
    %v5571 = vadd.f32 0.0, %v5570
    %v5572 = vpop.f32.mrf.mxu0
    %5573 = vmatprep.mubr.bf16.mxu0 0
    %5574 = vmatmul.mubr.bf16.gmra.mxu0 %v5492
    %v5575 = vpop.f32.mrf.mxu0
    %v5576 = vadd.f32 0.0, %v5575
    %v5577 = vpop.f32.mrf.mxu0
    %v5578 = vpop.f32.mrf.mxu0
    %v5579 = vadd.f32 0.0, %v5578
    %v5580 = vpop.f32.mrf.mxu0
    %5581 = vmatprep.mubr.bf16.mxu0 0
    %5582 = vmatmul.mubr.bf16.gmra.mxu0 %v5495
    %v5583 = vpop.f32.mrf.mxu0
    %v5584 = vadd.f32 0.0, %v5583
    %v5585 = vpop.f32.mrf.mxu0
    %v5586 = vpop.f32.mrf.mxu0
    %v5587 = vadd.f32 0.0, %v5586
    %v5588 = vpop.f32.mrf.mxu0
    %5589 = vmatprep.mubr.bf16.mxu0 0
    %5590 = vmatmul.mubr.bf16.gmra.mxu0 %v5498
    %v5591 = vpop.f32.mrf.mxu0
    %v5592 = vadd.f32 0.0, %v5591
    %v5593 = vpop.f32.mrf.mxu0
    %v5594 = vpop.f32.mrf.mxu0
    %v5595 = vadd.f32 0.0, %v5594
    %v5596 = vpop.f32.mrf.mxu0
    %5597 = vmatprep.mubr.bf16.mxu0 0
    %5598 = vmatmul.mubr.bf16.gmra.mxu0 %v5501
    %v5599 = vpop.f32.mrf.mxu0
    %v5600 = vadd.f32 0.0, %v5599
    %v5601 = vpop.f32.mrf.mxu0
    %v5602 = vpop.f32.mrf.mxu0
    %v5603 = vadd.f32 0.0, %v5602
    %v5604 = vpop.f32.mrf.mxu0
    %5605 = vmatprep.mubr.bf16.mxu0 0
    %5606 = vmatmul.mubr.bf16.gmra.mxu0 %v5504
    %v5607 = vpop.f32.mrf.mxu0
    %v5608 = vadd.f32 0.0, %v5607
    %v5609 = vpop.f32.mrf.mxu0
    %v5610 = vpop.f32.mrf.mxu0
    %v5611 = vadd.f32 0.0, %v5610
    %v5612 = vpop.f32.mrf.mxu0
    %5613 = vmatprep.mubr.bf16.mxu0 0
    %5614 = vmatmul.mubr.bf16.gmra.mxu0 %v5507
    %v5615 = vpop.f32.mrf.mxu0
    %v5616 = vadd.f32 0.0, %v5615
    %v5617 = vpop.f32.mrf.mxu0
    %v5618 = vpop.f32.mrf.mxu0
    %v5619 = vpop.f32.mrf.mxu0
    %5620 = vdwg.mxu0
    %v5621 = vadd.f32 %v5341, %v5544
    %v5622 = vadd.f32 %v5344, %v5547
    %v5623 = vadd.f32 %v5349, %v5552
    %v5624 = vadd.f32 %v5352, %v5555
    %v5625 = vadd.f32 %v5357, %v5560
    %v5626 = vadd.f32 %v5360, %v5563
    %v5627 = vadd.f32 %v5365, %v5568
    %v5628 = vadd.f32 %v5368, %v5571
    %v5629 = vadd.f32 %v5373, %v5576
    %v5630 = vadd.f32 %v5376, %v5579
    %v5631 = vadd.f32 %v5381, %v5584
    %v5632 = vadd.f32 %v5384, %v5587
    %v5633 = vadd.f32 %v5389, %v5592
    %v5634 = vadd.f32 %v5392, %v5595
    %v5635 = vadd.f32 %v5397, %v5600
    %v5636 = vadd.f32 %v5400, %v5603
    %v5637 = vadd.f32 %v5405, %v5608
    %v5638 = vadd.f32 %v5408, %v5611
    %v5639 = vadd.f32 %v5413, %v5616
    %v5640 = vld [vmem:[#allocation3 + $0x3] sm:$0xff]
    %v5641 = vld [vmem:[#allocation3 + $0xb] sm:$0xff]
    %v5642 = vld [vmem:[#allocation3 + $0x13] sm:$0xff]
    %v5643 = vld [vmem:[#allocation3 + $0x1b] sm:$0xff]
    %v5644 = vld [vmem:[#allocation3 + $0x23] sm:$0xff]
    %v5645 = vld [vmem:[#allocation3 + $0x2b] sm:$0xff]
    %v5646 = vld [vmem:[#allocation3 + $0x33] sm:$0xff]
    %v5647 = vld [vmem:[#allocation3 + $0x3b] sm:$0xff]
    %v5648 = vld [vmem:[#allocation3 + $0x43] sm:$0xff]
    %v5649 = vld [vmem:[#allocation3 + $0x4b] sm:$0xff]
    %v5650 = vld [vmem:[#allocation3 + $0x53] sm:$0xff]
    %v5651 = vld [vmem:[#allocation3 + $0x5b] sm:$0xff]
    %v5652 = vld [vmem:[#allocation3 + $0x63] sm:$0xff]
    %v5653 = vld [vmem:[#allocation3 + $0x6b] sm:$0xff]
    %v5654 = vld [vmem:[#allocation3 + $0x73] sm:$0xff]
    %v5655 = vld [vmem:[#allocation3 + $0x7b] sm:$0xff]
    %v5656 = vld [vmem:[#allocation3 + $0x83] sm:$0xff]
    %v5657 = vld [vmem:[#allocation3 + $0x8b] sm:$0xff]
    %v5658 = vld [vmem:[#allocation3 + $0x93] sm:$0xff]
    %v5659 = vpack.c.bf16 %v5641, %v5640
    %v5660 = vpack.c.bf16 %v5643, %v5642
    %v5661 = vpack.c.bf16 %v5645, %v5644
    %v5662 = vpack.c.bf16 %v5647, %v5646
    %v5663 = vpack.c.bf16 %v5649, %v5648
    %v5664 = vpack.c.bf16 %v5651, %v5650
    %v5665 = vpack.c.bf16 %v5653, %v5652
    %v5666 = vpack.c.bf16 %v5655, %v5654
    %v5667 = vpack.c.bf16 %v5657, %v5656
    %v5668 = vpack.c.bf16 %v5658, %v5658
    %v5669 = vld [vmem:[#allocation13 + $0x60] sm:$0xf]
    %v5670 = vld [vmem:[#allocation13 + $0x64] sm:$0xf]
    %v5671 = vld [vmem:[#allocation13 + $0x68] sm:$0xf]
    %v5672 = vld [vmem:[#allocation13 + $0x6c] sm:$0xf]
    %v5673 = vld [vmem:[#allocation13 + $0x70] sm:$0xf]
    %v5674 = vld [vmem:[#allocation13 + $0x74] sm:$0xf]
    %v5675 = vld [vmem:[#allocation13 + $0x78] sm:$0xf]
    %v5676 = vld [vmem:[#allocation13 + $0x7c] sm:$0xf]
    %v5685 = vunpack.c.l.b16 %v5669
    %v5686 = vunpack.c.l.b16 %v5670
    %v5687 = vunpack.c.l.b16 %v5671
    %v5688 = vunpack.c.l.b16 %v5672
    %v5689 = vunpack.c.l.b16 %v5673
    %v5690 = vunpack.c.l.b16 %v5674
    %v5691 = vunpack.c.l.b16 %v5675
    %v5692 = vunpack.c.l.b16 %v5676
    %v5693 = vpack.c.b16 %v5686, %v5685
    %v5694 = vpack.c.b16 %v5688, %v5687
    %v5695 = vpack.c.b16 %v5690, %v5689
    %v5696 = vpack.c.b16 %v5692, %v5691
    %v5702 = vsel %vm638, %v5659, 0
    %v5705 = vsel %vm638, %v5660, 0
    %v5708 = vsel %vm638, %v5661, 0
    %v5711 = vsel %vm638, %v5662, 0
    %v5714 = vsel %vm638, %v5663, 0
    %v5717 = vsel %vm638, %v5664, 0
    %v5720 = vsel %vm638, %v5665, 0
    %v5723 = vsel %vm638, %v5666, 0
    %v5726 = vsel %vm638, %v5667, 0
    %v5729 = vsel %vm638, %v5668, 0
    %5731 = vmatprep.subr.bf16.mxu0 0
    %5732 = vmatpush1.bf16.msra.mxu0 0
    %5733 = vmatprep.subr.bf16.mxu0 0
    %5734 = vmatpush1.bf16.msra.mxu0 0
    %5735 = vmatprep.subr.bf16.mxu0 0
    %5736 = vmatpush1.bf16.msra.mxu0 0
    %5737 = vmatprep.subr.bf16.mxu0 0
    %5738 = vmatpush1.bf16.msra.mxu0 0
    %5739 = vmatprep.subr.bf16.mxu0 0
    %5740 = vmatpush1.bf16.msra.mxu0 %v5696
    %5741 = vmatprep.subr.bf16.mxu0 0
    %5742 = vmatpush1.bf16.msra.mxu0 %v5695
    %5743 = vmatprep.subr.bf16.mxu0 0
    %5744 = vmatpush1.bf16.msra.mxu0 %v5694
    %5745 = vmatprep.subr.bf16.mxu0 0
    %5746 = vmatpush1.bf16.msra.mxu0 %v5693
    %5747 = vmatprep.subr.bf16.mxu0 0
    %5748 = vmatpush2.bf16.msra.mxu0 0
    %5749 = vmatprep.subr.bf16.mxu0 0
    %5750 = vmatpush2.bf16.msra.mxu0 0
    %5751 = vmatprep.subr.bf16.mxu0 0
    %5752 = vmatpush2.bf16.msra.mxu0 0
    %5753 = vmatprep.subr.bf16.mxu0 0
    %5754 = vmatpush2.bf16.msra.mxu0 0
    %5755 = vmatprep.subr.bf16.mxu0 0
    %5756 = vmatpush2.bf16.msra.mxu0 0
    %5757 = vmatprep.subr.bf16.mxu0 0
    %5758 = vmatpush2.bf16.msra.mxu0 0
    %5759 = vmatprep.subr.bf16.mxu0 0
    %5760 = vmatpush2.bf16.msra.mxu0 0
    %5761 = vmatprep.subr.bf16.mxu0 0
    %5762 = vmatpush2.bf16.msra.mxu0 0
    %5763 = vmatprep.mubr.bf16.mxu0 0
    %5764 = vmatmul.mubr.bf16.gmra.mxu0 %v5702
    %v5765 = vpop.f32.mrf.mxu0
    %v5766 = vadd.f32 0.0, %v5765
    %v5767 = vpop.f32.mrf.mxu0
    %v5768 = vpop.f32.mrf.mxu0
    %v5769 = vadd.f32 0.0, %v5768
    %v5770 = vpop.f32.mrf.mxu0
    %5771 = vmatprep.mubr.bf16.mxu0 0
    %5772 = vmatmul.mubr.bf16.gmra.mxu0 %v5705
    %v5773 = vpop.f32.mrf.mxu0
    %v5774 = vadd.f32 0.0, %v5773
    %v5775 = vpop.f32.mrf.mxu0
    %v5776 = vpop.f32.mrf.mxu0
    %v5777 = vadd.f32 0.0, %v5776
    %v5778 = vpop.f32.mrf.mxu0
    %5779 = vmatprep.mubr.bf16.mxu0 0
    %5780 = vmatmul.mubr.bf16.gmra.mxu0 %v5708
    %v5781 = vpop.f32.mrf.mxu0
    %v5782 = vadd.f32 0.0, %v5781
    %v5783 = vpop.f32.mrf.mxu0
    %v5784 = vpop.f32.mrf.mxu0
    %v5785 = vadd.f32 0.0, %v5784
    %v5786 = vpop.f32.mrf.mxu0
    %5787 = vmatprep.mubr.bf16.mxu0 0
    %5788 = vmatmul.mubr.bf16.gmra.mxu0 %v5711
    %v5789 = vpop.f32.mrf.mxu0
    %v5790 = vadd.f32 0.0, %v5789
    %v5791 = vpop.f32.mrf.mxu0
    %v5792 = vpop.f32.mrf.mxu0
    %v5793 = vadd.f32 0.0, %v5792
    %v5794 = vpop.f32.mrf.mxu0
    %5795 = vmatprep.mubr.bf16.mxu0 0
    %5796 = vmatmul.mubr.bf16.gmra.mxu0 %v5714
    %v5797 = vpop.f32.mrf.mxu0
    %v5798 = vadd.f32 0.0, %v5797
    %v5799 = vpop.f32.mrf.mxu0
    %v5800 = vpop.f32.mrf.mxu0
    %v5801 = vadd.f32 0.0, %v5800
    %v5802 = vpop.f32.mrf.mxu0
    %5803 = vmatprep.mubr.bf16.mxu0 0
    %5804 = vmatmul.mubr.bf16.gmra.mxu0 %v5717
    %v5805 = vpop.f32.mrf.mxu0
    %v5806 = vadd.f32 0.0, %v5805
    %v5807 = vpop.f32.mrf.mxu0
    %v5808 = vpop.f32.mrf.mxu0
    %v5809 = vadd.f32 0.0, %v5808
    %v5810 = vpop.f32.mrf.mxu0
    %5811 = vmatprep.mubr.bf16.mxu0 0
    %5812 = vmatmul.mubr.bf16.gmra.mxu0 %v5720
    %v5813 = vpop.f32.mrf.mxu0
    %v5814 = vadd.f32 0.0, %v5813
    %v5815 = vpop.f32.mrf.mxu0
    %v5816 = vpop.f32.mrf.mxu0
    %v5817 = vadd.f32 0.0, %v5816
    %v5818 = vpop.f32.mrf.mxu0
    %5819 = vmatprep.mubr.bf16.mxu0 0
    %5820 = vmatmul.mubr.bf16.gmra.mxu0 %v5723
    %v5821 = vpop.f32.mrf.mxu0
    %v5822 = vadd.f32 0.0, %v5821
    %v5823 = vpop.f32.mrf.mxu0
    %v5824 = vpop.f32.mrf.mxu0
    %v5825 = vadd.f32 0.0, %v5824
    %v5826 = vpop.f32.mrf.mxu0
    %5827 = vmatprep.mubr.bf16.mxu0 0
    %5828 = vmatmul.mubr.bf16.gmra.mxu0 %v5726
    %v5829 = vpop.f32.mrf.mxu0
    %v5830 = vadd.f32 0.0, %v5829
    %v5831 = vpop.f32.mrf.mxu0
    %v5832 = vpop.f32.mrf.mxu0
    %v5833 = vadd.f32 0.0, %v5832
    %v5834 = vpop.f32.mrf.mxu0
    %5835 = vmatprep.mubr.bf16.mxu0 0
    %5836 = vmatmul.mubr.bf16.gmra.mxu0 %v5729
    %v5837 = vpop.f32.mrf.mxu0
    %v5838 = vadd.f32 0.0, %v5837
    %v5839 = vpop.f32.mrf.mxu0
    %v5840 = vpop.f32.mrf.mxu0
    %v5841 = vpop.f32.mrf.mxu0
    %5842 = vdwg.mxu0
    %v5843 = vadd.f32 %v5621, %v5766
    %v5844 = vadd.f32 %v5622, %v5769
    %v5845 = vadd.f32 %v5623, %v5774
    %v5846 = vadd.f32 %v5624, %v5777
    %v5847 = vadd.f32 %v5625, %v5782
    %v5848 = vadd.f32 %v5626, %v5785
    %v5849 = vadd.f32 %v5627, %v5790
    %v5850 = vadd.f32 %v5628, %v5793
    %v5851 = vadd.f32 %v5629, %v5798
    %v5852 = vadd.f32 %v5630, %v5801
    %v5853 = vadd.f32 %v5631, %v5806
    %v5854 = vadd.f32 %v5632, %v5809
    %v5855 = vadd.f32 %v5633, %v5814
    %v5856 = vadd.f32 %v5634, %v5817
    %v5857 = vadd.f32 %v5635, %v5822
    %v5858 = vadd.f32 %v5636, %v5825
    %v5859 = vadd.f32 %v5637, %v5830
    %v5860 = vadd.f32 %v5638, %v5833
    %v5861 = vadd.f32 %v5639, %v5838
    %v5862 = vld [vmem:[#allocation3 + $0x4] sm:$0xff]
    %v5863 = vld [vmem:[#allocation3 + $0xc] sm:$0xff]
    %v5864 = vld [vmem:[#allocation3 + $0x14] sm:$0xff]
    %v5865 = vld [vmem:[#allocation3 + $0x1c] sm:$0xff]
    %v5866 = vld [vmem:[#allocation3 + $0x24] sm:$0xff]
    %v5867 = vld [vmem:[#allocation3 + $0x2c] sm:$0xff]
    %v5868 = vld [vmem:[#allocation3 + $0x34] sm:$0xff]
    %v5869 = vld [vmem:[#allocation3 + $0x3c] sm:$0xff]
    %v5870 = vld [vmem:[#allocation3 + $0x44] sm:$0xff]
    %v5871 = vld [vmem:[#allocation3 + $0x4c] sm:$0xff]
    %v5872 = vld [vmem:[#allocation3 + $0x54] sm:$0xff]
    %v5873 = vld [vmem:[#allocation3 + $0x5c] sm:$0xff]
    %v5874 = vld [vmem:[#allocation3 + $0x64] sm:$0xff]
    %v5875 = vld [vmem:[#allocation3 + $0x6c] sm:$0xff]
    %v5876 = vld [vmem:[#allocation3 + $0x74] sm:$0xff]
    %v5877 = vld [vmem:[#allocation3 + $0x7c] sm:$0xff]
    %v5878 = vld [vmem:[#allocation3 + $0x84] sm:$0xff]
    %v5879 = vld [vmem:[#allocation3 + $0x8c] sm:$0xff]
    %v5880 = vld [vmem:[#allocation3 + $0x94] sm:$0xff]
    %v5881 = vpack.c.bf16 %v5863, %v5862
    %v5882 = vpack.c.bf16 %v5865, %v5864
    %v5883 = vpack.c.bf16 %v5867, %v5866
    %v5884 = vpack.c.bf16 %v5869, %v5868
    %v5885 = vpack.c.bf16 %v5871, %v5870
    %v5886 = vpack.c.bf16 %v5873, %v5872
    %v5887 = vpack.c.bf16 %v5875, %v5874
    %v5888 = vpack.c.bf16 %v5877, %v5876
    %v5889 = vpack.c.bf16 %v5879, %v5878
    %v5890 = vpack.c.bf16 %v5880, %v5880
    %v5891 = vld [vmem:[#allocation13 + $0x80] sm:$0xf]
    %v5892 = vld [vmem:[#allocation13 + $0x84] sm:$0xf]
    %v5893 = vld [vmem:[#allocation13 + $0x88] sm:$0xf]
    %v5894 = vld [vmem:[#allocation13 + $0x8c] sm:$0xf]
    %v5895 = vld [vmem:[#allocation13 + $0x90] sm:$0xf]
    %v5896 = vld [vmem:[#allocation13 + $0x94] sm:$0xf]
    %v5897 = vld [vmem:[#allocation13 + $0x98] sm:$0xf]
    %v5898 = vld [vmem:[#allocation13 + $0x9c] sm:$0xf]
    %v5907 = vunpack.c.l.b16 %v5891
    %v5908 = vunpack.c.l.b16 %v5892
    %v5909 = vunpack.c.l.b16 %v5893
    %v5910 = vunpack.c.l.b16 %v5894
    %v5911 = vunpack.c.l.b16 %v5895
    %v5912 = vunpack.c.l.b16 %v5896
    %v5913 = vunpack.c.l.b16 %v5897
    %v5914 = vunpack.c.l.b16 %v5898
    %v5915 = vpack.c.b16 %v5908, %v5907
    %v5916 = vpack.c.b16 %v5910, %v5909
    %v5917 = vpack.c.b16 %v5912, %v5911
    %v5918 = vpack.c.b16 %v5914, %v5913
    %v5924 = vsel %vm638, %v5881, 0
    %v5927 = vsel %vm638, %v5882, 0
    %v5930 = vsel %vm638, %v5883, 0
    %v5933 = vsel %vm638, %v5884, 0
    %v5936 = vsel %vm638, %v5885, 0
    %v5939 = vsel %vm638, %v5886, 0
    %v5942 = vsel %vm638, %v5887, 0
    %v5945 = vsel %vm638, %v5888, 0
    %v5948 = vsel %vm638, %v5889, 0
    %v5951 = vsel %vm638, %v5890, 0
    %5953 = vmatprep.subr.bf16.mxu0 0
    %5954 = vmatpush1.bf16.msra.mxu0 0
    %5955 = vmatprep.subr.bf16.mxu0 0
    %5956 = vmatpush1.bf16.msra.mxu0 0
    %5957 = vmatprep.subr.bf16.mxu0 0
    %5958 = vmatpush1.bf16.msra.mxu0 0
    %5959 = vmatprep.subr.bf16.mxu0 0
    %5960 = vmatpush1.bf16.msra.mxu0 0
    %5961 = vmatprep.subr.bf16.mxu0 0
    %5962 = vmatpush1.bf16.msra.mxu0 %v5918
    %5963 = vmatprep.subr.bf16.mxu0 0
    %5964 = vmatpush1.bf16.msra.mxu0 %v5917
    %5965 = vmatprep.subr.bf16.mxu0 0
    %5966 = vmatpush1.bf16.msra.mxu0 %v5916
    %5967 = vmatprep.subr.bf16.mxu0 0
    %5968 = vmatpush1.bf16.msra.mxu0 %v5915
    %5969 = vmatprep.subr.bf16.mxu0 0
    %5970 = vmatpush2.bf16.msra.mxu0 0
    %5971 = vmatprep.subr.bf16.mxu0 0
    %5972 = vmatpush2.bf16.msra.mxu0 0
    %5973 = vmatprep.subr.bf16.mxu0 0
    %5974 = vmatpush2.bf16.msra.mxu0 0
    %5975 = vmatprep.subr.bf16.mxu0 0
    %5976 = vmatpush2.bf16.msra.mxu0 0
    %5977 = vmatprep.subr.bf16.mxu0 0
    %5978 = vmatpush2.bf16.msra.mxu0 0
    %5979 = vmatprep.subr.bf16.mxu0 0
    %5980 = vmatpush2.bf16.msra.mxu0 0
    %5981 = vmatprep.subr.bf16.mxu0 0
    %5982 = vmatpush2.bf16.msra.mxu0 0
    %5983 = vmatprep.subr.bf16.mxu0 0
    %5984 = vmatpush2.bf16.msra.mxu0 0
    %5985 = vmatprep.mubr.bf16.mxu0 0
    %5986 = vmatmul.mubr.bf16.gmra.mxu0 %v5924
    %v5987 = vpop.f32.mrf.mxu0
    %v5988 = vadd.f32 0.0, %v5987
    %v5989 = vpop.f32.mrf.mxu0
    %v5990 = vpop.f32.mrf.mxu0
    %v5991 = vadd.f32 0.0, %v5990
    %v5992 = vpop.f32.mrf.mxu0
    %5993 = vmatprep.mubr.bf16.mxu0 0
    %5994 = vmatmul.mubr.bf16.gmra.mxu0 %v5927
    %v5995 = vpop.f32.mrf.mxu0
    %v5996 = vadd.f32 0.0, %v5995
    %v5997 = vpop.f32.mrf.mxu0
    %v5998 = vpop.f32.mrf.mxu0
    %v5999 = vadd.f32 0.0, %v5998
    %v6000 = vpop.f32.mrf.mxu0
    %6001 = vmatprep.mubr.bf16.mxu0 0
    %6002 = vmatmul.mubr.bf16.gmra.mxu0 %v5930
    %v6003 = vpop.f32.mrf.mxu0
    %v6004 = vadd.f32 0.0, %v6003
    %v6005 = vpop.f32.mrf.mxu0
    %v6006 = vpop.f32.mrf.mxu0
    %v6007 = vadd.f32 0.0, %v6006
    %v6008 = vpop.f32.mrf.mxu0
    %6009 = vmatprep.mubr.bf16.mxu0 0
    %6010 = vmatmul.mubr.bf16.gmra.mxu0 %v5933
    %v6011 = vpop.f32.mrf.mxu0
    %v6012 = vadd.f32 0.0, %v6011
    %v6013 = vpop.f32.mrf.mxu0
    %v6014 = vpop.f32.mrf.mxu0
    %v6015 = vadd.f32 0.0, %v6014
    %v6016 = vpop.f32.mrf.mxu0
    %6017 = vmatprep.mubr.bf16.mxu0 0
    %6018 = vmatmul.mubr.bf16.gmra.mxu0 %v5936
    %v6019 = vpop.f32.mrf.mxu0
    %v6020 = vadd.f32 0.0, %v6019
    %v6021 = vpop.f32.mrf.mxu0
    %v6022 = vpop.f32.mrf.mxu0
    %v6023 = vadd.f32 0.0, %v6022
    %v6024 = vpop.f32.mrf.mxu0
    %6025 = vmatprep.mubr.bf16.mxu0 0
    %6026 = vmatmul.mubr.bf16.gmra.mxu0 %v5939
    %v6027 = vpop.f32.mrf.mxu0
    %v6028 = vadd.f32 0.0, %v6027
    %v6029 = vpop.f32.mrf.mxu0
    %v6030 = vpop.f32.mrf.mxu0
    %v6031 = vadd.f32 0.0, %v6030
    %v6032 = vpop.f32.mrf.mxu0
    %6033 = vmatprep.mubr.bf16.mxu0 0
    %6034 = vmatmul.mubr.bf16.gmra.mxu0 %v5942
    %v6035 = vpop.f32.mrf.mxu0
    %v6036 = vadd.f32 0.0, %v6035
    %v6037 = vpop.f32.mrf.mxu0
    %v6038 = vpop.f32.mrf.mxu0
    %v6039 = vadd.f32 0.0, %v6038
    %v6040 = vpop.f32.mrf.mxu0
    %6041 = vmatprep.mubr.bf16.mxu0 0
    %6042 = vmatmul.mubr.bf16.gmra.mxu0 %v5945
    %v6043 = vpop.f32.mrf.mxu0
    %v6044 = vadd.f32 0.0, %v6043
    %v6045 = vpop.f32.mrf.mxu0
    %v6046 = vpop.f32.mrf.mxu0
    %v6047 = vadd.f32 0.0, %v6046
    %v6048 = vpop.f32.mrf.mxu0
    %6049 = vmatprep.mubr.bf16.mxu0 0
    %6050 = vmatmul.mubr.bf16.gmra.mxu0 %v5948
    %v6051 = vpop.f32.mrf.mxu0
    %v6052 = vadd.f32 0.0, %v6051
    %v6053 = vpop.f32.mrf.mxu0
    %v6054 = vpop.f32.mrf.mxu0
    %v6055 = vadd.f32 0.0, %v6054
    %v6056 = vpop.f32.mrf.mxu0
    %6057 = vmatprep.mubr.bf16.mxu0 0
    %6058 = vmatmul.mubr.bf16.gmra.mxu0 %v5951
    %v6059 = vpop.f32.mrf.mxu0
    %v6060 = vadd.f32 0.0, %v6059
    %v6061 = vpop.f32.mrf.mxu0
    %v6062 = vpop.f32.mrf.mxu0
    %v6063 = vpop.f32.mrf.mxu0
    %6064 = vdwg.mxu0
    %v6065 = vadd.f32 %v5843, %v5988
    %v6066 = vadd.f32 %v5844, %v5991
    %v6067 = vadd.f32 %v5845, %v5996
    %v6068 = vadd.f32 %v5846, %v5999
    %v6069 = vadd.f32 %v5847, %v6004
    %v6070 = vadd.f32 %v5848, %v6007
    %v6071 = vadd.f32 %v5849, %v6012
    %v6072 = vadd.f32 %v5850, %v6015
    %v6073 = vadd.f32 %v5851, %v6020
    %v6074 = vadd.f32 %v5852, %v6023
    %v6075 = vadd.f32 %v5853, %v6028
    %v6076 = vadd.f32 %v5854, %v6031
    %v6077 = vadd.f32 %v5855, %v6036
    %v6078 = vadd.f32 %v5856, %v6039
    %v6079 = vadd.f32 %v5857, %v6044
    %v6080 = vadd.f32 %v5858, %v6047
    %v6081 = vadd.f32 %v5859, %v6052
    %v6082 = vadd.f32 %v5860, %v6055
    %v6083 = vadd.f32 %v5861, %v6060
    %v6084 = vld [vmem:[#allocation3 + $0x5] sm:$0xff]
    %v6085 = vld [vmem:[#allocation3 + $0xd] sm:$0xff]
    %v6086 = vld [vmem:[#allocation3 + $0x15] sm:$0xff]
    %v6087 = vld [vmem:[#allocation3 + $0x1d] sm:$0xff]
    %v6088 = vld [vmem:[#allocation3 + $0x25] sm:$0xff]
    %v6089 = vld [vmem:[#allocation3 + $0x2d] sm:$0xff]
    %v6090 = vld [vmem:[#allocation3 + $0x35] sm:$0xff]
    %v6091 = vld [vmem:[#allocation3 + $0x3d] sm:$0xff]
    %v6092 = vld [vmem:[#allocation3 + $0x45] sm:$0xff]
    %v6093 = vld [vmem:[#allocation3 + $0x4d] sm:$0xff]
    %v6094 = vld [vmem:[#allocation3 + $0x55] sm:$0xff]
    %v6095 = vld [vmem:[#allocation3 + $0x5d] sm:$0xff]
    %v6096 = vld [vmem:[#allocation3 + $0x65] sm:$0xff]
    %v6097 = vld [vmem:[#allocation3 + $0x6d] sm:$0xff]
    %v6098 = vld [vmem:[#allocation3 + $0x75] sm:$0xff]
    %v6099 = vld [vmem:[#allocation3 + $0x7d] sm:$0xff]
    %v6100 = vld [vmem:[#allocation3 + $0x85] sm:$0xff]
    %v6101 = vld [vmem:[#allocation3 + $0x8d] sm:$0xff]
    %v6102 = vld [vmem:[#allocation3 + $0x95] sm:$0xff]
    %v6103 = vpack.c.bf16 %v6085, %v6084
    %v6104 = vpack.c.bf16 %v6087, %v6086
    %v6105 = vpack.c.bf16 %v6089, %v6088
    %v6106 = vpack.c.bf16 %v6091, %v6090
    %v6107 = vpack.c.bf16 %v6093, %v6092
    %v6108 = vpack.c.bf16 %v6095, %v6094
    %v6109 = vpack.c.bf16 %v6097, %v6096
    %v6110 = vpack.c.bf16 %v6099, %v6098
    %v6111 = vpack.c.bf16 %v6101, %v6100
    %v6112 = vpack.c.bf16 %v6102, %v6102
    %v6113 = vld [vmem:[#allocation13 + $0xa0] sm:$0xf]
    %v6114 = vld [vmem:[#allocation13 + $0xa4] sm:$0xf]
    %v6115 = vld [vmem:[#allocation13 + $0xa8] sm:$0xf]
    %v6116 = vld [vmem:[#allocation13 + $0xac] sm:$0xf]
    %v6117 = vld [vmem:[#allocation13 + $0xb0] sm:$0xf]
    %v6118 = vld [vmem:[#allocation13 + $0xb4] sm:$0xf]
    %v6119 = vld [vmem:[#allocation13 + $0xb8] sm:$0xf]
    %v6120 = vld [vmem:[#allocation13 + $0xbc] sm:$0xf]
    %v6129 = vunpack.c.l.b16 %v6113
    %v6130 = vunpack.c.l.b16 %v6114
    %v6131 = vunpack.c.l.b16 %v6115
    %v6132 = vunpack.c.l.b16 %v6116
    %v6133 = vunpack.c.l.b16 %v6117
    %v6134 = vunpack.c.l.b16 %v6118
    %v6135 = vunpack.c.l.b16 %v6119
    %v6136 = vunpack.c.l.b16 %v6120
    %v6137 = vpack.c.b16 %v6130, %v6129
    %v6138 = vpack.c.b16 %v6132, %v6131
    %v6139 = vpack.c.b16 %v6134, %v6133
    %v6140 = vpack.c.b16 %v6136, %v6135
    %v6146 = vsel %vm638, %v6103, 0
    %v6149 = vsel %vm638, %v6104, 0
    %v6152 = vsel %vm638, %v6105, 0
    %v6155 = vsel %vm638, %v6106, 0
    %v6158 = vsel %vm638, %v6107, 0
    %v6161 = vsel %vm638, %v6108, 0
    %v6164 = vsel %vm638, %v6109, 0
    %v6167 = vsel %vm638, %v6110, 0
    %v6170 = vsel %vm638, %v6111, 0
    %v6173 = vsel %vm638, %v6112, 0
    %6175 = vmatprep.subr.bf16.mxu0 0
    %6176 = vmatpush1.bf16.msra.mxu0 0
    %6177 = vmatprep.subr.bf16.mxu0 0
    %6178 = vmatpush1.bf16.msra.mxu0 0
    %6179 = vmatprep.subr.bf16.mxu0 0
    %6180 = vmatpush1.bf16.msra.mxu0 0
    %6181 = vmatprep.subr.bf16.mxu0 0
    %6182 = vmatpush1.bf16.msra.mxu0 0
    %6183 = vmatprep.subr.bf16.mxu0 0
    %6184 = vmatpush1.bf16.msra.mxu0 %v6140
    %6185 = vmatprep.subr.bf16.mxu0 0
    %6186 = vmatpush1.bf16.msra.mxu0 %v6139
    %6187 = vmatprep.subr.bf16.mxu0 0
    %6188 = vmatpush1.bf16.msra.mxu0 %v6138
    %6189 = vmatprep.subr.bf16.mxu0 0
    %6190 = vmatpush1.bf16.msra.mxu0 %v6137
    %6191 = vmatprep.subr.bf16.mxu0 0
    %6192 = vmatpush2.bf16.msra.mxu0 0
    %6193 = vmatprep.subr.bf16.mxu0 0
    %6194 = vmatpush2.bf16.msra.mxu0 0
    %6195 = vmatprep.subr.bf16.mxu0 0
    %6196 = vmatpush2.bf16.msra.mxu0 0
    %6197 = vmatprep.subr.bf16.mxu0 0
    %6198 = vmatpush2.bf16.msra.mxu0 0
    %6199 = vmatprep.subr.bf16.mxu0 0
    %6200 = vmatpush2.bf16.msra.mxu0 0
    %6201 = vmatprep.subr.bf16.mxu0 0
    %6202 = vmatpush2.bf16.msra.mxu0 0
    %6203 = vmatprep.subr.bf16.mxu0 0
    %6204 = vmatpush2.bf16.msra.mxu0 0
    %6205 = vmatprep.subr.bf16.mxu0 0
    %6206 = vmatpush2.bf16.msra.mxu0 0
    %6207 = vmatprep.mubr.bf16.mxu0 0
    %6208 = vmatmul.mubr.bf16.gmra.mxu0 %v6146
    %v6209 = vpop.f32.mrf.mxu0
    %v6210 = vadd.f32 0.0, %v6209
    %v6211 = vpop.f32.mrf.mxu0
    %v6212 = vpop.f32.mrf.mxu0
    %v6213 = vadd.f32 0.0, %v6212
    %v6214 = vpop.f32.mrf.mxu0
    %6215 = vmatprep.mubr.bf16.mxu0 0
    %6216 = vmatmul.mubr.bf16.gmra.mxu0 %v6149
    %v6217 = vpop.f32.mrf.mxu0
    %v6218 = vadd.f32 0.0, %v6217
    %v6219 = vpop.f32.mrf.mxu0
    %v6220 = vpop.f32.mrf.mxu0
    %v6221 = vadd.f32 0.0, %v6220
    %v6222 = vpop.f32.mrf.mxu0
    %6223 = vmatprep.mubr.bf16.mxu0 0
    %6224 = vmatmul.mubr.bf16.gmra.mxu0 %v6152
    %v6225 = vpop.f32.mrf.mxu0
    %v6226 = vadd.f32 0.0, %v6225
    %v6227 = vpop.f32.mrf.mxu0
    %v6228 = vpop.f32.mrf.mxu0
    %v6229 = vadd.f32 0.0, %v6228
    %v6230 = vpop.f32.mrf.mxu0
    %6231 = vmatprep.mubr.bf16.mxu0 0
    %6232 = vmatmul.mubr.bf16.gmra.mxu0 %v6155
    %v6233 = vpop.f32.mrf.mxu0
    %v6234 = vadd.f32 0.0, %v6233
    %v6235 = vpop.f32.mrf.mxu0
    %v6236 = vpop.f32.mrf.mxu0
    %v6237 = vadd.f32 0.0, %v6236
    %v6238 = vpop.f32.mrf.mxu0
    %6239 = vmatprep.mubr.bf16.mxu0 0
    %6240 = vmatmul.mubr.bf16.gmra.mxu0 %v6158
    %v6241 = vpop.f32.mrf.mxu0
    %v6242 = vadd.f32 0.0, %v6241
    %v6243 = vpop.f32.mrf.mxu0
    %v6244 = vpop.f32.mrf.mxu0
    %v6245 = vadd.f32 0.0, %v6244
    %v6246 = vpop.f32.mrf.mxu0
    %6247 = vmatprep.mubr.bf16.mxu0 0
    %6248 = vmatmul.mubr.bf16.gmra.mxu0 %v6161
    %v6249 = vpop.f32.mrf.mxu0
    %v6250 = vadd.f32 0.0, %v6249
    %v6251 = vpop.f32.mrf.mxu0
    %v6252 = vpop.f32.mrf.mxu0
    %v6253 = vadd.f32 0.0, %v6252
    %v6254 = vpop.f32.mrf.mxu0
    %6255 = vmatprep.mubr.bf16.mxu0 0
    %6256 = vmatmul.mubr.bf16.gmra.mxu0 %v6164
    %v6257 = vpop.f32.mrf.mxu0
    %v6258 = vadd.f32 0.0, %v6257
    %v6259 = vpop.f32.mrf.mxu0
    %v6260 = vpop.f32.mrf.mxu0
    %v6261 = vadd.f32 0.0, %v6260
    %v6262 = vpop.f32.mrf.mxu0
    %6263 = vmatprep.mubr.bf16.mxu0 0
    %6264 = vmatmul.mubr.bf16.gmra.mxu0 %v6167
    %v6265 = vpop.f32.mrf.mxu0
    %v6266 = vadd.f32 0.0, %v6265
    %v6267 = vpop.f32.mrf.mxu0
    %v6268 = vpop.f32.mrf.mxu0
    %v6269 = vadd.f32 0.0, %v6268
    %v6270 = vpop.f32.mrf.mxu0
    %6271 = vmatprep.mubr.bf16.mxu0 0
    %6272 = vmatmul.mubr.bf16.gmra.mxu0 %v6170
    %v6273 = vpop.f32.mrf.mxu0
    %v6274 = vadd.f32 0.0, %v6273
    %v6275 = vpop.f32.mrf.mxu0
    %v6276 = vpop.f32.mrf.mxu0
    %v6277 = vadd.f32 0.0, %v6276
    %v6278 = vpop.f32.mrf.mxu0
    %6279 = vmatprep.mubr.bf16.mxu0 0
    %6280 = vmatmul.mubr.bf16.gmra.mxu0 %v6173
    %v6281 = vpop.f32.mrf.mxu0
    %v6282 = vadd.f32 0.0, %v6281
    %v6283 = vpop.f32.mrf.mxu0
    %v6284 = vpop.f32.mrf.mxu0
    %v6285 = vpop.f32.mrf.mxu0
    %6286 = vdwg.mxu0
    %v6287 = vadd.f32 %v6065, %v6210
    %v6288 = vadd.f32 %v6066, %v6213
    %v6289 = vadd.f32 %v6067, %v6218
    %v6290 = vadd.f32 %v6068, %v6221
    %v6291 = vadd.f32 %v6069, %v6226
    %v6292 = vadd.f32 %v6070, %v6229
    %v6293 = vadd.f32 %v6071, %v6234
    %v6294 = vadd.f32 %v6072, %v6237
    %v6295 = vadd.f32 %v6073, %v6242
    %v6296 = vadd.f32 %v6074, %v6245
    %v6297 = vadd.f32 %v6075, %v6250
    %v6298 = vadd.f32 %v6076, %v6253
    %v6299 = vadd.f32 %v6077, %v6258
    %v6300 = vadd.f32 %v6078, %v6261
    %v6301 = vadd.f32 %v6079, %v6266
    %v6302 = vadd.f32 %v6080, %v6269
    %v6303 = vadd.f32 %v6081, %v6274
    %v6304 = vadd.f32 %v6082, %v6277
    %v6305 = vadd.f32 %v6083, %v6282
    %v6306 = vld [vmem:[#allocation3 + $0x6] sm:$0xff]
    %v6307 = vld [vmem:[#allocation3 + $0xe] sm:$0xff]
    %v6308 = vld [vmem:[#allocation3 + $0x16] sm:$0xff]
    %v6309 = vld [vmem:[#allocation3 + $0x1e] sm:$0xff]
    %v6310 = vld [vmem:[#allocation3 + $0x26] sm:$0xff]
    %v6311 = vld [vmem:[#allocation3 + $0x2e] sm:$0xff]
    %v6312 = vld [vmem:[#allocation3 + $0x36] sm:$0xff]
    %v6313 = vld [vmem:[#allocation3 + $0x3e] sm:$0xff]
    %v6314 = vld [vmem:[#allocation3 + $0x46] sm:$0xff]
    %v6315 = vld [vmem:[#allocation3 + $0x4e] sm:$0xff]
    %v6316 = vld [vmem:[#allocation3 + $0x56] sm:$0xff]
    %v6317 = vld [vmem:[#allocation3 + $0x5e] sm:$0xff]
    %v6318 = vld [vmem:[#allocation3 + $0x66] sm:$0xff]
    %v6319 = vld [vmem:[#allocation3 + $0x6e] sm:$0xff]
    %v6320 = vld [vmem:[#allocation3 + $0x76] sm:$0xff]
    %v6321 = vld [vmem:[#allocation3 + $0x7e] sm:$0xff]
    %v6322 = vld [vmem:[#allocation3 + $0x86] sm:$0xff]
    %v6323 = vld [vmem:[#allocation3 + $0x8e] sm:$0xff]
    %v6324 = vld [vmem:[#allocation3 + $0x96] sm:$0xff]
    %v6325 = vpack.c.bf16 %v6307, %v6306
    %v6326 = vpack.c.bf16 %v6309, %v6308
    %v6327 = vpack.c.bf16 %v6311, %v6310
    %v6328 = vpack.c.bf16 %v6313, %v6312
    %v6329 = vpack.c.bf16 %v6315, %v6314
    %v6330 = vpack.c.bf16 %v6317, %v6316
    %v6331 = vpack.c.bf16 %v6319, %v6318
    %v6332 = vpack.c.bf16 %v6321, %v6320
    %v6333 = vpack.c.bf16 %v6323, %v6322
    %v6334 = vpack.c.bf16 %v6324, %v6324
    %v6335 = vld [vmem:[#allocation13 + $0xc0] sm:$0xf]
    %v6336 = vld [vmem:[#allocation13 + $0xc4] sm:$0xf]
    %v6337 = vld [vmem:[#allocation13 + $0xc8] sm:$0xf]
    %v6338 = vld [vmem:[#allocation13 + $0xcc] sm:$0xf]
    %v6339 = vld [vmem:[#allocation13 + $0xd0] sm:$0xf]
    %v6340 = vld [vmem:[#allocation13 + $0xd4] sm:$0xf]
    %v6341 = vld [vmem:[#allocation13 + $0xd8] sm:$0xf]
    %v6342 = vld [vmem:[#allocation13 + $0xdc] sm:$0xf]
    %v6351 = vunpack.c.l.b16 %v6335
    %v6352 = vunpack.c.l.b16 %v6336
    %v6353 = vunpack.c.l.b16 %v6337
    %v6354 = vunpack.c.l.b16 %v6338
    %v6355 = vunpack.c.l.b16 %v6339
    %v6356 = vunpack.c.l.b16 %v6340
    %v6357 = vunpack.c.l.b16 %v6341
    %v6358 = vunpack.c.l.b16 %v6342
    %v6359 = vpack.c.b16 %v6352, %v6351
    %v6360 = vpack.c.b16 %v6354, %v6353
    %v6361 = vpack.c.b16 %v6356, %v6355
    %v6362 = vpack.c.b16 %v6358, %v6357
    %v6368 = vsel %vm638, %v6325, 0
    %v6371 = vsel %vm638, %v6326, 0
    %v6374 = vsel %vm638, %v6327, 0
    %v6377 = vsel %vm638, %v6328, 0
    %v6380 = vsel %vm638, %v6329, 0
    %v6383 = vsel %vm638, %v6330, 0
    %v6386 = vsel %vm638, %v6331, 0
    %v6389 = vsel %vm638, %v6332, 0
    %v6392 = vsel %vm638, %v6333, 0
    %v6395 = vsel %vm638, %v6334, 0
    %6397 = vmatprep.subr.bf16.mxu0 0
    %6398 = vmatpush1.bf16.msra.mxu0 0
    %6399 = vmatprep.subr.bf16.mxu0 0
    %6400 = vmatpush1.bf16.msra.mxu0 0
    %6401 = vmatprep.subr.bf16.mxu0 0
    %6402 = vmatpush1.bf16.msra.mxu0 0
    %6403 = vmatprep.subr.bf16.mxu0 0
    %6404 = vmatpush1.bf16.msra.mxu0 0
    %6405 = vmatprep.subr.bf16.mxu0 0
    %6406 = vmatpush1.bf16.msra.mxu0 %v6362
    %6407 = vmatprep.subr.bf16.mxu0 0
    %6408 = vmatpush1.bf16.msra.mxu0 %v6361
    %6409 = vmatprep.subr.bf16.mxu0 0
    %6410 = vmatpush1.bf16.msra.mxu0 %v6360
    %6411 = vmatprep.subr.bf16.mxu0 0
    %6412 = vmatpush1.bf16.msra.mxu0 %v6359
    %6413 = vmatprep.subr.bf16.mxu0 0
    %6414 = vmatpush2.bf16.msra.mxu0 0
    %6415 = vmatprep.subr.bf16.mxu0 0
    %6416 = vmatpush2.bf16.msra.mxu0 0
    %6417 = vmatprep.subr.bf16.mxu0 0
    %6418 = vmatpush2.bf16.msra.mxu0 0
    %6419 = vmatprep.subr.bf16.mxu0 0
    %6420 = vmatpush2.bf16.msra.mxu0 0
    %6421 = vmatprep.subr.bf16.mxu0 0
    %6422 = vmatpush2.bf16.msra.mxu0 0
    %6423 = vmatprep.subr.bf16.mxu0 0
    %6424 = vmatpush2.bf16.msra.mxu0 0
    %6425 = vmatprep.subr.bf16.mxu0 0
    %6426 = vmatpush2.bf16.msra.mxu0 0
    %6427 = vmatprep.subr.bf16.mxu0 0
    %6428 = vmatpush2.bf16.msra.mxu0 0
    %6429 = vmatprep.mubr.bf16.mxu0 0
    %6430 = vmatmul.mubr.bf16.gmra.mxu0 %v6368
    %v6431 = vpop.f32.mrf.mxu0
    %v6432 = vadd.f32 0.0, %v6431
    %v6433 = vpop.f32.mrf.mxu0
    %v6434 = vpop.f32.mrf.mxu0
    %v6435 = vadd.f32 0.0, %v6434
    %v6436 = vpop.f32.mrf.mxu0
    %6437 = vmatprep.mubr.bf16.mxu0 0
    %6438 = vmatmul.mubr.bf16.gmra.mxu0 %v6371
    %v6439 = vpop.f32.mrf.mxu0
    %v6440 = vadd.f32 0.0, %v6439
    %v6441 = vpop.f32.mrf.mxu0
    %v6442 = vpop.f32.mrf.mxu0
    %v6443 = vadd.f32 0.0, %v6442
    %v6444 = vpop.f32.mrf.mxu0
    %6445 = vmatprep.mubr.bf16.mxu0 0
    %6446 = vmatmul.mubr.bf16.gmra.mxu0 %v6374
    %v6447 = vpop.f32.mrf.mxu0
    %v6448 = vadd.f32 0.0, %v6447
    %v6449 = vpop.f32.mrf.mxu0
    %v6450 = vpop.f32.mrf.mxu0
    %v6451 = vadd.f32 0.0, %v6450
    %v6452 = vpop.f32.mrf.mxu0
    %6453 = vmatprep.mubr.bf16.mxu0 0
    %6454 = vmatmul.mubr.bf16.gmra.mxu0 %v6377
    %v6455 = vpop.f32.mrf.mxu0
    %v6456 = vadd.f32 0.0, %v6455
    %v6457 = vpop.f32.mrf.mxu0
    %v6458 = vpop.f32.mrf.mxu0
    %v6459 = vadd.f32 0.0, %v6458
    %v6460 = vpop.f32.mrf.mxu0
    %6461 = vmatprep.mubr.bf16.mxu0 0
    %6462 = vmatmul.mubr.bf16.gmra.mxu0 %v6380
    %v6463 = vpop.f32.mrf.mxu0
    %v6464 = vadd.f32 0.0, %v6463
    %v6465 = vpop.f32.mrf.mxu0
    %v6466 = vpop.f32.mrf.mxu0
    %v6467 = vadd.f32 0.0, %v6466
    %v6468 = vpop.f32.mrf.mxu0
    %6469 = vmatprep.mubr.bf16.mxu0 0
    %6470 = vmatmul.mubr.bf16.gmra.mxu0 %v6383
    %v6471 = vpop.f32.mrf.mxu0
    %v6472 = vadd.f32 0.0, %v6471
    %v6473 = vpop.f32.mrf.mxu0
    %v6474 = vpop.f32.mrf.mxu0
    %v6475 = vadd.f32 0.0, %v6474
    %v6476 = vpop.f32.mrf.mxu0
    %6477 = vmatprep.mubr.bf16.mxu0 0
    %6478 = vmatmul.mubr.bf16.gmra.mxu0 %v6386
    %v6479 = vpop.f32.mrf.mxu0
    %v6480 = vadd.f32 0.0, %v6479
    %v6481 = vpop.f32.mrf.mxu0
    %v6482 = vpop.f32.mrf.mxu0
    %v6483 = vadd.f32 0.0, %v6482
    %v6484 = vpop.f32.mrf.mxu0
    %6485 = vmatprep.mubr.bf16.mxu0 0
    %6486 = vmatmul.mubr.bf16.gmra.mxu0 %v6389
    %v6487 = vpop.f32.mrf.mxu0
    %v6488 = vadd.f32 0.0, %v6487
    %v6489 = vpop.f32.mrf.mxu0
    %v6490 = vpop.f32.mrf.mxu0
    %v6491 = vadd.f32 0.0, %v6490
    %v6492 = vpop.f32.mrf.mxu0
    %6493 = vmatprep.mubr.bf16.mxu0 0
    %6494 = vmatmul.mubr.bf16.gmra.mxu0 %v6392
    %v6495 = vpop.f32.mrf.mxu0
    %v6496 = vadd.f32 0.0, %v6495
    %v6497 = vpop.f32.mrf.mxu0
    %v6498 = vpop.f32.mrf.mxu0
    %v6499 = vadd.f32 0.0, %v6498
    %v6500 = vpop.f32.mrf.mxu0
    %6501 = vmatprep.mubr.bf16.mxu0 0
    %6502 = vmatmul.mubr.bf16.gmra.mxu0 %v6395
    %v6503 = vpop.f32.mrf.mxu0
    %v6504 = vadd.f32 0.0, %v6503
    %v6505 = vpop.f32.mrf.mxu0
    %v6506 = vpop.f32.mrf.mxu0
    %v6507 = vpop.f32.mrf.mxu0
    %6508 = vdwg.mxu0
    %v6509 = vadd.f32 %v6287, %v6432
    %v6510 = vadd.f32 %v6288, %v6435
    %v6511 = vadd.f32 %v6289, %v6440
    %v6512 = vadd.f32 %v6290, %v6443
    %v6513 = vadd.f32 %v6291, %v6448
    %v6514 = vadd.f32 %v6292, %v6451
    %v6515 = vadd.f32 %v6293, %v6456
    %v6516 = vadd.f32 %v6294, %v6459
    %v6517 = vadd.f32 %v6295, %v6464
    %v6518 = vadd.f32 %v6296, %v6467
    %v6519 = vadd.f32 %v6297, %v6472
    %v6520 = vadd.f32 %v6298, %v6475
    %v6521 = vadd.f32 %v6299, %v6480
    %v6522 = vadd.f32 %v6300, %v6483
    %v6523 = vadd.f32 %v6301, %v6488
    %v6524 = vadd.f32 %v6302, %v6491
    %v6525 = vadd.f32 %v6303, %v6496
    %v6526 = vadd.f32 %v6304, %v6499
    %v6527 = vadd.f32 %v6305, %v6504
    %v6528 = vld [vmem:[#allocation3 + $0x7] sm:$0xff]
    %v6529 = vld [vmem:[#allocation3 + $0xf] sm:$0xff]
    %v6530 = vld [vmem:[#allocation3 + $0x17] sm:$0xff]
    %v6531 = vld [vmem:[#allocation3 + $0x1f] sm:$0xff]
    %v6532 = vld [vmem:[#allocation3 + $0x27] sm:$0xff]
    %v6533 = vld [vmem:[#allocation3 + $0x2f] sm:$0xff]
    %v6534 = vld [vmem:[#allocation3 + $0x37] sm:$0xff]
    %v6535 = vld [vmem:[#allocation3 + $0x3f] sm:$0xff]
    %v6536 = vld [vmem:[#allocation3 + $0x47] sm:$0xff]
    %v6537 = vld [vmem:[#allocation3 + $0x4f] sm:$0xff]
    %v6538 = vld [vmem:[#allocation3 + $0x57] sm:$0xff]
    %v6539 = vld [vmem:[#allocation3 + $0x5f] sm:$0xff]
    %v6540 = vld [vmem:[#allocation3 + $0x67] sm:$0xff]
    %v6541 = vld [vmem:[#allocation3 + $0x6f] sm:$0xff]
    %v6542 = vld [vmem:[#allocation3 + $0x77] sm:$0xff]
    %v6543 = vld [vmem:[#allocation3 + $0x7f] sm:$0xff]
    %v6544 = vld [vmem:[#allocation3 + $0x87] sm:$0xff]
    %v6545 = vld [vmem:[#allocation3 + $0x8f] sm:$0xff]
    %v6546 = vld [vmem:[#allocation3 + $0x97] sm:$0xff]
    %v6547 = vpack.c.bf16 %v6529, %v6528
    %v6548 = vpack.c.bf16 %v6531, %v6530
    %v6549 = vpack.c.bf16 %v6533, %v6532
    %v6550 = vpack.c.bf16 %v6535, %v6534
    %v6551 = vpack.c.bf16 %v6537, %v6536
    %v6552 = vpack.c.bf16 %v6539, %v6538
    %v6553 = vpack.c.bf16 %v6541, %v6540
    %v6554 = vpack.c.bf16 %v6543, %v6542
    %v6555 = vpack.c.bf16 %v6545, %v6544
    %v6556 = vpack.c.bf16 %v6546, %v6546
    %v6557 = vld [vmem:[#allocation13 + $0xe0] sm:$0xf]
    %v6558 = vld [vmem:[#allocation13 + $0xe4] sm:$0xf]
    %v6559 = vld [vmem:[#allocation13 + $0xe8] sm:$0xf]
    %v6560 = vld [vmem:[#allocation13 + $0xec] sm:$0xf]
    %v6561 = vld [vmem:[#allocation13 + $0xf0] sm:$0xf]
    %v6562 = vld [vmem:[#allocation13 + $0xf4] sm:$0xf]
    %v6563 = vld [vmem:[#allocation13 + $0xf8] sm:$0xf]
    %v6564 = vld [vmem:[#allocation13 + $0xfc] sm:$0xf]
    %v6573 = vunpack.c.l.b16 %v6557
    %v6574 = vunpack.c.l.b16 %v6558
    %v6575 = vunpack.c.l.b16 %v6559
    %v6576 = vunpack.c.l.b16 %v6560
    %v6577 = vunpack.c.l.b16 %v6561
    %v6578 = vunpack.c.l.b16 %v6562
    %v6579 = vunpack.c.l.b16 %v6563
    %v6580 = vunpack.c.l.b16 %v6564
    %v6581 = vpack.c.b16 %v6574, %v6573
    %v6582 = vpack.c.b16 %v6576, %v6575
    %v6583 = vpack.c.b16 %v6578, %v6577
    %v6584 = vpack.c.b16 %v6580, %v6579
    %v6590 = vsel %vm638, %v6547, 0
    %v6593 = vsel %vm638, %v6548, 0
    %v6596 = vsel %vm638, %v6549, 0
    %v6599 = vsel %vm638, %v6550, 0
    %v6602 = vsel %vm638, %v6551, 0
    %v6605 = vsel %vm638, %v6552, 0
    %v6608 = vsel %vm638, %v6553, 0
    %v6611 = vsel %vm638, %v6554, 0
    %v6614 = vsel %vm638, %v6555, 0
    %v6617 = vsel %vm638, %v6556, 0
    %6619 = vmatprep.subr.bf16.mxu0 0
    %6620 = vmatpush1.bf16.msra.mxu0 0
    %6621 = vmatprep.subr.bf16.mxu0 0
    %6622 = vmatpush1.bf16.msra.mxu0 0
    %6623 = vmatprep.subr.bf16.mxu0 0
    %6624 = vmatpush1.bf16.msra.mxu0 0
    %6625 = vmatprep.subr.bf16.mxu0 0
    %6626 = vmatpush1.bf16.msra.mxu0 0
    %6627 = vmatprep.subr.bf16.mxu0 0
    %6628 = vmatpush1.bf16.msra.mxu0 %v6584
    %6629 = vmatprep.subr.bf16.mxu0 0
    %6630 = vmatpush1.bf16.msra.mxu0 %v6583
    %6631 = vmatprep.subr.bf16.mxu0 0
    %6632 = vmatpush1.bf16.msra.mxu0 %v6582
    %6633 = vmatprep.subr.bf16.mxu0 0
    %6634 = vmatpush1.bf16.msra.mxu0 %v6581
    %6635 = vmatprep.subr.bf16.mxu0 0
    %6636 = vmatpush2.bf16.msra.mxu0 0
    %6637 = vmatprep.subr.bf16.mxu0 0
    %6638 = vmatpush2.bf16.msra.mxu0 0
    %6639 = vmatprep.subr.bf16.mxu0 0
    %6640 = vmatpush2.bf16.msra.mxu0 0
    %6641 = vmatprep.subr.bf16.mxu0 0
    %6642 = vmatpush2.bf16.msra.mxu0 0
    %6643 = vmatprep.subr.bf16.mxu0 0
    %6644 = vmatpush2.bf16.msra.mxu0 0
    %6645 = vmatprep.subr.bf16.mxu0 0
    %6646 = vmatpush2.bf16.msra.mxu0 0
    %6647 = vmatprep.subr.bf16.mxu0 0
    %6648 = vmatpush2.bf16.msra.mxu0 0
    %6649 = vmatprep.subr.bf16.mxu0 0
    %6650 = vmatpush2.bf16.msra.mxu0 0
    %6651 = vmatprep.mubr.bf16.mxu0 0
    %6652 = vmatmul.mubr.bf16.gmra.mxu0 %v6590
    %v6653 = vpop.f32.mrf.mxu0
    %v6654 = vadd.f32 0.0, %v6653
    %v6655 = vpop.f32.mrf.mxu0
    %v6656 = vpop.f32.mrf.mxu0
    %v6657 = vadd.f32 0.0, %v6656
    %v6658 = vpop.f32.mrf.mxu0
    %6659 = vmatprep.mubr.bf16.mxu0 0
    %6660 = vmatmul.mubr.bf16.gmra.mxu0 %v6593
    %v6661 = vpop.f32.mrf.mxu0
    %v6662 = vadd.f32 0.0, %v6661
    %v6663 = vpop.f32.mrf.mxu0
    %v6664 = vpop.f32.mrf.mxu0
    %v6665 = vadd.f32 0.0, %v6664
    %v6666 = vpop.f32.mrf.mxu0
    %6667 = vmatprep.mubr.bf16.mxu0 0
    %6668 = vmatmul.mubr.bf16.gmra.mxu0 %v6596
    %v6669 = vpop.f32.mrf.mxu0
    %v6670 = vadd.f32 0.0, %v6669
    %v6671 = vpop.f32.mrf.mxu0
    %v6672 = vpop.f32.mrf.mxu0
    %v6673 = vadd.f32 0.0, %v6672
    %v6674 = vpop.f32.mrf.mxu0
    %6675 = vmatprep.mubr.bf16.mxu0 0
    %6676 = vmatmul.mubr.bf16.gmra.mxu0 %v6599
    %v6677 = vpop.f32.mrf.mxu0
    %v6678 = vadd.f32 0.0, %v6677
    %v6679 = vpop.f32.mrf.mxu0
    %v6680 = vpop.f32.mrf.mxu0
    %v6681 = vadd.f32 0.0, %v6680
    %v6682 = vpop.f32.mrf.mxu0
    %6683 = vmatprep.mubr.bf16.mxu0 0
    %6684 = vmatmul.mubr.bf16.gmra.mxu0 %v6602
    %v6685 = vpop.f32.mrf.mxu0
    %v6686 = vadd.f32 0.0, %v6685
    %v6687 = vpop.f32.mrf.mxu0
    %v6688 = vpop.f32.mrf.mxu0
    %v6689 = vadd.f32 0.0, %v6688
    %v6690 = vpop.f32.mrf.mxu0
    %6691 = vmatprep.mubr.bf16.mxu0 0
    %6692 = vmatmul.mubr.bf16.gmra.mxu0 %v6605
    %v6693 = vpop.f32.mrf.mxu0
    %v6694 = vadd.f32 0.0, %v6693
    %v6695 = vpop.f32.mrf.mxu0
    %v6696 = vpop.f32.mrf.mxu0
    %v6697 = vadd.f32 0.0, %v6696
    %v6698 = vpop.f32.mrf.mxu0
    %6699 = vmatprep.mubr.bf16.mxu0 0
    %6700 = vmatmul.mubr.bf16.gmra.mxu0 %v6608
    %v6701 = vpop.f32.mrf.mxu0
    %v6702 = vadd.f32 0.0, %v6701
    %v6703 = vpop.f32.mrf.mxu0
    %v6704 = vpop.f32.mrf.mxu0
    %v6705 = vadd.f32 0.0, %v6704
    %v6706 = vpop.f32.mrf.mxu0
    %6707 = vmatprep.mubr.bf16.mxu0 0
    %6708 = vmatmul.mubr.bf16.gmra.mxu0 %v6611
    %v6709 = vpop.f32.mrf.mxu0
    %v6710 = vadd.f32 0.0, %v6709
    %v6711 = vpop.f32.mrf.mxu0
    %v6712 = vpop.f32.mrf.mxu0
    %v6713 = vadd.f32 0.0, %v6712
    %v6714 = vpop.f32.mrf.mxu0
    %6715 = vmatprep.mubr.bf16.mxu0 0
    %6716 = vmatmul.mubr.bf16.gmra.mxu0 %v6614
    %v6717 = vpop.f32.mrf.mxu0
    %v6718 = vadd.f32 0.0, %v6717
    %v6719 = vpop.f32.mrf.mxu0
    %v6720 = vpop.f32.mrf.mxu0
    %v6721 = vadd.f32 0.0, %v6720
    %v6722 = vpop.f32.mrf.mxu0
    %6723 = vmatprep.mubr.bf16.mxu0 0
    %6724 = vmatmul.mubr.bf16.gmra.mxu0 %v6617
    %v6725 = vpop.f32.mrf.mxu0
    %v6726 = vadd.f32 0.0, %v6725
    %v6727 = vpop.f32.mrf.mxu0
    %v6728 = vpop.f32.mrf.mxu0
    %v6729 = vpop.f32.mrf.mxu0
    %6730 = vdwg.mxu0
    %v6731 = vadd.f32 %v6509, %v6654
    %v6732 = vadd.f32 %v6510, %v6657
    %v6733 = vadd.f32 %v6511, %v6662
    %v6734 = vadd.f32 %v6512, %v6665
    %v6735 = vadd.f32 %v6513, %v6670
    %v6736 = vadd.f32 %v6514, %v6673
    %v6737 = vadd.f32 %v6515, %v6678
    %v6738 = vadd.f32 %v6516, %v6681
    %v6739 = vadd.f32 %v6517, %v6686
    %v6740 = vadd.f32 %v6518, %v6689
    %v6741 = vadd.f32 %v6519, %v6694
    %v6742 = vadd.f32 %v6520, %v6697
    %v6743 = vadd.f32 %v6521, %v6702
    %v6744 = vadd.f32 %v6522, %v6705
    %v6745 = vadd.f32 %v6523, %v6710
    %v6746 = vadd.f32 %v6524, %v6713
    %v6747 = vadd.f32 %v6525, %v6718
    %v6748 = vadd.f32 %v6526, %v6721
    %v6749 = vadd.f32 %v6527, %v6726
    %v6750 = vld [vmem:[#allocation3 + $0x8] sm:$0xff]
    %v6751 = vld [vmem:[#allocation3 + $0x10] sm:$0xff]
    %v6752 = vld [vmem:[#allocation3 + $0x18] sm:$0xff]
    %v6753 = vld [vmem:[#allocation3 + $0x20] sm:$0xff]
    %v6754 = vld [vmem:[#allocation3 + $0x28] sm:$0xff]
    %v6755 = vld [vmem:[#allocation3 + $0x30] sm:$0xff]
    %v6756 = vld [vmem:[#allocation3 + $0x38] sm:$0xff]
    %v6757 = vld [vmem:[#allocation3 + $0x40] sm:$0xff]
    %v6758 = vld [vmem:[#allocation3 + $0x48] sm:$0xff]
    %v6759 = vld [vmem:[#allocation3 + $0x50] sm:$0xff]
    %v6760 = vld [vmem:[#allocation3 + $0x58] sm:$0xff]
    %v6761 = vld [vmem:[#allocation3 + $0x60] sm:$0xff]
    %v6762 = vld [vmem:[#allocation3 + $0x68] sm:$0xff]
    %v6763 = vld [vmem:[#allocation3 + $0x70] sm:$0xff]
    %v6764 = vld [vmem:[#allocation3 + $0x78] sm:$0xff]
    %v6765 = vld [vmem:[#allocation3 + $0x80] sm:$0xff]
    %v6766 = vld [vmem:[#allocation3 + $0x88] sm:$0xff]
    %v6767 = vld [vmem:[#allocation3 + $0x90] sm:$0xff]
    %v6768 = vld [vmem:[#allocation3 + $0x98] sm:$0xff]
    %v6769 = vpack.c.bf16 %v6751, %v6750
    %v6770 = vpack.c.bf16 %v6753, %v6752
    %v6771 = vpack.c.bf16 %v6755, %v6754
    %v6772 = vpack.c.bf16 %v6757, %v6756
    %v6773 = vpack.c.bf16 %v6759, %v6758
    %v6774 = vpack.c.bf16 %v6761, %v6760
    %v6775 = vpack.c.bf16 %v6763, %v6762
    %v6776 = vpack.c.bf16 %v6765, %v6764
    %v6777 = vpack.c.bf16 %v6767, %v6766
    %v6778 = vpack.c.bf16 %v6768, %v6768
    %v6779 = vld [vmem:[#allocation13 + $0x100] sm:$0xf]
    %v6780 = vld [vmem:[#allocation13 + $0x104] sm:$0xf]
    %v6781 = vld [vmem:[#allocation13 + $0x108] sm:$0xf]
    %v6782 = vld [vmem:[#allocation13 + $0x10c] sm:$0xf]
    %v6783 = vld [vmem:[#allocation13 + $0x110] sm:$0xf]
    %v6784 = vld [vmem:[#allocation13 + $0x114] sm:$0xf]
    %v6785 = vld [vmem:[#allocation13 + $0x118] sm:$0xf]
    %v6786 = vld [vmem:[#allocation13 + $0x11c] sm:$0xf]
    %v6795 = vunpack.c.l.b16 %v6779
    %v6796 = vunpack.c.l.b16 %v6780
    %v6797 = vunpack.c.l.b16 %v6781
    %v6798 = vunpack.c.l.b16 %v6782
    %v6799 = vunpack.c.l.b16 %v6783
    %v6800 = vunpack.c.l.b16 %v6784
    %v6801 = vunpack.c.l.b16 %v6785
    %v6802 = vunpack.c.l.b16 %v6786
    %v6803 = vpack.c.b16 %v6796, %v6795
    %v6804 = vpack.c.b16 %v6798, %v6797
    %v6805 = vpack.c.b16 %v6800, %v6799
    %v6806 = vpack.c.b16 %v6802, %v6801
    %v6812 = vsel %vm638, %v6769, 0
    %v6815 = vsel %vm638, %v6770, 0
    %v6818 = vsel %vm638, %v6771, 0
    %v6821 = vsel %vm638, %v6772, 0
    %v6824 = vsel %vm638, %v6773, 0
    %v6827 = vsel %vm638, %v6774, 0
    %v6830 = vsel %vm638, %v6775, 0
    %v6833 = vsel %vm638, %v6776, 0
    %v6836 = vsel %vm638, %v6777, 0
    %v6839 = vsel %vm638, %v6778, 0
    %6841 = vmatprep.subr.bf16.mxu0 0
    %6842 = vmatpush1.bf16.msra.mxu0 0
    %6843 = vmatprep.subr.bf16.mxu0 0
    %6844 = vmatpush1.bf16.msra.mxu0 0
    %6845 = vmatprep.subr.bf16.mxu0 0
    %6846 = vmatpush1.bf16.msra.mxu0 0
    %6847 = vmatprep.subr.bf16.mxu0 0
    %6848 = vmatpush1.bf16.msra.mxu0 0
    %6849 = vmatprep.subr.bf16.mxu0 0
    %6850 = vmatpush1.bf16.msra.mxu0 %v6806
    %6851 = vmatprep.subr.bf16.mxu0 0
    %6852 = vmatpush1.bf16.msra.mxu0 %v6805
    %6853 = vmatprep.subr.bf16.mxu0 0
    %6854 = vmatpush1.bf16.msra.mxu0 %v6804
    %6855 = vmatprep.subr.bf16.mxu0 0
    %6856 = vmatpush1.bf16.msra.mxu0 %v6803
    %6857 = vmatprep.subr.bf16.mxu0 0
    %6858 = vmatpush2.bf16.msra.mxu0 0
    %6859 = vmatprep.subr.bf16.mxu0 0
    %6860 = vmatpush2.bf16.msra.mxu0 0
    %6861 = vmatprep.subr.bf16.mxu0 0
    %6862 = vmatpush2.bf16.msra.mxu0 0
    %6863 = vmatprep.subr.bf16.mxu0 0
    %6864 = vmatpush2.bf16.msra.mxu0 0
    %6865 = vmatprep.subr.bf16.mxu0 0
    %6866 = vmatpush2.bf16.msra.mxu0 0
    %6867 = vmatprep.subr.bf16.mxu0 0
    %6868 = vmatpush2.bf16.msra.mxu0 0
    %6869 = vmatprep.subr.bf16.mxu0 0
    %6870 = vmatpush2.bf16.msra.mxu0 0
    %6871 = vmatprep.subr.bf16.mxu0 0
    %6872 = vmatpush2.bf16.msra.mxu0 0
    %6873 = vmatprep.mubr.bf16.mxu0 0
    %6874 = vmatmul.mubr.bf16.gmra.mxu0 %v6812
    %v6875 = vpop.f32.mrf.mxu0
    %v6876 = vadd.f32 0.0, %v6875
    %v6877 = vpop.f32.mrf.mxu0
    %v6878 = vpop.f32.mrf.mxu0
    %v6879 = vadd.f32 0.0, %v6878
    %v6880 = vpop.f32.mrf.mxu0
    %6881 = vmatprep.mubr.bf16.mxu0 0
    %6882 = vmatmul.mubr.bf16.gmra.mxu0 %v6815
    %v6883 = vpop.f32.mrf.mxu0
    %v6884 = vadd.f32 0.0, %v6883
    %v6885 = vpop.f32.mrf.mxu0
    %v6886 = vpop.f32.mrf.mxu0
    %v6887 = vadd.f32 0.0, %v6886
    %v6888 = vpop.f32.mrf.mxu0
    %6889 = vmatprep.mubr.bf16.mxu0 0
    %6890 = vmatmul.mubr.bf16.gmra.mxu0 %v6818
    %v6891 = vpop.f32.mrf.mxu0
    %v6892 = vadd.f32 0.0, %v6891
    %v6893 = vpop.f32.mrf.mxu0
    %v6894 = vpop.f32.mrf.mxu0
    %v6895 = vadd.f32 0.0, %v6894
    %v6896 = vpop.f32.mrf.mxu0
    %6897 = vmatprep.mubr.bf16.mxu0 0
    %6898 = vmatmul.mubr.bf16.gmra.mxu0 %v6821
    %v6899 = vpop.f32.mrf.mxu0
    %v6900 = vadd.f32 0.0, %v6899
    %v6901 = vpop.f32.mrf.mxu0
    %v6902 = vpop.f32.mrf.mxu0
    %v6903 = vadd.f32 0.0, %v6902
    %v6904 = vpop.f32.mrf.mxu0
    %6905 = vmatprep.mubr.bf16.mxu0 0
    %6906 = vmatmul.mubr.bf16.gmra.mxu0 %v6824
    %v6907 = vpop.f32.mrf.mxu0
    %v6908 = vadd.f32 0.0, %v6907
    %v6909 = vpop.f32.mrf.mxu0
    %v6910 = vpop.f32.mrf.mxu0
    %v6911 = vadd.f32 0.0, %v6910
    %v6912 = vpop.f32.mrf.mxu0
    %6913 = vmatprep.mubr.bf16.mxu0 0
    %6914 = vmatmul.mubr.bf16.gmra.mxu0 %v6827
    %v6915 = vpop.f32.mrf.mxu0
    %v6916 = vadd.f32 0.0, %v6915
    %v6917 = vpop.f32.mrf.mxu0
    %v6918 = vpop.f32.mrf.mxu0
    %v6919 = vadd.f32 0.0, %v6918
    %v6920 = vpop.f32.mrf.mxu0
    %6921 = vmatprep.mubr.bf16.mxu0 0
    %6922 = vmatmul.mubr.bf16.gmra.mxu0 %v6830
    %v6923 = vpop.f32.mrf.mxu0
    %v6924 = vadd.f32 0.0, %v6923
    %v6925 = vpop.f32.mrf.mxu0
    %v6926 = vpop.f32.mrf.mxu0
    %v6927 = vadd.f32 0.0, %v6926
    %v6928 = vpop.f32.mrf.mxu0
    %6929 = vmatprep.mubr.bf16.mxu0 0
    %6930 = vmatmul.mubr.bf16.gmra.mxu0 %v6833
    %v6931 = vpop.f32.mrf.mxu0
    %v6932 = vadd.f32 0.0, %v6931
    %v6933 = vpop.f32.mrf.mxu0
    %v6934 = vpop.f32.mrf.mxu0
    %v6935 = vadd.f32 0.0, %v6934
    %v6936 = vpop.f32.mrf.mxu0
    %6937 = vmatprep.mubr.bf16.mxu0 0
    %6938 = vmatmul.mubr.bf16.gmra.mxu0 %v6836
    %v6939 = vpop.f32.mrf.mxu0
    %v6940 = vadd.f32 0.0, %v6939
    %v6941 = vpop.f32.mrf.mxu0
    %v6942 = vpop.f32.mrf.mxu0
    %v6943 = vadd.f32 0.0, %v6942
    %v6944 = vpop.f32.mrf.mxu0
    %6945 = vmatprep.mubr.bf16.mxu0 0
    %6946 = vmatmul.mubr.bf16.gmra.mxu0 %v6839
    %v6947 = vpop.f32.mrf.mxu0
    %v6948 = vadd.f32 0.0, %v6947
    %v6949 = vpop.f32.mrf.mxu0
    %v6950 = vpop.f32.mrf.mxu0
    %v6951 = vpop.f32.mrf.mxu0
    %6952 = vdwg.mxu0
    %v6953 = vadd.f32 %v6731, %v6876
    %v6954 = vadd.f32 %v6732, %v6879
    %v6955 = vadd.f32 %v6733, %v6884
    %v6956 = vadd.f32 %v6734, %v6887
    %v6957 = vadd.f32 %v6735, %v6892
    %v6958 = vadd.f32 %v6736, %v6895
    %v6959 = vadd.f32 %v6737, %v6900
    %v6960 = vadd.f32 %v6738, %v6903
    %v6961 = vadd.f32 %v6739, %v6908
    %v6962 = vadd.f32 %v6740, %v6911
    %v6963 = vadd.f32 %v6741, %v6916
    %v6964 = vadd.f32 %v6742, %v6919
    %v6965 = vadd.f32 %v6743, %v6924
    %v6966 = vadd.f32 %v6744, %v6927
    %v6967 = vadd.f32 %v6745, %v6932
    %v6968 = vadd.f32 %v6746, %v6935
    %v6969 = vadd.f32 %v6747, %v6940
    %v6970 = vadd.f32 %v6748, %v6943
    %v6971 = vadd.f32 %v6749, %v6948
    %v6972 = vld [vmem:[%s4] sm:$0x1]
    %v6974 = vlaneseq
    %v6975 = vshrl.u32 %v6974, 7
    %v6976 = vsub.s32 0, %v6975
    %v6977 = vrot.slane %v6972, %v6976
    %v6979 = vadd.f32 %v6953, %v6977
    %v6980 = vadd.f32 %v6954, %v6977
    %v6981 = vadd.f32 %v6955, %v6977
    %v6982 = vadd.f32 %v6956, %v6977
    %v6983 = vadd.f32 %v6957, %v6977
    %v6984 = vadd.f32 %v6958, %v6977
    %v6985 = vadd.f32 %v6959, %v6977
    %v6986 = vadd.f32 %v6960, %v6977
    %v6987 = vadd.f32 %v6961, %v6977
    %v6988 = vadd.f32 %v6962, %v6977
    %v6989 = vadd.f32 %v6963, %v6977
    %v6990 = vadd.f32 %v6964, %v6977
    %v6991 = vadd.f32 %v6965, %v6977
    %v6992 = vadd.f32 %v6966, %v6977
    %v6993 = vadd.f32 %v6967, %v6977
    %v6994 = vadd.f32 %v6968, %v6977
    %v6995 = vadd.f32 %v6969, %v6977
    %v6996 = vadd.f32 %v6970, %v6977
    %v6997 = vadd.f32 %v6971, %v6977
    %v6998 = vmax.f32 %v6979, 0.0
    %v6999 = vmax.f32 %v6980, 0.0
    %v7000 = vmax.f32 %v6981, 0.0
    %v7001 = vmax.f32 %v6982, 0.0
    %v7002 = vmax.f32 %v6983, 0.0
    %v7003 = vmax.f32 %v6984, 0.0
    %v7004 = vmax.f32 %v6985, 0.0
    %v7005 = vmax.f32 %v6986, 0.0
    %v7006 = vmax.f32 %v6987, 0.0
    %v7007 = vmax.f32 %v6988, 0.0
    %v7008 = vmax.f32 %v6989, 0.0
    %v7009 = vmax.f32 %v6990, 0.0
    %v7010 = vmax.f32 %v6991, 0.0
    %v7011 = vmax.f32 %v6992, 0.0
    %v7012 = vmax.f32 %v6993, 0.0
    %v7013 = vmax.f32 %v6994, 0.0
    %v7014 = vmax.f32 %v6995, 0.0
    %v7015 = vmax.f32 %v6996, 0.0
    %v7016 = vmax.f32 %v6997, 0.0
    %7017 = vst [vmem:[#allocation4] sm:$0xff] %v6998
    %7018 = vst [vmem:[#allocation4 + $0x8] sm:$0xff] %v6999
    %7019 = vst [vmem:[#allocation4 + $0x10] sm:$0xff] %v7000
    %7020 = vst [vmem:[#allocation4 + $0x18] sm:$0xff] %v7001
    %7021 = vst [vmem:[#allocation4 + $0x20] sm:$0xff] %v7002
    %7022 = vst [vmem:[#allocation4 + $0x28] sm:$0xff] %v7003
    %7023 = vst [vmem:[#allocation4 + $0x30] sm:$0xff] %v7004
    %7024 = vst [vmem:[#allocation4 + $0x38] sm:$0xff] %v7005
    %7025 = vst [vmem:[#allocation4 + $0x40] sm:$0xff] %v7006
    %7026 = vst [vmem:[#allocation4 + $0x48] sm:$0xff] %v7007
    %7027 = vst [vmem:[#allocation4 + $0x50] sm:$0xff] %v7008
    %7028 = vst [vmem:[#allocation4 + $0x58] sm:$0xff] %v7009
    %7029 = vst [vmem:[#allocation4 + $0x60] sm:$0xff] %v7010
    %7030 = vst [vmem:[#allocation4 + $0x68] sm:$0xff] %v7011
    %7031 = vst [vmem:[#allocation4 + $0x70] sm:$0xff] %v7012
    %7032 = vst [vmem:[#allocation4 + $0x78] sm:$0xff] %v7013
    %7033 = vst [vmem:[#allocation4 + $0x80] sm:$0xff] %v7014
    %7034 = vst [vmem:[#allocation4 + $0x88] sm:$0xff] %v7015
    %7035 = vst [vmem:[#allocation4 + $0x90] sm:$0xff] %v7016
    %v7036 = vld [vmem:[#allocation4] ss:$2 sm:$0xff]
    %v7037 = vld [vmem:[%s2815] ss:$2 sm:$0xff]
    %v7038 = vld [vmem:[%s2817] ss:$2 sm:$0xff]
    %v7039 = vld [vmem:[%s2819] ss:$2 sm:$0xff]
    %v7040 = vld [vmem:[%s2821] ss:$2 sm:$0xff]
    %v7041 = vld [vmem:[%s2823] ss:$2 sm:$0xff]
    %v7042 = vld [vmem:[%s2825] ss:$2 sm:$0xff]
    %v7043 = vld [vmem:[%s2827] ss:$2 sm:$0xff]
    %v7044 = vld [vmem:[%s2829] ss:$2 sm:$0xff]
    %v7045 = vld [vmem:[%s2831] ss:$2 sm:$0xf]
    %v7046 = vld [vmem:[%s2833] ss:$2 sm:$0xff]
    %v7047 = vld [vmem:[%s2835] ss:$2 sm:$0xff]
    %v7048 = vld [vmem:[%s2837] ss:$2 sm:$0xff]
    %v7049 = vld [vmem:[%s2839] ss:$2 sm:$0xff]
    %v7050 = vld [vmem:[%s2841] ss:$2 sm:$0xff]
    %v7051 = vld [vmem:[%s2843] ss:$2 sm:$0xff]
    %v7052 = vld [vmem:[%s2845] ss:$2 sm:$0xff]
    %v7053 = vld [vmem:[%s2847] ss:$2 sm:$0xff]
    %v7054 = vld [vmem:[%s2849] ss:$2 sm:$0xff]
    %v7055 = vld [vmem:[%s2851] ss:$2 sm:$0xf]
    %v7056 = vmax.f32 %v7036, %v7046
    %v7057 = vmax.f32 %v7037, %v7047
    %v7058 = vmax.f32 %v7038, %v7048
    %v7059 = vmax.f32 %v7039, %v7049
    %v7060 = vmax.f32 %v7040, %v7050
    %v7061 = vmax.f32 %v7041, %v7051
    %v7062 = vmax.f32 %v7042, %v7052
    %v7063 = vmax.f32 %v7043, %v7053
    %v7064 = vmax.f32 %v7044, %v7054
    %v7065 = vmax.f32 %v7045, %v7055
    %7066 = vst [vmem:[#allocation5 + $0x2] sm:$0xff] %v7056
    %7067 = vst [vmem:[#allocation5 + $0xa] sm:$0xff] %v7057
    %7068 = vst [vmem:[#allocation5 + $0x12] sm:$0xff] %v7058
    %7069 = vst [vmem:[#allocation5 + $0x1a] sm:$0xff] %v7059
    %7070 = vst [vmem:[#allocation5 + $0x22] sm:$0xff] %v7060
    %7071 = vst [vmem:[#allocation5 + $0x2a] sm:$0xff] %v7061
    %7072 = vst [vmem:[#allocation5 + $0x32] sm:$0xff] %v7062
    %7073 = vst [vmem:[#allocation5 + $0x3a] sm:$0xff] %v7063
    %7074 = vst [vmem:[#allocation5 + $0x42] sm:$0xff] %v7064
    %7075 = vst [vmem:[#allocation5 + $0x4a] sm:$0xf] %v7065
    %v7076 = vld [vmem:[#allocation5] ss:$2 sm:$0xff]
    %v7077 = vld [vmem:[%s2874] ss:$2 sm:$0xff]
    %v7078 = vld [vmem:[%s2876] ss:$2 sm:$0xff]
    %v7079 = vld [vmem:[%s2878] ss:$2 sm:$0xff]
    %v7080 = vld [vmem:[%s2880] ss:$2 sm:$0xf]
    %v7081 = vpack.c.bf16 %v7077, %v7076
    %v7082 = vpack.c.bf16 %v7079, %v7078
    %v7083 = vpack.c.bf16 %v7080, %v7080
    %v7084 = vld [vmem:[#allocation14] sm:$0xf]
    %v7085 = vld [vmem:[#allocation14 + $0x4] sm:$0xf]
    %v7086 = vld [vmem:[#allocation14 + $0x8] sm:$0xf]
    %v7087 = vld [vmem:[#allocation14 + $0xc] sm:$0xf]
    %v7088 = vld [vmem:[#allocation14 + $0x10] sm:$0xf]
    %v7089 = vld [vmem:[#allocation14 + $0x14] sm:$0xf]
    %v7090 = vld [vmem:[#allocation14 + $0x18] sm:$0xf]
    %v7091 = vld [vmem:[#allocation14 + $0x1c] sm:$0xf]
    %v7092 = vld [vmem:[#allocation14 + $0x20] sm:$0xf]
    %v7093 = vld [vmem:[#allocation14 + $0x24] sm:$0xf]
    %v7094 = vld [vmem:[#allocation14 + $0x28] sm:$0xf]
    %v7095 = vld [vmem:[#allocation14 + $0x2c] sm:$0xf]
    %v7096 = vld [vmem:[#allocation14 + $0x30] sm:$0xf]
    %v7097 = vld [vmem:[#allocation14 + $0x34] sm:$0xf]
    %v7098 = vld [vmem:[#allocation14 + $0x38] sm:$0xf]
    %v7099 = vld [vmem:[#allocation14 + $0x3c] sm:$0xf]
    %v7100 = vld [vmem:[%s2901] ss:$2 sm:$0xff]
    %v7101 = vld [vmem:[%s2903] ss:$2 sm:$0xff]
    %v7102 = vld [vmem:[%s2905] ss:$2 sm:$0xff]
    %v7103 = vld [vmem:[%s2907] ss:$2 sm:$0xff]
    %v7104 = vld [vmem:[%s2909] ss:$2 sm:$0xf]
    %v7105 = vpack.c.bf16 %v7101, %v7100
    %v7106 = vpack.c.bf16 %v7103, %v7102
    %v7107 = vpack.c.bf16 %v7104, %v7104
    %v7108 = vld [vmem:[#allocation14 + $0x40] sm:$0xf]
    %v7109 = vld [vmem:[#allocation14 + $0x44] sm:$0xf]
    %v7110 = vld [vmem:[#allocation14 + $0x48] sm:$0xf]
    %v7111 = vld [vmem:[#allocation14 + $0x4c] sm:$0xf]
    %v7112 = vld [vmem:[#allocation14 + $0x50] sm:$0xf]
    %v7113 = vld [vmem:[#allocation14 + $0x54] sm:$0xf]
    %v7114 = vld [vmem:[#allocation14 + $0x58] sm:$0xf]
    %v7115 = vld [vmem:[#allocation14 + $0x5c] sm:$0xf]
    %v7116 = vld [vmem:[#allocation14 + $0x60] sm:$0xf]
    %v7117 = vld [vmem:[#allocation14 + $0x64] sm:$0xf]
    %v7118 = vld [vmem:[#allocation14 + $0x68] sm:$0xf]
    %v7119 = vld [vmem:[#allocation14 + $0x6c] sm:$0xf]
    %v7120 = vld [vmem:[#allocation14 + $0x70] sm:$0xf]
    %v7121 = vld [vmem:[#allocation14 + $0x74] sm:$0xf]
    %v7122 = vld [vmem:[#allocation14 + $0x78] sm:$0xf]
    %v7123 = vld [vmem:[#allocation14 + $0x7c] sm:$0xf]
    %v7140 = vunpack.c.l.b16 %v7108
    %v7141 = vunpack.c.l.b16 %v7109
    %v7142 = vunpack.c.l.b16 %v7110
    %v7143 = vunpack.c.l.b16 %v7111
    %v7144 = vunpack.c.l.b16 %v7112
    %v7145 = vunpack.c.l.b16 %v7113
    %v7146 = vunpack.c.l.b16 %v7114
    %v7147 = vunpack.c.l.b16 %v7115
    %v7148 = vunpack.c.l.b16 %v7116
    %v7149 = vunpack.c.l.b16 %v7117
    %v7150 = vunpack.c.l.b16 %v7118
    %v7151 = vunpack.c.l.b16 %v7119
    %v7152 = vunpack.c.l.b16 %v7120
    %v7153 = vunpack.c.l.b16 %v7121
    %v7154 = vunpack.c.l.b16 %v7122
    %v7155 = vunpack.c.l.b16 %v7123
    %v7156 = vpack.c.b16 %v7141, %v7140
    %v7157 = vpack.c.b16 %v7143, %v7142
    %v7158 = vpack.c.b16 %v7145, %v7144
    %v7159 = vpack.c.b16 %v7147, %v7146
    %v7160 = vpack.c.b16 %v7149, %v7148
    %v7161 = vpack.c.b16 %v7151, %v7150
    %v7162 = vpack.c.b16 %v7153, %v7152
    %v7163 = vpack.c.b16 %v7155, %v7154
    %7172 = vmatprep.subr.bf16.mxu0 0
    %7173 = vmatpush1.bf16.msra.mxu0 %v7163
    %7174 = vmatprep.subr.bf16.mxu0 0
    %7175 = vmatpush1.bf16.msra.mxu0 %v7162
    %7176 = vmatprep.subr.bf16.mxu0 0
    %7177 = vmatpush1.bf16.msra.mxu0 %v7161
    %7178 = vmatprep.subr.bf16.mxu0 0
    %7179 = vmatpush1.bf16.msra.mxu0 %v7160
    %7180 = vmatprep.subr.bf16.mxu0 0
    %7181 = vmatpush1.bf16.msra.mxu0 %v7159
    %7182 = vmatprep.subr.bf16.mxu0 0
    %7183 = vmatpush1.bf16.msra.mxu0 %v7158
    %7184 = vmatprep.subr.bf16.mxu0 0
    %7185 = vmatpush1.bf16.msra.mxu0 %v7157
    %7186 = vmatprep.subr.bf16.mxu0 0
    %7187 = vmatpush1.bf16.msra.mxu0 %v7156
    %7188 = vmatprep.subr.bf16.mxu0 0
    %7189 = vmatpush2.bf16.msra.mxu0 0
    %7190 = vmatprep.subr.bf16.mxu0 0
    %7191 = vmatpush2.bf16.msra.mxu0 0
    %7192 = vmatprep.subr.bf16.mxu0 0
    %7193 = vmatpush2.bf16.msra.mxu0 0
    %7194 = vmatprep.subr.bf16.mxu0 0
    %7195 = vmatpush2.bf16.msra.mxu0 0
    %7196 = vmatprep.subr.bf16.mxu0 0
    %7197 = vmatpush2.bf16.msra.mxu0 0
    %7198 = vmatprep.subr.bf16.mxu0 0
    %7199 = vmatpush2.bf16.msra.mxu0 0
    %7200 = vmatprep.subr.bf16.mxu0 0
    %7201 = vmatpush2.bf16.msra.mxu0 0
    %7202 = vmatprep.subr.bf16.mxu0 0
    %7203 = vmatpush2.bf16.msra.mxu0 0
    %7204 = vmatprep.mubr.bf16.mxu0 0
    %7205 = vmatmul.mubr.bf16.gmra.mxu0 %v7105
    %v7206 = vpop.f32.mrf.mxu0
    %v7207 = vadd.f32 0.0, %v7206
    %v7208 = vpop.f32.mrf.mxu0
    %v7209 = vpop.f32.mrf.mxu0
    %v7210 = vadd.f32 0.0, %v7209
    %v7211 = vpop.f32.mrf.mxu0
    %7212 = vmatprep.mubr.bf16.mxu0 0
    %7213 = vmatmul.mubr.bf16.gmra.mxu0 %v7106
    %v7214 = vpop.f32.mrf.mxu0
    %v7215 = vadd.f32 0.0, %v7214
    %v7216 = vpop.f32.mrf.mxu0
    %v7217 = vpop.f32.mrf.mxu0
    %v7218 = vadd.f32 0.0, %v7217
    %v7219 = vpop.f32.mrf.mxu0
    %7220 = vmatprep.mubr.bf16.mxu0 0
    %7221 = vmatmul.mubr.bf16.gmra.mxu0 %v7107
    %v7222 = vpop.f32.mrf.mxu0
    %v7223 = vadd.f32 0.0, %v7222
    %v7224 = vpop.f32.mrf.mxu0
    %v7225 = vpop.f32.mrf.mxu0
    %v7226 = vpop.f32.mrf.mxu0
    %7227 = vdwg.mxu0
    %v7244 = vunpack.c.l.b16 %v7084
    %v7245 = vunpack.c.l.b16 %v7085
    %v7246 = vunpack.c.l.b16 %v7086
    %v7247 = vunpack.c.l.b16 %v7087
    %v7248 = vunpack.c.l.b16 %v7088
    %v7249 = vunpack.c.l.b16 %v7089
    %v7250 = vunpack.c.l.b16 %v7090
    %v7251 = vunpack.c.l.b16 %v7091
    %v7252 = vunpack.c.l.b16 %v7092
    %v7253 = vunpack.c.l.b16 %v7093
    %v7254 = vunpack.c.l.b16 %v7094
    %v7255 = vunpack.c.l.b16 %v7095
    %v7256 = vunpack.c.l.b16 %v7096
    %v7257 = vunpack.c.l.b16 %v7097
    %v7258 = vunpack.c.l.b16 %v7098
    %v7259 = vunpack.c.l.b16 %v7099
    %v7260 = vpack.c.b16 %v7245, %v7244
    %v7261 = vpack.c.b16 %v7247, %v7246
    %v7262 = vpack.c.b16 %v7249, %v7248
    %v7263 = vpack.c.b16 %v7251, %v7250
    %v7264 = vpack.c.b16 %v7253, %v7252
    %v7265 = vpack.c.b16 %v7255, %v7254
    %v7266 = vpack.c.b16 %v7257, %v7256
    %v7267 = vpack.c.b16 %v7259, %v7258
    %7276 = vmatprep.subr.bf16.mxu0 0
    %7277 = vmatpush1.bf16.msra.mxu0 %v7267
    %7278 = vmatprep.subr.bf16.mxu0 0
    %7279 = vmatpush1.bf16.msra.mxu0 %v7266
    %7280 = vmatprep.subr.bf16.mxu0 0
    %7281 = vmatpush1.bf16.msra.mxu0 %v7265
    %7282 = vmatprep.subr.bf16.mxu0 0
    %7283 = vmatpush1.bf16.msra.mxu0 %v7264
    %7284 = vmatprep.subr.bf16.mxu0 0
    %7285 = vmatpush1.bf16.msra.mxu0 %v7263
    %7286 = vmatprep.subr.bf16.mxu0 0
    %7287 = vmatpush1.bf16.msra.mxu0 %v7262
    %7288 = vmatprep.subr.bf16.mxu0 0
    %7289 = vmatpush1.bf16.msra.mxu0 %v7261
    %7290 = vmatprep.subr.bf16.mxu0 0
    %7291 = vmatpush1.bf16.msra.mxu0 %v7260
    %7292 = vmatprep.subr.bf16.mxu0 0
    %7293 = vmatpush2.bf16.msra.mxu0 0
    %7294 = vmatprep.subr.bf16.mxu0 0
    %7295 = vmatpush2.bf16.msra.mxu0 0
    %7296 = vmatprep.subr.bf16.mxu0 0
    %7297 = vmatpush2.bf16.msra.mxu0 0
    %7298 = vmatprep.subr.bf16.mxu0 0
    %7299 = vmatpush2.bf16.msra.mxu0 0
    %7300 = vmatprep.subr.bf16.mxu0 0
    %7301 = vmatpush2.bf16.msra.mxu0 0
    %7302 = vmatprep.subr.bf16.mxu0 0
    %7303 = vmatpush2.bf16.msra.mxu0 0
    %7304 = vmatprep.subr.bf16.mxu0 0
    %7305 = vmatpush2.bf16.msra.mxu0 0
    %7306 = vmatprep.subr.bf16.mxu0 0
    %7307 = vmatpush2.bf16.msra.mxu0 0
    %7308 = vmatprep.mubr.bf16.mxu0 0
    %7309 = vmatmul.mubr.bf16.gmra.mxu0 %v7081
    %v7310 = vpop.f32.mrf.mxu0
    %v7311 = vadd.f32 %v7207, %v7310
    %v7312 = vpop.f32.mrf.mxu0
    %v7313 = vpop.f32.mrf.mxu0
    %v7314 = vadd.f32 %v7210, %v7313
    %v7315 = vpop.f32.mrf.mxu0
    %7316 = vmatprep.mubr.bf16.mxu0 0
    %7317 = vmatmul.mubr.bf16.gmra.mxu0 %v7082
    %v7318 = vpop.f32.mrf.mxu0
    %v7319 = vadd.f32 %v7215, %v7318
    %v7320 = vpop.f32.mrf.mxu0
    %v7321 = vpop.f32.mrf.mxu0
    %v7322 = vadd.f32 %v7218, %v7321
    %v7323 = vpop.f32.mrf.mxu0
    %7324 = vmatprep.mubr.bf16.mxu0 0
    %7325 = vmatmul.mubr.bf16.gmra.mxu0 %v7083
    %v7326 = vpop.f32.mrf.mxu0
    %v7327 = vadd.f32 %v7223, %v7326
    %v7328 = vpop.f32.mrf.mxu0
    %v7329 = vpop.f32.mrf.mxu0
    %v7330 = vpop.f32.mrf.mxu0
    %7331 = vdwg.mxu0
    %v7332 = vld [vmem:[%s3138] ss:$2 sm:$0xff]
    %v7333 = vld [vmem:[%s3140] ss:$2 sm:$0xff]
    %v7334 = vld [vmem:[%s3142] ss:$2 sm:$0xff]
    %v7335 = vld [vmem:[%s3144] ss:$2 sm:$0xff]
    %v7336 = vld [vmem:[%s3146] ss:$2 sm:$0xf]
    %v7337 = vpack.c.bf16 %v7333, %v7332
    %v7338 = vpack.c.bf16 %v7335, %v7334
    %v7339 = vpack.c.bf16 %v7336, %v7336
    %v7340 = vld [vmem:[#allocation14 + $0x80] sm:$0xf]
    %v7341 = vld [vmem:[#allocation14 + $0x84] sm:$0xf]
    %v7342 = vld [vmem:[#allocation14 + $0x88] sm:$0xf]
    %v7343 = vld [vmem:[#allocation14 + $0x8c] sm:$0xf]
    %v7344 = vld [vmem:[#allocation14 + $0x90] sm:$0xf]
    %v7345 = vld [vmem:[#allocation14 + $0x94] sm:$0xf]
    %v7346 = vld [vmem:[#allocation14 + $0x98] sm:$0xf]
    %v7347 = vld [vmem:[#allocation14 + $0x9c] sm:$0xf]
    %v7348 = vld [vmem:[#allocation14 + $0xa0] sm:$0xf]
    %v7349 = vld [vmem:[#allocation14 + $0xa4] sm:$0xf]
    %v7350 = vld [vmem:[#allocation14 + $0xa8] sm:$0xf]
    %v7351 = vld [vmem:[#allocation14 + $0xac] sm:$0xf]
    %v7352 = vld [vmem:[#allocation14 + $0xb0] sm:$0xf]
    %v7353 = vld [vmem:[#allocation14 + $0xb4] sm:$0xf]
    %v7354 = vld [vmem:[#allocation14 + $0xb8] sm:$0xf]
    %v7355 = vld [vmem:[#allocation14 + $0xbc] sm:$0xf]
    %v7372 = vunpack.c.l.b16 %v7340
    %v7373 = vunpack.c.l.b16 %v7341
    %v7374 = vunpack.c.l.b16 %v7342
    %v7375 = vunpack.c.l.b16 %v7343
    %v7376 = vunpack.c.l.b16 %v7344
    %v7377 = vunpack.c.l.b16 %v7345
    %v7378 = vunpack.c.l.b16 %v7346
    %v7379 = vunpack.c.l.b16 %v7347
    %v7380 = vunpack.c.l.b16 %v7348
    %v7381 = vunpack.c.l.b16 %v7349
    %v7382 = vunpack.c.l.b16 %v7350
    %v7383 = vunpack.c.l.b16 %v7351
    %v7384 = vunpack.c.l.b16 %v7352
    %v7385 = vunpack.c.l.b16 %v7353
    %v7386 = vunpack.c.l.b16 %v7354
    %v7387 = vunpack.c.l.b16 %v7355
    %v7388 = vpack.c.b16 %v7373, %v7372
    %v7389 = vpack.c.b16 %v7375, %v7374
    %v7390 = vpack.c.b16 %v7377, %v7376
    %v7391 = vpack.c.b16 %v7379, %v7378
    %v7392 = vpack.c.b16 %v7381, %v7380
    %v7393 = vpack.c.b16 %v7383, %v7382
    %v7394 = vpack.c.b16 %v7385, %v7384
    %v7395 = vpack.c.b16 %v7387, %v7386
    %7404 = vmatprep.subr.bf16.mxu0 0
    %7405 = vmatpush1.bf16.msra.mxu0 %v7395
    %7406 = vmatprep.subr.bf16.mxu0 0
    %7407 = vmatpush1.bf16.msra.mxu0 %v7394
    %7408 = vmatprep.subr.bf16.mxu0 0
    %7409 = vmatpush1.bf16.msra.mxu0 %v7393
    %7410 = vmatprep.subr.bf16.mxu0 0
    %7411 = vmatpush1.bf16.msra.mxu0 %v7392
    %7412 = vmatprep.subr.bf16.mxu0 0
    %7413 = vmatpush1.bf16.msra.mxu0 %v7391
    %7414 = vmatprep.subr.bf16.mxu0 0
    %7415 = vmatpush1.bf16.msra.mxu0 %v7390
    %7416 = vmatprep.subr.bf16.mxu0 0
    %7417 = vmatpush1.bf16.msra.mxu0 %v7389
    %7418 = vmatprep.subr.bf16.mxu0 0
    %7419 = vmatpush1.bf16.msra.mxu0 %v7388
    %7420 = vmatprep.subr.bf16.mxu0 0
    %7421 = vmatpush2.bf16.msra.mxu0 0
    %7422 = vmatprep.subr.bf16.mxu0 0
    %7423 = vmatpush2.bf16.msra.mxu0 0
    %7424 = vmatprep.subr.bf16.mxu0 0
    %7425 = vmatpush2.bf16.msra.mxu0 0
    %7426 = vmatprep.subr.bf16.mxu0 0
    %7427 = vmatpush2.bf16.msra.mxu0 0
    %7428 = vmatprep.subr.bf16.mxu0 0
    %7429 = vmatpush2.bf16.msra.mxu0 0
    %7430 = vmatprep.subr.bf16.mxu0 0
    %7431 = vmatpush2.bf16.msra.mxu0 0
    %7432 = vmatprep.subr.bf16.mxu0 0
    %7433 = vmatpush2.bf16.msra.mxu0 0
    %7434 = vmatprep.subr.bf16.mxu0 0
    %7435 = vmatpush2.bf16.msra.mxu0 0
    %7436 = vmatprep.mubr.bf16.mxu0 0
    %7437 = vmatmul.mubr.bf16.gmra.mxu0 %v7337
    %v7438 = vpop.f32.mrf.mxu0
    %v7439 = vadd.f32 0.0, %v7438
    %v7440 = vpop.f32.mrf.mxu0
    %v7441 = vpop.f32.mrf.mxu0
    %v7442 = vadd.f32 0.0, %v7441
    %v7443 = vpop.f32.mrf.mxu0
    %7444 = vmatprep.mubr.bf16.mxu0 0
    %7445 = vmatmul.mubr.bf16.gmra.mxu0 %v7338
    %v7446 = vpop.f32.mrf.mxu0
    %v7447 = vadd.f32 0.0, %v7446
    %v7448 = vpop.f32.mrf.mxu0
    %v7449 = vpop.f32.mrf.mxu0
    %v7450 = vadd.f32 0.0, %v7449
    %v7451 = vpop.f32.mrf.mxu0
    %7452 = vmatprep.mubr.bf16.mxu0 0
    %7453 = vmatmul.mubr.bf16.gmra.mxu0 %v7339
    %v7454 = vpop.f32.mrf.mxu0
    %v7455 = vadd.f32 0.0, %v7454
    %v7456 = vpop.f32.mrf.mxu0
    %v7457 = vpop.f32.mrf.mxu0
    %v7458 = vpop.f32.mrf.mxu0
    %7459 = vdwg.mxu0
    %v7460 = vadd.f32 %v7311, %v7439
    %v7461 = vadd.f32 %v7314, %v7442
    %v7462 = vadd.f32 %v7319, %v7447
    %v7463 = vadd.f32 %v7322, %v7450
    %v7464 = vadd.f32 %v7327, %v7455
    %v7465 = vld [vmem:[%s3276] ss:$2 sm:$0xff]
    %v7466 = vld [vmem:[%s3278] ss:$2 sm:$0xff]
    %v7467 = vld [vmem:[%s3280] ss:$2 sm:$0xff]
    %v7468 = vld [vmem:[%s3282] ss:$2 sm:$0xff]
    %v7469 = vld [vmem:[%s3284] ss:$2 sm:$0xf]
    %v7470 = vpack.c.bf16 %v7466, %v7465
    %v7471 = vpack.c.bf16 %v7468, %v7467
    %v7472 = vpack.c.bf16 %v7469, %v7469
    %v7473 = vld [vmem:[#allocation14 + $0xc0] sm:$0xf]
    %v7474 = vld [vmem:[#allocation14 + $0xc4] sm:$0xf]
    %v7475 = vld [vmem:[#allocation14 + $0xc8] sm:$0xf]
    %v7476 = vld [vmem:[#allocation14 + $0xcc] sm:$0xf]
    %v7477 = vld [vmem:[#allocation14 + $0xd0] sm:$0xf]
    %v7478 = vld [vmem:[#allocation14 + $0xd4] sm:$0xf]
    %v7479 = vld [vmem:[#allocation14 + $0xd8] sm:$0xf]
    %v7480 = vld [vmem:[#allocation14 + $0xdc] sm:$0xf]
    %v7481 = vld [vmem:[#allocation14 + $0xe0] sm:$0xf]
    %v7482 = vld [vmem:[#allocation14 + $0xe4] sm:$0xf]
    %v7483 = vld [vmem:[#allocation14 + $0xe8] sm:$0xf]
    %v7484 = vld [vmem:[#allocation14 + $0xec] sm:$0xf]
    %v7485 = vld [vmem:[#allocation14 + $0xf0] sm:$0xf]
    %v7486 = vld [vmem:[#allocation14 + $0xf4] sm:$0xf]
    %v7487 = vld [vmem:[#allocation14 + $0xf8] sm:$0xf]
    %v7488 = vld [vmem:[#allocation14 + $0xfc] sm:$0xf]
    %v7505 = vunpack.c.l.b16 %v7473
    %v7506 = vunpack.c.l.b16 %v7474
    %v7507 = vunpack.c.l.b16 %v7475
    %v7508 = vunpack.c.l.b16 %v7476
    %v7509 = vunpack.c.l.b16 %v7477
    %v7510 = vunpack.c.l.b16 %v7478
    %v7511 = vunpack.c.l.b16 %v7479
    %v7512 = vunpack.c.l.b16 %v7480
    %v7513 = vunpack.c.l.b16 %v7481
    %v7514 = vunpack.c.l.b16 %v7482
    %v7515 = vunpack.c.l.b16 %v7483
    %v7516 = vunpack.c.l.b16 %v7484
    %v7517 = vunpack.c.l.b16 %v7485
    %v7518 = vunpack.c.l.b16 %v7486
    %v7519 = vunpack.c.l.b16 %v7487
    %v7520 = vunpack.c.l.b16 %v7488
    %v7521 = vpack.c.b16 %v7506, %v7505
    %v7522 = vpack.c.b16 %v7508, %v7507
    %v7523 = vpack.c.b16 %v7510, %v7509
    %v7524 = vpack.c.b16 %v7512, %v7511
    %v7525 = vpack.c.b16 %v7514, %v7513
    %v7526 = vpack.c.b16 %v7516, %v7515
    %v7527 = vpack.c.b16 %v7518, %v7517
    %v7528 = vpack.c.b16 %v7520, %v7519
    %7537 = vmatprep.subr.bf16.mxu0 0
    %7538 = vmatpush1.bf16.msra.mxu0 %v7528
    %7539 = vmatprep.subr.bf16.mxu0 0
    %7540 = vmatpush1.bf16.msra.mxu0 %v7527
    %7541 = vmatprep.subr.bf16.mxu0 0
    %7542 = vmatpush1.bf16.msra.mxu0 %v7526
    %7543 = vmatprep.subr.bf16.mxu0 0
    %7544 = vmatpush1.bf16.msra.mxu0 %v7525
    %7545 = vmatprep.subr.bf16.mxu0 0
    %7546 = vmatpush1.bf16.msra.mxu0 %v7524
    %7547 = vmatprep.subr.bf16.mxu0 0
    %7548 = vmatpush1.bf16.msra.mxu0 %v7523
    %7549 = vmatprep.subr.bf16.mxu0 0
    %7550 = vmatpush1.bf16.msra.mxu0 %v7522
    %7551 = vmatprep.subr.bf16.mxu0 0
    %7552 = vmatpush1.bf16.msra.mxu0 %v7521
    %7553 = vmatprep.subr.bf16.mxu0 0
    %7554 = vmatpush2.bf16.msra.mxu0 0
    %7555 = vmatprep.subr.bf16.mxu0 0
    %7556 = vmatpush2.bf16.msra.mxu0 0
    %7557 = vmatprep.subr.bf16.mxu0 0
    %7558 = vmatpush2.bf16.msra.mxu0 0
    %7559 = vmatprep.subr.bf16.mxu0 0
    %7560 = vmatpush2.bf16.msra.mxu0 0
    %7561 = vmatprep.subr.bf16.mxu0 0
    %7562 = vmatpush2.bf16.msra.mxu0 0
    %7563 = vmatprep.subr.bf16.mxu0 0
    %7564 = vmatpush2.bf16.msra.mxu0 0
    %7565 = vmatprep.subr.bf16.mxu0 0
    %7566 = vmatpush2.bf16.msra.mxu0 0
    %7567 = vmatprep.subr.bf16.mxu0 0
    %7568 = vmatpush2.bf16.msra.mxu0 0
    %7569 = vmatprep.mubr.bf16.mxu0 0
    %7570 = vmatmul.mubr.bf16.gmra.mxu0 %v7470
    %v7571 = vpop.f32.mrf.mxu0
    %v7572 = vadd.f32 0.0, %v7571
    %v7573 = vpop.f32.mrf.mxu0
    %v7574 = vpop.f32.mrf.mxu0
    %v7575 = vadd.f32 0.0, %v7574
    %v7576 = vpop.f32.mrf.mxu0
    %7577 = vmatprep.mubr.bf16.mxu0 0
    %7578 = vmatmul.mubr.bf16.gmra.mxu0 %v7471
    %v7579 = vpop.f32.mrf.mxu0
    %v7580 = vadd.f32 0.0, %v7579
    %v7581 = vpop.f32.mrf.mxu0
    %v7582 = vpop.f32.mrf.mxu0
    %v7583 = vadd.f32 0.0, %v7582
    %v7584 = vpop.f32.mrf.mxu0
    %7585 = vmatprep.mubr.bf16.mxu0 0
    %7586 = vmatmul.mubr.bf16.gmra.mxu0 %v7472
    %v7587 = vpop.f32.mrf.mxu0
    %v7588 = vadd.f32 0.0, %v7587
    %v7589 = vpop.f32.mrf.mxu0
    %v7590 = vpop.f32.mrf.mxu0
    %v7591 = vpop.f32.mrf.mxu0
    %7592 = vdwg.mxu0
    %v7593 = vadd.f32 %v7460, %v7572
    %v7594 = vadd.f32 %v7461, %v7575
    %v7595 = vadd.f32 %v7462, %v7580
    %v7596 = vadd.f32 %v7463, %v7583
    %v7597 = vadd.f32 %v7464, %v7588
    %v7598 = vld [vmem:[%s3414] ss:$2 sm:$0xff]
    %v7599 = vld [vmem:[%s3416] ss:$2 sm:$0xff]
    %v7600 = vld [vmem:[%s3418] ss:$2 sm:$0xff]
    %v7601 = vld [vmem:[%s3420] ss:$2 sm:$0xff]
    %v7602 = vld [vmem:[%s3422] ss:$2 sm:$0xf]
    %v7603 = vpack.c.bf16 %v7599, %v7598
    %v7604 = vpack.c.bf16 %v7601, %v7600
    %v7605 = vpack.c.bf16 %v7602, %v7602
    %v7606 = vld [vmem:[#allocation14 + $0x100] sm:$0xf]
    %v7607 = vld [vmem:[#allocation14 + $0x104] sm:$0xf]
    %v7608 = vld [vmem:[#allocation14 + $0x108] sm:$0xf]
    %v7609 = vld [vmem:[#allocation14 + $0x10c] sm:$0xf]
    %v7610 = vld [vmem:[#allocation14 + $0x110] sm:$0xf]
    %v7611 = vld [vmem:[#allocation14 + $0x114] sm:$0xf]
    %v7612 = vld [vmem:[#allocation14 + $0x118] sm:$0xf]
    %v7613 = vld [vmem:[#allocation14 + $0x11c] sm:$0xf]
    %v7614 = vld [vmem:[#allocation14 + $0x120] sm:$0xf]
    %v7615 = vld [vmem:[#allocation14 + $0x124] sm:$0xf]
    %v7616 = vld [vmem:[#allocation14 + $0x128] sm:$0xf]
    %v7617 = vld [vmem:[#allocation14 + $0x12c] sm:$0xf]
    %v7618 = vld [vmem:[#allocation14 + $0x130] sm:$0xf]
    %v7619 = vld [vmem:[#allocation14 + $0x134] sm:$0xf]
    %v7620 = vld [vmem:[#allocation14 + $0x138] sm:$0xf]
    %v7621 = vld [vmem:[#allocation14 + $0x13c] sm:$0xf]
    %v7638 = vunpack.c.l.b16 %v7606
    %v7639 = vunpack.c.l.b16 %v7607
    %v7640 = vunpack.c.l.b16 %v7608
    %v7641 = vunpack.c.l.b16 %v7609
    %v7642 = vunpack.c.l.b16 %v7610
    %v7643 = vunpack.c.l.b16 %v7611
    %v7644 = vunpack.c.l.b16 %v7612
    %v7645 = vunpack.c.l.b16 %v7613
    %v7646 = vunpack.c.l.b16 %v7614
    %v7647 = vunpack.c.l.b16 %v7615
    %v7648 = vunpack.c.l.b16 %v7616
    %v7649 = vunpack.c.l.b16 %v7617
    %v7650 = vunpack.c.l.b16 %v7618
    %v7651 = vunpack.c.l.b16 %v7619
    %v7652 = vunpack.c.l.b16 %v7620
    %v7653 = vunpack.c.l.b16 %v7621
    %v7654 = vpack.c.b16 %v7639, %v7638
    %v7655 = vpack.c.b16 %v7641, %v7640
    %v7656 = vpack.c.b16 %v7643, %v7642
    %v7657 = vpack.c.b16 %v7645, %v7644
    %v7658 = vpack.c.b16 %v7647, %v7646
    %v7659 = vpack.c.b16 %v7649, %v7648
    %v7660 = vpack.c.b16 %v7651, %v7650
    %v7661 = vpack.c.b16 %v7653, %v7652
    %7670 = vmatprep.subr.bf16.mxu0 0
    %7671 = vmatpush1.bf16.msra.mxu0 %v7661
    %7672 = vmatprep.subr.bf16.mxu0 0
    %7673 = vmatpush1.bf16.msra.mxu0 %v7660
    %7674 = vmatprep.subr.bf16.mxu0 0
    %7675 = vmatpush1.bf16.msra.mxu0 %v7659
    %7676 = vmatprep.subr.bf16.mxu0 0
    %7677 = vmatpush1.bf16.msra.mxu0 %v7658
    %7678 = vmatprep.subr.bf16.mxu0 0
    %7679 = vmatpush1.bf16.msra.mxu0 %v7657
    %7680 = vmatprep.subr.bf16.mxu0 0
    %7681 = vmatpush1.bf16.msra.mxu0 %v7656
    %7682 = vmatprep.subr.bf16.mxu0 0
    %7683 = vmatpush1.bf16.msra.mxu0 %v7655
    %7684 = vmatprep.subr.bf16.mxu0 0
    %7685 = vmatpush1.bf16.msra.mxu0 %v7654
    %7686 = vmatprep.subr.bf16.mxu0 0
    %7687 = vmatpush2.bf16.msra.mxu0 0
    %7688 = vmatprep.subr.bf16.mxu0 0
    %7689 = vmatpush2.bf16.msra.mxu0 0
    %7690 = vmatprep.subr.bf16.mxu0 0
    %7691 = vmatpush2.bf16.msra.mxu0 0
    %7692 = vmatprep.subr.bf16.mxu0 0
    %7693 = vmatpush2.bf16.msra.mxu0 0
    %7694 = vmatprep.subr.bf16.mxu0 0
    %7695 = vmatpush2.bf16.msra.mxu0 0
    %7696 = vmatprep.subr.bf16.mxu0 0
    %7697 = vmatpush2.bf16.msra.mxu0 0
    %7698 = vmatprep.subr.bf16.mxu0 0
    %7699 = vmatpush2.bf16.msra.mxu0 0
    %7700 = vmatprep.subr.bf16.mxu0 0
    %7701 = vmatpush2.bf16.msra.mxu0 0
    %7702 = vmatprep.mubr.bf16.mxu0 0
    %7703 = vmatmul.mubr.bf16.gmra.mxu0 %v7603
    %v7704 = vpop.f32.mrf.mxu0
    %v7705 = vadd.f32 0.0, %v7704
    %v7706 = vpop.f32.mrf.mxu0
    %v7707 = vpop.f32.mrf.mxu0
    %v7708 = vadd.f32 0.0, %v7707
    %v7709 = vpop.f32.mrf.mxu0
    %7710 = vmatprep.mubr.bf16.mxu0 0
    %7711 = vmatmul.mubr.bf16.gmra.mxu0 %v7604
    %v7712 = vpop.f32.mrf.mxu0
    %v7713 = vadd.f32 0.0, %v7712
    %v7714 = vpop.f32.mrf.mxu0
    %v7715 = vpop.f32.mrf.mxu0
    %v7716 = vadd.f32 0.0, %v7715
    %v7717 = vpop.f32.mrf.mxu0
    %7718 = vmatprep.mubr.bf16.mxu0 0
    %7719 = vmatmul.mubr.bf16.gmra.mxu0 %v7605
    %v7720 = vpop.f32.mrf.mxu0
    %v7721 = vadd.f32 0.0, %v7720
    %v7722 = vpop.f32.mrf.mxu0
    %v7723 = vpop.f32.mrf.mxu0
    %v7724 = vpop.f32.mrf.mxu0
    %7725 = vdwg.mxu0
    %v7726 = vadd.f32 %v7593, %v7705
    %v7727 = vadd.f32 %v7594, %v7708
    %v7728 = vadd.f32 %v7595, %v7713
    %v7729 = vadd.f32 %v7596, %v7716
    %v7730 = vadd.f32 %v7597, %v7721
    %v7731 = vld [vmem:[%s3552] ss:$2 sm:$0xff]
    %v7732 = vld [vmem:[%s3554] ss:$2 sm:$0xff]
    %v7733 = vld [vmem:[%s3556] ss:$2 sm:$0xff]
    %v7734 = vld [vmem:[%s3558] ss:$2 sm:$0xff]
    %v7735 = vld [vmem:[%s3560] ss:$2 sm:$0xf]
    %v7736 = vpack.c.bf16 %v7732, %v7731
    %v7737 = vpack.c.bf16 %v7734, %v7733
    %v7738 = vpack.c.bf16 %v7735, %v7735
    %v7739 = vld [vmem:[#allocation14 + $0x140] sm:$0xf]
    %v7740 = vld [vmem:[#allocation14 + $0x144] sm:$0xf]
    %v7741 = vld [vmem:[#allocation14 + $0x148] sm:$0xf]
    %v7742 = vld [vmem:[#allocation14 + $0x14c] sm:$0xf]
    %v7743 = vld [vmem:[#allocation14 + $0x150] sm:$0xf]
    %v7744 = vld [vmem:[#allocation14 + $0x154] sm:$0xf]
    %v7745 = vld [vmem:[#allocation14 + $0x158] sm:$0xf]
    %v7746 = vld [vmem:[#allocation14 + $0x15c] sm:$0xf]
    %v7747 = vld [vmem:[#allocation14 + $0x160] sm:$0xf]
    %v7748 = vld [vmem:[#allocation14 + $0x164] sm:$0xf]
    %v7749 = vld [vmem:[#allocation14 + $0x168] sm:$0xf]
    %v7750 = vld [vmem:[#allocation14 + $0x16c] sm:$0xf]
    %v7751 = vld [vmem:[#allocation14 + $0x170] sm:$0xf]
    %v7752 = vld [vmem:[#allocation14 + $0x174] sm:$0xf]
    %v7753 = vld [vmem:[#allocation14 + $0x178] sm:$0xf]
    %v7754 = vld [vmem:[#allocation14 + $0x17c] sm:$0xf]
    %v7771 = vunpack.c.l.b16 %v7739
    %v7772 = vunpack.c.l.b16 %v7740
    %v7773 = vunpack.c.l.b16 %v7741
    %v7774 = vunpack.c.l.b16 %v7742
    %v7775 = vunpack.c.l.b16 %v7743
    %v7776 = vunpack.c.l.b16 %v7744
    %v7777 = vunpack.c.l.b16 %v7745
    %v7778 = vunpack.c.l.b16 %v7746
    %v7779 = vunpack.c.l.b16 %v7747
    %v7780 = vunpack.c.l.b16 %v7748
    %v7781 = vunpack.c.l.b16 %v7749
    %v7782 = vunpack.c.l.b16 %v7750
    %v7783 = vunpack.c.l.b16 %v7751
    %v7784 = vunpack.c.l.b16 %v7752
    %v7785 = vunpack.c.l.b16 %v7753
    %v7786 = vunpack.c.l.b16 %v7754
    %v7787 = vpack.c.b16 %v7772, %v7771
    %v7788 = vpack.c.b16 %v7774, %v7773
    %v7789 = vpack.c.b16 %v7776, %v7775
    %v7790 = vpack.c.b16 %v7778, %v7777
    %v7791 = vpack.c.b16 %v7780, %v7779
    %v7792 = vpack.c.b16 %v7782, %v7781
    %v7793 = vpack.c.b16 %v7784, %v7783
    %v7794 = vpack.c.b16 %v7786, %v7785
    %7803 = vmatprep.subr.bf16.mxu0 0
    %7804 = vmatpush1.bf16.msra.mxu0 %v7794
    %7805 = vmatprep.subr.bf16.mxu0 0
    %7806 = vmatpush1.bf16.msra.mxu0 %v7793
    %7807 = vmatprep.subr.bf16.mxu0 0
    %7808 = vmatpush1.bf16.msra.mxu0 %v7792
    %7809 = vmatprep.subr.bf16.mxu0 0
    %7810 = vmatpush1.bf16.msra.mxu0 %v7791
    %7811 = vmatprep.subr.bf16.mxu0 0
    %7812 = vmatpush1.bf16.msra.mxu0 %v7790
    %7813 = vmatprep.subr.bf16.mxu0 0
    %7814 = vmatpush1.bf16.msra.mxu0 %v7789
    %7815 = vmatprep.subr.bf16.mxu0 0
    %7816 = vmatpush1.bf16.msra.mxu0 %v7788
    %7817 = vmatprep.subr.bf16.mxu0 0
    %7818 = vmatpush1.bf16.msra.mxu0 %v7787
    %7819 = vmatprep.subr.bf16.mxu0 0
    %7820 = vmatpush2.bf16.msra.mxu0 0
    %7821 = vmatprep.subr.bf16.mxu0 0
    %7822 = vmatpush2.bf16.msra.mxu0 0
    %7823 = vmatprep.subr.bf16.mxu0 0
    %7824 = vmatpush2.bf16.msra.mxu0 0
    %7825 = vmatprep.subr.bf16.mxu0 0
    %7826 = vmatpush2.bf16.msra.mxu0 0
    %7827 = vmatprep.subr.bf16.mxu0 0
    %7828 = vmatpush2.bf16.msra.mxu0 0
    %7829 = vmatprep.subr.bf16.mxu0 0
    %7830 = vmatpush2.bf16.msra.mxu0 0
    %7831 = vmatprep.subr.bf16.mxu0 0
    %7832 = vmatpush2.bf16.msra.mxu0 0
    %7833 = vmatprep.subr.bf16.mxu0 0
    %7834 = vmatpush2.bf16.msra.mxu0 0
    %7835 = vmatprep.mubr.bf16.mxu0 0
    %7836 = vmatmul.mubr.bf16.gmra.mxu0 %v7736
    %v7837 = vpop.f32.mrf.mxu0
    %v7838 = vadd.f32 0.0, %v7837
    %v7839 = vpop.f32.mrf.mxu0
    %v7840 = vpop.f32.mrf.mxu0
    %v7841 = vadd.f32 0.0, %v7840
    %v7842 = vpop.f32.mrf.mxu0
    %7843 = vmatprep.mubr.bf16.mxu0 0
    %7844 = vmatmul.mubr.bf16.gmra.mxu0 %v7737
    %v7845 = vpop.f32.mrf.mxu0
    %v7846 = vadd.f32 0.0, %v7845
    %v7847 = vpop.f32.mrf.mxu0
    %v7848 = vpop.f32.mrf.mxu0
    %v7849 = vadd.f32 0.0, %v7848
    %v7850 = vpop.f32.mrf.mxu0
    %7851 = vmatprep.mubr.bf16.mxu0 0
    %7852 = vmatmul.mubr.bf16.gmra.mxu0 %v7738
    %v7853 = vpop.f32.mrf.mxu0
    %v7854 = vadd.f32 0.0, %v7853
    %v7855 = vpop.f32.mrf.mxu0
    %v7856 = vpop.f32.mrf.mxu0
    %v7857 = vpop.f32.mrf.mxu0
    %7858 = vdwg.mxu0
    %v7859 = vadd.f32 %v7726, %v7838
    %v7860 = vadd.f32 %v7727, %v7841
    %v7861 = vadd.f32 %v7728, %v7846
    %v7862 = vadd.f32 %v7729, %v7849
    %v7863 = vadd.f32 %v7730, %v7854
    %v7864 = vld [vmem:[%s3690] ss:$2 sm:$0xff]
    %v7865 = vld [vmem:[%s3692] ss:$2 sm:$0xff]
    %v7866 = vld [vmem:[%s3694] ss:$2 sm:$0xff]
    %v7867 = vld [vmem:[%s3696] ss:$2 sm:$0xff]
    %v7868 = vld [vmem:[%s3698] ss:$2 sm:$0xf]
    %v7869 = vpack.c.bf16 %v7865, %v7864
    %v7870 = vpack.c.bf16 %v7867, %v7866
    %v7871 = vpack.c.bf16 %v7868, %v7868
    %v7872 = vld [vmem:[#allocation14 + $0x180] sm:$0xf]
    %v7873 = vld [vmem:[#allocation14 + $0x184] sm:$0xf]
    %v7874 = vld [vmem:[#allocation14 + $0x188] sm:$0xf]
    %v7875 = vld [vmem:[#allocation14 + $0x18c] sm:$0xf]
    %v7876 = vld [vmem:[#allocation14 + $0x190] sm:$0xf]
    %v7877 = vld [vmem:[#allocation14 + $0x194] sm:$0xf]
    %v7878 = vld [vmem:[#allocation14 + $0x198] sm:$0xf]
    %v7879 = vld [vmem:[#allocation14 + $0x19c] sm:$0xf]
    %v7880 = vld [vmem:[#allocation14 + $0x1a0] sm:$0xf]
    %v7881 = vld [vmem:[#allocation14 + $0x1a4] sm:$0xf]
    %v7882 = vld [vmem:[#allocation14 + $0x1a8] sm:$0xf]
    %v7883 = vld [vmem:[#allocation14 + $0x1ac] sm:$0xf]
    %v7884 = vld [vmem:[#allocation14 + $0x1b0] sm:$0xf]
    %v7885 = vld [vmem:[#allocation14 + $0x1b4] sm:$0xf]
    %v7886 = vld [vmem:[#allocation14 + $0x1b8] sm:$0xf]
    %v7887 = vld [vmem:[#allocation14 + $0x1bc] sm:$0xf]
    %v7904 = vunpack.c.l.b16 %v7872
    %v7905 = vunpack.c.l.b16 %v7873
    %v7906 = vunpack.c.l.b16 %v7874
    %v7907 = vunpack.c.l.b16 %v7875
    %v7908 = vunpack.c.l.b16 %v7876
    %v7909 = vunpack.c.l.b16 %v7877
    %v7910 = vunpack.c.l.b16 %v7878
    %v7911 = vunpack.c.l.b16 %v7879
    %v7912 = vunpack.c.l.b16 %v7880
    %v7913 = vunpack.c.l.b16 %v7881
    %v7914 = vunpack.c.l.b16 %v7882
    %v7915 = vunpack.c.l.b16 %v7883
    %v7916 = vunpack.c.l.b16 %v7884
    %v7917 = vunpack.c.l.b16 %v7885
    %v7918 = vunpack.c.l.b16 %v7886
    %v7919 = vunpack.c.l.b16 %v7887
    %v7920 = vpack.c.b16 %v7905, %v7904
    %v7921 = vpack.c.b16 %v7907, %v7906
    %v7922 = vpack.c.b16 %v7909, %v7908
    %v7923 = vpack.c.b16 %v7911, %v7910
    %v7924 = vpack.c.b16 %v7913, %v7912
    %v7925 = vpack.c.b16 %v7915, %v7914
    %v7926 = vpack.c.b16 %v7917, %v7916
    %v7927 = vpack.c.b16 %v7919, %v7918
    %7936 = vmatprep.subr.bf16.mxu0 0
    %7937 = vmatpush1.bf16.msra.mxu0 %v7927
    %7938 = vmatprep.subr.bf16.mxu0 0
    %7939 = vmatpush1.bf16.msra.mxu0 %v7926
    %7940 = vmatprep.subr.bf16.mxu0 0
    %7941 = vmatpush1.bf16.msra.mxu0 %v7925
    %7942 = vmatprep.subr.bf16.mxu0 0
    %7943 = vmatpush1.bf16.msra.mxu0 %v7924
    %7944 = vmatprep.subr.bf16.mxu0 0
    %7945 = vmatpush1.bf16.msra.mxu0 %v7923
    %7946 = vmatprep.subr.bf16.mxu0 0
    %7947 = vmatpush1.bf16.msra.mxu0 %v7922
    %7948 = vmatprep.subr.bf16.mxu0 0
    %7949 = vmatpush1.bf16.msra.mxu0 %v7921
    %7950 = vmatprep.subr.bf16.mxu0 0
    %7951 = vmatpush1.bf16.msra.mxu0 %v7920
    %7952 = vmatprep.subr.bf16.mxu0 0
    %7953 = vmatpush2.bf16.msra.mxu0 0
    %7954 = vmatprep.subr.bf16.mxu0 0
    %7955 = vmatpush2.bf16.msra.mxu0 0
    %7956 = vmatprep.subr.bf16.mxu0 0
    %7957 = vmatpush2.bf16.msra.mxu0 0
    %7958 = vmatprep.subr.bf16.mxu0 0
    %7959 = vmatpush2.bf16.msra.mxu0 0
    %7960 = vmatprep.subr.bf16.mxu0 0
    %7961 = vmatpush2.bf16.msra.mxu0 0
    %7962 = vmatprep.subr.bf16.mxu0 0
    %7963 = vmatpush2.bf16.msra.mxu0 0
    %7964 = vmatprep.subr.bf16.mxu0 0
    %7965 = vmatpush2.bf16.msra.mxu0 0
    %7966 = vmatprep.subr.bf16.mxu0 0
    %7967 = vmatpush2.bf16.msra.mxu0 0
    %7968 = vmatprep.mubr.bf16.mxu0 0
    %7969 = vmatmul.mubr.bf16.gmra.mxu0 %v7869
    %v7970 = vpop.f32.mrf.mxu0
    %v7971 = vadd.f32 0.0, %v7970
    %v7972 = vpop.f32.mrf.mxu0
    %v7973 = vpop.f32.mrf.mxu0
    %v7974 = vadd.f32 0.0, %v7973
    %v7975 = vpop.f32.mrf.mxu0
    %7976 = vmatprep.mubr.bf16.mxu0 0
    %7977 = vmatmul.mubr.bf16.gmra.mxu0 %v7870
    %v7978 = vpop.f32.mrf.mxu0
    %v7979 = vadd.f32 0.0, %v7978
    %v7980 = vpop.f32.mrf.mxu0
    %v7981 = vpop.f32.mrf.mxu0
    %v7982 = vadd.f32 0.0, %v7981
    %v7983 = vpop.f32.mrf.mxu0
    %7984 = vmatprep.mubr.bf16.mxu0 0
    %7985 = vmatmul.mubr.bf16.gmra.mxu0 %v7871
    %v7986 = vpop.f32.mrf.mxu0
    %v7987 = vadd.f32 0.0, %v7986
    %v7988 = vpop.f32.mrf.mxu0
    %v7989 = vpop.f32.mrf.mxu0
    %v7990 = vpop.f32.mrf.mxu0
    %7991 = vdwg.mxu0
    %v7992 = vadd.f32 %v7859, %v7971
    %v7993 = vadd.f32 %v7860, %v7974
    %v7994 = vadd.f32 %v7861, %v7979
    %v7995 = vadd.f32 %v7862, %v7982
    %v7996 = vadd.f32 %v7863, %v7987
    %v7997 = vld [vmem:[%s3828] ss:$2 sm:$0xff]
    %v7998 = vld [vmem:[%s3830] ss:$2 sm:$0xff]
    %v7999 = vld [vmem:[%s3832] ss:$2 sm:$0xff]
    %v8000 = vld [vmem:[%s3834] ss:$2 sm:$0xff]
    %v8001 = vld [vmem:[%s3836] ss:$2 sm:$0xf]
    %v8002 = vpack.c.bf16 %v7998, %v7997
    %v8003 = vpack.c.bf16 %v8000, %v7999
    %v8004 = vpack.c.bf16 %v8001, %v8001
    %v8005 = vld [vmem:[#allocation14 + $0x1c0] sm:$0xf]
    %v8006 = vld [vmem:[#allocation14 + $0x1c4] sm:$0xf]
    %v8007 = vld [vmem:[#allocation14 + $0x1c8] sm:$0xf]
    %v8008 = vld [vmem:[#allocation14 + $0x1cc] sm:$0xf]
    %v8009 = vld [vmem:[#allocation14 + $0x1d0] sm:$0xf]
    %v8010 = vld [vmem:[#allocation14 + $0x1d4] sm:$0xf]
    %v8011 = vld [vmem:[#allocation14 + $0x1d8] sm:$0xf]
    %v8012 = vld [vmem:[#allocation14 + $0x1dc] sm:$0xf]
    %v8013 = vld [vmem:[#allocation14 + $0x1e0] sm:$0xf]
    %v8014 = vld [vmem:[#allocation14 + $0x1e4] sm:$0xf]
    %v8015 = vld [vmem:[#allocation14 + $0x1e8] sm:$0xf]
    %v8016 = vld [vmem:[#allocation14 + $0x1ec] sm:$0xf]
    %v8017 = vld [vmem:[#allocation14 + $0x1f0] sm:$0xf]
    %v8018 = vld [vmem:[#allocation14 + $0x1f4] sm:$0xf]
    %v8019 = vld [vmem:[#allocation14 + $0x1f8] sm:$0xf]
    %v8020 = vld [vmem:[#allocation14 + $0x1fc] sm:$0xf]
    %v8037 = vunpack.c.l.b16 %v8005
    %v8038 = vunpack.c.l.b16 %v8006
    %v8039 = vunpack.c.l.b16 %v8007
    %v8040 = vunpack.c.l.b16 %v8008
    %v8041 = vunpack.c.l.b16 %v8009
    %v8042 = vunpack.c.l.b16 %v8010
    %v8043 = vunpack.c.l.b16 %v8011
    %v8044 = vunpack.c.l.b16 %v8012
    %v8045 = vunpack.c.l.b16 %v8013
    %v8046 = vunpack.c.l.b16 %v8014
    %v8047 = vunpack.c.l.b16 %v8015
    %v8048 = vunpack.c.l.b16 %v8016
    %v8049 = vunpack.c.l.b16 %v8017
    %v8050 = vunpack.c.l.b16 %v8018
    %v8051 = vunpack.c.l.b16 %v8019
    %v8052 = vunpack.c.l.b16 %v8020
    %v8053 = vpack.c.b16 %v8038, %v8037
    %v8054 = vpack.c.b16 %v8040, %v8039
    %v8055 = vpack.c.b16 %v8042, %v8041
    %v8056 = vpack.c.b16 %v8044, %v8043
    %v8057 = vpack.c.b16 %v8046, %v8045
    %v8058 = vpack.c.b16 %v8048, %v8047
    %v8059 = vpack.c.b16 %v8050, %v8049
    %v8060 = vpack.c.b16 %v8052, %v8051
    %8069 = vmatprep.subr.bf16.mxu0 0
    %8070 = vmatpush1.bf16.msra.mxu0 %v8060
    %8071 = vmatprep.subr.bf16.mxu0 0
    %8072 = vmatpush1.bf16.msra.mxu0 %v8059
    %8073 = vmatprep.subr.bf16.mxu0 0
    %8074 = vmatpush1.bf16.msra.mxu0 %v8058
    %8075 = vmatprep.subr.bf16.mxu0 0
    %8076 = vmatpush1.bf16.msra.mxu0 %v8057
    %8077 = vmatprep.subr.bf16.mxu0 0
    %8078 = vmatpush1.bf16.msra.mxu0 %v8056
    %8079 = vmatprep.subr.bf16.mxu0 0
    %8080 = vmatpush1.bf16.msra.mxu0 %v8055
    %8081 = vmatprep.subr.bf16.mxu0 0
    %8082 = vmatpush1.bf16.msra.mxu0 %v8054
    %8083 = vmatprep.subr.bf16.mxu0 0
    %8084 = vmatpush1.bf16.msra.mxu0 %v8053
    %8085 = vmatprep.subr.bf16.mxu0 0
    %8086 = vmatpush2.bf16.msra.mxu0 0
    %8087 = vmatprep.subr.bf16.mxu0 0
    %8088 = vmatpush2.bf16.msra.mxu0 0
    %8089 = vmatprep.subr.bf16.mxu0 0
    %8090 = vmatpush2.bf16.msra.mxu0 0
    %8091 = vmatprep.subr.bf16.mxu0 0
    %8092 = vmatpush2.bf16.msra.mxu0 0
    %8093 = vmatprep.subr.bf16.mxu0 0
    %8094 = vmatpush2.bf16.msra.mxu0 0
    %8095 = vmatprep.subr.bf16.mxu0 0
    %8096 = vmatpush2.bf16.msra.mxu0 0
    %8097 = vmatprep.subr.bf16.mxu0 0
    %8098 = vmatpush2.bf16.msra.mxu0 0
    %8099 = vmatprep.subr.bf16.mxu0 0
    %8100 = vmatpush2.bf16.msra.mxu0 0
    %8101 = vmatprep.mubr.bf16.mxu0 0
    %8102 = vmatmul.mubr.bf16.gmra.mxu0 %v8002
    %v8103 = vpop.f32.mrf.mxu0
    %v8104 = vadd.f32 0.0, %v8103
    %v8105 = vpop.f32.mrf.mxu0
    %v8106 = vpop.f32.mrf.mxu0
    %v8107 = vadd.f32 0.0, %v8106
    %v8108 = vpop.f32.mrf.mxu0
    %8109 = vmatprep.mubr.bf16.mxu0 0
    %8110 = vmatmul.mubr.bf16.gmra.mxu0 %v8003
    %v8111 = vpop.f32.mrf.mxu0
    %v8112 = vadd.f32 0.0, %v8111
    %v8113 = vpop.f32.mrf.mxu0
    %v8114 = vpop.f32.mrf.mxu0
    %v8115 = vadd.f32 0.0, %v8114
    %v8116 = vpop.f32.mrf.mxu0
    %8117 = vmatprep.mubr.bf16.mxu0 0
    %8118 = vmatmul.mubr.bf16.gmra.mxu0 %v8004
    %v8119 = vpop.f32.mrf.mxu0
    %v8120 = vadd.f32 0.0, %v8119
    %v8121 = vpop.f32.mrf.mxu0
    %v8122 = vpop.f32.mrf.mxu0
    %v8123 = vpop.f32.mrf.mxu0
    %8124 = vdwg.mxu0
    %v8125 = vadd.f32 %v7992, %v8104
    %v8126 = vadd.f32 %v7993, %v8107
    %v8127 = vadd.f32 %v7994, %v8112
    %v8128 = vadd.f32 %v7995, %v8115
    %v8129 = vadd.f32 %v7996, %v8120
    %v8130 = vld [vmem:[%s3966] ss:$2 sm:$0xff]
    %v8131 = vld [vmem:[%s3968] ss:$2 sm:$0xff]
    %v8132 = vld [vmem:[%s3970] ss:$2 sm:$0xff]
    %v8133 = vld [vmem:[%s3972] ss:$2 sm:$0xff]
    %v8134 = vld [vmem:[%s3974] ss:$2 sm:$0xf]
    %v8135 = vpack.c.bf16 %v8131, %v8130
    %v8136 = vpack.c.bf16 %v8133, %v8132
    %v8137 = vpack.c.bf16 %v8134, %v8134
    %v8138 = vld [vmem:[#allocation14 + $0x200] sm:$0xf]
    %v8139 = vld [vmem:[#allocation14 + $0x204] sm:$0xf]
    %v8140 = vld [vmem:[#allocation14 + $0x208] sm:$0xf]
    %v8141 = vld [vmem:[#allocation14 + $0x20c] sm:$0xf]
    %v8142 = vld [vmem:[#allocation14 + $0x210] sm:$0xf]
    %v8143 = vld [vmem:[#allocation14 + $0x214] sm:$0xf]
    %v8144 = vld [vmem:[#allocation14 + $0x218] sm:$0xf]
    %v8145 = vld [vmem:[#allocation14 + $0x21c] sm:$0xf]
    %v8146 = vld [vmem:[#allocation14 + $0x220] sm:$0xf]
    %v8147 = vld [vmem:[#allocation14 + $0x224] sm:$0xf]
    %v8148 = vld [vmem:[#allocation14 + $0x228] sm:$0xf]
    %v8149 = vld [vmem:[#allocation14 + $0x22c] sm:$0xf]
    %v8150 = vld [vmem:[#allocation14 + $0x230] sm:$0xf]
    %v8151 = vld [vmem:[#allocation14 + $0x234] sm:$0xf]
    %v8152 = vld [vmem:[#allocation14 + $0x238] sm:$0xf]
    %v8153 = vld [vmem:[#allocation14 + $0x23c] sm:$0xf]
    %v8170 = vunpack.c.l.b16 %v8138
    %v8171 = vunpack.c.l.b16 %v8139
    %v8172 = vunpack.c.l.b16 %v8140
    %v8173 = vunpack.c.l.b16 %v8141
    %v8174 = vunpack.c.l.b16 %v8142
    %v8175 = vunpack.c.l.b16 %v8143
    %v8176 = vunpack.c.l.b16 %v8144
    %v8177 = vunpack.c.l.b16 %v8145
    %v8178 = vunpack.c.l.b16 %v8146
    %v8179 = vunpack.c.l.b16 %v8147
    %v8180 = vunpack.c.l.b16 %v8148
    %v8181 = vunpack.c.l.b16 %v8149
    %v8182 = vunpack.c.l.b16 %v8150
    %v8183 = vunpack.c.l.b16 %v8151
    %v8184 = vunpack.c.l.b16 %v8152
    %v8185 = vunpack.c.l.b16 %v8153
    %v8186 = vpack.c.b16 %v8171, %v8170
    %v8187 = vpack.c.b16 %v8173, %v8172
    %v8188 = vpack.c.b16 %v8175, %v8174
    %v8189 = vpack.c.b16 %v8177, %v8176
    %v8190 = vpack.c.b16 %v8179, %v8178
    %v8191 = vpack.c.b16 %v8181, %v8180
    %v8192 = vpack.c.b16 %v8183, %v8182
    %v8193 = vpack.c.b16 %v8185, %v8184
    %8202 = vmatprep.subr.bf16.mxu0 0
    %8203 = vmatpush1.bf16.msra.mxu0 %v8193
    %8204 = vmatprep.subr.bf16.mxu0 0
    %8205 = vmatpush1.bf16.msra.mxu0 %v8192
    %8206 = vmatprep.subr.bf16.mxu0 0
    %8207 = vmatpush1.bf16.msra.mxu0 %v8191
    %8208 = vmatprep.subr.bf16.mxu0 0
    %8209 = vmatpush1.bf16.msra.mxu0 %v8190
    %8210 = vmatprep.subr.bf16.mxu0 0
    %8211 = vmatpush1.bf16.msra.mxu0 %v8189
    %8212 = vmatprep.subr.bf16.mxu0 0
    %8213 = vmatpush1.bf16.msra.mxu0 %v8188
    %8214 = vmatprep.subr.bf16.mxu0 0
    %8215 = vmatpush1.bf16.msra.mxu0 %v8187
    %8216 = vmatprep.subr.bf16.mxu0 0
    %8217 = vmatpush1.bf16.msra.mxu0 %v8186
    %8218 = vmatprep.subr.bf16.mxu0 0
    %8219 = vmatpush2.bf16.msra.mxu0 0
    %8220 = vmatprep.subr.bf16.mxu0 0
    %8221 = vmatpush2.bf16.msra.mxu0 0
    %8222 = vmatprep.subr.bf16.mxu0 0
    %8223 = vmatpush2.bf16.msra.mxu0 0
    %8224 = vmatprep.subr.bf16.mxu0 0
    %8225 = vmatpush2.bf16.msra.mxu0 0
    %8226 = vmatprep.subr.bf16.mxu0 0
    %8227 = vmatpush2.bf16.msra.mxu0 0
    %8228 = vmatprep.subr.bf16.mxu0 0
    %8229 = vmatpush2.bf16.msra.mxu0 0
    %8230 = vmatprep.subr.bf16.mxu0 0
    %8231 = vmatpush2.bf16.msra.mxu0 0
    %8232 = vmatprep.subr.bf16.mxu0 0
    %8233 = vmatpush2.bf16.msra.mxu0 0
    %8234 = vmatprep.mubr.bf16.mxu0 0
    %8235 = vmatmul.mubr.bf16.gmra.mxu0 %v8135
    %v8236 = vpop.f32.mrf.mxu0
    %v8237 = vadd.f32 0.0, %v8236
    %v8238 = vpop.f32.mrf.mxu0
    %v8239 = vpop.f32.mrf.mxu0
    %v8240 = vadd.f32 0.0, %v8239
    %v8241 = vpop.f32.mrf.mxu0
    %8242 = vmatprep.mubr.bf16.mxu0 0
    %8243 = vmatmul.mubr.bf16.gmra.mxu0 %v8136
    %v8244 = vpop.f32.mrf.mxu0
    %v8245 = vadd.f32 0.0, %v8244
    %v8246 = vpop.f32.mrf.mxu0
    %v8247 = vpop.f32.mrf.mxu0
    %v8248 = vadd.f32 0.0, %v8247
    %v8249 = vpop.f32.mrf.mxu0
    %8250 = vmatprep.mubr.bf16.mxu0 0
    %8251 = vmatmul.mubr.bf16.gmra.mxu0 %v8137
    %v8252 = vpop.f32.mrf.mxu0
    %v8253 = vadd.f32 0.0, %v8252
    %v8254 = vpop.f32.mrf.mxu0
    %v8255 = vpop.f32.mrf.mxu0
    %v8256 = vpop.f32.mrf.mxu0
    %8257 = vdwg.mxu0
    %v8258 = vadd.f32 %v8125, %v8237
    %v8259 = vadd.f32 %v8126, %v8240
    %v8260 = vadd.f32 %v8127, %v8245
    %v8261 = vadd.f32 %v8128, %v8248
    %v8262 = vadd.f32 %v8129, %v8253
    %v8263 = vld [vmem:[%s6] sm:$0x1]
    %v8265 = vlaneseq
    %v8266 = vshrl.u32 %v8265, 7
    %v8267 = vsub.s32 0, %v8266
    %v8268 = vrot.slane %v8263, %v8267
    %v8270 = vadd.f32 %v8258, %v8268
    %v8271 = vadd.f32 %v8259, %v8268
    %v8272 = vadd.f32 %v8260, %v8268
    %v8273 = vadd.f32 %v8261, %v8268
    %v8274 = vadd.f32 %v8262, %v8268
    %v8275 = vmax.f32 %v8270, 0.0
    %v8276 = vmax.f32 %v8271, 0.0
    %v8277 = vmax.f32 %v8272, 0.0
    %v8278 = vmax.f32 %v8273, 0.0
    %v8279 = vmax.f32 %v8274, 0.0
    %v8280 = vld [vmem:[%s7] sm:$0xff]
    %v8281 = vld [vmem:[%s7 + $0x8] sm:$0xff]
    %v8282 = vld [vmem:[%s7 + $0x10] sm:$0xff]
    %v8283 = vld [vmem:[%s7 + $0x18] sm:$0xff]
    %v8284 = vld [vmem:[%s7 + $0x20] sm:$0xf]
    %v8285 = vld [vmem:[%s8] sm:$0x1]
    %v8287 = vlaneseq
    %v8288 = vshrl.u32 %v8287, 7
    %v8289 = vsub.s32 0, %v8288
    %v8290 = vrot.slane %v8285, %v8289
    %8292 = vxpose.xlu0.b32.start [1/16] %v8275, 128
    %8293 = vxpose.xlu0.b32.cont [2/16] %v8276, 128
    %8294 = vxpose.xlu0.b32.cont [3/16] %v8277, 128
    %8295 = vxpose.xlu0.b32.cont [4/16] %v8278, 128
    %8296 = vxpose.xlu0.b32.cont [5/16] %v8279, 128
    %8297 = vxpose.xlu0.b32.cont [6/16] 0.0, 128
    %8298 = vxpose.xlu0.b32.cont [7/16] 0.0, 128
    %8299 = vxpose.xlu0.b32.cont [8/16] 0.0, 128
    %8300 = vxpose.xlu0.b32.cont [9/16] 0.0, 128
    %8301 = vxpose.xlu0.b32.cont [10/16] 0.0, 128
    %8302 = vxpose.xlu0.b32.cont [11/16] 0.0, 128
    %8303 = vxpose.xlu0.b32.cont [12/16] 0.0, 128
    %8304 = vxpose.xlu0.b32.cont [13/16] 0.0, 128
    %8305 = vxpose.xlu0.b32.cont [14/16] 0.0, 128
    %8306 = vxpose.xlu0.b32.cont [15/16] 0.0, 128
    %8307 = vxpose.xlu0.b32.end [16/16] 0.0, 128
    %v8308 = vpop.trf.xlu0
    %v8309 = vpop.trf.xlu0
    %v8310 = vpop.trf.xlu0
    %v8311 = vpop.trf.xlu0
    %v8312 = vpop.trf.xlu0
    %v8313 = vpop.trf.xlu0
    %v8314 = vpop.trf.xlu0
    %v8315 = vpop.trf.xlu0
    %v8316 = vpop.trf.xlu0
    %v8317 = vpop.trf.xlu0
    %v8318 = vpop.trf.xlu0
    %v8319 = vpop.trf.xlu0
    %v8320 = vpop.trf.xlu0
    %v8321 = vpop.trf.xlu0
    %v8322 = vpop.trf.xlu0
    %v8323 = vpop.trf.xlu0
    %v8325 = vsel %vm4165, %v8308, 0
    %v8328 = vsel %vm4165, %v8309, 0
    %v8331 = vsel %vm4165, %v8310, 0
    %v8334 = vsel %vm4165, %v8311, 0
    %v8337 = vsel %vm4165, %v8312, 0
    %v8340 = vsel %vm4165, %v8313, 0
    %v8343 = vsel %vm4165, %v8314, 0
    %v8346 = vsel %vm4165, %v8315, 0
    %v8349 = vsel %vm4165, %v8316, 0
    %v8352 = vsel %vm4165, %v8317, 0
    %v8355 = vsel %vm4165, %v8318, 0
    %v8358 = vsel %vm4165, %v8319, 0
    %v8361 = vsel %vm4165, %v8320, 0
    %v8364 = vsel %vm4165, %v8321, 0
    %v8367 = vsel %vm4165, %v8322, 0
    %v8370 = vsel %vm4165, %v8323, 0
    %v8373 = vsel %vm4214, %v8284, 0
    %8375 = vmatprep.subr.mxu0 0.0
    %8376 = vmatpush1.msra.mxu0 0.0
    %8377 = vmatprep.subr.mxu0 0.0
    %8378 = vmatpush1.msra.mxu0 0.0
    %8379 = vmatprep.subr.mxu0 0.0
    %8380 = vmatpush1.msra.mxu0 0.0
    %8381 = vmatprep.subr.mxu0 0.0
    %8382 = vmatpush1.msra.mxu0 0.0
    %8383 = vmatprep.subr.mxu0 0.0
    %8384 = vmatpush1.msra.mxu0 0.0
    %8385 = vmatprep.subr.mxu0 0.0
    %8386 = vmatpush1.msra.mxu0 0.0
    %8387 = vmatprep.subr.mxu0 0.0
    %8388 = vmatpush1.msra.mxu0 0.0
    %8389 = vmatprep.subr.mxu0 0.0
    %8390 = vmatpush1.msra.mxu0 0.0
    %8391 = vmatprep.subr.mxu0 0.0
    %8392 = vmatpush1.msra.mxu0 0.0
    %8393 = vmatprep.subr.mxu0 0.0
    %8394 = vmatpush1.msra.mxu0 0.0
    %8395 = vmatprep.subr.mxu0 0.0
    %8396 = vmatpush1.msra.mxu0 0.0
    %8397 = vmatprep.subr.mxu0 0.0
    %8398 = vmatpush1.msra.mxu0 %v8373
    %8399 = vmatprep.subr.mxu0 0.0
    %8400 = vmatpush1.msra.mxu0 %v8283
    %8401 = vmatprep.subr.mxu0 0.0
    %8402 = vmatpush1.msra.mxu0 %v8282
    %8403 = vmatprep.subr.mxu0 0.0
    %8404 = vmatpush1.msra.mxu0 %v8281
    %8405 = vmatprep.subr.mxu0 0.0
    %8406 = vmatpush1.msra.mxu0 %v8280
    %8407 = vmatprep.subr.mxu0 0.0
    %8408 = vmatpush2.msra.mxu0 0.0
    %8409 = vmatprep.subr.mxu0 0.0
    %8410 = vmatpush2.msra.mxu0 0.0
    %8411 = vmatprep.subr.mxu0 0.0
    %8412 = vmatpush2.msra.mxu0 0.0
    %8413 = vmatprep.subr.mxu0 0.0
    %8414 = vmatpush2.msra.mxu0 0.0
    %8415 = vmatprep.subr.mxu0 0.0
    %8416 = vmatpush2.msra.mxu0 0.0
    %8417 = vmatprep.subr.mxu0 0.0
    %8418 = vmatpush2.msra.mxu0 0.0
    %8419 = vmatprep.subr.mxu0 0.0
    %8420 = vmatpush2.msra.mxu0 0.0
    %8421 = vmatprep.subr.mxu0 0.0
    %8422 = vmatpush2.msra.mxu0 0.0
    %8423 = vmatprep.subr.mxu0 0.0
    %8424 = vmatpush2.msra.mxu0 0.0
    %8425 = vmatprep.subr.mxu0 0.0
    %8426 = vmatpush2.msra.mxu0 0.0
    %8427 = vmatprep.subr.mxu0 0.0
    %8428 = vmatpush2.msra.mxu0 0.0
    %8429 = vmatprep.subr.mxu0 0.0
    %8430 = vmatpush2.msra.mxu0 0.0
    %8431 = vmatprep.subr.mxu0 0.0
    %8432 = vmatpush2.msra.mxu0 0.0
    %8433 = vmatprep.subr.mxu0 0.0
    %8434 = vmatpush2.msra.mxu0 0.0
    %8435 = vmatprep.subr.mxu0 0.0
    %8436 = vmatpush2.msra.mxu0 0.0
    %8437 = vmatprep.subr.mxu0 0.0
    %8438 = vmatpush2.msra.mxu0 0.0
    %8439 = vmatprep.mubr.f32.mxu0 0.0
    %8440 = vmatmul.mubr.f32.gmra.mxu0 %v8325
    %v8441 = vpop.f32.mrf.mxu0
    %v8442 = vadd.f32 %v8290, %v8441
    %v8443 = vpop.f32.mrf.mxu0
    %8444 = vmatprep.mubr.f32.mxu0 0.0
    %8445 = vmatmul.mubr.f32.gmra.mxu0 %v8328
    %v8446 = vpop.f32.mrf.mxu0
    %v8447 = vadd.f32 %v8290, %v8446
    %v8448 = vpop.f32.mrf.mxu0
    %8449 = vmatprep.mubr.f32.mxu0 0.0
    %8450 = vmatmul.mubr.f32.gmra.mxu0 %v8331
    %v8451 = vpop.f32.mrf.mxu0
    %v8452 = vadd.f32 %v8290, %v8451
    %v8453 = vpop.f32.mrf.mxu0
    %8454 = vmatprep.mubr.f32.mxu0 0.0
    %8455 = vmatmul.mubr.f32.gmra.mxu0 %v8334
    %v8456 = vpop.f32.mrf.mxu0
    %v8457 = vadd.f32 %v8290, %v8456
    %v8458 = vpop.f32.mrf.mxu0
    %8459 = vmatprep.mubr.f32.mxu0 0.0
    %8460 = vmatmul.mubr.f32.gmra.mxu0 %v8337
    %v8461 = vpop.f32.mrf.mxu0
    %v8462 = vadd.f32 %v8290, %v8461
    %v8463 = vpop.f32.mrf.mxu0
    %8464 = vmatprep.mubr.f32.mxu0 0.0
    %8465 = vmatmul.mubr.f32.gmra.mxu0 %v8340
    %v8466 = vpop.f32.mrf.mxu0
    %v8467 = vadd.f32 %v8290, %v8466
    %v8468 = vpop.f32.mrf.mxu0
    %8469 = vmatprep.mubr.f32.mxu0 0.0
    %8470 = vmatmul.mubr.f32.gmra.mxu0 %v8343
    %v8471 = vpop.f32.mrf.mxu0
    %v8472 = vadd.f32 %v8290, %v8471
    %v8473 = vpop.f32.mrf.mxu0
    %8474 = vmatprep.mubr.f32.mxu0 0.0
    %8475 = vmatmul.mubr.f32.gmra.mxu0 %v8346
    %v8476 = vpop.f32.mrf.mxu0
    %v8477 = vadd.f32 %v8290, %v8476
    %v8478 = vpop.f32.mrf.mxu0
    %8479 = vmatprep.mubr.f32.mxu0 0.0
    %8480 = vmatmul.mubr.f32.gmra.mxu0 %v8349
    %v8481 = vpop.f32.mrf.mxu0
    %v8482 = vadd.f32 %v8290, %v8481
    %v8483 = vpop.f32.mrf.mxu0
    %8484 = vmatprep.mubr.f32.mxu0 0.0
    %8485 = vmatmul.mubr.f32.gmra.mxu0 %v8352
    %v8486 = vpop.f32.mrf.mxu0
    %v8487 = vadd.f32 %v8290, %v8486
    %v8488 = vpop.f32.mrf.mxu0
    %8489 = vmatprep.mubr.f32.mxu0 0.0
    %8490 = vmatmul.mubr.f32.gmra.mxu0 %v8355
    %v8491 = vpop.f32.mrf.mxu0
    %v8492 = vadd.f32 %v8290, %v8491
    %v8493 = vpop.f32.mrf.mxu0
    %8494 = vmatprep.mubr.f32.mxu0 0.0
    %8495 = vmatmul.mubr.f32.gmra.mxu0 %v8358
    %v8496 = vpop.f32.mrf.mxu0
    %v8497 = vadd.f32 %v8290, %v8496
    %v8498 = vpop.f32.mrf.mxu0
    %8499 = vmatprep.mubr.f32.mxu0 0.0
    %8500 = vmatmul.mubr.f32.gmra.mxu0 %v8361
    %v8501 = vpop.f32.mrf.mxu0
    %v8502 = vadd.f32 %v8290, %v8501
    %v8503 = vpop.f32.mrf.mxu0
    %8504 = vmatprep.mubr.f32.mxu0 0.0
    %8505 = vmatmul.mubr.f32.gmra.mxu0 %v8364
    %v8506 = vpop.f32.mrf.mxu0
    %v8507 = vadd.f32 %v8290, %v8506
    %v8508 = vpop.f32.mrf.mxu0
    %8509 = vmatprep.mubr.f32.mxu0 0.0
    %8510 = vmatmul.mubr.f32.gmra.mxu0 %v8367
    %v8511 = vpop.f32.mrf.mxu0
    %v8512 = vadd.f32 %v8290, %v8511
    %v8513 = vpop.f32.mrf.mxu0
    %8514 = vmatprep.mubr.f32.mxu0 0.0
    %8515 = vmatmul.mubr.f32.gmra.mxu0 %v8370
    %v8516 = vpop.f32.mrf.mxu0
    %v8517 = vadd.f32 %v8290, %v8516
    %v8518 = vpop.f32.mrf.mxu0
    %8519 = vdwg.mxu0
    %8520 = vst [vmem:[#allocation7] sm:$0xff] %v8442
    %8521 = vst [vmem:[#allocation7 + $0x8] sm:$0xff] %v8447
    %8522 = vst [vmem:[#allocation7 + $0x10] sm:$0xff] %v8452
    %8523 = vst [vmem:[#allocation7 + $0x18] sm:$0xff] %v8457
    %8524 = vst [vmem:[#allocation7 + $0x20] sm:$0xff] %v8462
    %8525 = vst [vmem:[#allocation7 + $0x28] sm:$0xff] %v8467
    %8526 = vst [vmem:[#allocation7 + $0x30] sm:$0xff] %v8472
    %8527 = vst [vmem:[#allocation7 + $0x38] sm:$0xff] %v8477
    %8528 = vst [vmem:[#allocation7 + $0x40] sm:$0xff] %v8482
    %8529 = vst [vmem:[#allocation7 + $0x48] sm:$0xff] %v8487
    %8530 = vst [vmem:[#allocation7 + $0x50] sm:$0xff] %v8492
    %8531 = vst [vmem:[#allocation7 + $0x58] sm:$0xff] %v8497
    %8532 = vst [vmem:[#allocation7 + $0x60] sm:$0xff] %v8502
    %8533 = vst [vmem:[#allocation7 + $0x68] sm:$0xff] %v8507
    %8534 = vst [vmem:[#allocation7 + $0x70] sm:$0xff] %v8512
    %8535 = vst [vmem:[#allocation7 + $0x78] sm:$0xff] %v8517
    %v8536 = vld [vmem:[#allocation16] sm:$0xff]
    %v8537 = vld [vmem:[#allocation16 + $0x8] sm:$0xff]
    %v8538 = vld [vmem:[#allocation16 + $0x10] sm:$0xff]
    %v8539 = vld [vmem:[#allocation16 + $0x18] sm:$0xff]
    %v8540 = vld [vmem:[#allocation16 + $0x20] sm:$0xff]
    %v8541 = vld [vmem:[#allocation16 + $0x28] sm:$0xff]
    %v8542 = vld [vmem:[#allocation16 + $0x30] sm:$0xff]
    %v8543 = vld [vmem:[#allocation16 + $0x38] sm:$0xff]
    %v8544 = vld [vmem:[#allocation16 + $0x40] sm:$0xff]
    %v8545 = vld [vmem:[#allocation16 + $0x48] sm:$0xff]
    %v8546 = vld [vmem:[#allocation16 + $0x50] sm:$0xff]
    %v8547 = vld [vmem:[#allocation16 + $0x58] sm:$0xff]
    %v8548 = vld [vmem:[#allocation16 + $0x60] sm:$0xff]
    %v8549 = vld [vmem:[#allocation16 + $0x68] sm:$0xff]
    %v8550 = vld [vmem:[#allocation16 + $0x70] sm:$0xff]
    %v8551 = vld [vmem:[#allocation16 + $0x78] sm:$0xff]
    %v8552 = vld [vmem:[%s10] sm:$0x1]
    %v8554 = vlaneseq
    %v8555 = vshrl.u32 %v8554, 7
    %v8556 = vsub.s32 0, %v8555
    %v8557 = vrot.slane %v8552, %v8556
    %v8559 = vld [vmem:[#allocation6] sm:$0x1]
    %v8560 = vld [vmem:[#allocation7] sm:$0x1]
    %v8562 = vrot.slane %v8560, 7
    %vm8564 = vcmask 1040384
    %v8565 = vsel %vm8564, %v8559, %v8562
    %v8566 = vxor.u32 %v8565, 2147483648
    %v8567 = vmul.f32 %v8566, 1.442695
    %v8568 = vpow.pop %v8567
    %v8569 = vadd.f32 %v8568, 1.0
    %v8570 = vrcp.pop %v8569
    %v8571 = vmul.f32 1.0, %v8570
    %v8572 = vtanh.pop %v8565
    %8574 = vrot.lane.b32.xlu0 %v8572, 64
    %v8575 = vpop.permute.xlu0 %8574
    %v8577 = vmul.f32 %v8571, %v8575
    %v8578 = vtanh.pop %v8577
    %8580 = vrot.lane.b32.xlu0 %v8578, 96
    %v8581 = vpop.permute.xlu0 %8580
    %v8583 = vmul.f32 %v8571, %v8581
    loop: start=0, step=1, limit=63
    $region74: #{tpu_custom_call.1} parent=1 // loop_pre_header
      _
    $region75: #{tpu_custom_call.1} parent=1 // loop_header
      %s8585 = sphi 0, %s8589
      %p8586 = scmp.ge.s32.totalorder %s8585, 63
      %v8590 = vphi %v8583, %v8859
      %v8591 = vphi %v8577, %v8886
      %v8592 = vphi 0.0, %v8883
      %v8593 = vphi 0.0, %v8877
    $region76: #{tpu_custom_call.1} parent=1 // loop_header_branch
      %8588 = sbr.rel (%p8586) target = $region80
    $region77: #{tpu_custom_call.1} parent=1 // loop_body
      %s8594 = smul.u32 %s8585, 2
      %s8595 = sadd.s32 %s8594, 1
      %s8596 = scalar_lea.vmem [#allocation6], %s8595
      %v8597 = vld [vmem:[%s8596] sm:$0x1]
      %s8598 = scalar_lea.vmem [#allocation7], %s8595
      %v8599 = vld [vmem:[%s8598] sm:$0x1]
      %v8601 = vrot.slane %v8599, 7
      %v8603 = vsel %vm8564, %v8597, %v8601
      %8605 = vrot.lane.b32.xlu0 %v8590, 32
      %v8606 = vpop.permute.xlu0 %8605
      %8609 = vrot.lane.b32.xlu0 %v8592, 64
      %v8610 = vpop.permute.xlu0 %8609
      %vm8612 = vcmask 261120
      %v8613 = vsel %vm8612, %v8606, %v8610
      %v8615 = vsel %vm638, %v8613, 0
      %8617 = vmatprep.subr.mxu0 0.0
      %8618 = vmatpush1.msra.mxu0 0.0
      %8619 = vmatprep.subr.mxu0 0.0
      %8620 = vmatpush1.msra.mxu0 0.0
      %8621 = vmatprep.subr.mxu0 0.0
      %8622 = vmatpush1.msra.mxu0 0.0
      %8623 = vmatprep.subr.mxu0 0.0
      %8624 = vmatpush1.msra.mxu0 0.0
      %8625 = vmatprep.subr.mxu0 0.0
      %8626 = vmatpush1.msra.mxu0 0.0
      %8627 = vmatprep.subr.mxu0 0.0
      %8628 = vmatpush1.msra.mxu0 0.0
      %8629 = vmatprep.subr.mxu0 0.0
      %8630 = vmatpush1.msra.mxu0 0.0
      %8631 = vmatprep.subr.mxu0 0.0
      %8632 = vmatpush1.msra.mxu0 0.0
      %8633 = vmatprep.subr.mxu0 %v8551
      %8634 = vmatpush1.msra.mxu0 %v8550
      %8635 = vmatprep.subr.mxu0 %v8549
      %8636 = vmatpush1.msra.mxu0 %v8548
      %8637 = vmatprep.subr.mxu0 %v8547
      %8638 = vmatpush1.msra.mxu0 %v8546
      %8639 = vmatprep.subr.mxu0 %v8545
      %8640 = vmatpush1.msra.mxu0 %v8544
      %8641 = vmatprep.subr.mxu0 %v8543
      %8642 = vmatpush1.msra.mxu0 %v8542
      %8643 = vmatprep.subr.mxu0 %v8541
      %8644 = vmatpush1.msra.mxu0 %v8540
      %8645 = vmatprep.subr.mxu0 %v8539
      %8646 = vmatpush1.msra.mxu0 %v8538
      %8647 = vmatprep.subr.mxu0 %v8537
      %8648 = vmatpush1.msra.mxu0 %v8536
      %8649 = vmatprep.subr.mxu0 0.0
      %8650 = vmatpush2.msra.mxu0 0.0
      %8651 = vmatprep.subr.mxu0 0.0
      %8652 = vmatpush2.msra.mxu0 0.0
      %8653 = vmatprep.subr.mxu0 0.0
      %8654 = vmatpush2.msra.mxu0 0.0
      %8655 = vmatprep.subr.mxu0 0.0
      %8656 = vmatpush2.msra.mxu0 0.0
      %8657 = vmatprep.subr.mxu0 0.0
      %8658 = vmatpush2.msra.mxu0 0.0
      %8659 = vmatprep.subr.mxu0 0.0
      %8660 = vmatpush2.msra.mxu0 0.0
      %8661 = vmatprep.subr.mxu0 0.0
      %8662 = vmatpush2.msra.mxu0 0.0
      %8663 = vmatprep.subr.mxu0 0.0
      %8664 = vmatpush2.msra.mxu0 0.0
      %8665 = vmatprep.subr.mxu0 0.0
      %8666 = vmatpush2.msra.mxu0 0.0
      %8667 = vmatprep.subr.mxu0 0.0
      %8668 = vmatpush2.msra.mxu0 0.0
      %8669 = vmatprep.subr.mxu0 0.0
      %8670 = vmatpush2.msra.mxu0 0.0
      %8671 = vmatprep.subr.mxu0 0.0
      %8672 = vmatpush2.msra.mxu0 0.0
      %8673 = vmatprep.subr.mxu0 0.0
      %8674 = vmatpush2.msra.mxu0 0.0
      %8675 = vmatprep.subr.mxu0 0.0
      %8676 = vmatpush2.msra.mxu0 0.0
      %8677 = vmatprep.subr.mxu0 0.0
      %8678 = vmatpush2.msra.mxu0 0.0
      %8679 = vmatprep.subr.mxu0 0.0
      %8680 = vmatpush2.msra.mxu0 0.0
      %8681 = vmatprep.mubr.f32.mxu0 0.0
      %8682 = vmatmul.mubr.f32.gmra.mxu0 %v8615
      %v8683 = vpop.f32.mrf.mxu0
      %v8684 = vadd.f32 0.0, %v8683
      %v8685 = vpop.f32.mrf.mxu0
      %v8686 = vadd.f32 0.0, %v8685
      %8687 = vdwg.mxu0
      %v8688 = vadd.f32 %v8684, %v8603
      %v8689 = vadd.f32 %v8686, %v8557
      %v8690 = vxor.u32 %v8688, 2147483648
      %v8691 = vmul.f32 %v8690, 1.442695
      %v8692 = vpow.pop %v8691
      %v8693 = vadd.f32 %v8692, 1.0
      %v8694 = vrcp.pop %v8693
      %v8695 = vmul.f32 1.0, %v8694
      %v8696 = vtanh.pop %v8688
      %8698 = vrot.lane.b32.xlu0 %v8591, 32
      %v8699 = vpop.permute.xlu0 %8698
      %v8701 = vmul.f32 %v8695, %v8699
      %8703 = vrot.lane.b32.xlu0 %v8696, 64
      %v8704 = vpop.permute.xlu0 %8703
      %v8706 = vmul.f32 %v8695, %v8704
      %8708 = vrot.lane.b32.xlu0 %v8706, 32
      %v8709 = vpop.permute.xlu0 %8708
      %v8711 = vadd.f32 %v8701, %v8709
      %v8712 = vtanh.pop %v8711
      %8714 = vrot.lane.b32.xlu0 %v8712, 64
      %v8715 = vpop.permute.xlu0 %8714
      %v8717 = vmul.f32 %v8695, %v8715
      %v8718 = vxor.u32 %v8689, 2147483648
      %v8719 = vmul.f32 %v8718, 1.442695
      %v8720 = vpow.pop %v8719
      %v8721 = vadd.f32 %v8720, 1.0
      %v8722 = vrcp.pop %v8721
      %v8723 = vmul.f32 1.0, %v8722
      %v8724 = vtanh.pop %v8689
      %v8725 = vmul.f32 %v8723, %v8593
      %8727 = vrot.lane.b32.xlu0 %v8724, 64
      %v8728 = vpop.permute.xlu0 %8727
      %v8730 = vmul.f32 %v8723, %v8728
      %8732 = vrot.lane.b32.xlu0 %v8730, 32
      %v8733 = vpop.permute.xlu0 %8732
      %v8735 = vadd.f32 %v8725, %v8733
      %v8736 = vtanh.pop %v8735
      %8738 = vrot.lane.b32.xlu0 %v8736, 64
      %v8739 = vpop.permute.xlu0 %8738
      %v8741 = vmul.f32 %v8723, %v8739
      %s8742 = sadd.s32 %s8594, 2
      %s8743 = scalar_lea.vmem [#allocation6], %s8742
      %v8744 = vld [vmem:[%s8743] sm:$0x1]
      %s8745 = scalar_lea.vmem [#allocation7], %s8742
      %v8746 = vld [vmem:[%s8745] sm:$0x1]
      %v8748 = vrot.slane %v8746, 7
      %v8750 = vsel %vm8564, %v8744, %v8748
      %8752 = vrot.lane.b32.xlu0 %v8717, 32
      %v8753 = vpop.permute.xlu0 %8752
      %8756 = vrot.lane.b32.xlu0 %v8741, 64
      %v8757 = vpop.permute.xlu0 %8756
      %v8759 = vsel %vm8612, %v8753, %v8757
      %v8761 = vsel %vm638, %v8759, 0
      %8763 = vmatprep.subr.mxu0 0.0
      %8764 = vmatpush1.msra.mxu0 0.0
      %8765 = vmatprep.subr.mxu0 0.0
      %8766 = vmatpush1.msra.mxu0 0.0
      %8767 = vmatprep.subr.mxu0 0.0
      %8768 = vmatpush1.msra.mxu0 0.0
      %8769 = vmatprep.subr.mxu0 0.0
      %8770 = vmatpush1.msra.mxu0 0.0
      %8771 = vmatprep.subr.mxu0 0.0
      %8772 = vmatpush1.msra.mxu0 0.0
      %8773 = vmatprep.subr.mxu0 0.0
      %8774 = vmatpush1.msra.mxu0 0.0
      %8775 = vmatprep.subr.mxu0 0.0
      %8776 = vmatpush1.msra.mxu0 0.0
      %8777 = vmatprep.subr.mxu0 0.0
      %8778 = vmatpush1.msra.mxu0 0.0
      %8779 = vmatprep.subr.mxu0 %v8551
      %8780 = vmatpush1.msra.mxu0 %v8550
      %8781 = vmatprep.subr.mxu0 %v8549
      %8782 = vmatpush1.msra.mxu0 %v8548
      %8783 = vmatprep.subr.mxu0 %v8547
      %8784 = vmatpush1.msra.mxu0 %v8546
      %8785 = vmatprep.subr.mxu0 %v8545
      %8786 = vmatpush1.msra.mxu0 %v8544
      %8787 = vmatprep.subr.mxu0 %v8543
      %8788 = vmatpush1.msra.mxu0 %v8542
      %8789 = vmatprep.subr.mxu0 %v8541
      %8790 = vmatpush1.msra.mxu0 %v8540
      %8791 = vmatprep.subr.mxu0 %v8539
      %8792 = vmatpush1.msra.mxu0 %v8538
      %8793 = vmatprep.subr.mxu0 %v8537
      %8794 = vmatpush1.msra.mxu0 %v8536
      %8795 = vmatprep.subr.mxu0 0.0
      %8796 = vmatpush2.msra.mxu0 0.0
      %8797 = vmatprep.subr.mxu0 0.0
      %8798 = vmatpush2.msra.mxu0 0.0
      %8799 = vmatprep.subr.mxu0 0.0
      %8800 = vmatpush2.msra.mxu0 0.0
      %8801 = vmatprep.subr.mxu0 0.0
      %8802 = vmatpush2.msra.mxu0 0.0
      %8803 = vmatprep.subr.mxu0 0.0
      %8804 = vmatpush2.msra.mxu0 0.0
      %8805 = vmatprep.subr.mxu0 0.0
      %8806 = vmatpush2.msra.mxu0 0.0
      %8807 = vmatprep.subr.mxu0 0.0
      %8808 = vmatpush2.msra.mxu0 0.0
      %8809 = vmatprep.subr.mxu0 0.0
      %8810 = vmatpush2.msra.mxu0 0.0
      %8811 = vmatprep.subr.mxu0 0.0
      %8812 = vmatpush2.msra.mxu0 0.0
      %8813 = vmatprep.subr.mxu0 0.0
      %8814 = vmatpush2.msra.mxu0 0.0
      %8815 = vmatprep.subr.mxu0 0.0
      %8816 = vmatpush2.msra.mxu0 0.0
      %8817 = vmatprep.subr.mxu0 0.0
      %8818 = vmatpush2.msra.mxu0 0.0
      %8819 = vmatprep.subr.mxu0 0.0
      %8820 = vmatpush2.msra.mxu0 0.0
      %8821 = vmatprep.subr.mxu0 0.0
      %8822 = vmatpush2.msra.mxu0 0.0
      %8823 = vmatprep.subr.mxu0 0.0
      %8824 = vmatpush2.msra.mxu0 0.0
      %8825 = vmatprep.subr.mxu0 0.0
      %8826 = vmatpush2.msra.mxu0 0.0
      %8827 = vmatprep.mubr.f32.mxu0 0.0
      %8828 = vmatmul.mubr.f32.gmra.mxu0 %v8761
      %v8829 = vpop.f32.mrf.mxu0
      %v8830 = vadd.f32 0.0, %v8829
      %v8831 = vpop.f32.mrf.mxu0
      %v8832 = vadd.f32 0.0, %v8831
      %8833 = vdwg.mxu0
      %v8834 = vadd.f32 %v8830, %v8750
      %v8835 = vadd.f32 %v8832, %v8557
      %v8836 = vxor.u32 %v8834, 2147483648
      %v8837 = vmul.f32 %v8836, 1.442695
      %v8838 = vpow.pop %v8837
      %v8839 = vadd.f32 %v8838, 1.0
      %v8840 = vrcp.pop %v8839
      %v8841 = vmul.f32 1.0, %v8840
      %v8842 = vtanh.pop %v8834
      %v8843 = vmul.f32 %v8841, %v8711
      %8845 = vrot.lane.b32.xlu0 %v8842, 64
      %v8846 = vpop.permute.xlu0 %8845
      %v8848 = vmul.f32 %v8841, %v8846
      %8850 = vrot.lane.b32.xlu0 %v8848, 32
      %v8851 = vpop.permute.xlu0 %8850
      %v8853 = vadd.f32 %v8843, %v8851
      %v8854 = vtanh.pop %v8853
      %8856 = vrot.lane.b32.xlu0 %v8854, 64
      %v8857 = vpop.permute.xlu0 %8856
      %v8859 = vmul.f32 %v8841, %v8857
      %v8860 = vxor.u32 %v8835, 2147483648
      %v8861 = vmul.f32 %v8860, 1.442695
      %v8862 = vpow.pop %v8861
      %v8863 = vadd.f32 %v8862, 1.0
      %v8864 = vrcp.pop %v8863
      %v8865 = vmul.f32 1.0, %v8864
      %v8866 = vtanh.pop %v8835
      %v8867 = vmul.f32 %v8865, %v8735
      %8869 = vrot.lane.b32.xlu0 %v8866, 64
      %v8870 = vpop.permute.xlu0 %8869
      %v8872 = vmul.f32 %v8865, %v8870
      %8874 = vrot.lane.b32.xlu0 %v8872, 32
      %v8875 = vpop.permute.xlu0 %8874
      %v8877 = vadd.f32 %v8867, %v8875
      %v8878 = vtanh.pop %v8877
      %8880 = vrot.lane.b32.xlu0 %v8878, 64
      %v8881 = vpop.permute.xlu0 %8880
      %v8883 = vmul.f32 %v8865, %v8881
      %8885 = vrot.lane.b32.xlu0 %v8853, 96
      %v8886 = vpop.permute.xlu0 %8885
    $region78: #{tpu_custom_call.1} parent=1 // loop_footer
      %s8589 = sadd.s32 1, %s8585
    $region79: #{tpu_custom_call.1} parent=1 // loop_footer_branch
      %8584 = sbr.rel target = $region75
    $region80: #{tpu_custom_call.1} parent=1 // loop_exit
      _
    %v8888 = vld [vmem:[#allocation6 + $0x7f] sm:$0x1]
    %v8889 = vld [vmem:[#allocation7 + $0x7f] sm:$0x1]
    %v8891 = vrot.slane %v8889, 7
    %v8893 = vsel %vm8564, %v8888, %v8891
    %8895 = vrot.lane.b32.xlu0 %v8590, 32
    %v8896 = vpop.permute.xlu0 %8895
    %8899 = vrot.lane.b32.xlu0 %v8592, 64
    %v8900 = vpop.permute.xlu0 %8899
    %vm8902 = vcmask 261120
    %v8903 = vsel %vm8902, %v8896, %v8900
    %v8905 = vsel %vm638, %v8903, 0
    %8907 = vmatprep.subr.mxu0 0.0
    %8908 = vmatpush1.msra.mxu0 0.0
    %8909 = vmatprep.subr.mxu0 0.0
    %8910 = vmatpush1.msra.mxu0 0.0
    %8911 = vmatprep.subr.mxu0 0.0
    %8912 = vmatpush1.msra.mxu0 0.0
    %8913 = vmatprep.subr.mxu0 0.0
    %8914 = vmatpush1.msra.mxu0 0.0
    %8915 = vmatprep.subr.mxu0 0.0
    %8916 = vmatpush1.msra.mxu0 0.0
    %8917 = vmatprep.subr.mxu0 0.0
    %8918 = vmatpush1.msra.mxu0 0.0
    %8919 = vmatprep.subr.mxu0 0.0
    %8920 = vmatpush1.msra.mxu0 0.0
    %8921 = vmatprep.subr.mxu0 0.0
    %8922 = vmatpush1.msra.mxu0 0.0
    %8923 = vmatprep.subr.mxu0 %v8551
    %8924 = vmatpush1.msra.mxu0 %v8550
    %8925 = vmatprep.subr.mxu0 %v8549
    %8926 = vmatpush1.msra.mxu0 %v8548
    %8927 = vmatprep.subr.mxu0 %v8547
    %8928 = vmatpush1.msra.mxu0 %v8546
    %8929 = vmatprep.subr.mxu0 %v8545
    %8930 = vmatpush1.msra.mxu0 %v8544
    %8931 = vmatprep.subr.mxu0 %v8543
    %8932 = vmatpush1.msra.mxu0 %v8542
    %8933 = vmatprep.subr.mxu0 %v8541
    %8934 = vmatpush1.msra.mxu0 %v8540
    %8935 = vmatprep.subr.mxu0 %v8539
    %8936 = vmatpush1.msra.mxu0 %v8538
    %8937 = vmatprep.subr.mxu0 %v8537
    %8938 = vmatpush1.msra.mxu0 %v8536
    %8939 = vmatprep.subr.mxu0 0.0
    %8940 = vmatpush2.msra.mxu0 0.0
    %8941 = vmatprep.subr.mxu0 0.0
    %8942 = vmatpush2.msra.mxu0 0.0
    %8943 = vmatprep.subr.mxu0 0.0
    %8944 = vmatpush2.msra.mxu0 0.0
    %8945 = vmatprep.subr.mxu0 0.0
    %8946 = vmatpush2.msra.mxu0 0.0
    %8947 = vmatprep.subr.mxu0 0.0
    %8948 = vmatpush2.msra.mxu0 0.0
    %8949 = vmatprep.subr.mxu0 0.0
    %8950 = vmatpush2.msra.mxu0 0.0
    %8951 = vmatprep.subr.mxu0 0.0
    %8952 = vmatpush2.msra.mxu0 0.0
    %8953 = vmatprep.subr.mxu0 0.0
    %8954 = vmatpush2.msra.mxu0 0.0
    %8955 = vmatprep.subr.mxu0 0.0
    %8956 = vmatpush2.msra.mxu0 0.0
    %8957 = vmatprep.subr.mxu0 0.0
    %8958 = vmatpush2.msra.mxu0 0.0
    %8959 = vmatprep.subr.mxu0 0.0
    %8960 = vmatpush2.msra.mxu0 0.0
    %8961 = vmatprep.subr.mxu0 0.0
    %8962 = vmatpush2.msra.mxu0 0.0
    %8963 = vmatprep.subr.mxu0 0.0
    %8964 = vmatpush2.msra.mxu0 0.0
    %8965 = vmatprep.subr.mxu0 0.0
    %8966 = vmatpush2.msra.mxu0 0.0
    %8967 = vmatprep.subr.mxu0 0.0
    %8968 = vmatpush2.msra.mxu0 0.0
    %8969 = vmatprep.subr.mxu0 0.0
    %8970 = vmatpush2.msra.mxu0 0.0
    %8971 = vmatprep.mubr.f32.mxu0 0.0
    %8972 = vmatmul.mubr.f32.gmra.mxu0 %v8905
    %v8973 = vpop.f32.mrf.mxu0
    %v8974 = vadd.f32 0.0, %v8973
    %v8975 = vpop.f32.mrf.mxu0
    %v8976 = vadd.f32 0.0, %v8975
    %8977 = vdwg.mxu0
    %v8978 = vadd.f32 %v8974, %v8893
    %v8979 = vadd.f32 %v8976, %v8557
    %v8980 = vxor.u32 %v8978, 2147483648
    %v8981 = vmul.f32 %v8980, 1.442695
    %v8982 = vpow.pop %v8981
    %v8983 = vadd.f32 %v8982, 1.0
    %v8984 = vrcp.pop %v8983
    %v8985 = vmul.f32 1.0, %v8984
    %v8986 = vtanh.pop %v8978
    %8988 = vrot.lane.b32.xlu0 %v8591, 32
    %v8989 = vpop.permute.xlu0 %8988
    %v8991 = vmul.f32 %v8985, %v8989
    %8993 = vrot.lane.b32.xlu0 %v8986, 64
    %v8994 = vpop.permute.xlu0 %8993
    %v8996 = vmul.f32 %v8985, %v8994
    %8998 = vrot.lane.b32.xlu0 %v8996, 32
    %v8999 = vpop.permute.xlu0 %8998
    %v9001 = vadd.f32 %v8991, %v8999
    %v9002 = vtanh.pop %v9001
    %9004 = vrot.lane.b32.xlu0 %v9002, 64
    %v9005 = vpop.permute.xlu0 %9004
    %v9007 = vmul.f32 %v8985, %v9005
    %v9008 = vxor.u32 %v8979, 2147483648
    %v9009 = vmul.f32 %v9008, 1.442695
    %v9010 = vpow.pop %v9009
    %v9011 = vadd.f32 %v9010, 1.0
    %v9012 = vrcp.pop %v9011
    %v9013 = vmul.f32 1.0, %v9012
    %v9014 = vtanh.pop %v8979
    %v9015 = vmul.f32 %v9013, %v8593
    %9017 = vrot.lane.b32.xlu0 %v9014, 64
    %v9018 = vpop.permute.xlu0 %9017
    %v9020 = vmul.f32 %v9013, %v9018
    %9022 = vrot.lane.b32.xlu0 %v9020, 32
    %v9023 = vpop.permute.xlu0 %9022
    %v9025 = vadd.f32 %v9015, %v9023
    %v9026 = vtanh.pop %v9025
    %9028 = vrot.lane.b32.xlu0 %v9026, 64
    %v9029 = vpop.permute.xlu0 %9028
    %v9031 = vmul.f32 %v9013, %v9029
    %9033 = vrot.lane.b32.xlu0 %v9007, 32
    %v9034 = vpop.permute.xlu0 %9033
    %9037 = vrot.lane.b32.xlu0 %v9031, 64
    %v9038 = vpop.permute.xlu0 %9037
    %v9040 = vsel %vm8902, %v9034, %v9038
    %v9042 = vsel %vm638, %v9040, 0
    %9044 = vmatprep.subr.mxu0 0.0
    %9045 = vmatpush1.msra.mxu0 0.0
    %9046 = vmatprep.subr.mxu0 0.0
    %9047 = vmatpush1.msra.mxu0 0.0
    %9048 = vmatprep.subr.mxu0 0.0
    %9049 = vmatpush1.msra.mxu0 0.0
    %9050 = vmatprep.subr.mxu0 0.0
    %9051 = vmatpush1.msra.mxu0 0.0
    %9052 = vmatprep.subr.mxu0 0.0
    %9053 = vmatpush1.msra.mxu0 0.0
    %9054 = vmatprep.subr.mxu0 0.0
    %9055 = vmatpush1.msra.mxu0 0.0
    %9056 = vmatprep.subr.mxu0 0.0
    %9057 = vmatpush1.msra.mxu0 0.0
    %9058 = vmatprep.subr.mxu0 0.0
    %9059 = vmatpush1.msra.mxu0 0.0
    %9060 = vmatprep.subr.mxu0 %v8551
    %9061 = vmatpush1.msra.mxu0 %v8550
    %9062 = vmatprep.subr.mxu0 %v8549
    %9063 = vmatpush1.msra.mxu0 %v8548
    %9064 = vmatprep.subr.mxu0 %v8547
    %9065 = vmatpush1.msra.mxu0 %v8546
    %9066 = vmatprep.subr.mxu0 %v8545
    %9067 = vmatpush1.msra.mxu0 %v8544
    %9068 = vmatprep.subr.mxu0 %v8543
    %9069 = vmatpush1.msra.mxu0 %v8542
    %9070 = vmatprep.subr.mxu0 %v8541
    %9071 = vmatpush1.msra.mxu0 %v8540
    %9072 = vmatprep.subr.mxu0 %v8539
    %9073 = vmatpush1.msra.mxu0 %v8538
    %9074 = vmatprep.subr.mxu0 %v8537
    %9075 = vmatpush1.msra.mxu0 %v8536
    %9076 = vmatprep.subr.mxu0 0.0
    %9077 = vmatpush2.msra.mxu0 0.0
    %9078 = vmatprep.subr.mxu0 0.0
    %9079 = vmatpush2.msra.mxu0 0.0
    %9080 = vmatprep.subr.mxu0 0.0
    %9081 = vmatpush2.msra.mxu0 0.0
    %9082 = vmatprep.subr.mxu0 0.0
    %9083 = vmatpush2.msra.mxu0 0.0
    %9084 = vmatprep.subr.mxu0 0.0
    %9085 = vmatpush2.msra.mxu0 0.0
    %9086 = vmatprep.subr.mxu0 0.0
    %9087 = vmatpush2.msra.mxu0 0.0
    %9088 = vmatprep.subr.mxu0 0.0
    %9089 = vmatpush2.msra.mxu0 0.0
    %9090 = vmatprep.subr.mxu0 0.0
    %9091 = vmatpush2.msra.mxu0 0.0
    %9092 = vmatprep.subr.mxu0 0.0
    %9093 = vmatpush2.msra.mxu0 0.0
    %9094 = vmatprep.subr.mxu0 0.0
    %9095 = vmatpush2.msra.mxu0 0.0
    %9096 = vmatprep.subr.mxu0 0.0
    %9097 = vmatpush2.msra.mxu0 0.0
    %9098 = vmatprep.subr.mxu0 0.0
    %9099 = vmatpush2.msra.mxu0 0.0
    %9100 = vmatprep.subr.mxu0 0.0
    %9101 = vmatpush2.msra.mxu0 0.0
    %9102 = vmatprep.subr.mxu0 0.0
    %9103 = vmatpush2.msra.mxu0 0.0
    %9104 = vmatprep.subr.mxu0 0.0
    %9105 = vmatpush2.msra.mxu0 0.0
    %9106 = vmatprep.subr.mxu0 0.0
    %9107 = vmatpush2.msra.mxu0 0.0
    %9108 = vmatprep.mubr.f32.mxu0 0.0
    %9109 = vmatmul.mubr.f32.gmra.mxu0 %v9042
    %v9110 = vpop.f32.mrf.mxu0
    %v9111 = vpop.f32.mrf.mxu0
    %v9112 = vadd.f32 0.0, %v9111
    %9113 = vdwg.mxu0
    %v9114 = vadd.f32 %v9112, %v8557
    %v9115 = vxor.u32 %v9114, 2147483648
    %v9116 = vmul.f32 %v9115, 1.442695
    %v9117 = vpow.pop %v9116
    %v9118 = vadd.f32 %v9117, 1.0
    %v9119 = vrcp.pop %v9118
    %v9120 = vmul.f32 1.0, %v9119
    %v9121 = vtanh.pop %v9114
    %v9122 = vmul.f32 %v9120, %v9025
    %9124 = vrot.lane.b32.xlu0 %v9121, 64
    %v9125 = vpop.permute.xlu0 %9124
    %v9127 = vmul.f32 %v9120, %v9125
    %9129 = vrot.lane.b32.xlu0 %v9127, 32
    %v9130 = vpop.permute.xlu0 %9129
    %v9132 = vadd.f32 %v9122, %v9130
    %v9133 = vtanh.pop %v9132
    %9135 = vrot.lane.b32.xlu0 %v9133, 64
    %v9136 = vpop.permute.xlu0 %9135
    %v9138 = vmul.f32 %v9120, %v9136
    %v9139 = vld [vmem:[%s11] sm:$0xff]
    %v9140 = vld [vmem:[%s11 + $0x8] sm:$0xff]
    %v9141 = vld [vmem:[%s11 + $0x10] sm:$0xff]
    %v9142 = vld [vmem:[%s11 + $0x18] sm:$0xff]
    %v9143 = vld [vmem:[%s12] sm:$0x1]
    %v9145 = vlaneseq
    %v9146 = vshrl.u32 %v9145, 7
    %v9147 = vsub.s32 0, %v9146
    %v9148 = vrot.slane %v9143, %v9147
    %9151 = vrot.lane.b32.xlu0 %v9138, 32
    %v9152 = vpop.permute.xlu0 %9151
    %v9153 = vsel %vm8902, %v9152, 0
    %9155 = vmatprep.subr.mxu0 0.0
    %9156 = vmatpush1.msra.mxu0 0.0
    %9157 = vmatprep.subr.mxu0 0.0
    %9158 = vmatpush1.msra.mxu0 0.0
    %9159 = vmatprep.subr.mxu0 0.0
    %9160 = vmatpush1.msra.mxu0 0.0
    %9161 = vmatprep.subr.mxu0 0.0
    %9162 = vmatpush1.msra.mxu0 0.0
    %9163 = vmatprep.subr.mxu0 0.0
    %9164 = vmatpush1.msra.mxu0 0.0
    %9165 = vmatprep.subr.mxu0 0.0
    %9166 = vmatpush1.msra.mxu0 0.0
    %9167 = vmatprep.subr.mxu0 0.0
    %9168 = vmatpush1.msra.mxu0 0.0
    %9169 = vmatprep.subr.mxu0 0.0
    %9170 = vmatpush1.msra.mxu0 0.0
    %9171 = vmatprep.subr.mxu0 0.0
    %9172 = vmatpush1.msra.mxu0 0.0
    %9173 = vmatprep.subr.mxu0 0.0
    %9174 = vmatpush1.msra.mxu0 0.0
    %9175 = vmatprep.subr.mxu0 0.0
    %9176 = vmatpush1.msra.mxu0 0.0
    %9177 = vmatprep.subr.mxu0 0.0
    %9178 = vmatpush1.msra.mxu0 0.0
    %9179 = vmatprep.subr.mxu0 0.0
    %9180 = vmatpush1.msra.mxu0 %v9142
    %9181 = vmatprep.subr.mxu0 0.0
    %9182 = vmatpush1.msra.mxu0 %v9141
    %9183 = vmatprep.subr.mxu0 0.0
    %9184 = vmatpush1.msra.mxu0 %v9140
    %9185 = vmatprep.subr.mxu0 0.0
    %9186 = vmatpush1.msra.mxu0 %v9139
    %9187 = vmatprep.subr.mxu0 0.0
    %9188 = vmatpush2.msra.mxu0 0.0
    %9189 = vmatprep.subr.mxu0 0.0
    %9190 = vmatpush2.msra.mxu0 0.0
    %9191 = vmatprep.subr.mxu0 0.0
    %9192 = vmatpush2.msra.mxu0 0.0
    %9193 = vmatprep.subr.mxu0 0.0
    %9194 = vmatpush2.msra.mxu0 0.0
    %9195 = vmatprep.subr.mxu0 0.0
    %9196 = vmatpush2.msra.mxu0 0.0
    %9197 = vmatprep.subr.mxu0 0.0
    %9198 = vmatpush2.msra.mxu0 0.0
    %9199 = vmatprep.subr.mxu0 0.0
    %9200 = vmatpush2.msra.mxu0 0.0
    %9201 = vmatprep.subr.mxu0 0.0
    %9202 = vmatpush2.msra.mxu0 0.0
    %9203 = vmatprep.subr.mxu0 0.0
    %9204 = vmatpush2.msra.mxu0 0.0
    %9205 = vmatprep.subr.mxu0 0.0
    %9206 = vmatpush2.msra.mxu0 0.0
    %9207 = vmatprep.subr.mxu0 0.0
    %9208 = vmatpush2.msra.mxu0 0.0
    %9209 = vmatprep.subr.mxu0 0.0
    %9210 = vmatpush2.msra.mxu0 0.0
    %9211 = vmatprep.subr.mxu0 0.0
    %9212 = vmatpush2.msra.mxu0 0.0
    %9213 = vmatprep.subr.mxu0 0.0
    %9214 = vmatpush2.msra.mxu0 0.0
    %9215 = vmatprep.subr.mxu0 0.0
    %9216 = vmatpush2.msra.mxu0 0.0
    %9217 = vmatprep.subr.mxu0 0.0
    %9218 = vmatpush2.msra.mxu0 0.0
    %9219 = vmatprep.mubr.f32.mxu0 0.0
    %9220 = vmatmul.mubr.f32.gmra.mxu0 %v9153
    %v9221 = vpop.f32.mrf.mxu0
    %v9222 = vadd.f32 %v9148, %v9221
    %v9223 = vpop.f32.mrf.mxu0
    %9224 = vdwg.mxu0
    %vm9225 = vcmask 74752
    %9226 = vst.msk [vmem:[#allocation17] sm:$0x3] %vm9225, %v9222
    // Predicated region
    $region81: #{tpu_custom_call.1} parent=1 // pred_check
      _
    $region82: #{tpu_custom_call.1} parent=1 // pred_check_branch
      %9228 = sbr.rel (0) target = $region84
    $region83: #{tpu_custom_call.1} parent=1 // pred_region
      %s9230 = ssub.s32 32, 32
      %9231 = vsyncadd [#allocation10], %s9230
      %s9233 = sshll.u32 [#allocation17], 4
      %s9234 = int_to_ptr.vmem [resolvable:$true] %s9233
      %9236 = dma.vmem_to_hbm [thread:$0]  %s9234, 32, %s13, [#allocation10]
    $region84: #{tpu_custom_call.1} parent=1 // pred_fallthru
      _
    // Predicated region
    $region85: #{tpu_custom_call.1} parent=1 // pred_check
      _
    $region86: #{tpu_custom_call.1} parent=1 // pred_check_branch
      %9238 = sbr.rel (0) target = $region88
    $region87: #{tpu_custom_call.1} parent=1 // pred_region
      %9239 = dma.done [#allocation10], 32
    $region88: #{tpu_custom_call.1} parent=1 // pred_fallthru
      _
    %9240 = vsyncpa [#allocation9], 1
    %9241 = vsyncpa [#allocation12], 1
    %9242 = vsyncpa [#allocation15], 1
    %9243 = vsyncpa [#allocation10], 1

</llo_original>
